<compile_context>
chip_gen: v6e
topology: v6e:2x2x1
jax: 0.10.0
libtpu: 0.0.40
codegen_flags: <defaults>
</compile_context>

<pallas_src>
import functools

import jax
import jax.numpy as jnp
from jax import lax
from jax.experimental import pallas as pl
from jax.experimental.pallas import tpu as pltpu

# ----------------------- module hyper-parameters (defaults) ------------------
N_BINS = 257
SIGMA = 0.5
LOSS_WEIGHT = 1.0


def _pick_tile_h(H, W, n_bins, budget_bytes=6 << 20):
    """Largest H-tile (multiple of 8, dividing H) whose q-tile fits the budget."""
    per_row = n_bins * W * 4
    max_th = max(8, budget_bytes // per_row)
    if H <= max_th:
        return H
    th = (min(max_th, H) // 8) * 8
    while th >= 8:
        if H % th == 0:
            return th
        th -= 8
    return H  # fallback: whole H


def _tie_kd_kernel(pred_ref, gt_ref, centers_ref, q_ref, acc_ref, *,
                   compute_sig, inv_two_sigma_sq):
    t = pl.program_id(1)

    gt = gt_ref[0, 0]                 # (tile_h, W)
    c = centers_ref[0]                # (N_BINS, 1, 1)
    q = q_ref[0]                      # (N_BINS, tile_h, W) student probabilities

    # ---------------- L_DPM: log-domain teacher DPM + KL divergence ----------
    # p_b = softmax_b(s_b) with s_b = -(d - c_b)^2 / (2 sigma^2)
    s = -((gt[None, :, :] - c) ** 2) * inv_two_sigma_sq   # (NB, tile_h, W)
    m = jnp.max(s, axis=0)                                # (tile_h, W)
    sm = s - m[None, :, :]
    e = jnp.exp(sm)                                       # (NB, tile_h, W)
    z = jnp.sum(e, axis=0)                                # (tile_h, W), >= 1
    # KL(p || q) = (1/z) * sum_b e_b * (sm_b - log q_b) - log z
    num = jnp.sum(e * (sm - jnp.log(q)), axis=0)          # (tile_h, W)
    kl = num / z - jnp.log(z)
    dpm_tile = jnp.sum(kl)

    # Lane-dense accumulator vector: [dpm_sum, g_sum, g2_sum, n_valid, 0, ...]
    lane = lax.broadcasted_iota(jnp.int32, (1, 128), 1)
    contrib = jnp.where(lane == 0, dpm_tile, 0.0)

    # ---------------- L_DEPTH: SigLoss partial sums (skipped if weight==1) ---
    if compute_sig:
        pred = pred_ref[0, 0]
        valid = gt > 0.0
        g = jnp.where(
            valid,
            jnp.log(jnp.maximum(pred, 1e-6)) - jnp.log(jnp.where(valid, gt, 1.0)),
            0.0)
        contrib = (contrib
                   + jnp.where(lane == 1, jnp.sum(g), 0.0)
                   + jnp.where(lane == 2, jnp.sum(g * g), 0.0)
                   + jnp.where(lane == 3, jnp.sum(valid.astype(jnp.float32)), 0.0))

    @pl.when(t == 0)
    def _():
        acc_ref[0] = contrib

    @pl.when(t > 0)
    def _():
        acc_ref[0] = acc_ref[0] + contrib


def tie_kd_loss(depth_pred, kd_gt, bin_edges, out, *,
                loss_weight=LOSS_WEIGHT, sigma=SIGMA,
                tile_h=None, vmem_limit_bytes=48 << 20):
    """depth_pred: (B,1,H,W)  kd_gt: (B,1,H,W)  bin_edges: (B, N_BINS+1)
       out: (B, N_BINS, H, W) student bin probabilities (softmax over dim 1)."""
    B, _, H, W = depth_pred.shape
    NB = out.shape[1]
    compute_sig = (loss_weight != 1.0)

    pred = depth_pred.astype(jnp.float32)
    gt = kd_gt.astype(jnp.float32)
    q = out.astype(jnp.float32)

    # Bin centers from edges (Adabins convention); broadcast-friendly shape.
    centers = 0.5 * (bin_edges[:, :-1] + bin_edges[:, 1:]).astype(jnp.float32)
    centers_b = centers.reshape(B, NB, 1, 1)

    if tile_h is None:
        tile_h = _pick_tile_h(H, W, NB)
    assert H % tile_h == 0, (H, tile_h)
    T = H // tile_h

    kernel = functools.partial(
        _tie_kd_kernel,
        compute_sig=compute_sig,
        inv_two_sigma_sq=1.0 / (2.0 * sigma * sigma))

    acc = pl.pallas_call(
        kernel,
        out_shape=jax.ShapeDtypeStruct((B, 1, 128), jnp.float32),
        grid=(B, T),
        in_specs=[
            pl.BlockSpec((1, 1, tile_h, W), lambda b, t: (b, 0, t, 0)),    # depth_pred
            pl.BlockSpec((1, 1, tile_h, W), lambda b, t: (b, 0, t, 0)),    # kd_gt
            pl.BlockSpec((1, NB, 1, 1), lambda b, t: (b, 0, 0, 0)),        # centers
            pl.BlockSpec((1, NB, tile_h, W), lambda b, t: (b, 0, t, 0)),   # out / q
        ],
        out_specs=pl.BlockSpec((1, 1, 128), lambda b, t: (b, 0, 0)),
        compiler_params=pltpu.CompilerParams(
            dimension_semantics=("parallel", "arbitrary"),
            vmem_limit_bytes=vmem_limit_bytes),
        cost_estimate=pl.CostEstimate(
            flops=8 * B * NB * H * W,
            transcendentals=2 * B * NB * H * W,
            bytes_accessed=4 * B * NB * H * W + 12 * B * H * W),
    )(pred, gt, centers_b, q)

    dpm_mean = jnp.sum(acc[:, 0, 0]) / float(B * H * W)
    if compute_sig:
        n = jnp.maximum(jnp.sum(acc[:, 0, 3]), 1.0)
        mg = jnp.sum(acc[:, 0, 1]) / n
        mg2 = jnp.sum(acc[:, 0, 2]) / n
        sig = jnp.sqrt(jnp.maximum(mg2 - 0.5 * mg * mg, 0.0))
    else:
        sig = 0.0
    return 10.0 * (loss_weight * dpm_mean + (1.0 - loss_weight) * sig)


def tie_kd_loss_ref(depth_pred, kd_gt, bin_edges, out,
                    loss_weight=LOSS_WEIGHT, sigma=SIGMA):
    """Pure-JAX reference for sanity checking."""
    B, _, H, W = depth_pred.shape
    nb = out.shape[1]
    pred = depth_pred.reshape(B, H * W).astype(jnp.float32)
    gt = kd_gt.reshape(B, H * W).astype(jnp.float32)
    centers = 0.5 * (bin_edges[:, :-1] + bin_edges[:, 1:]).astype(jnp.float32)
    q = jnp.transpose(out, (0, 2, 3, 1)).reshape(B, H * W, nb).astype(jnp.float32)
    w = jnp.exp(-((gt[:, :, None] - centers[:, None, :]) ** 2)
                / (2.0 * sigma * sigma))
    p = w / jnp.sum(w, axis=-1, keepdims=True)
    kl_terms = jnp.where(p > 0, p * (jnp.log(jnp.where(p > 0, p, 1.0))
                                     - jnp.log(q)), 0.0)
    dpm_mean = jnp.mean(jnp.sum(kl_terms, axis=-1))
    valid = gt > 0
    g = jnp.where(valid,
                  jnp.log(jnp.where(valid, jnp.maximum(pred, 1e-6), 1.0))
                  - jnp.log(jnp.where(valid, gt, 1.0)), 0.0)
    n = jnp.maximum(jnp.sum(valid.astype(jnp.float32)), 1.0)
    mg, mg2 = jnp.sum(g) / n, jnp.sum(g * g) / n
    sig = jnp.sqrt(jnp.maximum(mg2 - 0.5 * mg * mg, 0.0))
    return 10.0 * (loss_weight * dpm_mean + (1.0 - loss_weight) * sig)


if __name__ == "__main__":
    B, H, W = 2, 16, 16
    key = jax.random.PRNGKey(0)
    k1, k2, k3 = jax.random.split(key, 3)

    depth_pred = jax.random.uniform(k1, (B, 1, H, W), jnp.float32, 0.1, 10.0)
    kd_gt = jax.random.uniform(k2, (B, 1, H, W), jnp.float32, 0.1, 10.0)
    # Monotonic bin edges in [0.1, 10] per batch element.
    bin_edges = jnp.broadcast_to(
        jnp.linspace(0.1, 10.0, N_BINS + 1, dtype=jnp.float32), (B, N_BINS + 1))
    logits = jax.random.normal(k3, (B, N_BINS, H, W), jnp.float32)
    out = jax.nn.softmax(logits, axis=1)   # student bin probabilities

    # Default module config (loss_weight = 1.0); tile_h=8 exercises multi-tile
    # accumulation (grid = (2, 2)).
    loss = tie_kd_loss(depth_pred, kd_gt, bin_edges, out, tile_h=8)
    loss = jax.block_until_ready(loss)
    ref = tie_kd_loss_ref(depth_pred, kd_gt, bin_edges, out)
    assert jnp.allclose(loss, ref, rtol=1e-3, atol=1e-3), (loss, ref)

    # Non-default loss_weight exercises the SigLoss branch as well.
    loss_w = jax.block_until_ready(
        tie_kd_loss(depth_pred, kd_gt, bin_edges, out, loss_weight=0.5, tile_h=8))
    ref_w = tie_kd_loss_ref(depth_pred, kd_gt, bin_edges, out, loss_weight=0.5)
    assert jnp.allclose(loss_w, ref_w, rtol=1e-3, atol=1e-3), (loss_w, ref_w)

    print("KERNEL_OK")
</pallas_src>

<mosaic_0001>
module attributes {stable_mosaic.version = 11 : i64} {
  func.func @_tie_kd_kernel(%arg0: i32, %arg1: i32, %arg2: memref<1x1x8x16xf32, #tpu.memory_space<vmem>>, %arg3: memref<1x1x8x16xf32, #tpu.memory_space<vmem>>, %arg4: memref<1x257x1x1xf32, #tpu.memory_space<vmem>>, %arg5: memref<1x257x8x16xf32, #tpu.memory_space<vmem>>, %arg6: memref<1x1x128xf32, #tpu.memory_space<vmem>>) attributes {dimension_semantics = [#tpu.dimension_semantics<parallel>, #tpu.dimension_semantics<arbitrary>], iteration_bounds = array<i64: 2, 2>, scalar_prefetch = 0 : i64, scratch_operands = 0 : i64, tpu.core_type = #tpu.core_type<tc>, window_params = [{transform_indices = @transform_0, window_bounds = array<i64: 1, 1, 8, 16>}, {transform_indices = @transform_1, window_bounds = array<i64: 1, 1, 8, 16>}, {transform_indices = @transform_2, window_bounds = array<i64: 1, 257, 1, 1>}, {transform_indices = @transform_3, window_bounds = array<i64: 1, 257, 8, 16>}, {transform_indices = @transform_4, window_bounds = array<i64: 1, 1, 128>}]} {
    %c0 = arith.constant 0 : index
    %c0_0 = arith.constant 0 : index
    %c0_1 = arith.constant 0 : index
    %c0_2 = arith.constant 0 : index
    %0 = vector.load %arg3[%c0, %c0_0, %c0_1, %c0_2] : memref<1x1x8x16xf32, #tpu.memory_space<vmem>>, vector<1x1x8x16xf32>
    %1 = vector.shape_cast %0 : vector<1x1x8x16xf32> to vector<8x16xf32>
    %c0_3 = arith.constant 0 : index
    %c0_4 = arith.constant 0 : index
    %c0_5 = arith.constant 0 : index
    %c0_6 = arith.constant 0 : index
    %2 = vector.load %arg4[%c0_3, %c0_4, %c0_5, %c0_6] : memref<1x257x1x1xf32, #tpu.memory_space<vmem>>, vector<1x257x1x1xf32>
    %3 = vector.shape_cast %2 : vector<1x257x1x1xf32> to vector<257x1x1xf32>
    %c0_7 = arith.constant 0 : index
    %c0_8 = arith.constant 0 : index
    %c0_9 = arith.constant 0 : index
    %c0_10 = arith.constant 0 : index
    %4 = vector.load %arg5[%c0_7, %c0_8, %c0_9, %c0_10] : memref<1x257x8x16xf32, #tpu.memory_space<vmem>>, vector<1x257x8x16xf32>
    %5 = vector.shape_cast %4 : vector<1x257x8x16xf32> to vector<257x8x16xf32>
    %6 = vector.shape_cast %1 : vector<8x16xf32> to vector<1x8x16xf32>
    %7 = vector.broadcast %6 : vector<1x8x16xf32> to vector<257x8x16xf32>
    %8 = vector.broadcast %3 : vector<257x1x1xf32> to vector<257x8x16xf32>
    %9 = arith.subf %7, %8 : vector<257x8x16xf32>
    %10 = arith.mulf %9, %9 : vector<257x8x16xf32>
    %cst = arith.constant 0.000000e+00 : f32
    %11 = vector.broadcast %cst : f32 to vector<257x8x16xf32>
    %12 = arith.subf %11, %10 : vector<257x8x16xf32>
    %cst_11 = arith.constant 2.000000e+00 : f32
    %13 = vector.broadcast %cst_11 : f32 to vector<257x8x16xf32>
    %14 = arith.mulf %12, %13 : vector<257x8x16xf32>
    %cst_12 = arith.constant dense<0xFF800000> : vector<8x16xf32>
    %15 = vector.multi_reduction <maximumf>, %14, %cst_12 [0] : vector<257x8x16xf32> to vector<8x16xf32>
    %16 = vector.shape_cast %15 : vector<8x16xf32> to vector<1x8x16xf32>
    %17 = vector.broadcast %16 : vector<1x8x16xf32> to vector<257x8x16xf32>
    %18 = arith.subf %14, %17 : vector<257x8x16xf32>
    %19 = math.exp %18 : vector<257x8x16xf32>
    %cst_13 = arith.constant dense<0.000000e+00> : vector<8x16xf32>
    %20 = vector.multi_reduction <add>, %19, %cst_13 [0] : vector<257x8x16xf32> to vector<8x16xf32>
    %21 = math.log %5 : vector<257x8x16xf32>
    %22 = arith.subf %18, %21 : vector<257x8x16xf32>
    %23 = arith.mulf %19, %22 : vector<257x8x16xf32>
    %cst_14 = arith.constant dense<0.000000e+00> : vector<8x16xf32>
    %24 = vector.multi_reduction <add>, %23, %cst_14 [0] : vector<257x8x16xf32> to vector<8x16xf32>
    %25 = arith.divf %24, %20 : vector<8x16xf32>
    %26 = math.log %20 : vector<8x16xf32>
    %27 = arith.subf %25, %26 : vector<8x16xf32>
    %28 = vector.shape_cast %27 : vector<8x16xf32> to vector<1x8x16xf32>
    %cst_15 = arith.constant dense<0.000000e+00> : vector<1xf32>
    %29 = vector.multi_reduction <add>, %28, %cst_15 [1, 2] : vector<1x8x16xf32> to vector<1xf32>
    %30 = vector.shape_cast %29 : vector<1xf32> to vector<1x1x1xf32>
    %31 = vector.extract %30[0, 0, 0] : f32 from vector<1x1x1xf32>
    %32 = tpu.iota {dimensions = array<i32: 1>} : vector<1x128xi32>
    %c0_i32 = arith.constant 0 : i32
    %33 = vector.broadcast %c0_i32 : i32 to vector<1x128xi32>
    %34 = arith.cmpi eq, %32, %33 : vector<1x128xi32>
    %cst_16 = arith.constant 0.000000e+00 : f32
    %35 = vector.broadcast %31 : f32 to vector<1x128xf32>
    %36 = vector.broadcast %cst_16 : f32 to vector<1x128xf32>
    %37 = arith.select %34, %35, %36 : vector<1x128xi1>, vector<1x128xf32>
    %c0_i32_17 = arith.constant 0 : i32
    %38 = arith.cmpi eq, %arg1, %c0_i32_17 : i32
    %39 = arith.extui %38 : i1 to i32
    %c0_i32_18 = arith.constant 0 : i32
    %40 = arith.cmpi ne, %39, %c0_i32_18 : i32
    scf.if %40 {
      %c0_21 = arith.constant 0 : index
      %c0_22 = arith.constant 0 : index
      %c0_23 = arith.constant 0 : index
      %44 = vector.load %arg6[%c0_21, %c0_22, %c0_23] : memref<1x1x128xf32, #tpu.memory_space<vmem>>, vector<1x1x128xf32>
      %45 = vector.shape_cast %44 : vector<1x1x128xf32> to vector<1x128xf32>
      %46 = vector.shape_cast %37 : vector<1x128xf32> to vector<1x1x128xf32>
      tpu.vector_store %arg6[%c0_21, %c0_22, %c0_23], %46 {strides = array<i32>} : memref<1x1x128xf32, #tpu.memory_space<vmem>>, vector<1x1x128xf32>,
    } else {
    }
    %c0_i32_19 = arith.constant 0 : i32
    %41 = arith.cmpi sgt, %arg1, %c0_i32_19 : i32
    %42 = arith.extui %41 : i1 to i32
    %c0_i32_20 = arith.constant 0 : i32
    %43 = arith.cmpi ne, %42, %c0_i32_20 : i32
    scf.if %43 {
      %c0_21 = arith.constant 0 : index
      %c0_22 = arith.constant 0 : index
      %c0_23 = arith.constant 0 : index
      %44 = vector.load %arg6[%c0_21, %c0_22, %c0_23] : memref<1x1x128xf32, #tpu.memory_space<vmem>>, vector<1x1x128xf32>
      %45 = vector.shape_cast %44 : vector<1x1x128xf32> to vector<1x128xf32>
      %46 = arith.addf %45, %37 : vector<1x128xf32>
      %c0_24 = arith.constant 0 : index
      %c0_25 = arith.constant 0 : index
      %c0_26 = arith.constant 0 : index
      %47 = vector.load %arg6[%c0_24, %c0_25, %c0_26] : memref<1x1x128xf32, #tpu.memory_space<vmem>>, vector<1x1x128xf32>
      %48 = vector.shape_cast %47 : vector<1x1x128xf32> to vector<1x128xf32>
      %49 = vector.shape_cast %46 : vector<1x128xf32> to vector<1x1x128xf32>
      tpu.vector_store %arg6[%c0_24, %c0_25, %c0_26], %49 {strides = array<i32>} : memref<1x1x128xf32, #tpu.memory_space<vmem>>, vector<1x1x128xf32>,
    } else {
    }
    return
  }
  func.func @transform_0(%arg0: i32, %arg1: i32) -> (i32, i32, i32, i32) {
    %c0_i32 = arith.constant 0 : i32
    %c0_i32_0 = arith.constant 0 : i32
    %c0_i32_1 = arith.constant 0 : i32
    return %arg0, %c0_i32, %arg1, %c0_i32_0 : i32, i32, i32, i32
  }
  func.func @transform_1(%arg0: i32, %arg1: i32) -> (i32, i32, i32, i32) {
    %c0_i32 = arith.constant 0 : i32
    %c0_i32_0 = arith.constant 0 : i32
    %c0_i32_1 = arith.constant 0 : i32
    return %arg0, %c0_i32, %arg1, %c0_i32_0 : i32, i32, i32, i32
  }
  func.func @transform_2(%arg0: i32, %arg1: i32) -> (i32, i32, i32, i32) {
    %c0_i32 = arith.constant 0 : i32
    %c0_i32_0 = arith.constant 0 : i32
    %c0_i32_1 = arith.constant 0 : i32
    %c0_i32_2 = arith.constant 0 : i32
    return %arg0, %c0_i32, %c0_i32_0, %c0_i32_1 : i32, i32, i32, i32
  }
  func.func @transform_3(%arg0: i32, %arg1: i32) -> (i32, i32, i32, i32) {
    %c0_i32 = arith.constant 0 : i32
    %c0_i32_0 = arith.constant 0 : i32
    %c0_i32_1 = arith.constant 0 : i32
    return %arg0, %c0_i32, %arg1, %c0_i32_0 : i32, i32, i32, i32
  }
  func.func @transform_4(%arg0: i32, %arg1: i32) -> (i32, i32, i32) {
    %c0_i32 = arith.constant 0 : i32
    %c0_i32_0 = arith.constant 0 : i32
    %c0_i32_1 = arith.constant 0 : i32
    return %arg0, %c0_i32, %c0_i32_0 : i32, i32, i32
  }
}

</mosaic_0001>

<llo_original>
// kernel: tpu_custom_call.1
$region0: #{tpu_custom_call.1}
  #allocation0 [shape = 'u32[]', space=smem, size = 0x4, offset = 0x4, fixed_abs, tag = 'smem constant byte address 0x4 - core index']
  #allocation1 [shape = 'u32[144,128]{1,0:T(1,128)}', space=vmem, size = 0x12000, scoped, tag = 'internal scratch']
  %s0 = inlined_call_operand.vmem [shape: f32[2,1,16,16], index: 0, kind: input, shape index: {}]
  %s1 = inlined_call_operand.vmem [shape: f32[2,1,16,16], index: 1, kind: input, shape index: {}]
  %s2 = inlined_call_operand.vmem [shape: f32[2,257,1,1], index: 2, kind: input, shape index: {}]
  %s3 = inlined_call_operand.vmem [shape: f32[2,257,16,16], index: 3, kind: input, shape index: {}]
  %s4 = inlined_call_operand.hbm [shape: f32[2,1,128], index: 4, kind: output, shape index: {}]
  %s5 = sld [smem:[#allocation0]]
  $region95: #{tpu_custom_call.1} parent=0
    _
  %s7 = ssub.s32 1, %s5
  %s8 = scalar_select 0, %s7, %s5
  $region1: #{tpu_custom_call.1} parent=0
    #allocation2 [shape = 'u8[2105344]{0}', space=vmem, size = 0x202000, scoped, tag = 'input window, operand 3']
    #allocation3 [shape = 'u8[1024]{0}', space=vmem, size = 0x400, scoped, tag = 'output window, operand 0']
    #allocation4 [shape = 's32[2]{0}', space=sflag, size = 0x8, scoped, tag = 'scoped memory for tpu_custom_call.1']
    %9 = vsyncpa [#allocation4], 0
    %s10 = scalar_lea.sflag [#allocation4], 1
    %11 = vsyncpa %s10, 0
    loop: start=0, step=1, limit=6
    $region2: #{tpu_custom_call.1} parent=1 // loop_pre_header
      _
    $region3: #{tpu_custom_call.1} parent=1 // loop_header
      %s13 = sphi 0, %s17
      %p14 = scmp.ge.s32.totalorder %s13, 6
      %s20 = sphi 0, %s32
      %s21 = sphi 0, %s28
      %s22 = sphi 0, %s20
      %s23 = sphi 0, %s21
      %s24 = sphi 0, %s22
      %s25 = sphi 0, %s23
      %s37 = sphi 0, %s39
      %s40 = sphi 0, %s37
      %s41 = sphi 0, %s40
      %s57 = sphi 0, %s41
      %s65 = sphi 0, %s67
      %s68 = sphi 0, %s65
      %s69 = sphi 0, %s68
      %s85 = sphi 0, %s69
      %s91 = sphi 0, %s93
      %s94 = sphi 0, %s91
      %s95 = sphi 0, %s94
      %s111 = sphi 0, %s95
      %s119 = sphi 0, %s121
      %s122 = sphi 0, %s119
      %s123 = sphi 0, %s122
      %s139 = sphi 0, %s123
      %s145 = sphi 0, %s147
      %s148 = sphi 0, %s145
      %s149 = sphi 0, %s148
      %s165 = sphi 0, %s149
    $region4: #{tpu_custom_call.1} parent=1 // loop_header_branch
      %16 = sbr.rel (%p14) target = $region8
    $region5: #{tpu_custom_call.1} parent=1 // loop_body
      %s18 = ssub.s32 %s13, 1
      %s19 = ssub.s32 %s13, 2
      %s26 = sadd.s32 1, %s21
      %p27 = scmp.ge.s32.totalorder %s26, 2
      %s28 = scalar_select %p27, 0, %s26
      %s29 = sadd.s32 1, %s20
      %s30 = scalar_select %p27, %s29, %s20
      %p31 = scmp.ge.s32.totalorder %s30, 2
      %s32 = scalar_select %p31, 0, %s30
      %s33 = ssub.s32 %s20, %s32
      %s34 = ssub.s32 %s21, %s28
      %s35 = sor.u32 %s33, %s34
      %p36 = scmp.eq.s32.totalorder %s35, 0
      %s38 = sadd.s32 %s37, 1
      %s39 = scalar_select %p36, %s37, %s38
      %p42 = pneg %p36
      %p43 = scmp.eq.s32.totalorder %s13, 3
      %p44 = por %p42, %p43
      %p45 = scmp.ne.s32.totalorder %s37, %s40
      %p46 = scmp.eq.s32.totalorder %s13, 0
      %p47 = por %p45, %p46
      %p48 = scmp.ne.s32.totalorder %s37, %s40
      %p49 = scmp.eq.s32.totalorder %s18, 3
      %p50 = por %p48, %p49
      %p51 = scmp.ne.s32.totalorder %s40, %s41
      %p52 = scmp.eq.s32.totalorder %s18, 0
      %p53 = por %p51, %p52
      %p54 = scmp.ne.s32.totalorder %s40, %s41
      %p55 = scmp.eq.s32.totalorder %s19, 3
      %p56 = por %p54, %p55
      %p58 = scmp.ne.s32.totalorder %s41, %s57
      %p59 = scmp.eq.s32.totalorder %s19, 0
      %p60 = por %p58, %p59
      %s61 = ssub.s32 %s20, %s32
      %s62 = ssub.s32 %s21, %s28
      %s63 = sor.u32 %s61, %s62
      %p64 = scmp.eq.s32.totalorder %s63, 0
      %s66 = sadd.s32 %s65, 1
      %s67 = scalar_select %p64, %s65, %s66
      %p70 = pneg %p64
      %p71 = scmp.eq.s32.totalorder %s13, 3
      %p72 = por %p70, %p71
      %p73 = scmp.ne.s32.totalorder %s65, %s68
      %p74 = scmp.eq.s32.totalorder %s13, 0
      %p75 = por %p73, %p74
      %p76 = scmp.ne.s32.totalorder %s65, %s68
      %p77 = scmp.eq.s32.totalorder %s18, 3
      %p78 = por %p76, %p77
      %p79 = scmp.ne.s32.totalorder %s68, %s69
      %p80 = scmp.eq.s32.totalorder %s18, 0
      %p81 = por %p79, %p80
      %p82 = scmp.ne.s32.totalorder %s68, %s69
      %p83 = scmp.eq.s32.totalorder %s19, 3
      %p84 = por %p82, %p83
      %p86 = scmp.ne.s32.totalorder %s69, %s85
      %p87 = scmp.eq.s32.totalorder %s19, 0
      %p88 = por %p86, %p87
      %s89 = ssub.s32 %s20, %s32
      %p90 = scmp.eq.s32.totalorder %s89, 0
      %s92 = sadd.s32 %s91, 1
      %s93 = scalar_select %p90, %s91, %s92
      %p96 = pneg %p90
      %p97 = scmp.eq.s32.totalorder %s13, 3
      %p98 = por %p96, %p97
      %p99 = scmp.ne.s32.totalorder %s91, %s94
      %p100 = scmp.eq.s32.totalorder %s13, 0
      %p101 = por %p99, %p100
      %p102 = scmp.ne.s32.totalorder %s91, %s94
      %p103 = scmp.eq.s32.totalorder %s18, 3
      %p104 = por %p102, %p103
      %p105 = scmp.ne.s32.totalorder %s94, %s95
      %p106 = scmp.eq.s32.totalorder %s18, 0
      %p107 = por %p105, %p106
      %p108 = scmp.ne.s32.totalorder %s94, %s95
      %p109 = scmp.eq.s32.totalorder %s19, 3
      %p110 = por %p108, %p109
      %p112 = scmp.ne.s32.totalorder %s95, %s111
      %p113 = scmp.eq.s32.totalorder %s19, 0
      %p114 = por %p112, %p113
      %s115 = ssub.s32 %s20, %s32
      %s116 = ssub.s32 %s21, %s28
      %s117 = sor.u32 %s115, %s116
      %p118 = scmp.eq.s32.totalorder %s117, 0
      %s120 = sadd.s32 %s119, 1
      %s121 = scalar_select %p118, %s119, %s120
      %p124 = pneg %p118
      %p125 = scmp.eq.s32.totalorder %s13, 3
      %p126 = por %p124, %p125
      %p127 = scmp.ne.s32.totalorder %s119, %s122
      %p128 = scmp.eq.s32.totalorder %s13, 0
      %p129 = por %p127, %p128
      %p130 = scmp.ne.s32.totalorder %s119, %s122
      %p131 = scmp.eq.s32.totalorder %s18, 3
      %p132 = por %p130, %p131
      %p133 = scmp.ne.s32.totalorder %s122, %s123
      %p134 = scmp.eq.s32.totalorder %s18, 0
      %p135 = por %p133, %p134
      %p136 = scmp.ne.s32.totalorder %s122, %s123
      %p137 = scmp.eq.s32.totalorder %s19, 3
      %p138 = por %p136, %p137
      %p140 = scmp.ne.s32.totalorder %s123, %s139
      %p141 = scmp.eq.s32.totalorder %s19, 0
      %p142 = por %p140, %p141
      %s143 = ssub.s32 %s20, %s32
      %p144 = scmp.eq.s32.totalorder %s143, 0
      %s146 = sadd.s32 %s145, 1
      %s147 = scalar_select %p144, %s145, %s146
      %p150 = pneg %p144
      %p151 = scmp.eq.s32.totalorder %s13, 3
      %p152 = por %p150, %p151
      %p153 = scmp.ne.s32.totalorder %s145, %s148
      %p154 = scmp.eq.s32.totalorder %s13, 0
      %p155 = por %p153, %p154
      %p156 = scmp.ne.s32.totalorder %s145, %s148
      %p157 = scmp.eq.s32.totalorder %s18, 3
      %p158 = por %p156, %p157
      %p159 = scmp.ne.s32.totalorder %s148, %s149
      %p160 = scmp.eq.s32.totalorder %s18, 0
      %p161 = por %p159, %p160
      %p162 = scmp.ne.s32.totalorder %s148, %s149
      %p163 = scmp.eq.s32.totalorder %s19, 3
      %p164 = por %p162, %p163
      %p166 = scmp.ne.s32.totalorder %s149, %s165
      %p167 = scmp.eq.s32.totalorder %s19, 0
      %p168 = por %p166, %p167
      %p169 = scmp.le.s32.totalorder 1, %s13
      %p170 = scmp.lt.s32.totalorder %s13, 5
      %p171 = pnand %p169, %p170
      %p172 = pneg %p171
      // Predicated region
      $region9: #{tpu_custom_call.1} parent=5 // pred_check
        _
      $region10: #{tpu_custom_call.1} parent=5 // pred_check_branch
        %174 = sbr.rel (%p171) target = $region12
      $region11: #{tpu_custom_call.1} parent=5 // pred_region
        %s175 = ssub.s32 %s13, 1
      $region12: #{tpu_custom_call.1} parent=5 // pred_fallthru
        _
      %p176 = scmp.lt.s32.totalorder %s13, 4
      // Predicated region
      $region13: #{tpu_custom_call.1} parent=5 // pred_check
        %p177 = pneg %p176
      $region14: #{tpu_custom_call.1} parent=5 // pred_check_branch
        %179 = sbr.rel (%p177) target = $region16
      $region15: #{tpu_custom_call.1} parent=5 // pred_region
        // Predicated region
        $region17: #{tpu_custom_call.1} parent=15 // pred_check
          %p180 = pneg %p47
        $region18: #{tpu_custom_call.1} parent=15 // pred_check_branch
          %182 = sbr.rel (%p180) target = $region20
        $region19: #{tpu_custom_call.1} parent=15 // pred_region
          %p183 = scmp.lt.s32.totalorder %s20, 1
          %s184 = scalar_select %p183, %s20, 1
          %p185 = scmp.lt.s32.totalorder %s21, 1
          %s186 = scalar_select %p185, %s21, 1
          %s187 = smul.addr %s184, 2
          %s188 = sadd.s32 %s186, %s187
          %s189 = smul.addr %s188, 8
          %s190 = scalar_lea.vmem %s0, %s189
        $region20: #{tpu_custom_call.1} parent=15 // pred_fallthru
          _
        // Predicated region
        $region21: #{tpu_custom_call.1} parent=15 // pred_check
          %p191 = pneg %p75
        $region22: #{tpu_custom_call.1} parent=15 // pred_check_branch
          %193 = sbr.rel (%p191) target = $region24
        $region23: #{tpu_custom_call.1} parent=15 // pred_region
          %p194 = scmp.lt.s32.totalorder %s20, 1
          %s195 = scalar_select %p194, %s20, 1
          %p196 = scmp.lt.s32.totalorder %s21, 1
          %s197 = scalar_select %p196, %s21, 1
          %s198 = smul.addr %s195, 2
          %s199 = sadd.s32 %s197, %s198
          %s200 = smul.addr %s199, 8
          %s201 = scalar_lea.vmem %s1, %s200
        $region24: #{tpu_custom_call.1} parent=15 // pred_fallthru
          _
        // Predicated region
        $region25: #{tpu_custom_call.1} parent=15 // pred_check
          %p202 = pneg %p101
        $region26: #{tpu_custom_call.1} parent=15 // pred_check_branch
          %204 = sbr.rel (%p202) target = $region28
        $region27: #{tpu_custom_call.1} parent=15 // pred_region
          %p205 = scmp.lt.s32.totalorder %s20, 1
          %s206 = scalar_select %p205, %s20, 1
          %s207 = smul.addr %s206, 257
          %s208 = scalar_lea.vmem %s2, %s207
        $region28: #{tpu_custom_call.1} parent=15 // pred_fallthru
          _
        // Predicated region
        $region29: #{tpu_custom_call.1} parent=15 // pred_check
          %p209 = pneg %p129
        $region30: #{tpu_custom_call.1} parent=15 // pred_check_branch
          %211 = sbr.rel (%p209) target = $region32
        $region31: #{tpu_custom_call.1} parent=15 // pred_region
          %s212 = sand.u32 %s119, 1
          %s213 = sand.u32 %s119, 1
          %s214 = smul.addr %s213, 2056
          %s215 = scalar_lea.vmem [#allocation2], %s214
          %s216 = smul.addr %s20, 514
          %s217 = sadd.s32 %s21, %s216
          %s218 = smul.addr %s217, 8
          %s219 = scalar_lea.vmem %s3, %s218
          // Predicated region
          $region33: #{tpu_custom_call.1} parent=31 // pred_check
            _
          $region34: #{tpu_custom_call.1} parent=31 // pred_check_branch
            %221 = sbr.rel (0) target = $region36
          $region35: #{tpu_custom_call.1} parent=31 // pred_region
            // Predicated region
            $region37: #{tpu_custom_call.1} parent=35 // pred_check
              _
            $region38: #{tpu_custom_call.1} parent=35 // pred_check_branch
              %223 = sbr.rel (0) target = $region40
            $region39: #{tpu_custom_call.1} parent=35 // pred_region
              // Predicated region
              $region52: #{tpu_custom_call.1} parent=39 // pred_check
                _
              $region53: #{tpu_custom_call.1} parent=39 // pred_check_branch
                %751 = sbr.rel (0) target = $region55
              $region54: #{tpu_custom_call.1} parent=39 // pred_region
                loop: start=0, step=1, limit=1
                $region56: #{tpu_custom_call.1} parent=54 // loop_pre_header
                  _
                $region57: #{tpu_custom_call.1} parent=54 // loop_header
                  %s753 = sphi 0, %s757
                  %p754 = scmp.ge.s32.totalorder %s753, 1
                  %s758 = sphi %s219, %s219
                  %s759 = sphi %s215, %s215
                $region58: #{tpu_custom_call.1} parent=54 // loop_header_branch
                  %756 = sbr.rel (%p754) target = $region62
                $region59: #{tpu_custom_call.1} parent=54 // loop_body
                  %v760 = vld [vmem:[%s758] sm:$0xff]
                  %761 = vst [vmem:[%s759] sm:$0xff] %v760
                  %v762 = vld [vmem:[%s758 + $0x10] sm:$0xff]
                  %763 = vst [vmem:[%s759 + $0x8] sm:$0xff] %v762
                  %v764 = vld [vmem:[%s758 + $0x20] sm:$0xff]
                  %765 = vst [vmem:[%s759 + $0x10] sm:$0xff] %v764
                  %v766 = vld [vmem:[%s758 + $0x30] sm:$0xff]
                  %767 = vst [vmem:[%s759 + $0x18] sm:$0xff] %v766
                  %v768 = vld [vmem:[%s758 + $0x40] sm:$0xff]
                  %769 = vst [vmem:[%s759 + $0x20] sm:$0xff] %v768
                  %v770 = vld [vmem:[%s758 + $0x50] sm:$0xff]
                  %771 = vst [vmem:[%s759 + $0x28] sm:$0xff] %v770
                  %v772 = vld [vmem:[%s758 + $0x60] sm:$0xff]
                  %773 = vst [vmem:[%s759 + $0x30] sm:$0xff] %v772
                  %v774 = vld [vmem:[%s758 + $0x70] sm:$0xff]
                  %775 = vst [vmem:[%s759 + $0x38] sm:$0xff] %v774
                  %v776 = vld [vmem:[%s758 + $0x80] sm:$0xff]
                  %777 = vst [vmem:[%s759 + $0x40] sm:$0xff] %v776
                  %v778 = vld [vmem:[%s758 + $0x90] sm:$0xff]
                  %779 = vst [vmem:[%s759 + $0x48] sm:$0xff] %v778
                  %v780 = vld [vmem:[%s758 + $0xa0] sm:$0xff]
                  %781 = vst [vmem:[%s759 + $0x50] sm:$0xff] %v780
                  %v782 = vld [vmem:[%s758 + $0xb0] sm:$0xff]
                  %783 = vst [vmem:[%s759 + $0x58] sm:$0xff] %v782
                  %v784 = vld [vmem:[%s758 + $0xc0] sm:$0xff]
                  %785 = vst [vmem:[%s759 + $0x60] sm:$0xff] %v784
                  %v786 = vld [vmem:[%s758 + $0xd0] sm:$0xff]
                  %787 = vst [vmem:[%s759 + $0x68] sm:$0xff] %v786
                  %v788 = vld [vmem:[%s758 + $0xe0] sm:$0xff]
                  %789 = vst [vmem:[%s759 + $0x70] sm:$0xff] %v788
                  %v790 = vld [vmem:[%s758 + $0xf0] sm:$0xff]
                  %791 = vst [vmem:[%s759 + $0x78] sm:$0xff] %v790
                  %v792 = vld [vmem:[%s758 + $0x100] sm:$0xff]
                  %793 = vst [vmem:[%s759 + $0x80] sm:$0xff] %v792
                  %v794 = vld [vmem:[%s758 + $0x110] sm:$0xff]
                  %795 = vst [vmem:[%s759 + $0x88] sm:$0xff] %v794
                  %v796 = vld [vmem:[%s758 + $0x120] sm:$0xff]
                  %797 = vst [vmem:[%s759 + $0x90] sm:$0xff] %v796
                  %v798 = vld [vmem:[%s758 + $0x130] sm:$0xff]
                  %799 = vst [vmem:[%s759 + $0x98] sm:$0xff] %v798
                  %v800 = vld [vmem:[%s758 + $0x140] sm:$0xff]
                  %801 = vst [vmem:[%s759 + $0xa0] sm:$0xff] %v800
                  %v802 = vld [vmem:[%s758 + $0x150] sm:$0xff]
                  %803 = vst [vmem:[%s759 + $0xa8] sm:$0xff] %v802
                  %v804 = vld [vmem:[%s758 + $0x160] sm:$0xff]
                  %805 = vst [vmem:[%s759 + $0xb0] sm:$0xff] %v804
                  %v806 = vld [vmem:[%s758 + $0x170] sm:$0xff]
                  %807 = vst [vmem:[%s759 + $0xb8] sm:$0xff] %v806
                  %v808 = vld [vmem:[%s758 + $0x180] sm:$0xff]
                  %809 = vst [vmem:[%s759 + $0xc0] sm:$0xff] %v808
                  %v810 = vld [vmem:[%s758 + $0x190] sm:$0xff]
                  %811 = vst [vmem:[%s759 + $0xc8] sm:$0xff] %v810
                  %v812 = vld [vmem:[%s758 + $0x1a0] sm:$0xff]
                  %813 = vst [vmem:[%s759 + $0xd0] sm:$0xff] %v812
                  %v814 = vld [vmem:[%s758 + $0x1b0] sm:$0xff]
                  %815 = vst [vmem:[%s759 + $0xd8] sm:$0xff] %v814
                  %v816 = vld [vmem:[%s758 + $0x1c0] sm:$0xff]
                  %817 = vst [vmem:[%s759 + $0xe0] sm:$0xff] %v816
                  %v818 = vld [vmem:[%s758 + $0x1d0] sm:$0xff]
                  %819 = vst [vmem:[%s759 + $0xe8] sm:$0xff] %v818
                  %v820 = vld [vmem:[%s758 + $0x1e0] sm:$0xff]
                  %821 = vst [vmem:[%s759 + $0xf0] sm:$0xff] %v820
                  %v822 = vld [vmem:[%s758 + $0x1f0] sm:$0xff]
                  %823 = vst [vmem:[%s759 + $0xf8] sm:$0xff] %v822
                  %v824 = vld [vmem:[%s758 + $0x200] sm:$0xff]
                  %825 = vst [vmem:[%s759 + $0x100] sm:$0xff] %v824
                  %v826 = vld [vmem:[%s758 + $0x210] sm:$0xff]
                  %827 = vst [vmem:[%s759 + $0x108] sm:$0xff] %v826
                  %v828 = vld [vmem:[%s758 + $0x220] sm:$0xff]
                  %829 = vst [vmem:[%s759 + $0x110] sm:$0xff] %v828
                  %v830 = vld [vmem:[%s758 + $0x230] sm:$0xff]
                  %831 = vst [vmem:[%s759 + $0x118] sm:$0xff] %v830
                  %v832 = vld [vmem:[%s758 + $0x240] sm:$0xff]
                  %833 = vst [vmem:[%s759 + $0x120] sm:$0xff] %v832
                  %v834 = vld [vmem:[%s758 + $0x250] sm:$0xff]
                  %835 = vst [vmem:[%s759 + $0x128] sm:$0xff] %v834
                  %v836 = vld [vmem:[%s758 + $0x260] sm:$0xff]
                  %837 = vst [vmem:[%s759 + $0x130] sm:$0xff] %v836
                  %v838 = vld [vmem:[%s758 + $0x270] sm:$0xff]
                  %839 = vst [vmem:[%s759 + $0x138] sm:$0xff] %v838
                  %v840 = vld [vmem:[%s758 + $0x280] sm:$0xff]
                  %841 = vst [vmem:[%s759 + $0x140] sm:$0xff] %v840
                  %v842 = vld [vmem:[%s758 + $0x290] sm:$0xff]
                  %843 = vst [vmem:[%s759 + $0x148] sm:$0xff] %v842
                  %v844 = vld [vmem:[%s758 + $0x2a0] sm:$0xff]
                  %845 = vst [vmem:[%s759 + $0x150] sm:$0xff] %v844
                  %v846 = vld [vmem:[%s758 + $0x2b0] sm:$0xff]
                  %847 = vst [vmem:[%s759 + $0x158] sm:$0xff] %v846
                  %v848 = vld [vmem:[%s758 + $0x2c0] sm:$0xff]
                  %849 = vst [vmem:[%s759 + $0x160] sm:$0xff] %v848
                  %v850 = vld [vmem:[%s758 + $0x2d0] sm:$0xff]
                  %851 = vst [vmem:[%s759 + $0x168] sm:$0xff] %v850
                  %v852 = vld [vmem:[%s758 + $0x2e0] sm:$0xff]
                  %853 = vst [vmem:[%s759 + $0x170] sm:$0xff] %v852
                  %v854 = vld [vmem:[%s758 + $0x2f0] sm:$0xff]
                  %855 = vst [vmem:[%s759 + $0x178] sm:$0xff] %v854
                  %v856 = vld [vmem:[%s758 + $0x300] sm:$0xff]
                  %857 = vst [vmem:[%s759 + $0x180] sm:$0xff] %v856
                  %v858 = vld [vmem:[%s758 + $0x310] sm:$0xff]
                  %859 = vst [vmem:[%s759 + $0x188] sm:$0xff] %v858
                  %v860 = vld [vmem:[%s758 + $0x320] sm:$0xff]
                  %861 = vst [vmem:[%s759 + $0x190] sm:$0xff] %v860
                  %v862 = vld [vmem:[%s758 + $0x330] sm:$0xff]
                  %863 = vst [vmem:[%s759 + $0x198] sm:$0xff] %v862
                  %v864 = vld [vmem:[%s758 + $0x340] sm:$0xff]
                  %865 = vst [vmem:[%s759 + $0x1a0] sm:$0xff] %v864
                  %v866 = vld [vmem:[%s758 + $0x350] sm:$0xff]
                  %867 = vst [vmem:[%s759 + $0x1a8] sm:$0xff] %v866
                  %v868 = vld [vmem:[%s758 + $0x360] sm:$0xff]
                  %869 = vst [vmem:[%s759 + $0x1b0] sm:$0xff] %v868
                  %v870 = vld [vmem:[%s758 + $0x370] sm:$0xff]
                  %871 = vst [vmem:[%s759 + $0x1b8] sm:$0xff] %v870
                  %v872 = vld [vmem:[%s758 + $0x380] sm:$0xff]
                  %873 = vst [vmem:[%s759 + $0x1c0] sm:$0xff] %v872
                  %v874 = vld [vmem:[%s758 + $0x390] sm:$0xff]
                  %875 = vst [vmem:[%s759 + $0x1c8] sm:$0xff] %v874
                  %v876 = vld [vmem:[%s758 + $0x3a0] sm:$0xff]
                  %877 = vst [vmem:[%s759 + $0x1d0] sm:$0xff] %v876
                  %v878 = vld [vmem:[%s758 + $0x3b0] sm:$0xff]
                  %879 = vst [vmem:[%s759 + $0x1d8] sm:$0xff] %v878
                  %v880 = vld [vmem:[%s758 + $0x3c0] sm:$0xff]
                  %881 = vst [vmem:[%s759 + $0x1e0] sm:$0xff] %v880
                  %v882 = vld [vmem:[%s758 + $0x3d0] sm:$0xff]
                  %883 = vst [vmem:[%s759 + $0x1e8] sm:$0xff] %v882
                  %v884 = vld [vmem:[%s758 + $0x3e0] sm:$0xff]
                  %885 = vst [vmem:[%s759 + $0x1f0] sm:$0xff] %v884
                  %v886 = vld [vmem:[%s758 + $0x3f0] sm:$0xff]
                  %887 = vst [vmem:[%s759 + $0x1f8] sm:$0xff] %v886
                  %v888 = vld [vmem:[%s758 + $0x400] sm:$0xff]
                  %889 = vst [vmem:[%s759 + $0x200] sm:$0xff] %v888
                  %v890 = vld [vmem:[%s758 + $0x410] sm:$0xff]
                  %891 = vst [vmem:[%s759 + $0x208] sm:$0xff] %v890
                  %v892 = vld [vmem:[%s758 + $0x420] sm:$0xff]
                  %893 = vst [vmem:[%s759 + $0x210] sm:$0xff] %v892
                  %v894 = vld [vmem:[%s758 + $0x430] sm:$0xff]
                  %895 = vst [vmem:[%s759 + $0x218] sm:$0xff] %v894
                  %v896 = vld [vmem:[%s758 + $0x440] sm:$0xff]
                  %897 = vst [vmem:[%s759 + $0x220] sm:$0xff] %v896
                  %v898 = vld [vmem:[%s758 + $0x450] sm:$0xff]
                  %899 = vst [vmem:[%s759 + $0x228] sm:$0xff] %v898
                  %v900 = vld [vmem:[%s758 + $0x460] sm:$0xff]
                  %901 = vst [vmem:[%s759 + $0x230] sm:$0xff] %v900
                  %v902 = vld [vmem:[%s758 + $0x470] sm:$0xff]
                  %903 = vst [vmem:[%s759 + $0x238] sm:$0xff] %v902
                  %v904 = vld [vmem:[%s758 + $0x480] sm:$0xff]
                  %905 = vst [vmem:[%s759 + $0x240] sm:$0xff] %v904
                  %v906 = vld [vmem:[%s758 + $0x490] sm:$0xff]
                  %907 = vst [vmem:[%s759 + $0x248] sm:$0xff] %v906
                  %v908 = vld [vmem:[%s758 + $0x4a0] sm:$0xff]
                  %909 = vst [vmem:[%s759 + $0x250] sm:$0xff] %v908
                  %v910 = vld [vmem:[%s758 + $0x4b0] sm:$0xff]
                  %911 = vst [vmem:[%s759 + $0x258] sm:$0xff] %v910
                  %v912 = vld [vmem:[%s758 + $0x4c0] sm:$0xff]
                  %913 = vst [vmem:[%s759 + $0x260] sm:$0xff] %v912
                  %v914 = vld [vmem:[%s758 + $0x4d0] sm:$0xff]
                  %915 = vst [vmem:[%s759 + $0x268] sm:$0xff] %v914
                  %v916 = vld [vmem:[%s758 + $0x4e0] sm:$0xff]
                  %917 = vst [vmem:[%s759 + $0x270] sm:$0xff] %v916
                  %v918 = vld [vmem:[%s758 + $0x4f0] sm:$0xff]
                  %919 = vst [vmem:[%s759 + $0x278] sm:$0xff] %v918
                  %v920 = vld [vmem:[%s758 + $0x500] sm:$0xff]
                  %921 = vst [vmem:[%s759 + $0x280] sm:$0xff] %v920
                  %v922 = vld [vmem:[%s758 + $0x510] sm:$0xff]
                  %923 = vst [vmem:[%s759 + $0x288] sm:$0xff] %v922
                  %v924 = vld [vmem:[%s758 + $0x520] sm:$0xff]
                  %925 = vst [vmem:[%s759 + $0x290] sm:$0xff] %v924
                  %v926 = vld [vmem:[%s758 + $0x530] sm:$0xff]
                  %927 = vst [vmem:[%s759 + $0x298] sm:$0xff] %v926
                  %v928 = vld [vmem:[%s758 + $0x540] sm:$0xff]
                  %929 = vst [vmem:[%s759 + $0x2a0] sm:$0xff] %v928
                  %v930 = vld [vmem:[%s758 + $0x550] sm:$0xff]
                  %931 = vst [vmem:[%s759 + $0x2a8] sm:$0xff] %v930
                  %v932 = vld [vmem:[%s758 + $0x560] sm:$0xff]
                  %933 = vst [vmem:[%s759 + $0x2b0] sm:$0xff] %v932
                  %v934 = vld [vmem:[%s758 + $0x570] sm:$0xff]
                  %935 = vst [vmem:[%s759 + $0x2b8] sm:$0xff] %v934
                  %v936 = vld [vmem:[%s758 + $0x580] sm:$0xff]
                  %937 = vst [vmem:[%s759 + $0x2c0] sm:$0xff] %v936
                  %v938 = vld [vmem:[%s758 + $0x590] sm:$0xff]
                  %939 = vst [vmem:[%s759 + $0x2c8] sm:$0xff] %v938
                  %v940 = vld [vmem:[%s758 + $0x5a0] sm:$0xff]
                  %941 = vst [vmem:[%s759 + $0x2d0] sm:$0xff] %v940
                  %v942 = vld [vmem:[%s758 + $0x5b0] sm:$0xff]
                  %943 = vst [vmem:[%s759 + $0x2d8] sm:$0xff] %v942
                  %v944 = vld [vmem:[%s758 + $0x5c0] sm:$0xff]
                  %945 = vst [vmem:[%s759 + $0x2e0] sm:$0xff] %v944
                  %v946 = vld [vmem:[%s758 + $0x5d0] sm:$0xff]
                  %947 = vst [vmem:[%s759 + $0x2e8] sm:$0xff] %v946
                  %v948 = vld [vmem:[%s758 + $0x5e0] sm:$0xff]
                  %949 = vst [vmem:[%s759 + $0x2f0] sm:$0xff] %v948
                  %v950 = vld [vmem:[%s758 + $0x5f0] sm:$0xff]
                  %951 = vst [vmem:[%s759 + $0x2f8] sm:$0xff] %v950
                  %v952 = vld [vmem:[%s758 + $0x600] sm:$0xff]
                  %953 = vst [vmem:[%s759 + $0x300] sm:$0xff] %v952
                  %v954 = vld [vmem:[%s758 + $0x610] sm:$0xff]
                  %955 = vst [vmem:[%s759 + $0x308] sm:$0xff] %v954
                  %v956 = vld [vmem:[%s758 + $0x620] sm:$0xff]
                  %957 = vst [vmem:[%s759 + $0x310] sm:$0xff] %v956
                  %v958 = vld [vmem:[%s758 + $0x630] sm:$0xff]
                  %959 = vst [vmem:[%s759 + $0x318] sm:$0xff] %v958
                  %v960 = vld [vmem:[%s758 + $0x640] sm:$0xff]
                  %961 = vst [vmem:[%s759 + $0x320] sm:$0xff] %v960
                  %v962 = vld [vmem:[%s758 + $0x650] sm:$0xff]
                  %963 = vst [vmem:[%s759 + $0x328] sm:$0xff] %v962
                  %v964 = vld [vmem:[%s758 + $0x660] sm:$0xff]
                  %965 = vst [vmem:[%s759 + $0x330] sm:$0xff] %v964
                  %v966 = vld [vmem:[%s758 + $0x670] sm:$0xff]
                  %967 = vst [vmem:[%s759 + $0x338] sm:$0xff] %v966
                  %v968 = vld [vmem:[%s758 + $0x680] sm:$0xff]
                  %969 = vst [vmem:[%s759 + $0x340] sm:$0xff] %v968
                  %v970 = vld [vmem:[%s758 + $0x690] sm:$0xff]
                  %971 = vst [vmem:[%s759 + $0x348] sm:$0xff] %v970
                  %v972 = vld [vmem:[%s758 + $0x6a0] sm:$0xff]
                  %973 = vst [vmem:[%s759 + $0x350] sm:$0xff] %v972
                  %v974 = vld [vmem:[%s758 + $0x6b0] sm:$0xff]
                  %975 = vst [vmem:[%s759 + $0x358] sm:$0xff] %v974
                  %v976 = vld [vmem:[%s758 + $0x6c0] sm:$0xff]
                  %977 = vst [vmem:[%s759 + $0x360] sm:$0xff] %v976
                  %v978 = vld [vmem:[%s758 + $0x6d0] sm:$0xff]
                  %979 = vst [vmem:[%s759 + $0x368] sm:$0xff] %v978
                  %v980 = vld [vmem:[%s758 + $0x6e0] sm:$0xff]
                  %981 = vst [vmem:[%s759 + $0x370] sm:$0xff] %v980
                  %v982 = vld [vmem:[%s758 + $0x6f0] sm:$0xff]
                  %983 = vst [vmem:[%s759 + $0x378] sm:$0xff] %v982
                  %v984 = vld [vmem:[%s758 + $0x700] sm:$0xff]
                  %985 = vst [vmem:[%s759 + $0x380] sm:$0xff] %v984
                  %v986 = vld [vmem:[%s758 + $0x710] sm:$0xff]
                  %987 = vst [vmem:[%s759 + $0x388] sm:$0xff] %v986
                  %v988 = vld [vmem:[%s758 + $0x720] sm:$0xff]
                  %989 = vst [vmem:[%s759 + $0x390] sm:$0xff] %v988
                  %v990 = vld [vmem:[%s758 + $0x730] sm:$0xff]
                  %991 = vst [vmem:[%s759 + $0x398] sm:$0xff] %v990
                  %v992 = vld [vmem:[%s758 + $0x740] sm:$0xff]
                  %993 = vst [vmem:[%s759 + $0x3a0] sm:$0xff] %v992
                  %v994 = vld [vmem:[%s758 + $0x750] sm:$0xff]
                  %995 = vst [vmem:[%s759 + $0x3a8] sm:$0xff] %v994
                  %v996 = vld [vmem:[%s758 + $0x760] sm:$0xff]
                  %997 = vst [vmem:[%s759 + $0x3b0] sm:$0xff] %v996
                  %v998 = vld [vmem:[%s758 + $0x770] sm:$0xff]
                  %999 = vst [vmem:[%s759 + $0x3b8] sm:$0xff] %v998
                  %v1000 = vld [vmem:[%s758 + $0x780] sm:$0xff]
                  %1001 = vst [vmem:[%s759 + $0x3c0] sm:$0xff] %v1000
                  %v1002 = vld [vmem:[%s758 + $0x790] sm:$0xff]
                  %1003 = vst [vmem:[%s759 + $0x3c8] sm:$0xff] %v1002
                  %v1004 = vld [vmem:[%s758 + $0x7a0] sm:$0xff]
                  %1005 = vst [vmem:[%s759 + $0x3d0] sm:$0xff] %v1004
                  %v1006 = vld [vmem:[%s758 + $0x7b0] sm:$0xff]
                  %1007 = vst [vmem:[%s759 + $0x3d8] sm:$0xff] %v1006
                  %v1008 = vld [vmem:[%s758 + $0x7c0] sm:$0xff]
                  %1009 = vst [vmem:[%s759 + $0x3e0] sm:$0xff] %v1008
                  %v1010 = vld [vmem:[%s758 + $0x7d0] sm:$0xff]
                  %1011 = vst [vmem:[%s759 + $0x3e8] sm:$0xff] %v1010
                  %v1012 = vld [vmem:[%s758 + $0x7e0] sm:$0xff]
                  %1013 = vst [vmem:[%s759 + $0x3f0] sm:$0xff] %v1012
                  %v1014 = vld [vmem:[%s758 + $0x7f0] sm:$0xff]
                  %1015 = vst [vmem:[%s759 + $0x3f8] sm:$0xff] %v1014
                  %v1016 = vld [vmem:[%s758 + $0x800] sm:$0xff]
                  %1017 = vst [vmem:[%s759 + $0x400] sm:$0xff] %v1016
                  %v1018 = vld [vmem:[%s758 + $0x810] sm:$0xff]
                  %1019 = vst [vmem:[%s759 + $0x408] sm:$0xff] %v1018
                  %v1020 = vld [vmem:[%s758 + $0x820] sm:$0xff]
                  %1021 = vst [vmem:[%s759 + $0x410] sm:$0xff] %v1020
                  %v1022 = vld [vmem:[%s758 + $0x830] sm:$0xff]
                  %1023 = vst [vmem:[%s759 + $0x418] sm:$0xff] %v1022
                  %v1024 = vld [vmem:[%s758 + $0x840] sm:$0xff]
                  %1025 = vst [vmem:[%s759 + $0x420] sm:$0xff] %v1024
                  %v1026 = vld [vmem:[%s758 + $0x850] sm:$0xff]
                  %1027 = vst [vmem:[%s759 + $0x428] sm:$0xff] %v1026
                  %v1028 = vld [vmem:[%s758 + $0x860] sm:$0xff]
                  %1029 = vst [vmem:[%s759 + $0x430] sm:$0xff] %v1028
                  %v1030 = vld [vmem:[%s758 + $0x870] sm:$0xff]
                  %1031 = vst [vmem:[%s759 + $0x438] sm:$0xff] %v1030
                  %v1032 = vld [vmem:[%s758 + $0x880] sm:$0xff]
                  %1033 = vst [vmem:[%s759 + $0x440] sm:$0xff] %v1032
                  %v1034 = vld [vmem:[%s758 + $0x890] sm:$0xff]
                  %1035 = vst [vmem:[%s759 + $0x448] sm:$0xff] %v1034
                  %v1036 = vld [vmem:[%s758 + $0x8a0] sm:$0xff]
                  %1037 = vst [vmem:[%s759 + $0x450] sm:$0xff] %v1036
                  %v1038 = vld [vmem:[%s758 + $0x8b0] sm:$0xff]
                  %1039 = vst [vmem:[%s759 + $0x458] sm:$0xff] %v1038
                  %v1040 = vld [vmem:[%s758 + $0x8c0] sm:$0xff]
                  %1041 = vst [vmem:[%s759 + $0x460] sm:$0xff] %v1040
                  %v1042 = vld [vmem:[%s758 + $0x8d0] sm:$0xff]
                  %1043 = vst [vmem:[%s759 + $0x468] sm:$0xff] %v1042
                  %v1044 = vld [vmem:[%s758 + $0x8e0] sm:$0xff]
                  %1045 = vst [vmem:[%s759 + $0x470] sm:$0xff] %v1044
                  %v1046 = vld [vmem:[%s758 + $0x8f0] sm:$0xff]
                  %1047 = vst [vmem:[%s759 + $0x478] sm:$0xff] %v1046
                  %v1048 = vld [vmem:[%s758 + $0x900] sm:$0xff]
                  %1049 = vst [vmem:[%s759 + $0x480] sm:$0xff] %v1048
                  %v1050 = vld [vmem:[%s758 + $0x910] sm:$0xff]
                  %1051 = vst [vmem:[%s759 + $0x488] sm:$0xff] %v1050
                  %v1052 = vld [vmem:[%s758 + $0x920] sm:$0xff]
                  %1053 = vst [vmem:[%s759 + $0x490] sm:$0xff] %v1052
                  %v1054 = vld [vmem:[%s758 + $0x930] sm:$0xff]
                  %1055 = vst [vmem:[%s759 + $0x498] sm:$0xff] %v1054
                  %v1056 = vld [vmem:[%s758 + $0x940] sm:$0xff]
                  %1057 = vst [vmem:[%s759 + $0x4a0] sm:$0xff] %v1056
                  %v1058 = vld [vmem:[%s758 + $0x950] sm:$0xff]
                  %1059 = vst [vmem:[%s759 + $0x4a8] sm:$0xff] %v1058
                  %v1060 = vld [vmem:[%s758 + $0x960] sm:$0xff]
                  %1061 = vst [vmem:[%s759 + $0x4b0] sm:$0xff] %v1060
                  %v1062 = vld [vmem:[%s758 + $0x970] sm:$0xff]
                  %1063 = vst [vmem:[%s759 + $0x4b8] sm:$0xff] %v1062
                  %v1064 = vld [vmem:[%s758 + $0x980] sm:$0xff]
                  %1065 = vst [vmem:[%s759 + $0x4c0] sm:$0xff] %v1064
                  %v1066 = vld [vmem:[%s758 + $0x990] sm:$0xff]
                  %1067 = vst [vmem:[%s759 + $0x4c8] sm:$0xff] %v1066
                  %v1068 = vld [vmem:[%s758 + $0x9a0] sm:$0xff]
                  %1069 = vst [vmem:[%s759 + $0x4d0] sm:$0xff] %v1068
                  %v1070 = vld [vmem:[%s758 + $0x9b0] sm:$0xff]
                  %1071 = vst [vmem:[%s759 + $0x4d8] sm:$0xff] %v1070
                  %v1072 = vld [vmem:[%s758 + $0x9c0] sm:$0xff]
                  %1073 = vst [vmem:[%s759 + $0x4e0] sm:$0xff] %v1072
                  %v1074 = vld [vmem:[%s758 + $0x9d0] sm:$0xff]
                  %1075 = vst [vmem:[%s759 + $0x4e8] sm:$0xff] %v1074
                  %v1076 = vld [vmem:[%s758 + $0x9e0] sm:$0xff]
                  %1077 = vst [vmem:[%s759 + $0x4f0] sm:$0xff] %v1076
                  %v1078 = vld [vmem:[%s758 + $0x9f0] sm:$0xff]
                  %1079 = vst [vmem:[%s759 + $0x4f8] sm:$0xff] %v1078
                  %v1080 = vld [vmem:[%s758 + $0xa00] sm:$0xff]
                  %1081 = vst [vmem:[%s759 + $0x500] sm:$0xff] %v1080
                  %v1082 = vld [vmem:[%s758 + $0xa10] sm:$0xff]
                  %1083 = vst [vmem:[%s759 + $0x508] sm:$0xff] %v1082
                  %v1084 = vld [vmem:[%s758 + $0xa20] sm:$0xff]
                  %1085 = vst [vmem:[%s759 + $0x510] sm:$0xff] %v1084
                  %v1086 = vld [vmem:[%s758 + $0xa30] sm:$0xff]
                  %1087 = vst [vmem:[%s759 + $0x518] sm:$0xff] %v1086
                  %v1088 = vld [vmem:[%s758 + $0xa40] sm:$0xff]
                  %1089 = vst [vmem:[%s759 + $0x520] sm:$0xff] %v1088
                  %v1090 = vld [vmem:[%s758 + $0xa50] sm:$0xff]
                  %1091 = vst [vmem:[%s759 + $0x528] sm:$0xff] %v1090
                  %v1092 = vld [vmem:[%s758 + $0xa60] sm:$0xff]
                  %1093 = vst [vmem:[%s759 + $0x530] sm:$0xff] %v1092
                  %v1094 = vld [vmem:[%s758 + $0xa70] sm:$0xff]
                  %1095 = vst [vmem:[%s759 + $0x538] sm:$0xff] %v1094
                  %v1096 = vld [vmem:[%s758 + $0xa80] sm:$0xff]
                  %1097 = vst [vmem:[%s759 + $0x540] sm:$0xff] %v1096
                  %v1098 = vld [vmem:[%s758 + $0xa90] sm:$0xff]
                  %1099 = vst [vmem:[%s759 + $0x548] sm:$0xff] %v1098
                  %v1100 = vld [vmem:[%s758 + $0xaa0] sm:$0xff]
                  %1101 = vst [vmem:[%s759 + $0x550] sm:$0xff] %v1100
                  %v1102 = vld [vmem:[%s758 + $0xab0] sm:$0xff]
                  %1103 = vst [vmem:[%s759 + $0x558] sm:$0xff] %v1102
                  %v1104 = vld [vmem:[%s758 + $0xac0] sm:$0xff]
                  %1105 = vst [vmem:[%s759 + $0x560] sm:$0xff] %v1104
                  %v1106 = vld [vmem:[%s758 + $0xad0] sm:$0xff]
                  %1107 = vst [vmem:[%s759 + $0x568] sm:$0xff] %v1106
                  %v1108 = vld [vmem:[%s758 + $0xae0] sm:$0xff]
                  %1109 = vst [vmem:[%s759 + $0x570] sm:$0xff] %v1108
                  %v1110 = vld [vmem:[%s758 + $0xaf0] sm:$0xff]
                  %1111 = vst [vmem:[%s759 + $0x578] sm:$0xff] %v1110
                  %v1112 = vld [vmem:[%s758 + $0xb00] sm:$0xff]
                  %1113 = vst [vmem:[%s759 + $0x580] sm:$0xff] %v1112
                  %v1114 = vld [vmem:[%s758 + $0xb10] sm:$0xff]
                  %1115 = vst [vmem:[%s759 + $0x588] sm:$0xff] %v1114
                  %v1116 = vld [vmem:[%s758 + $0xb20] sm:$0xff]
                  %1117 = vst [vmem:[%s759 + $0x590] sm:$0xff] %v1116
                  %v1118 = vld [vmem:[%s758 + $0xb30] sm:$0xff]
                  %1119 = vst [vmem:[%s759 + $0x598] sm:$0xff] %v1118
                  %v1120 = vld [vmem:[%s758 + $0xb40] sm:$0xff]
                  %1121 = vst [vmem:[%s759 + $0x5a0] sm:$0xff] %v1120
                  %v1122 = vld [vmem:[%s758 + $0xb50] sm:$0xff]
                  %1123 = vst [vmem:[%s759 + $0x5a8] sm:$0xff] %v1122
                  %v1124 = vld [vmem:[%s758 + $0xb60] sm:$0xff]
                  %1125 = vst [vmem:[%s759 + $0x5b0] sm:$0xff] %v1124
                  %v1126 = vld [vmem:[%s758 + $0xb70] sm:$0xff]
                  %1127 = vst [vmem:[%s759 + $0x5b8] sm:$0xff] %v1126
                  %v1128 = vld [vmem:[%s758 + $0xb80] sm:$0xff]
                  %1129 = vst [vmem:[%s759 + $0x5c0] sm:$0xff] %v1128
                  %v1130 = vld [vmem:[%s758 + $0xb90] sm:$0xff]
                  %1131 = vst [vmem:[%s759 + $0x5c8] sm:$0xff] %v1130
                  %v1132 = vld [vmem:[%s758 + $0xba0] sm:$0xff]
                  %1133 = vst [vmem:[%s759 + $0x5d0] sm:$0xff] %v1132
                  %v1134 = vld [vmem:[%s758 + $0xbb0] sm:$0xff]
                  %1135 = vst [vmem:[%s759 + $0x5d8] sm:$0xff] %v1134
                  %v1136 = vld [vmem:[%s758 + $0xbc0] sm:$0xff]
                  %1137 = vst [vmem:[%s759 + $0x5e0] sm:$0xff] %v1136
                  %v1138 = vld [vmem:[%s758 + $0xbd0] sm:$0xff]
                  %1139 = vst [vmem:[%s759 + $0x5e8] sm:$0xff] %v1138
                  %v1140 = vld [vmem:[%s758 + $0xbe0] sm:$0xff]
                  %1141 = vst [vmem:[%s759 + $0x5f0] sm:$0xff] %v1140
                  %v1142 = vld [vmem:[%s758 + $0xbf0] sm:$0xff]
                  %1143 = vst [vmem:[%s759 + $0x5f8] sm:$0xff] %v1142
                  %v1144 = vld [vmem:[%s758 + $0xc00] sm:$0xff]
                  %1145 = vst [vmem:[%s759 + $0x600] sm:$0xff] %v1144
                  %v1146 = vld [vmem:[%s758 + $0xc10] sm:$0xff]
                  %1147 = vst [vmem:[%s759 + $0x608] sm:$0xff] %v1146
                  %v1148 = vld [vmem:[%s758 + $0xc20] sm:$0xff]
                  %1149 = vst [vmem:[%s759 + $0x610] sm:$0xff] %v1148
                  %v1150 = vld [vmem:[%s758 + $0xc30] sm:$0xff]
                  %1151 = vst [vmem:[%s759 + $0x618] sm:$0xff] %v1150
                  %v1152 = vld [vmem:[%s758 + $0xc40] sm:$0xff]
                  %1153 = vst [vmem:[%s759 + $0x620] sm:$0xff] %v1152
                  %v1154 = vld [vmem:[%s758 + $0xc50] sm:$0xff]
                  %1155 = vst [vmem:[%s759 + $0x628] sm:$0xff] %v1154
                  %v1156 = vld [vmem:[%s758 + $0xc60] sm:$0xff]
                  %1157 = vst [vmem:[%s759 + $0x630] sm:$0xff] %v1156
                  %v1158 = vld [vmem:[%s758 + $0xc70] sm:$0xff]
                  %1159 = vst [vmem:[%s759 + $0x638] sm:$0xff] %v1158
                  %v1160 = vld [vmem:[%s758 + $0xc80] sm:$0xff]
                  %1161 = vst [vmem:[%s759 + $0x640] sm:$0xff] %v1160
                  %v1162 = vld [vmem:[%s758 + $0xc90] sm:$0xff]
                  %1163 = vst [vmem:[%s759 + $0x648] sm:$0xff] %v1162
                  %v1164 = vld [vmem:[%s758 + $0xca0] sm:$0xff]
                  %1165 = vst [vmem:[%s759 + $0x650] sm:$0xff] %v1164
                  %v1166 = vld [vmem:[%s758 + $0xcb0] sm:$0xff]
                  %1167 = vst [vmem:[%s759 + $0x658] sm:$0xff] %v1166
                  %v1168 = vld [vmem:[%s758 + $0xcc0] sm:$0xff]
                  %1169 = vst [vmem:[%s759 + $0x660] sm:$0xff] %v1168
                  %v1170 = vld [vmem:[%s758 + $0xcd0] sm:$0xff]
                  %1171 = vst [vmem:[%s759 + $0x668] sm:$0xff] %v1170
                  %v1172 = vld [vmem:[%s758 + $0xce0] sm:$0xff]
                  %1173 = vst [vmem:[%s759 + $0x670] sm:$0xff] %v1172
                  %v1174 = vld [vmem:[%s758 + $0xcf0] sm:$0xff]
                  %1175 = vst [vmem:[%s759 + $0x678] sm:$0xff] %v1174
                  %v1176 = vld [vmem:[%s758 + $0xd00] sm:$0xff]
                  %1177 = vst [vmem:[%s759 + $0x680] sm:$0xff] %v1176
                  %v1178 = vld [vmem:[%s758 + $0xd10] sm:$0xff]
                  %1179 = vst [vmem:[%s759 + $0x688] sm:$0xff] %v1178
                  %v1180 = vld [vmem:[%s758 + $0xd20] sm:$0xff]
                  %1181 = vst [vmem:[%s759 + $0x690] sm:$0xff] %v1180
                  %v1182 = vld [vmem:[%s758 + $0xd30] sm:$0xff]
                  %1183 = vst [vmem:[%s759 + $0x698] sm:$0xff] %v1182
                  %v1184 = vld [vmem:[%s758 + $0xd40] sm:$0xff]
                  %1185 = vst [vmem:[%s759 + $0x6a0] sm:$0xff] %v1184
                  %v1186 = vld [vmem:[%s758 + $0xd50] sm:$0xff]
                  %1187 = vst [vmem:[%s759 + $0x6a8] sm:$0xff] %v1186
                  %v1188 = vld [vmem:[%s758 + $0xd60] sm:$0xff]
                  %1189 = vst [vmem:[%s759 + $0x6b0] sm:$0xff] %v1188
                  %v1190 = vld [vmem:[%s758 + $0xd70] sm:$0xff]
                  %1191 = vst [vmem:[%s759 + $0x6b8] sm:$0xff] %v1190
                  %v1192 = vld [vmem:[%s758 + $0xd80] sm:$0xff]
                  %1193 = vst [vmem:[%s759 + $0x6c0] sm:$0xff] %v1192
                  %v1194 = vld [vmem:[%s758 + $0xd90] sm:$0xff]
                  %1195 = vst [vmem:[%s759 + $0x6c8] sm:$0xff] %v1194
                  %v1196 = vld [vmem:[%s758 + $0xda0] sm:$0xff]
                  %1197 = vst [vmem:[%s759 + $0x6d0] sm:$0xff] %v1196
                  %v1198 = vld [vmem:[%s758 + $0xdb0] sm:$0xff]
                  %1199 = vst [vmem:[%s759 + $0x6d8] sm:$0xff] %v1198
                  %v1200 = vld [vmem:[%s758 + $0xdc0] sm:$0xff]
                  %1201 = vst [vmem:[%s759 + $0x6e0] sm:$0xff] %v1200
                  %v1202 = vld [vmem:[%s758 + $0xdd0] sm:$0xff]
                  %1203 = vst [vmem:[%s759 + $0x6e8] sm:$0xff] %v1202
                  %v1204 = vld [vmem:[%s758 + $0xde0] sm:$0xff]
                  %1205 = vst [vmem:[%s759 + $0x6f0] sm:$0xff] %v1204
                  %v1206 = vld [vmem:[%s758 + $0xdf0] sm:$0xff]
                  %1207 = vst [vmem:[%s759 + $0x6f8] sm:$0xff] %v1206
                  %v1208 = vld [vmem:[%s758 + $0xe00] sm:$0xff]
                  %1209 = vst [vmem:[%s759 + $0x700] sm:$0xff] %v1208
                  %v1210 = vld [vmem:[%s758 + $0xe10] sm:$0xff]
                  %1211 = vst [vmem:[%s759 + $0x708] sm:$0xff] %v1210
                  %v1212 = vld [vmem:[%s758 + $0xe20] sm:$0xff]
                  %1213 = vst [vmem:[%s759 + $0x710] sm:$0xff] %v1212
                  %v1214 = vld [vmem:[%s758 + $0xe30] sm:$0xff]
                  %1215 = vst [vmem:[%s759 + $0x718] sm:$0xff] %v1214
                  %v1216 = vld [vmem:[%s758 + $0xe40] sm:$0xff]
                  %1217 = vst [vmem:[%s759 + $0x720] sm:$0xff] %v1216
                  %v1218 = vld [vmem:[%s758 + $0xe50] sm:$0xff]
                  %1219 = vst [vmem:[%s759 + $0x728] sm:$0xff] %v1218
                  %v1220 = vld [vmem:[%s758 + $0xe60] sm:$0xff]
                  %1221 = vst [vmem:[%s759 + $0x730] sm:$0xff] %v1220
                  %v1222 = vld [vmem:[%s758 + $0xe70] sm:$0xff]
                  %1223 = vst [vmem:[%s759 + $0x738] sm:$0xff] %v1222
                  %v1224 = vld [vmem:[%s758 + $0xe80] sm:$0xff]
                  %1225 = vst [vmem:[%s759 + $0x740] sm:$0xff] %v1224
                  %v1226 = vld [vmem:[%s758 + $0xe90] sm:$0xff]
                  %1227 = vst [vmem:[%s759 + $0x748] sm:$0xff] %v1226
                  %v1228 = vld [vmem:[%s758 + $0xea0] sm:$0xff]
                  %1229 = vst [vmem:[%s759 + $0x750] sm:$0xff] %v1228
                  %v1230 = vld [vmem:[%s758 + $0xeb0] sm:$0xff]
                  %1231 = vst [vmem:[%s759 + $0x758] sm:$0xff] %v1230
                  %v1232 = vld [vmem:[%s758 + $0xec0] sm:$0xff]
                  %1233 = vst [vmem:[%s759 + $0x760] sm:$0xff] %v1232
                  %v1234 = vld [vmem:[%s758 + $0xed0] sm:$0xff]
                  %1235 = vst [vmem:[%s759 + $0x768] sm:$0xff] %v1234
                  %v1236 = vld [vmem:[%s758 + $0xee0] sm:$0xff]
                  %1237 = vst [vmem:[%s759 + $0x770] sm:$0xff] %v1236
                  %v1238 = vld [vmem:[%s758 + $0xef0] sm:$0xff]
                  %1239 = vst [vmem:[%s759 + $0x778] sm:$0xff] %v1238
                  %v1240 = vld [vmem:[%s758 + $0xf00] sm:$0xff]
                  %1241 = vst [vmem:[%s759 + $0x780] sm:$0xff] %v1240
                  %v1242 = vld [vmem:[%s758 + $0xf10] sm:$0xff]
                  %1243 = vst [vmem:[%s759 + $0x788] sm:$0xff] %v1242
                  %v1244 = vld [vmem:[%s758 + $0xf20] sm:$0xff]
                  %1245 = vst [vmem:[%s759 + $0x790] sm:$0xff] %v1244
                  %v1246 = vld [vmem:[%s758 + $0xf30] sm:$0xff]
                  %1247 = vst [vmem:[%s759 + $0x798] sm:$0xff] %v1246
                  %v1248 = vld [vmem:[%s758 + $0xf40] sm:$0xff]
                  %1249 = vst [vmem:[%s759 + $0x7a0] sm:$0xff] %v1248
                  %v1250 = vld [vmem:[%s758 + $0xf50] sm:$0xff]
                  %1251 = vst [vmem:[%s759 + $0x7a8] sm:$0xff] %v1250
                  %v1252 = vld [vmem:[%s758 + $0xf60] sm:$0xff]
                  %1253 = vst [vmem:[%s759 + $0x7b0] sm:$0xff] %v1252
                  %v1254 = vld [vmem:[%s758 + $0xf70] sm:$0xff]
                  %1255 = vst [vmem:[%s759 + $0x7b8] sm:$0xff] %v1254
                  %v1256 = vld [vmem:[%s758 + $0xf80] sm:$0xff]
                  %1257 = vst [vmem:[%s759 + $0x7c0] sm:$0xff] %v1256
                  %v1258 = vld [vmem:[%s758 + $0xf90] sm:$0xff]
                  %1259 = vst [vmem:[%s759 + $0x7c8] sm:$0xff] %v1258
                  %v1260 = vld [vmem:[%s758 + $0xfa0] sm:$0xff]
                  %1261 = vst [vmem:[%s759 + $0x7d0] sm:$0xff] %v1260
                  %v1262 = vld [vmem:[%s758 + $0xfb0] sm:$0xff]
                  %1263 = vst [vmem:[%s759 + $0x7d8] sm:$0xff] %v1262
                  %v1264 = vld [vmem:[%s758 + $0xfc0] sm:$0xff]
                  %1265 = vst [vmem:[%s759 + $0x7e0] sm:$0xff] %v1264
                  %v1266 = vld [vmem:[%s758 + $0xfd0] sm:$0xff]
                  %1267 = vst [vmem:[%s759 + $0x7e8] sm:$0xff] %v1266
                  %v1268 = vld [vmem:[%s758 + $0xfe0] sm:$0xff]
                  %1269 = vst [vmem:[%s759 + $0x7f0] sm:$0xff] %v1268
                  %v1270 = vld [vmem:[%s758 + $0xff0] sm:$0xff]
                  %1271 = vst [vmem:[%s759 + $0x7f8] sm:$0xff] %v1270
                  %v1272 = vld [vmem:[%s758 + $0x1000] sm:$0xff]
                  %1273 = vst [vmem:[%s759 + $0x800] sm:$0xff] %v1272
                $region60: #{tpu_custom_call.1} parent=54 // loop_footer
                  %s757 = sadd.s32 1, %s753
                $region61: #{tpu_custom_call.1} parent=54 // loop_footer_branch
                  %752 = sbr.rel target = $region57
                $region62: #{tpu_custom_call.1} parent=54 // loop_exit
                  _
              $region55: #{tpu_custom_call.1} parent=39 // pred_fallthru
                _
              // Predicated region
              $region63: #{tpu_custom_call.1} parent=39 // pred_check
                _
              $region64: #{tpu_custom_call.1} parent=39 // pred_check_branch
                %1275 = sbr.rel target = $region66
              $region65: #{tpu_custom_call.1} parent=39 // pred_region
                _
              $region66: #{tpu_custom_call.1} parent=39 // pred_fallthru
                _
            $region40: #{tpu_custom_call.1} parent=35 // pred_fallthru
              _
            // Predicated region
            $region41: #{tpu_custom_call.1} parent=35 // pred_check
              _
            $region42: #{tpu_custom_call.1} parent=35 // pred_check_branch
              %225 = sbr.rel target = $region44
            $region43: #{tpu_custom_call.1} parent=35 // pred_region
              %s227 = ssub.s32 256, 1
              loop: start=0, step=1, limit=1
              $region45: #{tpu_custom_call.1} parent=43 // loop_pre_header
                _
              $region46: #{tpu_custom_call.1} parent=43 // loop_header
                %s229 = sphi 0, %s233
                %p230 = scmp.ge.s32.totalorder %s229, 1
                %s234 = sphi %s219, %s219
                %s235 = sphi %s215, %s215
              $region47: #{tpu_custom_call.1} parent=43 // loop_header_branch
                %232 = sbr.rel (%p230) target = $region51
              $region48: #{tpu_custom_call.1} parent=43 // loop_body
                %v236 = vld [vmem:[%s234] sm:%s227]
                %237 = vst [vmem:[%s235] sm:%s227] %v236
                %v238 = vld [vmem:[%s234 + $0x10] sm:%s227]
                %239 = vst [vmem:[%s235 + $0x8] sm:%s227] %v238
                %v240 = vld [vmem:[%s234 + $0x20] sm:%s227]
                %241 = vst [vmem:[%s235 + $0x10] sm:%s227] %v240
                %v242 = vld [vmem:[%s234 + $0x30] sm:%s227]
                %243 = vst [vmem:[%s235 + $0x18] sm:%s227] %v242
                %v244 = vld [vmem:[%s234 + $0x40] sm:%s227]
                %245 = vst [vmem:[%s235 + $0x20] sm:%s227] %v244
                %v246 = vld [vmem:[%s234 + $0x50] sm:%s227]
                %247 = vst [vmem:[%s235 + $0x28] sm:%s227] %v246
                %v248 = vld [vmem:[%s234 + $0x60] sm:%s227]
                %249 = vst [vmem:[%s235 + $0x30] sm:%s227] %v248
                %v250 = vld [vmem:[%s234 + $0x70] sm:%s227]
                %251 = vst [vmem:[%s235 + $0x38] sm:%s227] %v250
                %v252 = vld [vmem:[%s234 + $0x80] sm:%s227]
                %253 = vst [vmem:[%s235 + $0x40] sm:%s227] %v252
                %v254 = vld [vmem:[%s234 + $0x90] sm:%s227]
                %255 = vst [vmem:[%s235 + $0x48] sm:%s227] %v254
                %v256 = vld [vmem:[%s234 + $0xa0] sm:%s227]
                %257 = vst [vmem:[%s235 + $0x50] sm:%s227] %v256
                %v258 = vld [vmem:[%s234 + $0xb0] sm:%s227]
                %259 = vst [vmem:[%s235 + $0x58] sm:%s227] %v258
                %v260 = vld [vmem:[%s234 + $0xc0] sm:%s227]
                %261 = vst [vmem:[%s235 + $0x60] sm:%s227] %v260
                %v262 = vld [vmem:[%s234 + $0xd0] sm:%s227]
                %263 = vst [vmem:[%s235 + $0x68] sm:%s227] %v262
                %v264 = vld [vmem:[%s234 + $0xe0] sm:%s227]
                %265 = vst [vmem:[%s235 + $0x70] sm:%s227] %v264
                %v266 = vld [vmem:[%s234 + $0xf0] sm:%s227]
                %267 = vst [vmem:[%s235 + $0x78] sm:%s227] %v266
                %v268 = vld [vmem:[%s234 + $0x100] sm:%s227]
                %269 = vst [vmem:[%s235 + $0x80] sm:%s227] %v268
                %v270 = vld [vmem:[%s234 + $0x110] sm:%s227]
                %271 = vst [vmem:[%s235 + $0x88] sm:%s227] %v270
                %v272 = vld [vmem:[%s234 + $0x120] sm:%s227]
                %273 = vst [vmem:[%s235 + $0x90] sm:%s227] %v272
                %v274 = vld [vmem:[%s234 + $0x130] sm:%s227]
                %275 = vst [vmem:[%s235 + $0x98] sm:%s227] %v274
                %v276 = vld [vmem:[%s234 + $0x140] sm:%s227]
                %277 = vst [vmem:[%s235 + $0xa0] sm:%s227] %v276
                %v278 = vld [vmem:[%s234 + $0x150] sm:%s227]
                %279 = vst [vmem:[%s235 + $0xa8] sm:%s227] %v278
                %v280 = vld [vmem:[%s234 + $0x160] sm:%s227]
                %281 = vst [vmem:[%s235 + $0xb0] sm:%s227] %v280
                %v282 = vld [vmem:[%s234 + $0x170] sm:%s227]
                %283 = vst [vmem:[%s235 + $0xb8] sm:%s227] %v282
                %v284 = vld [vmem:[%s234 + $0x180] sm:%s227]
                %285 = vst [vmem:[%s235 + $0xc0] sm:%s227] %v284
                %v286 = vld [vmem:[%s234 + $0x190] sm:%s227]
                %287 = vst [vmem:[%s235 + $0xc8] sm:%s227] %v286
                %v288 = vld [vmem:[%s234 + $0x1a0] sm:%s227]
                %289 = vst [vmem:[%s235 + $0xd0] sm:%s227] %v288
                %v290 = vld [vmem:[%s234 + $0x1b0] sm:%s227]
                %291 = vst [vmem:[%s235 + $0xd8] sm:%s227] %v290
                %v292 = vld [vmem:[%s234 + $0x1c0] sm:%s227]
                %293 = vst [vmem:[%s235 + $0xe0] sm:%s227] %v292
                %v294 = vld [vmem:[%s234 + $0x1d0] sm:%s227]
                %295 = vst [vmem:[%s235 + $0xe8] sm:%s227] %v294
                %v296 = vld [vmem:[%s234 + $0x1e0] sm:%s227]
                %297 = vst [vmem:[%s235 + $0xf0] sm:%s227] %v296
                %v298 = vld [vmem:[%s234 + $0x1f0] sm:%s227]
                %299 = vst [vmem:[%s235 + $0xf8] sm:%s227] %v298
                %v300 = vld [vmem:[%s234 + $0x200] sm:%s227]
                %301 = vst [vmem:[%s235 + $0x100] sm:%s227] %v300
                %v302 = vld [vmem:[%s234 + $0x210] sm:%s227]
                %303 = vst [vmem:[%s235 + $0x108] sm:%s227] %v302
                %v304 = vld [vmem:[%s234 + $0x220] sm:%s227]
                %305 = vst [vmem:[%s235 + $0x110] sm:%s227] %v304
                %v306 = vld [vmem:[%s234 + $0x230] sm:%s227]
                %307 = vst [vmem:[%s235 + $0x118] sm:%s227] %v306
                %v308 = vld [vmem:[%s234 + $0x240] sm:%s227]
                %309 = vst [vmem:[%s235 + $0x120] sm:%s227] %v308
                %v310 = vld [vmem:[%s234 + $0x250] sm:%s227]
                %311 = vst [vmem:[%s235 + $0x128] sm:%s227] %v310
                %v312 = vld [vmem:[%s234 + $0x260] sm:%s227]
                %313 = vst [vmem:[%s235 + $0x130] sm:%s227] %v312
                %v314 = vld [vmem:[%s234 + $0x270] sm:%s227]
                %315 = vst [vmem:[%s235 + $0x138] sm:%s227] %v314
                %v316 = vld [vmem:[%s234 + $0x280] sm:%s227]
                %317 = vst [vmem:[%s235 + $0x140] sm:%s227] %v316
                %v318 = vld [vmem:[%s234 + $0x290] sm:%s227]
                %319 = vst [vmem:[%s235 + $0x148] sm:%s227] %v318
                %v320 = vld [vmem:[%s234 + $0x2a0] sm:%s227]
                %321 = vst [vmem:[%s235 + $0x150] sm:%s227] %v320
                %v322 = vld [vmem:[%s234 + $0x2b0] sm:%s227]
                %323 = vst [vmem:[%s235 + $0x158] sm:%s227] %v322
                %v324 = vld [vmem:[%s234 + $0x2c0] sm:%s227]
                %325 = vst [vmem:[%s235 + $0x160] sm:%s227] %v324
                %v326 = vld [vmem:[%s234 + $0x2d0] sm:%s227]
                %327 = vst [vmem:[%s235 + $0x168] sm:%s227] %v326
                %v328 = vld [vmem:[%s234 + $0x2e0] sm:%s227]
                %329 = vst [vmem:[%s235 + $0x170] sm:%s227] %v328
                %v330 = vld [vmem:[%s234 + $0x2f0] sm:%s227]
                %331 = vst [vmem:[%s235 + $0x178] sm:%s227] %v330
                %v332 = vld [vmem:[%s234 + $0x300] sm:%s227]
                %333 = vst [vmem:[%s235 + $0x180] sm:%s227] %v332
                %v334 = vld [vmem:[%s234 + $0x310] sm:%s227]
                %335 = vst [vmem:[%s235 + $0x188] sm:%s227] %v334
                %v336 = vld [vmem:[%s234 + $0x320] sm:%s227]
                %337 = vst [vmem:[%s235 + $0x190] sm:%s227] %v336
                %v338 = vld [vmem:[%s234 + $0x330] sm:%s227]
                %339 = vst [vmem:[%s235 + $0x198] sm:%s227] %v338
                %v340 = vld [vmem:[%s234 + $0x340] sm:%s227]
                %341 = vst [vmem:[%s235 + $0x1a0] sm:%s227] %v340
                %v342 = vld [vmem:[%s234 + $0x350] sm:%s227]
                %343 = vst [vmem:[%s235 + $0x1a8] sm:%s227] %v342
                %v344 = vld [vmem:[%s234 + $0x360] sm:%s227]
                %345 = vst [vmem:[%s235 + $0x1b0] sm:%s227] %v344
                %v346 = vld [vmem:[%s234 + $0x370] sm:%s227]
                %347 = vst [vmem:[%s235 + $0x1b8] sm:%s227] %v346
                %v348 = vld [vmem:[%s234 + $0x380] sm:%s227]
                %349 = vst [vmem:[%s235 + $0x1c0] sm:%s227] %v348
                %v350 = vld [vmem:[%s234 + $0x390] sm:%s227]
                %351 = vst [vmem:[%s235 + $0x1c8] sm:%s227] %v350
                %v352 = vld [vmem:[%s234 + $0x3a0] sm:%s227]
                %353 = vst [vmem:[%s235 + $0x1d0] sm:%s227] %v352
                %v354 = vld [vmem:[%s234 + $0x3b0] sm:%s227]
                %355 = vst [vmem:[%s235 + $0x1d8] sm:%s227] %v354
                %v356 = vld [vmem:[%s234 + $0x3c0] sm:%s227]
                %357 = vst [vmem:[%s235 + $0x1e0] sm:%s227] %v356
                %v358 = vld [vmem:[%s234 + $0x3d0] sm:%s227]
                %359 = vst [vmem:[%s235 + $0x1e8] sm:%s227] %v358
                %v360 = vld [vmem:[%s234 + $0x3e0] sm:%s227]
                %361 = vst [vmem:[%s235 + $0x1f0] sm:%s227] %v360
                %v362 = vld [vmem:[%s234 + $0x3f0] sm:%s227]
                %363 = vst [vmem:[%s235 + $0x1f8] sm:%s227] %v362
                %v364 = vld [vmem:[%s234 + $0x400] sm:%s227]
                %365 = vst [vmem:[%s235 + $0x200] sm:%s227] %v364
                %v366 = vld [vmem:[%s234 + $0x410] sm:%s227]
                %367 = vst [vmem:[%s235 + $0x208] sm:%s227] %v366
                %v368 = vld [vmem:[%s234 + $0x420] sm:%s227]
                %369 = vst [vmem:[%s235 + $0x210] sm:%s227] %v368
                %v370 = vld [vmem:[%s234 + $0x430] sm:%s227]
                %371 = vst [vmem:[%s235 + $0x218] sm:%s227] %v370
                %v372 = vld [vmem:[%s234 + $0x440] sm:%s227]
                %373 = vst [vmem:[%s235 + $0x220] sm:%s227] %v372
                %v374 = vld [vmem:[%s234 + $0x450] sm:%s227]
                %375 = vst [vmem:[%s235 + $0x228] sm:%s227] %v374
                %v376 = vld [vmem:[%s234 + $0x460] sm:%s227]
                %377 = vst [vmem:[%s235 + $0x230] sm:%s227] %v376
                %v378 = vld [vmem:[%s234 + $0x470] sm:%s227]
                %379 = vst [vmem:[%s235 + $0x238] sm:%s227] %v378
                %v380 = vld [vmem:[%s234 + $0x480] sm:%s227]
                %381 = vst [vmem:[%s235 + $0x240] sm:%s227] %v380
                %v382 = vld [vmem:[%s234 + $0x490] sm:%s227]
                %383 = vst [vmem:[%s235 + $0x248] sm:%s227] %v382
                %v384 = vld [vmem:[%s234 + $0x4a0] sm:%s227]
                %385 = vst [vmem:[%s235 + $0x250] sm:%s227] %v384
                %v386 = vld [vmem:[%s234 + $0x4b0] sm:%s227]
                %387 = vst [vmem:[%s235 + $0x258] sm:%s227] %v386
                %v388 = vld [vmem:[%s234 + $0x4c0] sm:%s227]
                %389 = vst [vmem:[%s235 + $0x260] sm:%s227] %v388
                %v390 = vld [vmem:[%s234 + $0x4d0] sm:%s227]
                %391 = vst [vmem:[%s235 + $0x268] sm:%s227] %v390
                %v392 = vld [vmem:[%s234 + $0x4e0] sm:%s227]
                %393 = vst [vmem:[%s235 + $0x270] sm:%s227] %v392
                %v394 = vld [vmem:[%s234 + $0x4f0] sm:%s227]
                %395 = vst [vmem:[%s235 + $0x278] sm:%s227] %v394
                %v396 = vld [vmem:[%s234 + $0x500] sm:%s227]
                %397 = vst [vmem:[%s235 + $0x280] sm:%s227] %v396
                %v398 = vld [vmem:[%s234 + $0x510] sm:%s227]
                %399 = vst [vmem:[%s235 + $0x288] sm:%s227] %v398
                %v400 = vld [vmem:[%s234 + $0x520] sm:%s227]
                %401 = vst [vmem:[%s235 + $0x290] sm:%s227] %v400
                %v402 = vld [vmem:[%s234 + $0x530] sm:%s227]
                %403 = vst [vmem:[%s235 + $0x298] sm:%s227] %v402
                %v404 = vld [vmem:[%s234 + $0x540] sm:%s227]
                %405 = vst [vmem:[%s235 + $0x2a0] sm:%s227] %v404
                %v406 = vld [vmem:[%s234 + $0x550] sm:%s227]
                %407 = vst [vmem:[%s235 + $0x2a8] sm:%s227] %v406
                %v408 = vld [vmem:[%s234 + $0x560] sm:%s227]
                %409 = vst [vmem:[%s235 + $0x2b0] sm:%s227] %v408
                %v410 = vld [vmem:[%s234 + $0x570] sm:%s227]
                %411 = vst [vmem:[%s235 + $0x2b8] sm:%s227] %v410
                %v412 = vld [vmem:[%s234 + $0x580] sm:%s227]
                %413 = vst [vmem:[%s235 + $0x2c0] sm:%s227] %v412
                %v414 = vld [vmem:[%s234 + $0x590] sm:%s227]
                %415 = vst [vmem:[%s235 + $0x2c8] sm:%s227] %v414
                %v416 = vld [vmem:[%s234 + $0x5a0] sm:%s227]
                %417 = vst [vmem:[%s235 + $0x2d0] sm:%s227] %v416
                %v418 = vld [vmem:[%s234 + $0x5b0] sm:%s227]
                %419 = vst [vmem:[%s235 + $0x2d8] sm:%s227] %v418
                %v420 = vld [vmem:[%s234 + $0x5c0] sm:%s227]
                %421 = vst [vmem:[%s235 + $0x2e0] sm:%s227] %v420
                %v422 = vld [vmem:[%s234 + $0x5d0] sm:%s227]
                %423 = vst [vmem:[%s235 + $0x2e8] sm:%s227] %v422
                %v424 = vld [vmem:[%s234 + $0x5e0] sm:%s227]
                %425 = vst [vmem:[%s235 + $0x2f0] sm:%s227] %v424
                %v426 = vld [vmem:[%s234 + $0x5f0] sm:%s227]
                %427 = vst [vmem:[%s235 + $0x2f8] sm:%s227] %v426
                %v428 = vld [vmem:[%s234 + $0x600] sm:%s227]
                %429 = vst [vmem:[%s235 + $0x300] sm:%s227] %v428
                %v430 = vld [vmem:[%s234 + $0x610] sm:%s227]
                %431 = vst [vmem:[%s235 + $0x308] sm:%s227] %v430
                %v432 = vld [vmem:[%s234 + $0x620] sm:%s227]
                %433 = vst [vmem:[%s235 + $0x310] sm:%s227] %v432
                %v434 = vld [vmem:[%s234 + $0x630] sm:%s227]
                %435 = vst [vmem:[%s235 + $0x318] sm:%s227] %v434
                %v436 = vld [vmem:[%s234 + $0x640] sm:%s227]
                %437 = vst [vmem:[%s235 + $0x320] sm:%s227] %v436
                %v438 = vld [vmem:[%s234 + $0x650] sm:%s227]
                %439 = vst [vmem:[%s235 + $0x328] sm:%s227] %v438
                %v440 = vld [vmem:[%s234 + $0x660] sm:%s227]
                %441 = vst [vmem:[%s235 + $0x330] sm:%s227] %v440
                %v442 = vld [vmem:[%s234 + $0x670] sm:%s227]
                %443 = vst [vmem:[%s235 + $0x338] sm:%s227] %v442
                %v444 = vld [vmem:[%s234 + $0x680] sm:%s227]
                %445 = vst [vmem:[%s235 + $0x340] sm:%s227] %v444
                %v446 = vld [vmem:[%s234 + $0x690] sm:%s227]
                %447 = vst [vmem:[%s235 + $0x348] sm:%s227] %v446
                %v448 = vld [vmem:[%s234 + $0x6a0] sm:%s227]
                %449 = vst [vmem:[%s235 + $0x350] sm:%s227] %v448
                %v450 = vld [vmem:[%s234 + $0x6b0] sm:%s227]
                %451 = vst [vmem:[%s235 + $0x358] sm:%s227] %v450
                %v452 = vld [vmem:[%s234 + $0x6c0] sm:%s227]
                %453 = vst [vmem:[%s235 + $0x360] sm:%s227] %v452
                %v454 = vld [vmem:[%s234 + $0x6d0] sm:%s227]
                %455 = vst [vmem:[%s235 + $0x368] sm:%s227] %v454
                %v456 = vld [vmem:[%s234 + $0x6e0] sm:%s227]
                %457 = vst [vmem:[%s235 + $0x370] sm:%s227] %v456
                %v458 = vld [vmem:[%s234 + $0x6f0] sm:%s227]
                %459 = vst [vmem:[%s235 + $0x378] sm:%s227] %v458
                %v460 = vld [vmem:[%s234 + $0x700] sm:%s227]
                %461 = vst [vmem:[%s235 + $0x380] sm:%s227] %v460
                %v462 = vld [vmem:[%s234 + $0x710] sm:%s227]
                %463 = vst [vmem:[%s235 + $0x388] sm:%s227] %v462
                %v464 = vld [vmem:[%s234 + $0x720] sm:%s227]
                %465 = vst [vmem:[%s235 + $0x390] sm:%s227] %v464
                %v466 = vld [vmem:[%s234 + $0x730] sm:%s227]
                %467 = vst [vmem:[%s235 + $0x398] sm:%s227] %v466
                %v468 = vld [vmem:[%s234 + $0x740] sm:%s227]
                %469 = vst [vmem:[%s235 + $0x3a0] sm:%s227] %v468
                %v470 = vld [vmem:[%s234 + $0x750] sm:%s227]
                %471 = vst [vmem:[%s235 + $0x3a8] sm:%s227] %v470
                %v472 = vld [vmem:[%s234 + $0x760] sm:%s227]
                %473 = vst [vmem:[%s235 + $0x3b0] sm:%s227] %v472
                %v474 = vld [vmem:[%s234 + $0x770] sm:%s227]
                %475 = vst [vmem:[%s235 + $0x3b8] sm:%s227] %v474
                %v476 = vld [vmem:[%s234 + $0x780] sm:%s227]
                %477 = vst [vmem:[%s235 + $0x3c0] sm:%s227] %v476
                %v478 = vld [vmem:[%s234 + $0x790] sm:%s227]
                %479 = vst [vmem:[%s235 + $0x3c8] sm:%s227] %v478
                %v480 = vld [vmem:[%s234 + $0x7a0] sm:%s227]
                %481 = vst [vmem:[%s235 + $0x3d0] sm:%s227] %v480
                %v482 = vld [vmem:[%s234 + $0x7b0] sm:%s227]
                %483 = vst [vmem:[%s235 + $0x3d8] sm:%s227] %v482
                %v484 = vld [vmem:[%s234 + $0x7c0] sm:%s227]
                %485 = vst [vmem:[%s235 + $0x3e0] sm:%s227] %v484
                %v486 = vld [vmem:[%s234 + $0x7d0] sm:%s227]
                %487 = vst [vmem:[%s235 + $0x3e8] sm:%s227] %v486
                %v488 = vld [vmem:[%s234 + $0x7e0] sm:%s227]
                %489 = vst [vmem:[%s235 + $0x3f0] sm:%s227] %v488
                %v490 = vld [vmem:[%s234 + $0x7f0] sm:%s227]
                %491 = vst [vmem:[%s235 + $0x3f8] sm:%s227] %v490
                %v492 = vld [vmem:[%s234 + $0x800] sm:%s227]
                %493 = vst [vmem:[%s235 + $0x400] sm:%s227] %v492
                %v494 = vld [vmem:[%s234 + $0x810] sm:%s227]
                %495 = vst [vmem:[%s235 + $0x408] sm:%s227] %v494
                %v496 = vld [vmem:[%s234 + $0x820] sm:%s227]
                %497 = vst [vmem:[%s235 + $0x410] sm:%s227] %v496
                %v498 = vld [vmem:[%s234 + $0x830] sm:%s227]
                %499 = vst [vmem:[%s235 + $0x418] sm:%s227] %v498
                %v500 = vld [vmem:[%s234 + $0x840] sm:%s227]
                %501 = vst [vmem:[%s235 + $0x420] sm:%s227] %v500
                %v502 = vld [vmem:[%s234 + $0x850] sm:%s227]
                %503 = vst [vmem:[%s235 + $0x428] sm:%s227] %v502
                %v504 = vld [vmem:[%s234 + $0x860] sm:%s227]
                %505 = vst [vmem:[%s235 + $0x430] sm:%s227] %v504
                %v506 = vld [vmem:[%s234 + $0x870] sm:%s227]
                %507 = vst [vmem:[%s235 + $0x438] sm:%s227] %v506
                %v508 = vld [vmem:[%s234 + $0x880] sm:%s227]
                %509 = vst [vmem:[%s235 + $0x440] sm:%s227] %v508
                %v510 = vld [vmem:[%s234 + $0x890] sm:%s227]
                %511 = vst [vmem:[%s235 + $0x448] sm:%s227] %v510
                %v512 = vld [vmem:[%s234 + $0x8a0] sm:%s227]
                %513 = vst [vmem:[%s235 + $0x450] sm:%s227] %v512
                %v514 = vld [vmem:[%s234 + $0x8b0] sm:%s227]
                %515 = vst [vmem:[%s235 + $0x458] sm:%s227] %v514
                %v516 = vld [vmem:[%s234 + $0x8c0] sm:%s227]
                %517 = vst [vmem:[%s235 + $0x460] sm:%s227] %v516
                %v518 = vld [vmem:[%s234 + $0x8d0] sm:%s227]
                %519 = vst [vmem:[%s235 + $0x468] sm:%s227] %v518
                %v520 = vld [vmem:[%s234 + $0x8e0] sm:%s227]
                %521 = vst [vmem:[%s235 + $0x470] sm:%s227] %v520
                %v522 = vld [vmem:[%s234 + $0x8f0] sm:%s227]
                %523 = vst [vmem:[%s235 + $0x478] sm:%s227] %v522
                %v524 = vld [vmem:[%s234 + $0x900] sm:%s227]
                %525 = vst [vmem:[%s235 + $0x480] sm:%s227] %v524
                %v526 = vld [vmem:[%s234 + $0x910] sm:%s227]
                %527 = vst [vmem:[%s235 + $0x488] sm:%s227] %v526
                %v528 = vld [vmem:[%s234 + $0x920] sm:%s227]
                %529 = vst [vmem:[%s235 + $0x490] sm:%s227] %v528
                %v530 = vld [vmem:[%s234 + $0x930] sm:%s227]
                %531 = vst [vmem:[%s235 + $0x498] sm:%s227] %v530
                %v532 = vld [vmem:[%s234 + $0x940] sm:%s227]
                %533 = vst [vmem:[%s235 + $0x4a0] sm:%s227] %v532
                %v534 = vld [vmem:[%s234 + $0x950] sm:%s227]
                %535 = vst [vmem:[%s235 + $0x4a8] sm:%s227] %v534
                %v536 = vld [vmem:[%s234 + $0x960] sm:%s227]
                %537 = vst [vmem:[%s235 + $0x4b0] sm:%s227] %v536
                %v538 = vld [vmem:[%s234 + $0x970] sm:%s227]
                %539 = vst [vmem:[%s235 + $0x4b8] sm:%s227] %v538
                %v540 = vld [vmem:[%s234 + $0x980] sm:%s227]
                %541 = vst [vmem:[%s235 + $0x4c0] sm:%s227] %v540
                %v542 = vld [vmem:[%s234 + $0x990] sm:%s227]
                %543 = vst [vmem:[%s235 + $0x4c8] sm:%s227] %v542
                %v544 = vld [vmem:[%s234 + $0x9a0] sm:%s227]
                %545 = vst [vmem:[%s235 + $0x4d0] sm:%s227] %v544
                %v546 = vld [vmem:[%s234 + $0x9b0] sm:%s227]
                %547 = vst [vmem:[%s235 + $0x4d8] sm:%s227] %v546
                %v548 = vld [vmem:[%s234 + $0x9c0] sm:%s227]
                %549 = vst [vmem:[%s235 + $0x4e0] sm:%s227] %v548
                %v550 = vld [vmem:[%s234 + $0x9d0] sm:%s227]
                %551 = vst [vmem:[%s235 + $0x4e8] sm:%s227] %v550
                %v552 = vld [vmem:[%s234 + $0x9e0] sm:%s227]
                %553 = vst [vmem:[%s235 + $0x4f0] sm:%s227] %v552
                %v554 = vld [vmem:[%s234 + $0x9f0] sm:%s227]
                %555 = vst [vmem:[%s235 + $0x4f8] sm:%s227] %v554
                %v556 = vld [vmem:[%s234 + $0xa00] sm:%s227]
                %557 = vst [vmem:[%s235 + $0x500] sm:%s227] %v556
                %v558 = vld [vmem:[%s234 + $0xa10] sm:%s227]
                %559 = vst [vmem:[%s235 + $0x508] sm:%s227] %v558
                %v560 = vld [vmem:[%s234 + $0xa20] sm:%s227]
                %561 = vst [vmem:[%s235 + $0x510] sm:%s227] %v560
                %v562 = vld [vmem:[%s234 + $0xa30] sm:%s227]
                %563 = vst [vmem:[%s235 + $0x518] sm:%s227] %v562
                %v564 = vld [vmem:[%s234 + $0xa40] sm:%s227]
                %565 = vst [vmem:[%s235 + $0x520] sm:%s227] %v564
                %v566 = vld [vmem:[%s234 + $0xa50] sm:%s227]
                %567 = vst [vmem:[%s235 + $0x528] sm:%s227] %v566
                %v568 = vld [vmem:[%s234 + $0xa60] sm:%s227]
                %569 = vst [vmem:[%s235 + $0x530] sm:%s227] %v568
                %v570 = vld [vmem:[%s234 + $0xa70] sm:%s227]
                %571 = vst [vmem:[%s235 + $0x538] sm:%s227] %v570
                %v572 = vld [vmem:[%s234 + $0xa80] sm:%s227]
                %573 = vst [vmem:[%s235 + $0x540] sm:%s227] %v572
                %v574 = vld [vmem:[%s234 + $0xa90] sm:%s227]
                %575 = vst [vmem:[%s235 + $0x548] sm:%s227] %v574
                %v576 = vld [vmem:[%s234 + $0xaa0] sm:%s227]
                %577 = vst [vmem:[%s235 + $0x550] sm:%s227] %v576
                %v578 = vld [vmem:[%s234 + $0xab0] sm:%s227]
                %579 = vst [vmem:[%s235 + $0x558] sm:%s227] %v578
                %v580 = vld [vmem:[%s234 + $0xac0] sm:%s227]
                %581 = vst [vmem:[%s235 + $0x560] sm:%s227] %v580
                %v582 = vld [vmem:[%s234 + $0xad0] sm:%s227]
                %583 = vst [vmem:[%s235 + $0x568] sm:%s227] %v582
                %v584 = vld [vmem:[%s234 + $0xae0] sm:%s227]
                %585 = vst [vmem:[%s235 + $0x570] sm:%s227] %v584
                %v586 = vld [vmem:[%s234 + $0xaf0] sm:%s227]
                %587 = vst [vmem:[%s235 + $0x578] sm:%s227] %v586
                %v588 = vld [vmem:[%s234 + $0xb00] sm:%s227]
                %589 = vst [vmem:[%s235 + $0x580] sm:%s227] %v588
                %v590 = vld [vmem:[%s234 + $0xb10] sm:%s227]
                %591 = vst [vmem:[%s235 + $0x588] sm:%s227] %v590
                %v592 = vld [vmem:[%s234 + $0xb20] sm:%s227]
                %593 = vst [vmem:[%s235 + $0x590] sm:%s227] %v592
                %v594 = vld [vmem:[%s234 + $0xb30] sm:%s227]
                %595 = vst [vmem:[%s235 + $0x598] sm:%s227] %v594
                %v596 = vld [vmem:[%s234 + $0xb40] sm:%s227]
                %597 = vst [vmem:[%s235 + $0x5a0] sm:%s227] %v596
                %v598 = vld [vmem:[%s234 + $0xb50] sm:%s227]
                %599 = vst [vmem:[%s235 + $0x5a8] sm:%s227] %v598
                %v600 = vld [vmem:[%s234 + $0xb60] sm:%s227]
                %601 = vst [vmem:[%s235 + $0x5b0] sm:%s227] %v600
                %v602 = vld [vmem:[%s234 + $0xb70] sm:%s227]
                %603 = vst [vmem:[%s235 + $0x5b8] sm:%s227] %v602
                %v604 = vld [vmem:[%s234 + $0xb80] sm:%s227]
                %605 = vst [vmem:[%s235 + $0x5c0] sm:%s227] %v604
                %v606 = vld [vmem:[%s234 + $0xb90] sm:%s227]
                %607 = vst [vmem:[%s235 + $0x5c8] sm:%s227] %v606
                %v608 = vld [vmem:[%s234 + $0xba0] sm:%s227]
                %609 = vst [vmem:[%s235 + $0x5d0] sm:%s227] %v608
                %v610 = vld [vmem:[%s234 + $0xbb0] sm:%s227]
                %611 = vst [vmem:[%s235 + $0x5d8] sm:%s227] %v610
                %v612 = vld [vmem:[%s234 + $0xbc0] sm:%s227]
                %613 = vst [vmem:[%s235 + $0x5e0] sm:%s227] %v612
                %v614 = vld [vmem:[%s234 + $0xbd0] sm:%s227]
                %615 = vst [vmem:[%s235 + $0x5e8] sm:%s227] %v614
                %v616 = vld [vmem:[%s234 + $0xbe0] sm:%s227]
                %617 = vst [vmem:[%s235 + $0x5f0] sm:%s227] %v616
                %v618 = vld [vmem:[%s234 + $0xbf0] sm:%s227]
                %619 = vst [vmem:[%s235 + $0x5f8] sm:%s227] %v618
                %v620 = vld [vmem:[%s234 + $0xc00] sm:%s227]
                %621 = vst [vmem:[%s235 + $0x600] sm:%s227] %v620
                %v622 = vld [vmem:[%s234 + $0xc10] sm:%s227]
                %623 = vst [vmem:[%s235 + $0x608] sm:%s227] %v622
                %v624 = vld [vmem:[%s234 + $0xc20] sm:%s227]
                %625 = vst [vmem:[%s235 + $0x610] sm:%s227] %v624
                %v626 = vld [vmem:[%s234 + $0xc30] sm:%s227]
                %627 = vst [vmem:[%s235 + $0x618] sm:%s227] %v626
                %v628 = vld [vmem:[%s234 + $0xc40] sm:%s227]
                %629 = vst [vmem:[%s235 + $0x620] sm:%s227] %v628
                %v630 = vld [vmem:[%s234 + $0xc50] sm:%s227]
                %631 = vst [vmem:[%s235 + $0x628] sm:%s227] %v630
                %v632 = vld [vmem:[%s234 + $0xc60] sm:%s227]
                %633 = vst [vmem:[%s235 + $0x630] sm:%s227] %v632
                %v634 = vld [vmem:[%s234 + $0xc70] sm:%s227]
                %635 = vst [vmem:[%s235 + $0x638] sm:%s227] %v634
                %v636 = vld [vmem:[%s234 + $0xc80] sm:%s227]
                %637 = vst [vmem:[%s235 + $0x640] sm:%s227] %v636
                %v638 = vld [vmem:[%s234 + $0xc90] sm:%s227]
                %639 = vst [vmem:[%s235 + $0x648] sm:%s227] %v638
                %v640 = vld [vmem:[%s234 + $0xca0] sm:%s227]
                %641 = vst [vmem:[%s235 + $0x650] sm:%s227] %v640
                %v642 = vld [vmem:[%s234 + $0xcb0] sm:%s227]
                %643 = vst [vmem:[%s235 + $0x658] sm:%s227] %v642
                %v644 = vld [vmem:[%s234 + $0xcc0] sm:%s227]
                %645 = vst [vmem:[%s235 + $0x660] sm:%s227] %v644
                %v646 = vld [vmem:[%s234 + $0xcd0] sm:%s227]
                %647 = vst [vmem:[%s235 + $0x668] sm:%s227] %v646
                %v648 = vld [vmem:[%s234 + $0xce0] sm:%s227]
                %649 = vst [vmem:[%s235 + $0x670] sm:%s227] %v648
                %v650 = vld [vmem:[%s234 + $0xcf0] sm:%s227]
                %651 = vst [vmem:[%s235 + $0x678] sm:%s227] %v650
                %v652 = vld [vmem:[%s234 + $0xd00] sm:%s227]
                %653 = vst [vmem:[%s235 + $0x680] sm:%s227] %v652
                %v654 = vld [vmem:[%s234 + $0xd10] sm:%s227]
                %655 = vst [vmem:[%s235 + $0x688] sm:%s227] %v654
                %v656 = vld [vmem:[%s234 + $0xd20] sm:%s227]
                %657 = vst [vmem:[%s235 + $0x690] sm:%s227] %v656
                %v658 = vld [vmem:[%s234 + $0xd30] sm:%s227]
                %659 = vst [vmem:[%s235 + $0x698] sm:%s227] %v658
                %v660 = vld [vmem:[%s234 + $0xd40] sm:%s227]
                %661 = vst [vmem:[%s235 + $0x6a0] sm:%s227] %v660
                %v662 = vld [vmem:[%s234 + $0xd50] sm:%s227]
                %663 = vst [vmem:[%s235 + $0x6a8] sm:%s227] %v662
                %v664 = vld [vmem:[%s234 + $0xd60] sm:%s227]
                %665 = vst [vmem:[%s235 + $0x6b0] sm:%s227] %v664
                %v666 = vld [vmem:[%s234 + $0xd70] sm:%s227]
                %667 = vst [vmem:[%s235 + $0x6b8] sm:%s227] %v666
                %v668 = vld [vmem:[%s234 + $0xd80] sm:%s227]
                %669 = vst [vmem:[%s235 + $0x6c0] sm:%s227] %v668
                %v670 = vld [vmem:[%s234 + $0xd90] sm:%s227]
                %671 = vst [vmem:[%s235 + $0x6c8] sm:%s227] %v670
                %v672 = vld [vmem:[%s234 + $0xda0] sm:%s227]
                %673 = vst [vmem:[%s235 + $0x6d0] sm:%s227] %v672
                %v674 = vld [vmem:[%s234 + $0xdb0] sm:%s227]
                %675 = vst [vmem:[%s235 + $0x6d8] sm:%s227] %v674
                %v676 = vld [vmem:[%s234 + $0xdc0] sm:%s227]
                %677 = vst [vmem:[%s235 + $0x6e0] sm:%s227] %v676
                %v678 = vld [vmem:[%s234 + $0xdd0] sm:%s227]
                %679 = vst [vmem:[%s235 + $0x6e8] sm:%s227] %v678
                %v680 = vld [vmem:[%s234 + $0xde0] sm:%s227]
                %681 = vst [vmem:[%s235 + $0x6f0] sm:%s227] %v680
                %v682 = vld [vmem:[%s234 + $0xdf0] sm:%s227]
                %683 = vst [vmem:[%s235 + $0x6f8] sm:%s227] %v682
                %v684 = vld [vmem:[%s234 + $0xe00] sm:%s227]
                %685 = vst [vmem:[%s235 + $0x700] sm:%s227] %v684
                %v686 = vld [vmem:[%s234 + $0xe10] sm:%s227]
                %687 = vst [vmem:[%s235 + $0x708] sm:%s227] %v686
                %v688 = vld [vmem:[%s234 + $0xe20] sm:%s227]
                %689 = vst [vmem:[%s235 + $0x710] sm:%s227] %v688
                %v690 = vld [vmem:[%s234 + $0xe30] sm:%s227]
                %691 = vst [vmem:[%s235 + $0x718] sm:%s227] %v690
                %v692 = vld [vmem:[%s234 + $0xe40] sm:%s227]
                %693 = vst [vmem:[%s235 + $0x720] sm:%s227] %v692
                %v694 = vld [vmem:[%s234 + $0xe50] sm:%s227]
                %695 = vst [vmem:[%s235 + $0x728] sm:%s227] %v694
                %v696 = vld [vmem:[%s234 + $0xe60] sm:%s227]
                %697 = vst [vmem:[%s235 + $0x730] sm:%s227] %v696
                %v698 = vld [vmem:[%s234 + $0xe70] sm:%s227]
                %699 = vst [vmem:[%s235 + $0x738] sm:%s227] %v698
                %v700 = vld [vmem:[%s234 + $0xe80] sm:%s227]
                %701 = vst [vmem:[%s235 + $0x740] sm:%s227] %v700
                %v702 = vld [vmem:[%s234 + $0xe90] sm:%s227]
                %703 = vst [vmem:[%s235 + $0x748] sm:%s227] %v702
                %v704 = vld [vmem:[%s234 + $0xea0] sm:%s227]
                %705 = vst [vmem:[%s235 + $0x750] sm:%s227] %v704
                %v706 = vld [vmem:[%s234 + $0xeb0] sm:%s227]
                %707 = vst [vmem:[%s235 + $0x758] sm:%s227] %v706
                %v708 = vld [vmem:[%s234 + $0xec0] sm:%s227]
                %709 = vst [vmem:[%s235 + $0x760] sm:%s227] %v708
                %v710 = vld [vmem:[%s234 + $0xed0] sm:%s227]
                %711 = vst [vmem:[%s235 + $0x768] sm:%s227] %v710
                %v712 = vld [vmem:[%s234 + $0xee0] sm:%s227]
                %713 = vst [vmem:[%s235 + $0x770] sm:%s227] %v712
                %v714 = vld [vmem:[%s234 + $0xef0] sm:%s227]
                %715 = vst [vmem:[%s235 + $0x778] sm:%s227] %v714
                %v716 = vld [vmem:[%s234 + $0xf00] sm:%s227]
                %717 = vst [vmem:[%s235 + $0x780] sm:%s227] %v716
                %v718 = vld [vmem:[%s234 + $0xf10] sm:%s227]
                %719 = vst [vmem:[%s235 + $0x788] sm:%s227] %v718
                %v720 = vld [vmem:[%s234 + $0xf20] sm:%s227]
                %721 = vst [vmem:[%s235 + $0x790] sm:%s227] %v720
                %v722 = vld [vmem:[%s234 + $0xf30] sm:%s227]
                %723 = vst [vmem:[%s235 + $0x798] sm:%s227] %v722
                %v724 = vld [vmem:[%s234 + $0xf40] sm:%s227]
                %725 = vst [vmem:[%s235 + $0x7a0] sm:%s227] %v724
                %v726 = vld [vmem:[%s234 + $0xf50] sm:%s227]
                %727 = vst [vmem:[%s235 + $0x7a8] sm:%s227] %v726
                %v728 = vld [vmem:[%s234 + $0xf60] sm:%s227]
                %729 = vst [vmem:[%s235 + $0x7b0] sm:%s227] %v728
                %v730 = vld [vmem:[%s234 + $0xf70] sm:%s227]
                %731 = vst [vmem:[%s235 + $0x7b8] sm:%s227] %v730
                %v732 = vld [vmem:[%s234 + $0xf80] sm:%s227]
                %733 = vst [vmem:[%s235 + $0x7c0] sm:%s227] %v732
                %v734 = vld [vmem:[%s234 + $0xf90] sm:%s227]
                %735 = vst [vmem:[%s235 + $0x7c8] sm:%s227] %v734
                %v736 = vld [vmem:[%s234 + $0xfa0] sm:%s227]
                %737 = vst [vmem:[%s235 + $0x7d0] sm:%s227] %v736
                %v738 = vld [vmem:[%s234 + $0xfb0] sm:%s227]
                %739 = vst [vmem:[%s235 + $0x7d8] sm:%s227] %v738
                %v740 = vld [vmem:[%s234 + $0xfc0] sm:%s227]
                %741 = vst [vmem:[%s235 + $0x7e0] sm:%s227] %v740
                %v742 = vld [vmem:[%s234 + $0xfd0] sm:%s227]
                %743 = vst [vmem:[%s235 + $0x7e8] sm:%s227] %v742
                %v744 = vld [vmem:[%s234 + $0xfe0] sm:%s227]
                %745 = vst [vmem:[%s235 + $0x7f0] sm:%s227] %v744
                %v746 = vld [vmem:[%s234 + $0xff0] sm:%s227]
                %747 = vst [vmem:[%s235 + $0x7f8] sm:%s227] %v746
                %v748 = vld [vmem:[%s234 + $0x1000] sm:%s227]
                %749 = vst [vmem:[%s235 + $0x800] sm:%s227] %v748
              $region49: #{tpu_custom_call.1} parent=43 // loop_footer
                %s233 = sadd.s32 1, %s229
              $region50: #{tpu_custom_call.1} parent=43 // loop_footer_branch
                %228 = sbr.rel target = $region46
              $region51: #{tpu_custom_call.1} parent=43 // loop_exit
                _
            $region44: #{tpu_custom_call.1} parent=35 // pred_fallthru
              _
          $region36: #{tpu_custom_call.1} parent=31 // pred_fallthru
            _
          %1276 = vnop
        $region32: #{tpu_custom_call.1} parent=15 // pred_fallthru
          _
      $region16: #{tpu_custom_call.1} parent=5 // pred_fallthru
        _
      %p1277 = scmp.le.s32.totalorder 1, %s13
      %p1278 = scmp.lt.s32.totalorder %s13, 5
      %p1279 = pnand %p1277, %p1278
      %p1280 = pneg %p1279
      // Predicated region
      $region67: #{tpu_custom_call.1} parent=5 // pred_check
        _
      $region68: #{tpu_custom_call.1} parent=5 // pred_check_branch
        %1282 = sbr.rel (%p1279) target = $region70
      $region69: #{tpu_custom_call.1} parent=5 // pred_region
        %s1283 = ssub.s32 %s13, 1
        %s1284 = sand.u32 %s122, 1
        %s1285 = sand.u32 %s122, 1
        %s1286 = smul.addr %s1285, 2056
        %s1287 = scalar_lea.vmem [#allocation2], %s1286
        // Predicated region
        $region71: #{tpu_custom_call.1} parent=69 // pred_check
          %p1288 = pneg %p135
        $region72: #{tpu_custom_call.1} parent=69 // pred_check_branch
          %1290 = sbr.rel (%p1288) target = $region74
        $region73: #{tpu_custom_call.1} parent=69 // pred_region
          _
        $region74: #{tpu_custom_call.1} parent=69 // pred_fallthru
          _
        %p1291 = scmp.lt.s32.totalorder %s22, 1
        %s1292 = scalar_select %p1291, %s22, 1
        %p1293 = scmp.lt.s32.totalorder %s23, 1
        %s1294 = scalar_select %p1293, %s23, 1
        %s1295 = smul.addr %s1292, 2
        %s1296 = sadd.s32 %s1294, %s1295
        %s1297 = smul.addr %s1296, 8
        %s1298 = scalar_lea.vmem %s0, %s1297
        %p1299 = pneg %p53
        %p1300 = pneg %p50
        %p1301 = scmp.lt.s32.totalorder %s22, 1
        %s1302 = scalar_select %p1301, %s22, 1
        %p1303 = scmp.lt.s32.totalorder %s23, 1
        %s1304 = scalar_select %p1303, %s23, 1
        %s1305 = smul.addr %s1302, 2
        %s1306 = sadd.s32 %s1304, %s1305
        %s1307 = smul.addr %s1306, 8
        %s1308 = scalar_lea.vmem %s1, %s1307
        %p1309 = pneg %p81
        %p1310 = pneg %p78
        %p1311 = scmp.lt.s32.totalorder %s22, 1
        %s1312 = scalar_select %p1311, %s22, 1
        %s1313 = smul.addr %s1312, 257
        %s1314 = scalar_lea.vmem %s2, %s1313
        %p1315 = pneg %p107
        %p1316 = pneg %p104
        %s1317 = sand.u32 %s122, 1
        %s1318 = sand.u32 %s122, 1
        %s1319 = smul.addr %s1318, 2056
        %s1320 = scalar_lea.vmem [#allocation2], %s1319
        %p1321 = pneg %p135
        %p1322 = pneg %p132
        %p1323 = pneg %p161
        %p1324 = pneg %p158
        %s1325 = sand.u32 %s148, 1
        %s1326 = scalar_lea.sflag [#allocation4], %s1325
        %s1327 = sand.u32 %s148, 1
        %s1328 = scalar_lea.vmem [#allocation3], %s1327
        %p1329 = scmp.lt.s32.totalorder %s22, 1
        %s1330 = scalar_select %p1329, %s22, 1
        %p1331 = scmp.lt.s32.totalorder %s23, 1
        %s1332 = scalar_select %p1331, %s23, 1
        %s1333 = smul.addr %s1330, 2
        %s1334 = sadd.s32 %s1332, %s1333
        %s1335 = smul.addr %s1334, 8
        %s1336 = scalar_lea.vmem %s0, %s1335
        %p1337 = scmp.lt.s32.totalorder %s22, 1
        %s1338 = scalar_select %p1337, %s22, 1
        %p1339 = scmp.lt.s32.totalorder %s23, 1
        %s1340 = scalar_select %p1339, %s23, 1
        %s1341 = smul.addr %s1338, 2
        %s1342 = sadd.s32 %s1340, %s1341
        %s1343 = smul.addr %s1342, 8
        %s1344 = scalar_lea.vmem %s1, %s1343
        %p1345 = scmp.lt.s32.totalorder %s22, 1
        %s1346 = scalar_select %p1345, %s22, 1
        %s1347 = smul.addr %s1346, 257
        %s1348 = scalar_lea.vmem %s2, %s1347
        %v1349 = vld [vmem:[%s1344] sm:$0xff]
        %v1350 = vld [vmem:[%s1348] sm:$0x1]
        %v1351 = vld [vmem:[%s1348 + $0x1] sm:$0x1]
        %v1352 = vld [vmem:[%s1348 + $0x2] sm:$0x1]
        %v1353 = vld [vmem:[%s1348 + $0x3] sm:$0x1]
        %v1354 = vld [vmem:[%s1348 + $0x4] sm:$0x1]
        %v1355 = vld [vmem:[%s1348 + $0x5] sm:$0x1]
        %v1356 = vld [vmem:[%s1348 + $0x6] sm:$0x1]
        %v1357 = vld [vmem:[%s1348 + $0x7] sm:$0x1]
        %v1358 = vld [vmem:[%s1348 + $0x8] sm:$0x1]
        %v1359 = vld [vmem:[%s1348 + $0x9] sm:$0x1]
        %v1360 = vld [vmem:[%s1348 + $0xa] sm:$0x1]
        %v1361 = vld [vmem:[%s1348 + $0xb] sm:$0x1]
        %v1362 = vld [vmem:[%s1348 + $0xc] sm:$0x1]
        %v1363 = vld [vmem:[%s1348 + $0xd] sm:$0x1]
        %v1364 = vld [vmem:[%s1348 + $0xe] sm:$0x1]
        %v1365 = vld [vmem:[%s1348 + $0xf] sm:$0x1]
        %v1366 = vld [vmem:[%s1348 + $0x10] sm:$0x1]
        %v1367 = vld [vmem:[%s1348 + $0x11] sm:$0x1]
        %v1368 = vld [vmem:[%s1348 + $0x12] sm:$0x1]
        %v1369 = vld [vmem:[%s1348 + $0x13] sm:$0x1]
        %v1370 = vld [vmem:[%s1348 + $0x14] sm:$0x1]
        %v1371 = vld [vmem:[%s1348 + $0x15] sm:$0x1]
        %v1372 = vld [vmem:[%s1348 + $0x16] sm:$0x1]
        %v1373 = vld [vmem:[%s1348 + $0x17] sm:$0x1]
        %v1374 = vld [vmem:[%s1348 + $0x18] sm:$0x1]
        %v1375 = vld [vmem:[%s1348 + $0x19] sm:$0x1]
        %v1376 = vld [vmem:[%s1348 + $0x1a] sm:$0x1]
        %v1377 = vld [vmem:[%s1348 + $0x1b] sm:$0x1]
        %v1378 = vld [vmem:[%s1348 + $0x1c] sm:$0x1]
        %v1379 = vld [vmem:[%s1348 + $0x1d] sm:$0x1]
        %v1380 = vld [vmem:[%s1348 + $0x1e] sm:$0x1]
        %v1381 = vld [vmem:[%s1348 + $0x1f] sm:$0x1]
        %v1382 = vld [vmem:[%s1348 + $0x20] sm:$0x1]
        %v1383 = vld [vmem:[%s1348 + $0x21] sm:$0x1]
        %v1384 = vld [vmem:[%s1348 + $0x22] sm:$0x1]
        %v1385 = vld [vmem:[%s1348 + $0x23] sm:$0x1]
        %v1386 = vld [vmem:[%s1348 + $0x24] sm:$0x1]
        %v1387 = vld [vmem:[%s1348 + $0x25] sm:$0x1]
        %v1388 = vld [vmem:[%s1348 + $0x26] sm:$0x1]
        %v1389 = vld [vmem:[%s1348 + $0x27] sm:$0x1]
        %v1390 = vld [vmem:[%s1348 + $0x28] sm:$0x1]
        %v1391 = vld [vmem:[%s1348 + $0x29] sm:$0x1]
        %v1392 = vld [vmem:[%s1348 + $0x2a] sm:$0x1]
        %v1393 = vld [vmem:[%s1348 + $0x2b] sm:$0x1]
        %v1394 = vld [vmem:[%s1348 + $0x2c] sm:$0x1]
        %v1395 = vld [vmem:[%s1348 + $0x2d] sm:$0x1]
        %v1396 = vld [vmem:[%s1348 + $0x2e] sm:$0x1]
        %v1397 = vld [vmem:[%s1348 + $0x2f] sm:$0x1]
        %v1398 = vld [vmem:[%s1348 + $0x30] sm:$0x1]
        %v1399 = vld [vmem:[%s1348 + $0x31] sm:$0x1]
        %v1400 = vld [vmem:[%s1348 + $0x32] sm:$0x1]
        %v1401 = vld [vmem:[%s1348 + $0x33] sm:$0x1]
        %v1402 = vld [vmem:[%s1348 + $0x34] sm:$0x1]
        %v1403 = vld [vmem:[%s1348 + $0x35] sm:$0x1]
        %v1404 = vld [vmem:[%s1348 + $0x36] sm:$0x1]
        %v1405 = vld [vmem:[%s1348 + $0x37] sm:$0x1]
        %v1406 = vld [vmem:[%s1348 + $0x38] sm:$0x1]
        %v1407 = vld [vmem:[%s1348 + $0x39] sm:$0x1]
        %v1408 = vld [vmem:[%s1348 + $0x3a] sm:$0x1]
        %v1409 = vld [vmem:[%s1348 + $0x3b] sm:$0x1]
        %v1410 = vld [vmem:[%s1348 + $0x3c] sm:$0x1]
        %v1411 = vld [vmem:[%s1348 + $0x3d] sm:$0x1]
        %v1412 = vld [vmem:[%s1348 + $0x3e] sm:$0x1]
        %v1413 = vld [vmem:[%s1348 + $0x3f] sm:$0x1]
        %v1414 = vld [vmem:[%s1348 + $0x40] sm:$0x1]
        %v1415 = vld [vmem:[%s1348 + $0x41] sm:$0x1]
        %v1416 = vld [vmem:[%s1348 + $0x42] sm:$0x1]
        %v1417 = vld [vmem:[%s1348 + $0x43] sm:$0x1]
        %v1418 = vld [vmem:[%s1348 + $0x44] sm:$0x1]
        %v1419 = vld [vmem:[%s1348 + $0x45] sm:$0x1]
        %v1420 = vld [vmem:[%s1348 + $0x46] sm:$0x1]
        %v1421 = vld [vmem:[%s1348 + $0x47] sm:$0x1]
        %v1422 = vld [vmem:[%s1348 + $0x48] sm:$0x1]
        %v1423 = vld [vmem:[%s1348 + $0x49] sm:$0x1]
        %v1424 = vld [vmem:[%s1348 + $0x4a] sm:$0x1]
        %v1425 = vld [vmem:[%s1348 + $0x4b] sm:$0x1]
        %v1426 = vld [vmem:[%s1348 + $0x4c] sm:$0x1]
        %v1427 = vld [vmem:[%s1348 + $0x4d] sm:$0x1]
        %v1428 = vld [vmem:[%s1348 + $0x4e] sm:$0x1]
        %v1429 = vld [vmem:[%s1348 + $0x4f] sm:$0x1]
        %v1430 = vld [vmem:[%s1348 + $0x50] sm:$0x1]
        %v1431 = vld [vmem:[%s1348 + $0x51] sm:$0x1]
        %v1432 = vld [vmem:[%s1348 + $0x52] sm:$0x1]
        %v1433 = vld [vmem:[%s1348 + $0x53] sm:$0x1]
        %v1434 = vld [vmem:[%s1348 + $0x54] sm:$0x1]
        %v1435 = vld [vmem:[%s1348 + $0x55] sm:$0x1]
        %v1436 = vld [vmem:[%s1348 + $0x56] sm:$0x1]
        %v1437 = vld [vmem:[%s1348 + $0x57] sm:$0x1]
        %v1438 = vld [vmem:[%s1348 + $0x58] sm:$0x1]
        %v1439 = vld [vmem:[%s1348 + $0x59] sm:$0x1]
        %v1440 = vld [vmem:[%s1348 + $0x5a] sm:$0x1]
        %v1441 = vld [vmem:[%s1348 + $0x5b] sm:$0x1]
        %v1442 = vld [vmem:[%s1348 + $0x5c] sm:$0x1]
        %v1443 = vld [vmem:[%s1348 + $0x5d] sm:$0x1]
        %v1444 = vld [vmem:[%s1348 + $0x5e] sm:$0x1]
        %v1445 = vld [vmem:[%s1348 + $0x5f] sm:$0x1]
        %v1446 = vld [vmem:[%s1348 + $0x60] sm:$0x1]
        %v1447 = vld [vmem:[%s1348 + $0x61] sm:$0x1]
        %v1448 = vld [vmem:[%s1348 + $0x62] sm:$0x1]
        %v1449 = vld [vmem:[%s1348 + $0x63] sm:$0x1]
        %v1450 = vld [vmem:[%s1348 + $0x64] sm:$0x1]
        %v1451 = vld [vmem:[%s1348 + $0x65] sm:$0x1]
        %v1452 = vld [vmem:[%s1348 + $0x66] sm:$0x1]
        %v1453 = vld [vmem:[%s1348 + $0x67] sm:$0x1]
        %v1454 = vld [vmem:[%s1348 + $0x68] sm:$0x1]
        %v1455 = vld [vmem:[%s1348 + $0x69] sm:$0x1]
        %v1456 = vld [vmem:[%s1348 + $0x6a] sm:$0x1]
        %v1457 = vld [vmem:[%s1348 + $0x6b] sm:$0x1]
        %v1458 = vld [vmem:[%s1348 + $0x6c] sm:$0x1]
        %v1459 = vld [vmem:[%s1348 + $0x6d] sm:$0x1]
        %v1460 = vld [vmem:[%s1348 + $0x6e] sm:$0x1]
        %v1461 = vld [vmem:[%s1348 + $0x6f] sm:$0x1]
        %v1462 = vld [vmem:[%s1348 + $0x70] sm:$0x1]
        %v1463 = vld [vmem:[%s1348 + $0x71] sm:$0x1]
        %v1464 = vld [vmem:[%s1348 + $0x72] sm:$0x1]
        %v1465 = vld [vmem:[%s1348 + $0x73] sm:$0x1]
        %v1466 = vld [vmem:[%s1348 + $0x74] sm:$0x1]
        %v1467 = vld [vmem:[%s1348 + $0x75] sm:$0x1]
        %v1468 = vld [vmem:[%s1348 + $0x76] sm:$0x1]
        %v1469 = vld [vmem:[%s1348 + $0x77] sm:$0x1]
        %v1470 = vld [vmem:[%s1348 + $0x78] sm:$0x1]
        %v1471 = vld [vmem:[%s1348 + $0x79] sm:$0x1]
        %v1472 = vld [vmem:[%s1348 + $0x7a] sm:$0x1]
        %v1473 = vld [vmem:[%s1348 + $0x7b] sm:$0x1]
        %v1474 = vld [vmem:[%s1348 + $0x7c] sm:$0x1]
        %v1475 = vld [vmem:[%s1348 + $0x7d] sm:$0x1]
        %v1476 = vld [vmem:[%s1348 + $0x7e] sm:$0x1]
        %v1477 = vld [vmem:[%s1348 + $0x7f] sm:$0x1]
        %v1478 = vld [vmem:[%s1348 + $0x80] sm:$0x1]
        %v1479 = vld [vmem:[%s1348 + $0x81] sm:$0x1]
        %v1480 = vld [vmem:[%s1348 + $0x82] sm:$0x1]
        %v1481 = vld [vmem:[%s1348 + $0x83] sm:$0x1]
        %v1482 = vld [vmem:[%s1348 + $0x84] sm:$0x1]
        %v1483 = vld [vmem:[%s1348 + $0x85] sm:$0x1]
        %v1484 = vld [vmem:[%s1348 + $0x86] sm:$0x1]
        %v1485 = vld [vmem:[%s1348 + $0x87] sm:$0x1]
        %v1486 = vld [vmem:[%s1348 + $0x88] sm:$0x1]
        %v1487 = vld [vmem:[%s1348 + $0x89] sm:$0x1]
        %v1488 = vld [vmem:[%s1348 + $0x8a] sm:$0x1]
        %v1489 = vld [vmem:[%s1348 + $0x8b] sm:$0x1]
        %v1490 = vld [vmem:[%s1348 + $0x8c] sm:$0x1]
        %v1491 = vld [vmem:[%s1348 + $0x8d] sm:$0x1]
        %v1492 = vld [vmem:[%s1348 + $0x8e] sm:$0x1]
        %v1493 = vld [vmem:[%s1348 + $0x8f] sm:$0x1]
        %v1494 = vld [vmem:[%s1348 + $0x90] sm:$0x1]
        %v1495 = vld [vmem:[%s1348 + $0x91] sm:$0x1]
        %v1496 = vld [vmem:[%s1348 + $0x92] sm:$0x1]
        %v1497 = vld [vmem:[%s1348 + $0x93] sm:$0x1]
        %v1498 = vld [vmem:[%s1348 + $0x94] sm:$0x1]
        %v1499 = vld [vmem:[%s1348 + $0x95] sm:$0x1]
        %v1500 = vld [vmem:[%s1348 + $0x96] sm:$0x1]
        %v1501 = vld [vmem:[%s1348 + $0x97] sm:$0x1]
        %v1502 = vld [vmem:[%s1348 + $0x98] sm:$0x1]
        %v1503 = vld [vmem:[%s1348 + $0x99] sm:$0x1]
        %v1504 = vld [vmem:[%s1348 + $0x9a] sm:$0x1]
        %v1505 = vld [vmem:[%s1348 + $0x9b] sm:$0x1]
        %v1506 = vld [vmem:[%s1348 + $0x9c] sm:$0x1]
        %v1507 = vld [vmem:[%s1348 + $0x9d] sm:$0x1]
        %v1508 = vld [vmem:[%s1348 + $0x9e] sm:$0x1]
        %v1509 = vld [vmem:[%s1348 + $0x9f] sm:$0x1]
        %v1510 = vld [vmem:[%s1348 + $0xa0] sm:$0x1]
        %v1511 = vld [vmem:[%s1348 + $0xa1] sm:$0x1]
        %v1512 = vld [vmem:[%s1348 + $0xa2] sm:$0x1]
        %v1513 = vld [vmem:[%s1348 + $0xa3] sm:$0x1]
        %v1514 = vld [vmem:[%s1348 + $0xa4] sm:$0x1]
        %v1515 = vld [vmem:[%s1348 + $0xa5] sm:$0x1]
        %v1516 = vld [vmem:[%s1348 + $0xa6] sm:$0x1]
        %v1517 = vld [vmem:[%s1348 + $0xa7] sm:$0x1]
        %v1518 = vld [vmem:[%s1348 + $0xa8] sm:$0x1]
        %v1519 = vld [vmem:[%s1348 + $0xa9] sm:$0x1]
        %v1520 = vld [vmem:[%s1348 + $0xaa] sm:$0x1]
        %v1521 = vld [vmem:[%s1348 + $0xab] sm:$0x1]
        %v1522 = vld [vmem:[%s1348 + $0xac] sm:$0x1]
        %v1523 = vld [vmem:[%s1348 + $0xad] sm:$0x1]
        %v1524 = vld [vmem:[%s1348 + $0xae] sm:$0x1]
        %v1525 = vld [vmem:[%s1348 + $0xaf] sm:$0x1]
        %v1526 = vld [vmem:[%s1348 + $0xb0] sm:$0x1]
        %v1527 = vld [vmem:[%s1348 + $0xb1] sm:$0x1]
        %v1528 = vld [vmem:[%s1348 + $0xb2] sm:$0x1]
        %v1529 = vld [vmem:[%s1348 + $0xb3] sm:$0x1]
        %v1530 = vld [vmem:[%s1348 + $0xb4] sm:$0x1]
        %v1531 = vld [vmem:[%s1348 + $0xb5] sm:$0x1]
        %v1532 = vld [vmem:[%s1348 + $0xb6] sm:$0x1]
        %v1533 = vld [vmem:[%s1348 + $0xb7] sm:$0x1]
        %v1534 = vld [vmem:[%s1348 + $0xb8] sm:$0x1]
        %v1535 = vld [vmem:[%s1348 + $0xb9] sm:$0x1]
        %v1536 = vld [vmem:[%s1348 + $0xba] sm:$0x1]
        %v1537 = vld [vmem:[%s1348 + $0xbb] sm:$0x1]
        %v1538 = vld [vmem:[%s1348 + $0xbc] sm:$0x1]
        %v1539 = vld [vmem:[%s1348 + $0xbd] sm:$0x1]
        %v1540 = vld [vmem:[%s1348 + $0xbe] sm:$0x1]
        %v1541 = vld [vmem:[%s1348 + $0xbf] sm:$0x1]
        %v1542 = vld [vmem:[%s1348 + $0xc0] sm:$0x1]
        %v1543 = vld [vmem:[%s1348 + $0xc1] sm:$0x1]
        %v1544 = vld [vmem:[%s1348 + $0xc2] sm:$0x1]
        %v1545 = vld [vmem:[%s1348 + $0xc3] sm:$0x1]
        %v1546 = vld [vmem:[%s1348 + $0xc4] sm:$0x1]
        %v1547 = vld [vmem:[%s1348 + $0xc5] sm:$0x1]
        %v1548 = vld [vmem:[%s1348 + $0xc6] sm:$0x1]
        %v1549 = vld [vmem:[%s1348 + $0xc7] sm:$0x1]
        %v1550 = vld [vmem:[%s1348 + $0xc8] sm:$0x1]
        %v1551 = vld [vmem:[%s1348 + $0xc9] sm:$0x1]
        %v1552 = vld [vmem:[%s1348 + $0xca] sm:$0x1]
        %v1553 = vld [vmem:[%s1348 + $0xcb] sm:$0x1]
        %v1554 = vld [vmem:[%s1348 + $0xcc] sm:$0x1]
        %v1555 = vld [vmem:[%s1348 + $0xcd] sm:$0x1]
        %v1556 = vld [vmem:[%s1348 + $0xce] sm:$0x1]
        %v1557 = vld [vmem:[%s1348 + $0xcf] sm:$0x1]
        %v1558 = vld [vmem:[%s1348 + $0xd0] sm:$0x1]
        %v1559 = vld [vmem:[%s1348 + $0xd1] sm:$0x1]
        %v1560 = vld [vmem:[%s1348 + $0xd2] sm:$0x1]
        %v1561 = vld [vmem:[%s1348 + $0xd3] sm:$0x1]
        %v1562 = vld [vmem:[%s1348 + $0xd4] sm:$0x1]
        %v1563 = vld [vmem:[%s1348 + $0xd5] sm:$0x1]
        %v1564 = vld [vmem:[%s1348 + $0xd6] sm:$0x1]
        %v1565 = vld [vmem:[%s1348 + $0xd7] sm:$0x1]
        %v1566 = vld [vmem:[%s1348 + $0xd8] sm:$0x1]
        %v1567 = vld [vmem:[%s1348 + $0xd9] sm:$0x1]
        %v1568 = vld [vmem:[%s1348 + $0xda] sm:$0x1]
        %v1569 = vld [vmem:[%s1348 + $0xdb] sm:$0x1]
        %v1570 = vld [vmem:[%s1348 + $0xdc] sm:$0x1]
        %v1571 = vld [vmem:[%s1348 + $0xdd] sm:$0x1]
        %v1572 = vld [vmem:[%s1348 + $0xde] sm:$0x1]
        %v1573 = vld [vmem:[%s1348 + $0xdf] sm:$0x1]
        %v1574 = vld [vmem:[%s1348 + $0xe0] sm:$0x1]
        %v1575 = vld [vmem:[%s1348 + $0xe1] sm:$0x1]
        %v1576 = vld [vmem:[%s1348 + $0xe2] sm:$0x1]
        %v1577 = vld [vmem:[%s1348 + $0xe3] sm:$0x1]
        %v1578 = vld [vmem:[%s1348 + $0xe4] sm:$0x1]
        %v1579 = vld [vmem:[%s1348 + $0xe5] sm:$0x1]
        %v1580 = vld [vmem:[%s1348 + $0xe6] sm:$0x1]
        %v1581 = vld [vmem:[%s1348 + $0xe7] sm:$0x1]
        %v1582 = vld [vmem:[%s1348 + $0xe8] sm:$0x1]
        %v1583 = vld [vmem:[%s1348 + $0xe9] sm:$0x1]
        %v1584 = vld [vmem:[%s1348 + $0xea] sm:$0x1]
        %v1585 = vld [vmem:[%s1348 + $0xeb] sm:$0x1]
        %v1586 = vld [vmem:[%s1348 + $0xec] sm:$0x1]
        %v1587 = vld [vmem:[%s1348 + $0xed] sm:$0x1]
        %v1588 = vld [vmem:[%s1348 + $0xee] sm:$0x1]
        %v1589 = vld [vmem:[%s1348 + $0xef] sm:$0x1]
        %v1590 = vld [vmem:[%s1348 + $0xf0] sm:$0x1]
        %v1591 = vld [vmem:[%s1348 + $0xf1] sm:$0x1]
        %v1592 = vld [vmem:[%s1348 + $0xf2] sm:$0x1]
        %v1593 = vld [vmem:[%s1348 + $0xf3] sm:$0x1]
        %v1594 = vld [vmem:[%s1348 + $0xf4] sm:$0x1]
        %v1595 = vld [vmem:[%s1348 + $0xf5] sm:$0x1]
        %v1596 = vld [vmem:[%s1348 + $0xf6] sm:$0x1]
        %v1597 = vld [vmem:[%s1348 + $0xf7] sm:$0x1]
        %v1598 = vld [vmem:[%s1348 + $0xf8] sm:$0x1]
        %v1599 = vld [vmem:[%s1348 + $0xf9] sm:$0x1]
        %v1600 = vld [vmem:[%s1348 + $0xfa] sm:$0x1]
        %v1601 = vld [vmem:[%s1348 + $0xfb] sm:$0x1]
        %v1602 = vld [vmem:[%s1348 + $0xfc] sm:$0x1]
        %v1603 = vld [vmem:[%s1348 + $0xfd] sm:$0x1]
        %v1604 = vld [vmem:[%s1348 + $0xfe] sm:$0x1]
        %v1605 = vld [vmem:[%s1348 + $0xff] sm:$0x1]
        %v1606 = vld [vmem:[%s1348 + $0x100] sm:$0x1]
        %v1607 = vld [vmem:[%s1287] sm:$0xff]
        %v1608 = vld [vmem:[%s1287 + $0x8] sm:$0xff]
        %v1609 = vld [vmem:[%s1287 + $0x10] sm:$0xff]
        %v1610 = vld [vmem:[%s1287 + $0x18] sm:$0xff]
        %v1611 = vld [vmem:[%s1287 + $0x20] sm:$0xff]
        %v1612 = vld [vmem:[%s1287 + $0x28] sm:$0xff]
        %v1613 = vld [vmem:[%s1287 + $0x30] sm:$0xff]
        %v1614 = vld [vmem:[%s1287 + $0x38] sm:$0xff]
        %v1615 = vld [vmem:[%s1287 + $0x40] sm:$0xff]
        %v1616 = vld [vmem:[%s1287 + $0x48] sm:$0xff]
        %v1617 = vld [vmem:[%s1287 + $0x50] sm:$0xff]
        %v1618 = vld [vmem:[%s1287 + $0x58] sm:$0xff]
        %v1619 = vld [vmem:[%s1287 + $0x60] sm:$0xff]
        %v1620 = vld [vmem:[%s1287 + $0x68] sm:$0xff]
        %v1621 = vld [vmem:[%s1287 + $0x70] sm:$0xff]
        %v1622 = vld [vmem:[%s1287 + $0x78] sm:$0xff]
        %v1623 = vld [vmem:[%s1287 + $0x80] sm:$0xff]
        %v1624 = vld [vmem:[%s1287 + $0x88] sm:$0xff]
        %v1625 = vld [vmem:[%s1287 + $0x90] sm:$0xff]
        %v1626 = vld [vmem:[%s1287 + $0x98] sm:$0xff]
        %v1627 = vld [vmem:[%s1287 + $0xa0] sm:$0xff]
        %v1628 = vld [vmem:[%s1287 + $0xa8] sm:$0xff]
        %v1629 = vld [vmem:[%s1287 + $0xb0] sm:$0xff]
        %v1630 = vld [vmem:[%s1287 + $0xb8] sm:$0xff]
        %v1631 = vld [vmem:[%s1287 + $0xc0] sm:$0xff]
        %v1632 = vld [vmem:[%s1287 + $0xc8] sm:$0xff]
        %v1633 = vld [vmem:[%s1287 + $0xd0] sm:$0xff]
        %v1634 = vld [vmem:[%s1287 + $0xd8] sm:$0xff]
        %v1635 = vld [vmem:[%s1287 + $0xe0] sm:$0xff]
        %v1636 = vld [vmem:[%s1287 + $0xe8] sm:$0xff]
        %v1637 = vld [vmem:[%s1287 + $0xf0] sm:$0xff]
        %v1638 = vld [vmem:[%s1287 + $0xf8] sm:$0xff]
        %v1639 = vld [vmem:[%s1287 + $0x100] sm:$0xff]
        %v1640 = vld [vmem:[%s1287 + $0x108] sm:$0xff]
        %v1641 = vld [vmem:[%s1287 + $0x110] sm:$0xff]
        %v1642 = vld [vmem:[%s1287 + $0x118] sm:$0xff]
        %v1643 = vld [vmem:[%s1287 + $0x120] sm:$0xff]
        %v1644 = vld [vmem:[%s1287 + $0x128] sm:$0xff]
        %v1645 = vld [vmem:[%s1287 + $0x130] sm:$0xff]
        %v1646 = vld [vmem:[%s1287 + $0x138] sm:$0xff]
        %v1647 = vld [vmem:[%s1287 + $0x140] sm:$0xff]
        %v1648 = vld [vmem:[%s1287 + $0x148] sm:$0xff]
        %v1649 = vld [vmem:[%s1287 + $0x150] sm:$0xff]
        %v1650 = vld [vmem:[%s1287 + $0x158] sm:$0xff]
        %v1651 = vld [vmem:[%s1287 + $0x160] sm:$0xff]
        %v1652 = vld [vmem:[%s1287 + $0x168] sm:$0xff]
        %v1653 = vld [vmem:[%s1287 + $0x170] sm:$0xff]
        %v1654 = vld [vmem:[%s1287 + $0x178] sm:$0xff]
        %v1655 = vld [vmem:[%s1287 + $0x180] sm:$0xff]
        %v1656 = vld [vmem:[%s1287 + $0x188] sm:$0xff]
        %v1657 = vld [vmem:[%s1287 + $0x190] sm:$0xff]
        %v1658 = vld [vmem:[%s1287 + $0x198] sm:$0xff]
        %v1659 = vld [vmem:[%s1287 + $0x1a0] sm:$0xff]
        %v1660 = vld [vmem:[%s1287 + $0x1a8] sm:$0xff]
        %v1661 = vld [vmem:[%s1287 + $0x1b0] sm:$0xff]
        %v1662 = vld [vmem:[%s1287 + $0x1b8] sm:$0xff]
        %v1663 = vld [vmem:[%s1287 + $0x1c0] sm:$0xff]
        %v1664 = vld [vmem:[%s1287 + $0x1c8] sm:$0xff]
        %v1665 = vld [vmem:[%s1287 + $0x1d0] sm:$0xff]
        %v1666 = vld [vmem:[%s1287 + $0x1d8] sm:$0xff]
        %v1667 = vld [vmem:[%s1287 + $0x1e0] sm:$0xff]
        %v1668 = vld [vmem:[%s1287 + $0x1e8] sm:$0xff]
        %v1669 = vld [vmem:[%s1287 + $0x1f0] sm:$0xff]
        %v1670 = vld [vmem:[%s1287 + $0x1f8] sm:$0xff]
        %v1671 = vld [vmem:[%s1287 + $0x200] sm:$0xff]
        %v1672 = vld [vmem:[%s1287 + $0x208] sm:$0xff]
        %v1673 = vld [vmem:[%s1287 + $0x210] sm:$0xff]
        %v1674 = vld [vmem:[%s1287 + $0x218] sm:$0xff]
        %v1675 = vld [vmem:[%s1287 + $0x220] sm:$0xff]
        %v1676 = vld [vmem:[%s1287 + $0x228] sm:$0xff]
        %v1677 = vld [vmem:[%s1287 + $0x230] sm:$0xff]
        %v1678 = vld [vmem:[%s1287 + $0x238] sm:$0xff]
        %v1679 = vld [vmem:[%s1287 + $0x240] sm:$0xff]
        %v1680 = vld [vmem:[%s1287 + $0x248] sm:$0xff]
        %v1681 = vld [vmem:[%s1287 + $0x250] sm:$0xff]
        %v1682 = vld [vmem:[%s1287 + $0x258] sm:$0xff]
        %v1683 = vld [vmem:[%s1287 + $0x260] sm:$0xff]
        %v1684 = vld [vmem:[%s1287 + $0x268] sm:$0xff]
        %v1685 = vld [vmem:[%s1287 + $0x270] sm:$0xff]
        %v1686 = vld [vmem:[%s1287 + $0x278] sm:$0xff]
        %v1687 = vld [vmem:[%s1287 + $0x280] sm:$0xff]
        %v1688 = vld [vmem:[%s1287 + $0x288] sm:$0xff]
        %v1689 = vld [vmem:[%s1287 + $0x290] sm:$0xff]
        %v1690 = vld [vmem:[%s1287 + $0x298] sm:$0xff]
        %v1691 = vld [vmem:[%s1287 + $0x2a0] sm:$0xff]
        %v1692 = vld [vmem:[%s1287 + $0x2a8] sm:$0xff]
        %v1693 = vld [vmem:[%s1287 + $0x2b0] sm:$0xff]
        %v1694 = vld [vmem:[%s1287 + $0x2b8] sm:$0xff]
        %v1695 = vld [vmem:[%s1287 + $0x2c0] sm:$0xff]
        %v1696 = vld [vmem:[%s1287 + $0x2c8] sm:$0xff]
        %v1697 = vld [vmem:[%s1287 + $0x2d0] sm:$0xff]
        %v1698 = vld [vmem:[%s1287 + $0x2d8] sm:$0xff]
        %v1699 = vld [vmem:[%s1287 + $0x2e0] sm:$0xff]
        %v1700 = vld [vmem:[%s1287 + $0x2e8] sm:$0xff]
        %v1701 = vld [vmem:[%s1287 + $0x2f0] sm:$0xff]
        %v1702 = vld [vmem:[%s1287 + $0x2f8] sm:$0xff]
        %v1703 = vld [vmem:[%s1287 + $0x300] sm:$0xff]
        %v1704 = vld [vmem:[%s1287 + $0x308] sm:$0xff]
        %v1705 = vld [vmem:[%s1287 + $0x310] sm:$0xff]
        %v1706 = vld [vmem:[%s1287 + $0x318] sm:$0xff]
        %v1707 = vld [vmem:[%s1287 + $0x320] sm:$0xff]
        %v1708 = vld [vmem:[%s1287 + $0x328] sm:$0xff]
        %v1709 = vld [vmem:[%s1287 + $0x330] sm:$0xff]
        %v1710 = vld [vmem:[%s1287 + $0x338] sm:$0xff]
        %v1711 = vld [vmem:[%s1287 + $0x340] sm:$0xff]
        %v1712 = vld [vmem:[%s1287 + $0x348] sm:$0xff]
        %v1713 = vld [vmem:[%s1287 + $0x350] sm:$0xff]
        %v1714 = vld [vmem:[%s1287 + $0x358] sm:$0xff]
        %v1715 = vld [vmem:[%s1287 + $0x360] sm:$0xff]
        %v1716 = vld [vmem:[%s1287 + $0x368] sm:$0xff]
        %v1717 = vld [vmem:[%s1287 + $0x370] sm:$0xff]
        %v1718 = vld [vmem:[%s1287 + $0x378] sm:$0xff]
        %v1719 = vld [vmem:[%s1287 + $0x380] sm:$0xff]
        %v1720 = vld [vmem:[%s1287 + $0x388] sm:$0xff]
        %v1721 = vld [vmem:[%s1287 + $0x390] sm:$0xff]
        %v1722 = vld [vmem:[%s1287 + $0x398] sm:$0xff]
        %v1723 = vld [vmem:[%s1287 + $0x3a0] sm:$0xff]
        %v1724 = vld [vmem:[%s1287 + $0x3a8] sm:$0xff]
        %v1725 = vld [vmem:[%s1287 + $0x3b0] sm:$0xff]
        %v1726 = vld [vmem:[%s1287 + $0x3b8] sm:$0xff]
        %v1727 = vld [vmem:[%s1287 + $0x3c0] sm:$0xff]
        %v1728 = vld [vmem:[%s1287 + $0x3c8] sm:$0xff]
        %v1729 = vld [vmem:[%s1287 + $0x3d0] sm:$0xff]
        %v1730 = vld [vmem:[%s1287 + $0x3d8] sm:$0xff]
        %v1731 = vld [vmem:[%s1287 + $0x3e0] sm:$0xff]
        %v1732 = vld [vmem:[%s1287 + $0x3e8] sm:$0xff]
        %v1733 = vld [vmem:[%s1287 + $0x3f0] sm:$0xff]
        %v1734 = vld [vmem:[%s1287 + $0x3f8] sm:$0xff]
        %v1735 = vld [vmem:[%s1287 + $0x400] sm:$0xff]
        %v1736 = vld [vmem:[%s1287 + $0x408] sm:$0xff]
        %v1737 = vld [vmem:[%s1287 + $0x410] sm:$0xff]
        %v1738 = vld [vmem:[%s1287 + $0x418] sm:$0xff]
        %v1739 = vld [vmem:[%s1287 + $0x420] sm:$0xff]
        %v1740 = vld [vmem:[%s1287 + $0x428] sm:$0xff]
        %v1741 = vld [vmem:[%s1287 + $0x430] sm:$0xff]
        %v1742 = vld [vmem:[%s1287 + $0x438] sm:$0xff]
        %v1743 = vld [vmem:[%s1287 + $0x440] sm:$0xff]
        %v1744 = vld [vmem:[%s1287 + $0x448] sm:$0xff]
        %v1745 = vld [vmem:[%s1287 + $0x450] sm:$0xff]
        %v1746 = vld [vmem:[%s1287 + $0x458] sm:$0xff]
        %v1747 = vld [vmem:[%s1287 + $0x460] sm:$0xff]
        %v1748 = vld [vmem:[%s1287 + $0x468] sm:$0xff]
        %v1749 = vld [vmem:[%s1287 + $0x470] sm:$0xff]
        %v1750 = vld [vmem:[%s1287 + $0x478] sm:$0xff]
        %v1751 = vld [vmem:[%s1287 + $0x480] sm:$0xff]
        %v1752 = vld [vmem:[%s1287 + $0x488] sm:$0xff]
        %v1753 = vld [vmem:[%s1287 + $0x490] sm:$0xff]
        %v1754 = vld [vmem:[%s1287 + $0x498] sm:$0xff]
        %v1755 = vld [vmem:[%s1287 + $0x4a0] sm:$0xff]
        %v1756 = vld [vmem:[%s1287 + $0x4a8] sm:$0xff]
        %v1757 = vld [vmem:[%s1287 + $0x4b0] sm:$0xff]
        %v1758 = vld [vmem:[%s1287 + $0x4b8] sm:$0xff]
        %v1759 = vld [vmem:[%s1287 + $0x4c0] sm:$0xff]
        %v1760 = vld [vmem:[%s1287 + $0x4c8] sm:$0xff]
        %v1761 = vld [vmem:[%s1287 + $0x4d0] sm:$0xff]
        %v1762 = vld [vmem:[%s1287 + $0x4d8] sm:$0xff]
        %v1763 = vld [vmem:[%s1287 + $0x4e0] sm:$0xff]
        %v1764 = vld [vmem:[%s1287 + $0x4e8] sm:$0xff]
        %v1765 = vld [vmem:[%s1287 + $0x4f0] sm:$0xff]
        %v1766 = vld [vmem:[%s1287 + $0x4f8] sm:$0xff]
        %v1767 = vld [vmem:[%s1287 + $0x500] sm:$0xff]
        %v1768 = vld [vmem:[%s1287 + $0x508] sm:$0xff]
        %v1769 = vld [vmem:[%s1287 + $0x510] sm:$0xff]
        %v1770 = vld [vmem:[%s1287 + $0x518] sm:$0xff]
        %v1771 = vld [vmem:[%s1287 + $0x520] sm:$0xff]
        %v1772 = vld [vmem:[%s1287 + $0x528] sm:$0xff]
        %v1773 = vld [vmem:[%s1287 + $0x530] sm:$0xff]
        %v1774 = vld [vmem:[%s1287 + $0x538] sm:$0xff]
        %v1775 = vld [vmem:[%s1287 + $0x540] sm:$0xff]
        %v1776 = vld [vmem:[%s1287 + $0x548] sm:$0xff]
        %v1777 = vld [vmem:[%s1287 + $0x550] sm:$0xff]
        %v1778 = vld [vmem:[%s1287 + $0x558] sm:$0xff]
        %v1779 = vld [vmem:[%s1287 + $0x560] sm:$0xff]
        %v1780 = vld [vmem:[%s1287 + $0x568] sm:$0xff]
        %v1781 = vld [vmem:[%s1287 + $0x570] sm:$0xff]
        %v1782 = vld [vmem:[%s1287 + $0x578] sm:$0xff]
        %v1783 = vld [vmem:[%s1287 + $0x580] sm:$0xff]
        %v1784 = vld [vmem:[%s1287 + $0x588] sm:$0xff]
        %v1785 = vld [vmem:[%s1287 + $0x590] sm:$0xff]
        %v1786 = vld [vmem:[%s1287 + $0x598] sm:$0xff]
        %v1787 = vld [vmem:[%s1287 + $0x5a0] sm:$0xff]
        %v1788 = vld [vmem:[%s1287 + $0x5a8] sm:$0xff]
        %v1789 = vld [vmem:[%s1287 + $0x5b0] sm:$0xff]
        %v1790 = vld [vmem:[%s1287 + $0x5b8] sm:$0xff]
        %v1791 = vld [vmem:[%s1287 + $0x5c0] sm:$0xff]
        %v1792 = vld [vmem:[%s1287 + $0x5c8] sm:$0xff]
        %v1793 = vld [vmem:[%s1287 + $0x5d0] sm:$0xff]
        %v1794 = vld [vmem:[%s1287 + $0x5d8] sm:$0xff]
        %v1795 = vld [vmem:[%s1287 + $0x5e0] sm:$0xff]
        %v1796 = vld [vmem:[%s1287 + $0x5e8] sm:$0xff]
        %v1797 = vld [vmem:[%s1287 + $0x5f0] sm:$0xff]
        %v1798 = vld [vmem:[%s1287 + $0x5f8] sm:$0xff]
        %v1799 = vld [vmem:[%s1287 + $0x600] sm:$0xff]
        %v1800 = vld [vmem:[%s1287 + $0x608] sm:$0xff]
        %v1801 = vld [vmem:[%s1287 + $0x610] sm:$0xff]
        %v1802 = vld [vmem:[%s1287 + $0x618] sm:$0xff]
        %v1803 = vld [vmem:[%s1287 + $0x620] sm:$0xff]
        %v1804 = vld [vmem:[%s1287 + $0x628] sm:$0xff]
        %v1805 = vld [vmem:[%s1287 + $0x630] sm:$0xff]
        %v1806 = vld [vmem:[%s1287 + $0x638] sm:$0xff]
        %v1807 = vld [vmem:[%s1287 + $0x640] sm:$0xff]
        %v1808 = vld [vmem:[%s1287 + $0x648] sm:$0xff]
        %v1809 = vld [vmem:[%s1287 + $0x650] sm:$0xff]
        %v1810 = vld [vmem:[%s1287 + $0x658] sm:$0xff]
        %v1811 = vld [vmem:[%s1287 + $0x660] sm:$0xff]
        %v1812 = vld [vmem:[%s1287 + $0x668] sm:$0xff]
        %v1813 = vld [vmem:[%s1287 + $0x670] sm:$0xff]
        %v1814 = vld [vmem:[%s1287 + $0x678] sm:$0xff]
        %v1815 = vld [vmem:[%s1287 + $0x680] sm:$0xff]
        %v1816 = vld [vmem:[%s1287 + $0x688] sm:$0xff]
        %v1817 = vld [vmem:[%s1287 + $0x690] sm:$0xff]
        %v1818 = vld [vmem:[%s1287 + $0x698] sm:$0xff]
        %v1819 = vld [vmem:[%s1287 + $0x6a0] sm:$0xff]
        %v1820 = vld [vmem:[%s1287 + $0x6a8] sm:$0xff]
        %v1821 = vld [vmem:[%s1287 + $0x6b0] sm:$0xff]
        %v1822 = vld [vmem:[%s1287 + $0x6b8] sm:$0xff]
        %v1823 = vld [vmem:[%s1287 + $0x6c0] sm:$0xff]
        %v1824 = vld [vmem:[%s1287 + $0x6c8] sm:$0xff]
        %v1825 = vld [vmem:[%s1287 + $0x6d0] sm:$0xff]
        %v1826 = vld [vmem:[%s1287 + $0x6d8] sm:$0xff]
        %v1827 = vld [vmem:[%s1287 + $0x6e0] sm:$0xff]
        %v1828 = vld [vmem:[%s1287 + $0x6e8] sm:$0xff]
        %v1829 = vld [vmem:[%s1287 + $0x6f0] sm:$0xff]
        %v1830 = vld [vmem:[%s1287 + $0x6f8] sm:$0xff]
        %v1831 = vld [vmem:[%s1287 + $0x700] sm:$0xff]
        %v1832 = vld [vmem:[%s1287 + $0x708] sm:$0xff]
        %v1833 = vld [vmem:[%s1287 + $0x710] sm:$0xff]
        %v1834 = vld [vmem:[%s1287 + $0x718] sm:$0xff]
        %v1835 = vld [vmem:[%s1287 + $0x720] sm:$0xff]
        %v1836 = vld [vmem:[%s1287 + $0x728] sm:$0xff]
        %v1837 = vld [vmem:[%s1287 + $0x730] sm:$0xff]
        %v1838 = vld [vmem:[%s1287 + $0x738] sm:$0xff]
        %v1839 = vld [vmem:[%s1287 + $0x740] sm:$0xff]
        %v1840 = vld [vmem:[%s1287 + $0x748] sm:$0xff]
        %v1841 = vld [vmem:[%s1287 + $0x750] sm:$0xff]
        %v1842 = vld [vmem:[%s1287 + $0x758] sm:$0xff]
        %v1843 = vld [vmem:[%s1287 + $0x760] sm:$0xff]
        %v1844 = vld [vmem:[%s1287 + $0x768] sm:$0xff]
        %v1845 = vld [vmem:[%s1287 + $0x770] sm:$0xff]
        %v1846 = vld [vmem:[%s1287 + $0x778] sm:$0xff]
        %v1847 = vld [vmem:[%s1287 + $0x780] sm:$0xff]
        %v1848 = vld [vmem:[%s1287 + $0x788] sm:$0xff]
        %v1849 = vld [vmem:[%s1287 + $0x790] sm:$0xff]
        %v1850 = vld [vmem:[%s1287 + $0x798] sm:$0xff]
        %v1851 = vld [vmem:[%s1287 + $0x7a0] sm:$0xff]
        %v1852 = vld [vmem:[%s1287 + $0x7a8] sm:$0xff]
        %v1853 = vld [vmem:[%s1287 + $0x7b0] sm:$0xff]
        %v1854 = vld [vmem:[%s1287 + $0x7b8] sm:$0xff]
        %v1855 = vld [vmem:[%s1287 + $0x7c0] sm:$0xff]
        %v1856 = vld [vmem:[%s1287 + $0x7c8] sm:$0xff]
        %v1857 = vld [vmem:[%s1287 + $0x7d0] sm:$0xff]
        %v1858 = vld [vmem:[%s1287 + $0x7d8] sm:$0xff]
        %v1859 = vld [vmem:[%s1287 + $0x7e0] sm:$0xff]
        %v1860 = vld [vmem:[%s1287 + $0x7e8] sm:$0xff]
        %v1861 = vld [vmem:[%s1287 + $0x7f0] sm:$0xff]
        %v1862 = vld [vmem:[%s1287 + $0x7f8] sm:$0xff]
        %v1863 = vld [vmem:[%s1287 + $0x800] sm:$0xff]
        %v2121 = vlaneseq
        %v2122 = vshrl.u32 %v2121, 7
        %v2123 = vsub.s32 0, %v2122
        %v2124 = vrot.slane %v1350, %v2123
        %v2125 = vlaneseq
        %v2126 = vshrl.u32 %v2125, 7
        %v2127 = vsub.s32 0, %v2126
        %v2128 = vrot.slane %v1351, %v2127
        %v2129 = vlaneseq
        %v2130 = vshrl.u32 %v2129, 7
        %v2131 = vsub.s32 0, %v2130
        %v2132 = vrot.slane %v1352, %v2131
        %v2133 = vlaneseq
        %v2134 = vshrl.u32 %v2133, 7
        %v2135 = vsub.s32 0, %v2134
        %v2136 = vrot.slane %v1353, %v2135
        %v2137 = vlaneseq
        %v2138 = vshrl.u32 %v2137, 7
        %v2139 = vsub.s32 0, %v2138
        %v2140 = vrot.slane %v1354, %v2139
        %v2141 = vlaneseq
        %v2142 = vshrl.u32 %v2141, 7
        %v2143 = vsub.s32 0, %v2142
        %v2144 = vrot.slane %v1355, %v2143
        %v2145 = vlaneseq
        %v2146 = vshrl.u32 %v2145, 7
        %v2147 = vsub.s32 0, %v2146
        %v2148 = vrot.slane %v1356, %v2147
        %v2149 = vlaneseq
        %v2150 = vshrl.u32 %v2149, 7
        %v2151 = vsub.s32 0, %v2150
        %v2152 = vrot.slane %v1357, %v2151
        %v2153 = vlaneseq
        %v2154 = vshrl.u32 %v2153, 7
        %v2155 = vsub.s32 0, %v2154
        %v2156 = vrot.slane %v1358, %v2155
        %v2157 = vlaneseq
        %v2158 = vshrl.u32 %v2157, 7
        %v2159 = vsub.s32 0, %v2158
        %v2160 = vrot.slane %v1359, %v2159
        %v2161 = vlaneseq
        %v2162 = vshrl.u32 %v2161, 7
        %v2163 = vsub.s32 0, %v2162
        %v2164 = vrot.slane %v1360, %v2163
        %v2165 = vlaneseq
        %v2166 = vshrl.u32 %v2165, 7
        %v2167 = vsub.s32 0, %v2166
        %v2168 = vrot.slane %v1361, %v2167
        %v2169 = vlaneseq
        %v2170 = vshrl.u32 %v2169, 7
        %v2171 = vsub.s32 0, %v2170
        %v2172 = vrot.slane %v1362, %v2171
        %v2173 = vlaneseq
        %v2174 = vshrl.u32 %v2173, 7
        %v2175 = vsub.s32 0, %v2174
        %v2176 = vrot.slane %v1363, %v2175
        %v2177 = vlaneseq
        %v2178 = vshrl.u32 %v2177, 7
        %v2179 = vsub.s32 0, %v2178
        %v2180 = vrot.slane %v1364, %v2179
        %v2181 = vlaneseq
        %v2182 = vshrl.u32 %v2181, 7
        %v2183 = vsub.s32 0, %v2182
        %v2184 = vrot.slane %v1365, %v2183
        %v2185 = vlaneseq
        %v2186 = vshrl.u32 %v2185, 7
        %v2187 = vsub.s32 0, %v2186
        %v2188 = vrot.slane %v1366, %v2187
        %v2189 = vlaneseq
        %v2190 = vshrl.u32 %v2189, 7
        %v2191 = vsub.s32 0, %v2190
        %v2192 = vrot.slane %v1367, %v2191
        %v2193 = vlaneseq
        %v2194 = vshrl.u32 %v2193, 7
        %v2195 = vsub.s32 0, %v2194
        %v2196 = vrot.slane %v1368, %v2195
        %v2197 = vlaneseq
        %v2198 = vshrl.u32 %v2197, 7
        %v2199 = vsub.s32 0, %v2198
        %v2200 = vrot.slane %v1369, %v2199
        %v2201 = vlaneseq
        %v2202 = vshrl.u32 %v2201, 7
        %v2203 = vsub.s32 0, %v2202
        %v2204 = vrot.slane %v1370, %v2203
        %v2205 = vlaneseq
        %v2206 = vshrl.u32 %v2205, 7
        %v2207 = vsub.s32 0, %v2206
        %v2208 = vrot.slane %v1371, %v2207
        %v2209 = vlaneseq
        %v2210 = vshrl.u32 %v2209, 7
        %v2211 = vsub.s32 0, %v2210
        %v2212 = vrot.slane %v1372, %v2211
        %v2213 = vlaneseq
        %v2214 = vshrl.u32 %v2213, 7
        %v2215 = vsub.s32 0, %v2214
        %v2216 = vrot.slane %v1373, %v2215
        %v2217 = vlaneseq
        %v2218 = vshrl.u32 %v2217, 7
        %v2219 = vsub.s32 0, %v2218
        %v2220 = vrot.slane %v1374, %v2219
        %v2221 = vlaneseq
        %v2222 = vshrl.u32 %v2221, 7
        %v2223 = vsub.s32 0, %v2222
        %v2224 = vrot.slane %v1375, %v2223
        %v2225 = vlaneseq
        %v2226 = vshrl.u32 %v2225, 7
        %v2227 = vsub.s32 0, %v2226
        %v2228 = vrot.slane %v1376, %v2227
        %v2229 = vlaneseq
        %v2230 = vshrl.u32 %v2229, 7
        %v2231 = vsub.s32 0, %v2230
        %v2232 = vrot.slane %v1377, %v2231
        %v2233 = vlaneseq
        %v2234 = vshrl.u32 %v2233, 7
        %v2235 = vsub.s32 0, %v2234
        %v2236 = vrot.slane %v1378, %v2235
        %v2237 = vlaneseq
        %v2238 = vshrl.u32 %v2237, 7
        %v2239 = vsub.s32 0, %v2238
        %v2240 = vrot.slane %v1379, %v2239
        %v2241 = vlaneseq
        %v2242 = vshrl.u32 %v2241, 7
        %v2243 = vsub.s32 0, %v2242
        %v2244 = vrot.slane %v1380, %v2243
        %v2245 = vlaneseq
        %v2246 = vshrl.u32 %v2245, 7
        %v2247 = vsub.s32 0, %v2246
        %v2248 = vrot.slane %v1381, %v2247
        %v2249 = vlaneseq
        %v2250 = vshrl.u32 %v2249, 7
        %v2251 = vsub.s32 0, %v2250
        %v2252 = vrot.slane %v1382, %v2251
        %v2253 = vlaneseq
        %v2254 = vshrl.u32 %v2253, 7
        %v2255 = vsub.s32 0, %v2254
        %v2256 = vrot.slane %v1383, %v2255
        %v2257 = vlaneseq
        %v2258 = vshrl.u32 %v2257, 7
        %v2259 = vsub.s32 0, %v2258
        %v2260 = vrot.slane %v1384, %v2259
        %v2261 = vlaneseq
        %v2262 = vshrl.u32 %v2261, 7
        %v2263 = vsub.s32 0, %v2262
        %v2264 = vrot.slane %v1385, %v2263
        %v2265 = vlaneseq
        %v2266 = vshrl.u32 %v2265, 7
        %v2267 = vsub.s32 0, %v2266
        %v2268 = vrot.slane %v1386, %v2267
        %v2269 = vlaneseq
        %v2270 = vshrl.u32 %v2269, 7
        %v2271 = vsub.s32 0, %v2270
        %v2272 = vrot.slane %v1387, %v2271
        %v2273 = vlaneseq
        %v2274 = vshrl.u32 %v2273, 7
        %v2275 = vsub.s32 0, %v2274
        %v2276 = vrot.slane %v1388, %v2275
        %v2277 = vlaneseq
        %v2278 = vshrl.u32 %v2277, 7
        %v2279 = vsub.s32 0, %v2278
        %v2280 = vrot.slane %v1389, %v2279
        %v2281 = vlaneseq
        %v2282 = vshrl.u32 %v2281, 7
        %v2283 = vsub.s32 0, %v2282
        %v2284 = vrot.slane %v1390, %v2283
        %v2285 = vlaneseq
        %v2286 = vshrl.u32 %v2285, 7
        %v2287 = vsub.s32 0, %v2286
        %v2288 = vrot.slane %v1391, %v2287
        %v2289 = vlaneseq
        %v2290 = vshrl.u32 %v2289, 7
        %v2291 = vsub.s32 0, %v2290
        %v2292 = vrot.slane %v1392, %v2291
        %v2293 = vlaneseq
        %v2294 = vshrl.u32 %v2293, 7
        %v2295 = vsub.s32 0, %v2294
        %v2296 = vrot.slane %v1393, %v2295
        %v2297 = vlaneseq
        %v2298 = vshrl.u32 %v2297, 7
        %v2299 = vsub.s32 0, %v2298
        %v2300 = vrot.slane %v1394, %v2299
        %v2301 = vlaneseq
        %v2302 = vshrl.u32 %v2301, 7
        %v2303 = vsub.s32 0, %v2302
        %v2304 = vrot.slane %v1395, %v2303
        %v2305 = vlaneseq
        %v2306 = vshrl.u32 %v2305, 7
        %v2307 = vsub.s32 0, %v2306
        %v2308 = vrot.slane %v1396, %v2307
        %v2309 = vlaneseq
        %v2310 = vshrl.u32 %v2309, 7
        %v2311 = vsub.s32 0, %v2310
        %v2312 = vrot.slane %v1397, %v2311
        %v2313 = vlaneseq
        %v2314 = vshrl.u32 %v2313, 7
        %v2315 = vsub.s32 0, %v2314
        %v2316 = vrot.slane %v1398, %v2315
        %v2317 = vlaneseq
        %v2318 = vshrl.u32 %v2317, 7
        %v2319 = vsub.s32 0, %v2318
        %v2320 = vrot.slane %v1399, %v2319
        %v2321 = vlaneseq
        %v2322 = vshrl.u32 %v2321, 7
        %v2323 = vsub.s32 0, %v2322
        %v2324 = vrot.slane %v1400, %v2323
        %v2325 = vlaneseq
        %v2326 = vshrl.u32 %v2325, 7
        %v2327 = vsub.s32 0, %v2326
        %v2328 = vrot.slane %v1401, %v2327
        %v2329 = vlaneseq
        %v2330 = vshrl.u32 %v2329, 7
        %v2331 = vsub.s32 0, %v2330
        %v2332 = vrot.slane %v1402, %v2331
        %v2333 = vlaneseq
        %v2334 = vshrl.u32 %v2333, 7
        %v2335 = vsub.s32 0, %v2334
        %v2336 = vrot.slane %v1403, %v2335
        %v2337 = vlaneseq
        %v2338 = vshrl.u32 %v2337, 7
        %v2339 = vsub.s32 0, %v2338
        %v2340 = vrot.slane %v1404, %v2339
        %v2341 = vlaneseq
        %v2342 = vshrl.u32 %v2341, 7
        %v2343 = vsub.s32 0, %v2342
        %v2344 = vrot.slane %v1405, %v2343
        %v2345 = vlaneseq
        %v2346 = vshrl.u32 %v2345, 7
        %v2347 = vsub.s32 0, %v2346
        %v2348 = vrot.slane %v1406, %v2347
        %v2349 = vlaneseq
        %v2350 = vshrl.u32 %v2349, 7
        %v2351 = vsub.s32 0, %v2350
        %v2352 = vrot.slane %v1407, %v2351
        %v2353 = vlaneseq
        %v2354 = vshrl.u32 %v2353, 7
        %v2355 = vsub.s32 0, %v2354
        %v2356 = vrot.slane %v1408, %v2355
        %v2357 = vlaneseq
        %v2358 = vshrl.u32 %v2357, 7
        %v2359 = vsub.s32 0, %v2358
        %v2360 = vrot.slane %v1409, %v2359
        %v2361 = vlaneseq
        %v2362 = vshrl.u32 %v2361, 7
        %v2363 = vsub.s32 0, %v2362
        %v2364 = vrot.slane %v1410, %v2363
        %v2365 = vlaneseq
        %v2366 = vshrl.u32 %v2365, 7
        %v2367 = vsub.s32 0, %v2366
        %v2368 = vrot.slane %v1411, %v2367
        %v2369 = vlaneseq
        %v2370 = vshrl.u32 %v2369, 7
        %v2371 = vsub.s32 0, %v2370
        %v2372 = vrot.slane %v1412, %v2371
        %v2373 = vlaneseq
        %v2374 = vshrl.u32 %v2373, 7
        %v2375 = vsub.s32 0, %v2374
        %v2376 = vrot.slane %v1413, %v2375
        %v2377 = vlaneseq
        %v2378 = vshrl.u32 %v2377, 7
        %v2379 = vsub.s32 0, %v2378
        %v2380 = vrot.slane %v1414, %v2379
        %v2381 = vlaneseq
        %v2382 = vshrl.u32 %v2381, 7
        %v2383 = vsub.s32 0, %v2382
        %v2384 = vrot.slane %v1415, %v2383
        %v2385 = vlaneseq
        %v2386 = vshrl.u32 %v2385, 7
        %v2387 = vsub.s32 0, %v2386
        %v2388 = vrot.slane %v1416, %v2387
        %v2389 = vlaneseq
        %v2390 = vshrl.u32 %v2389, 7
        %v2391 = vsub.s32 0, %v2390
        %v2392 = vrot.slane %v1417, %v2391
        %v2393 = vlaneseq
        %v2394 = vshrl.u32 %v2393, 7
        %v2395 = vsub.s32 0, %v2394
        %v2396 = vrot.slane %v1418, %v2395
        %v2397 = vlaneseq
        %v2398 = vshrl.u32 %v2397, 7
        %v2399 = vsub.s32 0, %v2398
        %v2400 = vrot.slane %v1419, %v2399
        %v2401 = vlaneseq
        %v2402 = vshrl.u32 %v2401, 7
        %v2403 = vsub.s32 0, %v2402
        %v2404 = vrot.slane %v1420, %v2403
        %v2405 = vlaneseq
        %v2406 = vshrl.u32 %v2405, 7
        %v2407 = vsub.s32 0, %v2406
        %v2408 = vrot.slane %v1421, %v2407
        %v2409 = vlaneseq
        %v2410 = vshrl.u32 %v2409, 7
        %v2411 = vsub.s32 0, %v2410
        %v2412 = vrot.slane %v1422, %v2411
        %v2413 = vlaneseq
        %v2414 = vshrl.u32 %v2413, 7
        %v2415 = vsub.s32 0, %v2414
        %v2416 = vrot.slane %v1423, %v2415
        %v2417 = vlaneseq
        %v2418 = vshrl.u32 %v2417, 7
        %v2419 = vsub.s32 0, %v2418
        %v2420 = vrot.slane %v1424, %v2419
        %v2421 = vlaneseq
        %v2422 = vshrl.u32 %v2421, 7
        %v2423 = vsub.s32 0, %v2422
        %v2424 = vrot.slane %v1425, %v2423
        %v2425 = vlaneseq
        %v2426 = vshrl.u32 %v2425, 7
        %v2427 = vsub.s32 0, %v2426
        %v2428 = vrot.slane %v1426, %v2427
        %v2429 = vlaneseq
        %v2430 = vshrl.u32 %v2429, 7
        %v2431 = vsub.s32 0, %v2430
        %v2432 = vrot.slane %v1427, %v2431
        %v2433 = vlaneseq
        %v2434 = vshrl.u32 %v2433, 7
        %v2435 = vsub.s32 0, %v2434
        %v2436 = vrot.slane %v1428, %v2435
        %v2437 = vlaneseq
        %v2438 = vshrl.u32 %v2437, 7
        %v2439 = vsub.s32 0, %v2438
        %v2440 = vrot.slane %v1429, %v2439
        %v2441 = vlaneseq
        %v2442 = vshrl.u32 %v2441, 7
        %v2443 = vsub.s32 0, %v2442
        %v2444 = vrot.slane %v1430, %v2443
        %v2445 = vlaneseq
        %v2446 = vshrl.u32 %v2445, 7
        %v2447 = vsub.s32 0, %v2446
        %v2448 = vrot.slane %v1431, %v2447
        %v2449 = vlaneseq
        %v2450 = vshrl.u32 %v2449, 7
        %v2451 = vsub.s32 0, %v2450
        %v2452 = vrot.slane %v1432, %v2451
        %v2453 = vlaneseq
        %v2454 = vshrl.u32 %v2453, 7
        %v2455 = vsub.s32 0, %v2454
        %v2456 = vrot.slane %v1433, %v2455
        %v2457 = vlaneseq
        %v2458 = vshrl.u32 %v2457, 7
        %v2459 = vsub.s32 0, %v2458
        %v2460 = vrot.slane %v1434, %v2459
        %v2461 = vlaneseq
        %v2462 = vshrl.u32 %v2461, 7
        %v2463 = vsub.s32 0, %v2462
        %v2464 = vrot.slane %v1435, %v2463
        %v2465 = vlaneseq
        %v2466 = vshrl.u32 %v2465, 7
        %v2467 = vsub.s32 0, %v2466
        %v2468 = vrot.slane %v1436, %v2467
        %v2469 = vlaneseq
        %v2470 = vshrl.u32 %v2469, 7
        %v2471 = vsub.s32 0, %v2470
        %v2472 = vrot.slane %v1437, %v2471
        %v2473 = vlaneseq
        %v2474 = vshrl.u32 %v2473, 7
        %v2475 = vsub.s32 0, %v2474
        %v2476 = vrot.slane %v1438, %v2475
        %v2477 = vlaneseq
        %v2478 = vshrl.u32 %v2477, 7
        %v2479 = vsub.s32 0, %v2478
        %v2480 = vrot.slane %v1439, %v2479
        %v2481 = vlaneseq
        %v2482 = vshrl.u32 %v2481, 7
        %v2483 = vsub.s32 0, %v2482
        %v2484 = vrot.slane %v1440, %v2483
        %v2485 = vlaneseq
        %v2486 = vshrl.u32 %v2485, 7
        %v2487 = vsub.s32 0, %v2486
        %v2488 = vrot.slane %v1441, %v2487
        %v2489 = vlaneseq
        %v2490 = vshrl.u32 %v2489, 7
        %v2491 = vsub.s32 0, %v2490
        %v2492 = vrot.slane %v1442, %v2491
        %v2493 = vlaneseq
        %v2494 = vshrl.u32 %v2493, 7
        %v2495 = vsub.s32 0, %v2494
        %v2496 = vrot.slane %v1443, %v2495
        %v2497 = vlaneseq
        %v2498 = vshrl.u32 %v2497, 7
        %v2499 = vsub.s32 0, %v2498
        %v2500 = vrot.slane %v1444, %v2499
        %v2501 = vlaneseq
        %v2502 = vshrl.u32 %v2501, 7
        %v2503 = vsub.s32 0, %v2502
        %v2504 = vrot.slane %v1445, %v2503
        %v2505 = vlaneseq
        %v2506 = vshrl.u32 %v2505, 7
        %v2507 = vsub.s32 0, %v2506
        %v2508 = vrot.slane %v1446, %v2507
        %v2509 = vlaneseq
        %v2510 = vshrl.u32 %v2509, 7
        %v2511 = vsub.s32 0, %v2510
        %v2512 = vrot.slane %v1447, %v2511
        %v2513 = vlaneseq
        %v2514 = vshrl.u32 %v2513, 7
        %v2515 = vsub.s32 0, %v2514
        %v2516 = vrot.slane %v1448, %v2515
        %v2517 = vlaneseq
        %v2518 = vshrl.u32 %v2517, 7
        %v2519 = vsub.s32 0, %v2518
        %v2520 = vrot.slane %v1449, %v2519
        %v2521 = vlaneseq
        %v2522 = vshrl.u32 %v2521, 7
        %v2523 = vsub.s32 0, %v2522
        %v2524 = vrot.slane %v1450, %v2523
        %v2525 = vlaneseq
        %v2526 = vshrl.u32 %v2525, 7
        %v2527 = vsub.s32 0, %v2526
        %v2528 = vrot.slane %v1451, %v2527
        %v2529 = vlaneseq
        %v2530 = vshrl.u32 %v2529, 7
        %v2531 = vsub.s32 0, %v2530
        %v2532 = vrot.slane %v1452, %v2531
        %v2533 = vlaneseq
        %v2534 = vshrl.u32 %v2533, 7
        %v2535 = vsub.s32 0, %v2534
        %v2536 = vrot.slane %v1453, %v2535
        %v2537 = vlaneseq
        %v2538 = vshrl.u32 %v2537, 7
        %v2539 = vsub.s32 0, %v2538
        %v2540 = vrot.slane %v1454, %v2539
        %v2541 = vlaneseq
        %v2542 = vshrl.u32 %v2541, 7
        %v2543 = vsub.s32 0, %v2542
        %v2544 = vrot.slane %v1455, %v2543
        %v2545 = vlaneseq
        %v2546 = vshrl.u32 %v2545, 7
        %v2547 = vsub.s32 0, %v2546
        %v2548 = vrot.slane %v1456, %v2547
        %v2549 = vlaneseq
        %v2550 = vshrl.u32 %v2549, 7
        %v2551 = vsub.s32 0, %v2550
        %v2552 = vrot.slane %v1457, %v2551
        %v2553 = vlaneseq
        %v2554 = vshrl.u32 %v2553, 7
        %v2555 = vsub.s32 0, %v2554
        %v2556 = vrot.slane %v1458, %v2555
        %v2557 = vlaneseq
        %v2558 = vshrl.u32 %v2557, 7
        %v2559 = vsub.s32 0, %v2558
        %v2560 = vrot.slane %v1459, %v2559
        %v2561 = vlaneseq
        %v2562 = vshrl.u32 %v2561, 7
        %v2563 = vsub.s32 0, %v2562
        %v2564 = vrot.slane %v1460, %v2563
        %v2565 = vlaneseq
        %v2566 = vshrl.u32 %v2565, 7
        %v2567 = vsub.s32 0, %v2566
        %v2568 = vrot.slane %v1461, %v2567
        %v2569 = vlaneseq
        %v2570 = vshrl.u32 %v2569, 7
        %v2571 = vsub.s32 0, %v2570
        %v2572 = vrot.slane %v1462, %v2571
        %v2573 = vlaneseq
        %v2574 = vshrl.u32 %v2573, 7
        %v2575 = vsub.s32 0, %v2574
        %v2576 = vrot.slane %v1463, %v2575
        %v2577 = vlaneseq
        %v2578 = vshrl.u32 %v2577, 7
        %v2579 = vsub.s32 0, %v2578
        %v2580 = vrot.slane %v1464, %v2579
        %v2581 = vlaneseq
        %v2582 = vshrl.u32 %v2581, 7
        %v2583 = vsub.s32 0, %v2582
        %v2584 = vrot.slane %v1465, %v2583
        %v2585 = vlaneseq
        %v2586 = vshrl.u32 %v2585, 7
        %v2587 = vsub.s32 0, %v2586
        %v2588 = vrot.slane %v1466, %v2587
        %v2589 = vlaneseq
        %v2590 = vshrl.u32 %v2589, 7
        %v2591 = vsub.s32 0, %v2590
        %v2592 = vrot.slane %v1467, %v2591
        %v2593 = vlaneseq
        %v2594 = vshrl.u32 %v2593, 7
        %v2595 = vsub.s32 0, %v2594
        %v2596 = vrot.slane %v1468, %v2595
        %v2597 = vlaneseq
        %v2598 = vshrl.u32 %v2597, 7
        %v2599 = vsub.s32 0, %v2598
        %v2600 = vrot.slane %v1469, %v2599
        %v2601 = vlaneseq
        %v2602 = vshrl.u32 %v2601, 7
        %v2603 = vsub.s32 0, %v2602
        %v2604 = vrot.slane %v1470, %v2603
        %v2605 = vlaneseq
        %v2606 = vshrl.u32 %v2605, 7
        %v2607 = vsub.s32 0, %v2606
        %v2608 = vrot.slane %v1471, %v2607
        %v2609 = vlaneseq
        %v2610 = vshrl.u32 %v2609, 7
        %v2611 = vsub.s32 0, %v2610
        %v2612 = vrot.slane %v1472, %v2611
        %v2613 = vlaneseq
        %v2614 = vshrl.u32 %v2613, 7
        %v2615 = vsub.s32 0, %v2614
        %v2616 = vrot.slane %v1473, %v2615
        %v2617 = vlaneseq
        %v2618 = vshrl.u32 %v2617, 7
        %v2619 = vsub.s32 0, %v2618
        %v2620 = vrot.slane %v1474, %v2619
        %v2621 = vlaneseq
        %v2622 = vshrl.u32 %v2621, 7
        %v2623 = vsub.s32 0, %v2622
        %v2624 = vrot.slane %v1475, %v2623
        %v2625 = vlaneseq
        %v2626 = vshrl.u32 %v2625, 7
        %v2627 = vsub.s32 0, %v2626
        %v2628 = vrot.slane %v1476, %v2627
        %v2629 = vlaneseq
        %v2630 = vshrl.u32 %v2629, 7
        %v2631 = vsub.s32 0, %v2630
        %v2632 = vrot.slane %v1477, %v2631
        %v2633 = vlaneseq
        %v2634 = vshrl.u32 %v2633, 7
        %v2635 = vsub.s32 0, %v2634
        %v2636 = vrot.slane %v1478, %v2635
        %v2637 = vlaneseq
        %v2638 = vshrl.u32 %v2637, 7
        %v2639 = vsub.s32 0, %v2638
        %v2640 = vrot.slane %v1479, %v2639
        %v2641 = vlaneseq
        %v2642 = vshrl.u32 %v2641, 7
        %v2643 = vsub.s32 0, %v2642
        %v2644 = vrot.slane %v1480, %v2643
        %v2645 = vlaneseq
        %v2646 = vshrl.u32 %v2645, 7
        %v2647 = vsub.s32 0, %v2646
        %v2648 = vrot.slane %v1481, %v2647
        %v2649 = vlaneseq
        %v2650 = vshrl.u32 %v2649, 7
        %v2651 = vsub.s32 0, %v2650
        %v2652 = vrot.slane %v1482, %v2651
        %v2653 = vlaneseq
        %v2654 = vshrl.u32 %v2653, 7
        %v2655 = vsub.s32 0, %v2654
        %v2656 = vrot.slane %v1483, %v2655
        %v2657 = vlaneseq
        %v2658 = vshrl.u32 %v2657, 7
        %v2659 = vsub.s32 0, %v2658
        %v2660 = vrot.slane %v1484, %v2659
        %v2661 = vlaneseq
        %v2662 = vshrl.u32 %v2661, 7
        %v2663 = vsub.s32 0, %v2662
        %v2664 = vrot.slane %v1485, %v2663
        %v2665 = vlaneseq
        %v2666 = vshrl.u32 %v2665, 7
        %v2667 = vsub.s32 0, %v2666
        %v2668 = vrot.slane %v1486, %v2667
        %v2669 = vlaneseq
        %v2670 = vshrl.u32 %v2669, 7
        %v2671 = vsub.s32 0, %v2670
        %v2672 = vrot.slane %v1487, %v2671
        %v2673 = vlaneseq
        %v2674 = vshrl.u32 %v2673, 7
        %v2675 = vsub.s32 0, %v2674
        %v2676 = vrot.slane %v1488, %v2675
        %v2677 = vlaneseq
        %v2678 = vshrl.u32 %v2677, 7
        %v2679 = vsub.s32 0, %v2678
        %v2680 = vrot.slane %v1489, %v2679
        %v2681 = vlaneseq
        %v2682 = vshrl.u32 %v2681, 7
        %v2683 = vsub.s32 0, %v2682
        %v2684 = vrot.slane %v1490, %v2683
        %v2685 = vlaneseq
        %v2686 = vshrl.u32 %v2685, 7
        %v2687 = vsub.s32 0, %v2686
        %v2688 = vrot.slane %v1491, %v2687
        %v2689 = vlaneseq
        %v2690 = vshrl.u32 %v2689, 7
        %v2691 = vsub.s32 0, %v2690
        %v2692 = vrot.slane %v1492, %v2691
        %v2693 = vlaneseq
        %v2694 = vshrl.u32 %v2693, 7
        %v2695 = vsub.s32 0, %v2694
        %v2696 = vrot.slane %v1493, %v2695
        %v2697 = vlaneseq
        %v2698 = vshrl.u32 %v2697, 7
        %v2699 = vsub.s32 0, %v2698
        %v2700 = vrot.slane %v1494, %v2699
        %v2701 = vlaneseq
        %v2702 = vshrl.u32 %v2701, 7
        %v2703 = vsub.s32 0, %v2702
        %v2704 = vrot.slane %v1495, %v2703
        %v2705 = vlaneseq
        %v2706 = vshrl.u32 %v2705, 7
        %v2707 = vsub.s32 0, %v2706
        %v2708 = vrot.slane %v1496, %v2707
        %v2709 = vlaneseq
        %v2710 = vshrl.u32 %v2709, 7
        %v2711 = vsub.s32 0, %v2710
        %v2712 = vrot.slane %v1497, %v2711
        %v2713 = vlaneseq
        %v2714 = vshrl.u32 %v2713, 7
        %v2715 = vsub.s32 0, %v2714
        %v2716 = vrot.slane %v1498, %v2715
        %v2717 = vlaneseq
        %v2718 = vshrl.u32 %v2717, 7
        %v2719 = vsub.s32 0, %v2718
        %v2720 = vrot.slane %v1499, %v2719
        %v2721 = vlaneseq
        %v2722 = vshrl.u32 %v2721, 7
        %v2723 = vsub.s32 0, %v2722
        %v2724 = vrot.slane %v1500, %v2723
        %v2725 = vlaneseq
        %v2726 = vshrl.u32 %v2725, 7
        %v2727 = vsub.s32 0, %v2726
        %v2728 = vrot.slane %v1501, %v2727
        %v2729 = vlaneseq
        %v2730 = vshrl.u32 %v2729, 7
        %v2731 = vsub.s32 0, %v2730
        %v2732 = vrot.slane %v1502, %v2731
        %v2733 = vlaneseq
        %v2734 = vshrl.u32 %v2733, 7
        %v2735 = vsub.s32 0, %v2734
        %v2736 = vrot.slane %v1503, %v2735
        %v2737 = vlaneseq
        %v2738 = vshrl.u32 %v2737, 7
        %v2739 = vsub.s32 0, %v2738
        %v2740 = vrot.slane %v1504, %v2739
        %v2741 = vlaneseq
        %v2742 = vshrl.u32 %v2741, 7
        %v2743 = vsub.s32 0, %v2742
        %v2744 = vrot.slane %v1505, %v2743
        %v2745 = vlaneseq
        %v2746 = vshrl.u32 %v2745, 7
        %v2747 = vsub.s32 0, %v2746
        %v2748 = vrot.slane %v1506, %v2747
        %v2749 = vlaneseq
        %v2750 = vshrl.u32 %v2749, 7
        %v2751 = vsub.s32 0, %v2750
        %v2752 = vrot.slane %v1507, %v2751
        %v2753 = vlaneseq
        %v2754 = vshrl.u32 %v2753, 7
        %v2755 = vsub.s32 0, %v2754
        %v2756 = vrot.slane %v1508, %v2755
        %v2757 = vlaneseq
        %v2758 = vshrl.u32 %v2757, 7
        %v2759 = vsub.s32 0, %v2758
        %v2760 = vrot.slane %v1509, %v2759
        %v2761 = vlaneseq
        %v2762 = vshrl.u32 %v2761, 7
        %v2763 = vsub.s32 0, %v2762
        %v2764 = vrot.slane %v1510, %v2763
        %v2765 = vlaneseq
        %v2766 = vshrl.u32 %v2765, 7
        %v2767 = vsub.s32 0, %v2766
        %v2768 = vrot.slane %v1511, %v2767
        %v2769 = vlaneseq
        %v2770 = vshrl.u32 %v2769, 7
        %v2771 = vsub.s32 0, %v2770
        %v2772 = vrot.slane %v1512, %v2771
        %v2773 = vlaneseq
        %v2774 = vshrl.u32 %v2773, 7
        %v2775 = vsub.s32 0, %v2774
        %v2776 = vrot.slane %v1513, %v2775
        %v2777 = vlaneseq
        %v2778 = vshrl.u32 %v2777, 7
        %v2779 = vsub.s32 0, %v2778
        %v2780 = vrot.slane %v1514, %v2779
        %v2781 = vlaneseq
        %v2782 = vshrl.u32 %v2781, 7
        %v2783 = vsub.s32 0, %v2782
        %v2784 = vrot.slane %v1515, %v2783
        %v2785 = vlaneseq
        %v2786 = vshrl.u32 %v2785, 7
        %v2787 = vsub.s32 0, %v2786
        %v2788 = vrot.slane %v1516, %v2787
        %v2789 = vlaneseq
        %v2790 = vshrl.u32 %v2789, 7
        %v2791 = vsub.s32 0, %v2790
        %v2792 = vrot.slane %v1517, %v2791
        %v2793 = vlaneseq
        %v2794 = vshrl.u32 %v2793, 7
        %v2795 = vsub.s32 0, %v2794
        %v2796 = vrot.slane %v1518, %v2795
        %v2797 = vlaneseq
        %v2798 = vshrl.u32 %v2797, 7
        %v2799 = vsub.s32 0, %v2798
        %v2800 = vrot.slane %v1519, %v2799
        %v2801 = vlaneseq
        %v2802 = vshrl.u32 %v2801, 7
        %v2803 = vsub.s32 0, %v2802
        %v2804 = vrot.slane %v1520, %v2803
        %v2805 = vlaneseq
        %v2806 = vshrl.u32 %v2805, 7
        %v2807 = vsub.s32 0, %v2806
        %v2808 = vrot.slane %v1521, %v2807
        %v2809 = vlaneseq
        %v2810 = vshrl.u32 %v2809, 7
        %v2811 = vsub.s32 0, %v2810
        %v2812 = vrot.slane %v1522, %v2811
        %v2813 = vlaneseq
        %v2814 = vshrl.u32 %v2813, 7
        %v2815 = vsub.s32 0, %v2814
        %v2816 = vrot.slane %v1523, %v2815
        %v2817 = vlaneseq
        %v2818 = vshrl.u32 %v2817, 7
        %v2819 = vsub.s32 0, %v2818
        %v2820 = vrot.slane %v1524, %v2819
        %v2821 = vlaneseq
        %v2822 = vshrl.u32 %v2821, 7
        %v2823 = vsub.s32 0, %v2822
        %v2824 = vrot.slane %v1525, %v2823
        %v2825 = vlaneseq
        %v2826 = vshrl.u32 %v2825, 7
        %v2827 = vsub.s32 0, %v2826
        %v2828 = vrot.slane %v1526, %v2827
        %v2829 = vlaneseq
        %v2830 = vshrl.u32 %v2829, 7
        %v2831 = vsub.s32 0, %v2830
        %v2832 = vrot.slane %v1527, %v2831
        %v2833 = vlaneseq
        %v2834 = vshrl.u32 %v2833, 7
        %v2835 = vsub.s32 0, %v2834
        %v2836 = vrot.slane %v1528, %v2835
        %v2837 = vlaneseq
        %v2838 = vshrl.u32 %v2837, 7
        %v2839 = vsub.s32 0, %v2838
        %v2840 = vrot.slane %v1529, %v2839
        %v2841 = vlaneseq
        %v2842 = vshrl.u32 %v2841, 7
        %v2843 = vsub.s32 0, %v2842
        %v2844 = vrot.slane %v1530, %v2843
        %v2845 = vlaneseq
        %v2846 = vshrl.u32 %v2845, 7
        %v2847 = vsub.s32 0, %v2846
        %v2848 = vrot.slane %v1531, %v2847
        %v2849 = vlaneseq
        %v2850 = vshrl.u32 %v2849, 7
        %v2851 = vsub.s32 0, %v2850
        %v2852 = vrot.slane %v1532, %v2851
        %v2853 = vlaneseq
        %v2854 = vshrl.u32 %v2853, 7
        %v2855 = vsub.s32 0, %v2854
        %v2856 = vrot.slane %v1533, %v2855
        %v2857 = vlaneseq
        %v2858 = vshrl.u32 %v2857, 7
        %v2859 = vsub.s32 0, %v2858
        %v2860 = vrot.slane %v1534, %v2859
        %v2861 = vlaneseq
        %v2862 = vshrl.u32 %v2861, 7
        %v2863 = vsub.s32 0, %v2862
        %v2864 = vrot.slane %v1535, %v2863
        %v2865 = vlaneseq
        %v2866 = vshrl.u32 %v2865, 7
        %v2867 = vsub.s32 0, %v2866
        %v2868 = vrot.slane %v1536, %v2867
        %v2869 = vlaneseq
        %v2870 = vshrl.u32 %v2869, 7
        %v2871 = vsub.s32 0, %v2870
        %v2872 = vrot.slane %v1537, %v2871
        %v2873 = vlaneseq
        %v2874 = vshrl.u32 %v2873, 7
        %v2875 = vsub.s32 0, %v2874
        %v2876 = vrot.slane %v1538, %v2875
        %v2877 = vlaneseq
        %v2878 = vshrl.u32 %v2877, 7
        %v2879 = vsub.s32 0, %v2878
        %v2880 = vrot.slane %v1539, %v2879
        %v2881 = vlaneseq
        %v2882 = vshrl.u32 %v2881, 7
        %v2883 = vsub.s32 0, %v2882
        %v2884 = vrot.slane %v1540, %v2883
        %v2885 = vlaneseq
        %v2886 = vshrl.u32 %v2885, 7
        %v2887 = vsub.s32 0, %v2886
        %v2888 = vrot.slane %v1541, %v2887
        %v2889 = vlaneseq
        %v2890 = vshrl.u32 %v2889, 7
        %v2891 = vsub.s32 0, %v2890
        %v2892 = vrot.slane %v1542, %v2891
        %v2893 = vlaneseq
        %v2894 = vshrl.u32 %v2893, 7
        %v2895 = vsub.s32 0, %v2894
        %v2896 = vrot.slane %v1543, %v2895
        %v2897 = vlaneseq
        %v2898 = vshrl.u32 %v2897, 7
        %v2899 = vsub.s32 0, %v2898
        %v2900 = vrot.slane %v1544, %v2899
        %v2901 = vlaneseq
        %v2902 = vshrl.u32 %v2901, 7
        %v2903 = vsub.s32 0, %v2902
        %v2904 = vrot.slane %v1545, %v2903
        %v2905 = vlaneseq
        %v2906 = vshrl.u32 %v2905, 7
        %v2907 = vsub.s32 0, %v2906
        %v2908 = vrot.slane %v1546, %v2907
        %v2909 = vlaneseq
        %v2910 = vshrl.u32 %v2909, 7
        %v2911 = vsub.s32 0, %v2910
        %v2912 = vrot.slane %v1547, %v2911
        %v2913 = vlaneseq
        %v2914 = vshrl.u32 %v2913, 7
        %v2915 = vsub.s32 0, %v2914
        %v2916 = vrot.slane %v1548, %v2915
        %v2917 = vlaneseq
        %v2918 = vshrl.u32 %v2917, 7
        %v2919 = vsub.s32 0, %v2918
        %v2920 = vrot.slane %v1549, %v2919
        %v2921 = vlaneseq
        %v2922 = vshrl.u32 %v2921, 7
        %v2923 = vsub.s32 0, %v2922
        %v2924 = vrot.slane %v1550, %v2923
        %v2925 = vlaneseq
        %v2926 = vshrl.u32 %v2925, 7
        %v2927 = vsub.s32 0, %v2926
        %v2928 = vrot.slane %v1551, %v2927
        %v2929 = vlaneseq
        %v2930 = vshrl.u32 %v2929, 7
        %v2931 = vsub.s32 0, %v2930
        %v2932 = vrot.slane %v1552, %v2931
        %v2933 = vlaneseq
        %v2934 = vshrl.u32 %v2933, 7
        %v2935 = vsub.s32 0, %v2934
        %v2936 = vrot.slane %v1553, %v2935
        %v2937 = vlaneseq
        %v2938 = vshrl.u32 %v2937, 7
        %v2939 = vsub.s32 0, %v2938
        %v2940 = vrot.slane %v1554, %v2939
        %v2941 = vlaneseq
        %v2942 = vshrl.u32 %v2941, 7
        %v2943 = vsub.s32 0, %v2942
        %v2944 = vrot.slane %v1555, %v2943
        %v2945 = vlaneseq
        %v2946 = vshrl.u32 %v2945, 7
        %v2947 = vsub.s32 0, %v2946
        %v2948 = vrot.slane %v1556, %v2947
        %v2949 = vlaneseq
        %v2950 = vshrl.u32 %v2949, 7
        %v2951 = vsub.s32 0, %v2950
        %v2952 = vrot.slane %v1557, %v2951
        %v2953 = vlaneseq
        %v2954 = vshrl.u32 %v2953, 7
        %v2955 = vsub.s32 0, %v2954
        %v2956 = vrot.slane %v1558, %v2955
        %v2957 = vlaneseq
        %v2958 = vshrl.u32 %v2957, 7
        %v2959 = vsub.s32 0, %v2958
        %v2960 = vrot.slane %v1559, %v2959
        %v2961 = vlaneseq
        %v2962 = vshrl.u32 %v2961, 7
        %v2963 = vsub.s32 0, %v2962
        %v2964 = vrot.slane %v1560, %v2963
        %v2965 = vlaneseq
        %v2966 = vshrl.u32 %v2965, 7
        %v2967 = vsub.s32 0, %v2966
        %v2968 = vrot.slane %v1561, %v2967
        %v2969 = vlaneseq
        %v2970 = vshrl.u32 %v2969, 7
        %v2971 = vsub.s32 0, %v2970
        %v2972 = vrot.slane %v1562, %v2971
        %v2973 = vlaneseq
        %v2974 = vshrl.u32 %v2973, 7
        %v2975 = vsub.s32 0, %v2974
        %v2976 = vrot.slane %v1563, %v2975
        %v2977 = vlaneseq
        %v2978 = vshrl.u32 %v2977, 7
        %v2979 = vsub.s32 0, %v2978
        %v2980 = vrot.slane %v1564, %v2979
        %v2981 = vlaneseq
        %v2982 = vshrl.u32 %v2981, 7
        %v2983 = vsub.s32 0, %v2982
        %v2984 = vrot.slane %v1565, %v2983
        %v2985 = vlaneseq
        %v2986 = vshrl.u32 %v2985, 7
        %v2987 = vsub.s32 0, %v2986
        %v2988 = vrot.slane %v1566, %v2987
        %v2989 = vlaneseq
        %v2990 = vshrl.u32 %v2989, 7
        %v2991 = vsub.s32 0, %v2990
        %v2992 = vrot.slane %v1567, %v2991
        %v2993 = vlaneseq
        %v2994 = vshrl.u32 %v2993, 7
        %v2995 = vsub.s32 0, %v2994
        %v2996 = vrot.slane %v1568, %v2995
        %v2997 = vlaneseq
        %v2998 = vshrl.u32 %v2997, 7
        %v2999 = vsub.s32 0, %v2998
        %v3000 = vrot.slane %v1569, %v2999
        %v3001 = vlaneseq
        %v3002 = vshrl.u32 %v3001, 7
        %v3003 = vsub.s32 0, %v3002
        %v3004 = vrot.slane %v1570, %v3003
        %v3005 = vlaneseq
        %v3006 = vshrl.u32 %v3005, 7
        %v3007 = vsub.s32 0, %v3006
        %v3008 = vrot.slane %v1571, %v3007
        %v3009 = vlaneseq
        %v3010 = vshrl.u32 %v3009, 7
        %v3011 = vsub.s32 0, %v3010
        %v3012 = vrot.slane %v1572, %v3011
        %v3013 = vlaneseq
        %v3014 = vshrl.u32 %v3013, 7
        %v3015 = vsub.s32 0, %v3014
        %v3016 = vrot.slane %v1573, %v3015
        %v3017 = vlaneseq
        %v3018 = vshrl.u32 %v3017, 7
        %v3019 = vsub.s32 0, %v3018
        %v3020 = vrot.slane %v1574, %v3019
        %v3021 = vlaneseq
        %v3022 = vshrl.u32 %v3021, 7
        %v3023 = vsub.s32 0, %v3022
        %v3024 = vrot.slane %v1575, %v3023
        %v3025 = vlaneseq
        %v3026 = vshrl.u32 %v3025, 7
        %v3027 = vsub.s32 0, %v3026
        %v3028 = vrot.slane %v1576, %v3027
        %v3029 = vlaneseq
        %v3030 = vshrl.u32 %v3029, 7
        %v3031 = vsub.s32 0, %v3030
        %v3032 = vrot.slane %v1577, %v3031
        %v3033 = vlaneseq
        %v3034 = vshrl.u32 %v3033, 7
        %v3035 = vsub.s32 0, %v3034
        %v3036 = vrot.slane %v1578, %v3035
        %v3037 = vlaneseq
        %v3038 = vshrl.u32 %v3037, 7
        %v3039 = vsub.s32 0, %v3038
        %v3040 = vrot.slane %v1579, %v3039
        %v3041 = vlaneseq
        %v3042 = vshrl.u32 %v3041, 7
        %v3043 = vsub.s32 0, %v3042
        %v3044 = vrot.slane %v1580, %v3043
        %v3045 = vlaneseq
        %v3046 = vshrl.u32 %v3045, 7
        %v3047 = vsub.s32 0, %v3046
        %v3048 = vrot.slane %v1581, %v3047
        %v3049 = vlaneseq
        %v3050 = vshrl.u32 %v3049, 7
        %v3051 = vsub.s32 0, %v3050
        %v3052 = vrot.slane %v1582, %v3051
        %v3053 = vlaneseq
        %v3054 = vshrl.u32 %v3053, 7
        %v3055 = vsub.s32 0, %v3054
        %v3056 = vrot.slane %v1583, %v3055
        %v3057 = vlaneseq
        %v3058 = vshrl.u32 %v3057, 7
        %v3059 = vsub.s32 0, %v3058
        %v3060 = vrot.slane %v1584, %v3059
        %v3061 = vlaneseq
        %v3062 = vshrl.u32 %v3061, 7
        %v3063 = vsub.s32 0, %v3062
        %v3064 = vrot.slane %v1585, %v3063
        %v3065 = vlaneseq
        %v3066 = vshrl.u32 %v3065, 7
        %v3067 = vsub.s32 0, %v3066
        %v3068 = vrot.slane %v1586, %v3067
        %v3069 = vlaneseq
        %v3070 = vshrl.u32 %v3069, 7
        %v3071 = vsub.s32 0, %v3070
        %v3072 = vrot.slane %v1587, %v3071
        %v3073 = vlaneseq
        %v3074 = vshrl.u32 %v3073, 7
        %v3075 = vsub.s32 0, %v3074
        %v3076 = vrot.slane %v1588, %v3075
        %v3077 = vlaneseq
        %v3078 = vshrl.u32 %v3077, 7
        %v3079 = vsub.s32 0, %v3078
        %v3080 = vrot.slane %v1589, %v3079
        %v3081 = vlaneseq
        %v3082 = vshrl.u32 %v3081, 7
        %v3083 = vsub.s32 0, %v3082
        %v3084 = vrot.slane %v1590, %v3083
        %v3085 = vlaneseq
        %v3086 = vshrl.u32 %v3085, 7
        %v3087 = vsub.s32 0, %v3086
        %v3088 = vrot.slane %v1591, %v3087
        %v3089 = vlaneseq
        %v3090 = vshrl.u32 %v3089, 7
        %v3091 = vsub.s32 0, %v3090
        %v3092 = vrot.slane %v1592, %v3091
        %v3093 = vlaneseq
        %v3094 = vshrl.u32 %v3093, 7
        %v3095 = vsub.s32 0, %v3094
        %v3096 = vrot.slane %v1593, %v3095
        %v3097 = vlaneseq
        %v3098 = vshrl.u32 %v3097, 7
        %v3099 = vsub.s32 0, %v3098
        %v3100 = vrot.slane %v1594, %v3099
        %v3101 = vlaneseq
        %v3102 = vshrl.u32 %v3101, 7
        %v3103 = vsub.s32 0, %v3102
        %v3104 = vrot.slane %v1595, %v3103
        %v3105 = vlaneseq
        %v3106 = vshrl.u32 %v3105, 7
        %v3107 = vsub.s32 0, %v3106
        %v3108 = vrot.slane %v1596, %v3107
        %v3109 = vlaneseq
        %v3110 = vshrl.u32 %v3109, 7
        %v3111 = vsub.s32 0, %v3110
        %v3112 = vrot.slane %v1597, %v3111
        %v3113 = vlaneseq
        %v3114 = vshrl.u32 %v3113, 7
        %v3115 = vsub.s32 0, %v3114
        %v3116 = vrot.slane %v1598, %v3115
        %v3117 = vlaneseq
        %v3118 = vshrl.u32 %v3117, 7
        %v3119 = vsub.s32 0, %v3118
        %v3120 = vrot.slane %v1599, %v3119
        %v3121 = vlaneseq
        %v3122 = vshrl.u32 %v3121, 7
        %v3123 = vsub.s32 0, %v3122
        %v3124 = vrot.slane %v1600, %v3123
        %v3125 = vlaneseq
        %v3126 = vshrl.u32 %v3125, 7
        %v3127 = vsub.s32 0, %v3126
        %v3128 = vrot.slane %v1601, %v3127
        %v3129 = vlaneseq
        %v3130 = vshrl.u32 %v3129, 7
        %v3131 = vsub.s32 0, %v3130
        %v3132 = vrot.slane %v1602, %v3131
        %v3133 = vlaneseq
        %v3134 = vshrl.u32 %v3133, 7
        %v3135 = vsub.s32 0, %v3134
        %v3136 = vrot.slane %v1603, %v3135
        %v3137 = vlaneseq
        %v3138 = vshrl.u32 %v3137, 7
        %v3139 = vsub.s32 0, %v3138
        %v3140 = vrot.slane %v1604, %v3139
        %v3141 = vlaneseq
        %v3142 = vshrl.u32 %v3141, 7
        %v3143 = vsub.s32 0, %v3142
        %v3144 = vrot.slane %v1605, %v3143
        %v3145 = vlaneseq
        %v3146 = vshrl.u32 %v3145, 7
        %v3147 = vsub.s32 0, %v3146
        %v3148 = vrot.slane %v1606, %v3147
        %3149 = vset.pattern.permute.xlu0 0
        %3150 = vperm.xlu0 %3149, %v2124
        %v3151 = vpop.permute.xlu0 %3150
        %3153 = vset.pattern.permute.xlu0 0
        %3154 = vperm.xlu0 %3153, %v2128
        %v3155 = vpop.permute.xlu0 %3154
        %3157 = vset.pattern.permute.xlu0 0
        %3158 = vperm.xlu0 %3157, %v2132
        %v3159 = vpop.permute.xlu0 %3158
        %3161 = vset.pattern.permute.xlu0 0
        %3162 = vperm.xlu0 %3161, %v2136
        %v3163 = vpop.permute.xlu0 %3162
        %3165 = vset.pattern.permute.xlu0 0
        %3166 = vperm.xlu0 %3165, %v2140
        %v3167 = vpop.permute.xlu0 %3166
        %3169 = vset.pattern.permute.xlu0 0
        %3170 = vperm.xlu0 %3169, %v2144
        %v3171 = vpop.permute.xlu0 %3170
        %3173 = vset.pattern.permute.xlu0 0
        %3174 = vperm.xlu0 %3173, %v2148
        %v3175 = vpop.permute.xlu0 %3174
        %3177 = vset.pattern.permute.xlu0 0
        %3178 = vperm.xlu0 %3177, %v2152
        %v3179 = vpop.permute.xlu0 %3178
        %3181 = vset.pattern.permute.xlu0 0
        %3182 = vperm.xlu0 %3181, %v2156
        %v3183 = vpop.permute.xlu0 %3182
        %3185 = vset.pattern.permute.xlu0 0
        %3186 = vperm.xlu0 %3185, %v2160
        %v3187 = vpop.permute.xlu0 %3186
        %3189 = vset.pattern.permute.xlu0 0
        %3190 = vperm.xlu0 %3189, %v2164
        %v3191 = vpop.permute.xlu0 %3190
        %3193 = vset.pattern.permute.xlu0 0
        %3194 = vperm.xlu0 %3193, %v2168
        %v3195 = vpop.permute.xlu0 %3194
        %3197 = vset.pattern.permute.xlu0 0
        %3198 = vperm.xlu0 %3197, %v2172
        %v3199 = vpop.permute.xlu0 %3198
        %3201 = vset.pattern.permute.xlu0 0
        %3202 = vperm.xlu0 %3201, %v2176
        %v3203 = vpop.permute.xlu0 %3202
        %3205 = vset.pattern.permute.xlu0 0
        %3206 = vperm.xlu0 %3205, %v2180
        %v3207 = vpop.permute.xlu0 %3206
        %3209 = vset.pattern.permute.xlu0 0
        %3210 = vperm.xlu0 %3209, %v2184
        %v3211 = vpop.permute.xlu0 %3210
        %3213 = vset.pattern.permute.xlu0 0
        %3214 = vperm.xlu0 %3213, %v2188
        %v3215 = vpop.permute.xlu0 %3214
        %3217 = vset.pattern.permute.xlu0 0
        %3218 = vperm.xlu0 %3217, %v2192
        %v3219 = vpop.permute.xlu0 %3218
        %3221 = vset.pattern.permute.xlu0 0
        %3222 = vperm.xlu0 %3221, %v2196
        %v3223 = vpop.permute.xlu0 %3222
        %3225 = vset.pattern.permute.xlu0 0
        %3226 = vperm.xlu0 %3225, %v2200
        %v3227 = vpop.permute.xlu0 %3226
        %3229 = vset.pattern.permute.xlu0 0
        %3230 = vperm.xlu0 %3229, %v2204
        %v3231 = vpop.permute.xlu0 %3230
        %3233 = vset.pattern.permute.xlu0 0
        %3234 = vperm.xlu0 %3233, %v2208
        %v3235 = vpop.permute.xlu0 %3234
        %3237 = vset.pattern.permute.xlu0 0
        %3238 = vperm.xlu0 %3237, %v2212
        %v3239 = vpop.permute.xlu0 %3238
        %3241 = vset.pattern.permute.xlu0 0
        %3242 = vperm.xlu0 %3241, %v2216
        %v3243 = vpop.permute.xlu0 %3242
        %3245 = vset.pattern.permute.xlu0 0
        %3246 = vperm.xlu0 %3245, %v2220
        %v3247 = vpop.permute.xlu0 %3246
        %3249 = vset.pattern.permute.xlu0 0
        %3250 = vperm.xlu0 %3249, %v2224
        %v3251 = vpop.permute.xlu0 %3250
        %3253 = vset.pattern.permute.xlu0 0
        %3254 = vperm.xlu0 %3253, %v2228
        %v3255 = vpop.permute.xlu0 %3254
        %3257 = vset.pattern.permute.xlu0 0
        %3258 = vperm.xlu0 %3257, %v2232
        %v3259 = vpop.permute.xlu0 %3258
        %3261 = vset.pattern.permute.xlu0 0
        %3262 = vperm.xlu0 %3261, %v2236
        %v3263 = vpop.permute.xlu0 %3262
        %3265 = vset.pattern.permute.xlu0 0
        %3266 = vperm.xlu0 %3265, %v2240
        %v3267 = vpop.permute.xlu0 %3266
        %3269 = vset.pattern.permute.xlu0 0
        %3270 = vperm.xlu0 %3269, %v2244
        %v3271 = vpop.permute.xlu0 %3270
        %3273 = vset.pattern.permute.xlu0 0
        %3274 = vperm.xlu0 %3273, %v2248
        %v3275 = vpop.permute.xlu0 %3274
        %3277 = vset.pattern.permute.xlu0 0
        %3278 = vperm.xlu0 %3277, %v2252
        %v3279 = vpop.permute.xlu0 %3278
        %3281 = vset.pattern.permute.xlu0 0
        %3282 = vperm.xlu0 %3281, %v2256
        %v3283 = vpop.permute.xlu0 %3282
        %3285 = vset.pattern.permute.xlu0 0
        %3286 = vperm.xlu0 %3285, %v2260
        %v3287 = vpop.permute.xlu0 %3286
        %3289 = vset.pattern.permute.xlu0 0
        %3290 = vperm.xlu0 %3289, %v2264
        %v3291 = vpop.permute.xlu0 %3290
        %3293 = vset.pattern.permute.xlu0 0
        %3294 = vperm.xlu0 %3293, %v2268
        %v3295 = vpop.permute.xlu0 %3294
        %3297 = vset.pattern.permute.xlu0 0
        %3298 = vperm.xlu0 %3297, %v2272
        %v3299 = vpop.permute.xlu0 %3298
        %3301 = vset.pattern.permute.xlu0 0
        %3302 = vperm.xlu0 %3301, %v2276
        %v3303 = vpop.permute.xlu0 %3302
        %3305 = vset.pattern.permute.xlu0 0
        %3306 = vperm.xlu0 %3305, %v2280
        %v3307 = vpop.permute.xlu0 %3306
        %3309 = vset.pattern.permute.xlu0 0
        %3310 = vperm.xlu0 %3309, %v2284
        %v3311 = vpop.permute.xlu0 %3310
        %3313 = vset.pattern.permute.xlu0 0
        %3314 = vperm.xlu0 %3313, %v2288
        %v3315 = vpop.permute.xlu0 %3314
        %3317 = vset.pattern.permute.xlu0 0
        %3318 = vperm.xlu0 %3317, %v2292
        %v3319 = vpop.permute.xlu0 %3318
        %3321 = vset.pattern.permute.xlu0 0
        %3322 = vperm.xlu0 %3321, %v2296
        %v3323 = vpop.permute.xlu0 %3322
        %3325 = vset.pattern.permute.xlu0 0
        %3326 = vperm.xlu0 %3325, %v2300
        %v3327 = vpop.permute.xlu0 %3326
        %3329 = vset.pattern.permute.xlu0 0
        %3330 = vperm.xlu0 %3329, %v2304
        %v3331 = vpop.permute.xlu0 %3330
        %3333 = vset.pattern.permute.xlu0 0
        %3334 = vperm.xlu0 %3333, %v2308
        %v3335 = vpop.permute.xlu0 %3334
        %3337 = vset.pattern.permute.xlu0 0
        %3338 = vperm.xlu0 %3337, %v2312
        %v3339 = vpop.permute.xlu0 %3338
        %3341 = vset.pattern.permute.xlu0 0
        %3342 = vperm.xlu0 %3341, %v2316
        %v3343 = vpop.permute.xlu0 %3342
        %3345 = vset.pattern.permute.xlu0 0
        %3346 = vperm.xlu0 %3345, %v2320
        %v3347 = vpop.permute.xlu0 %3346
        %3349 = vset.pattern.permute.xlu0 0
        %3350 = vperm.xlu0 %3349, %v2324
        %v3351 = vpop.permute.xlu0 %3350
        %3353 = vset.pattern.permute.xlu0 0
        %3354 = vperm.xlu0 %3353, %v2328
        %v3355 = vpop.permute.xlu0 %3354
        %3357 = vset.pattern.permute.xlu0 0
        %3358 = vperm.xlu0 %3357, %v2332
        %v3359 = vpop.permute.xlu0 %3358
        %3361 = vset.pattern.permute.xlu0 0
        %3362 = vperm.xlu0 %3361, %v2336
        %v3363 = vpop.permute.xlu0 %3362
        %3365 = vset.pattern.permute.xlu0 0
        %3366 = vperm.xlu0 %3365, %v2340
        %v3367 = vpop.permute.xlu0 %3366
        %3369 = vset.pattern.permute.xlu0 0
        %3370 = vperm.xlu0 %3369, %v2344
        %v3371 = vpop.permute.xlu0 %3370
        %3373 = vset.pattern.permute.xlu0 0
        %3374 = vperm.xlu0 %3373, %v2348
        %v3375 = vpop.permute.xlu0 %3374
        %3377 = vset.pattern.permute.xlu0 0
        %3378 = vperm.xlu0 %3377, %v2352
        %v3379 = vpop.permute.xlu0 %3378
        %3381 = vset.pattern.permute.xlu0 0
        %3382 = vperm.xlu0 %3381, %v2356
        %v3383 = vpop.permute.xlu0 %3382
        %3385 = vset.pattern.permute.xlu0 0
        %3386 = vperm.xlu0 %3385, %v2360
        %v3387 = vpop.permute.xlu0 %3386
        %3389 = vset.pattern.permute.xlu0 0
        %3390 = vperm.xlu0 %3389, %v2364
        %v3391 = vpop.permute.xlu0 %3390
        %3393 = vset.pattern.permute.xlu0 0
        %3394 = vperm.xlu0 %3393, %v2368
        %v3395 = vpop.permute.xlu0 %3394
        %3397 = vset.pattern.permute.xlu0 0
        %3398 = vperm.xlu0 %3397, %v2372
        %v3399 = vpop.permute.xlu0 %3398
        %3401 = vset.pattern.permute.xlu0 0
        %3402 = vperm.xlu0 %3401, %v2376
        %v3403 = vpop.permute.xlu0 %3402
        %3405 = vset.pattern.permute.xlu0 0
        %3406 = vperm.xlu0 %3405, %v2380
        %v3407 = vpop.permute.xlu0 %3406
        %3409 = vset.pattern.permute.xlu0 0
        %3410 = vperm.xlu0 %3409, %v2384
        %v3411 = vpop.permute.xlu0 %3410
        %3413 = vset.pattern.permute.xlu0 0
        %3414 = vperm.xlu0 %3413, %v2388
        %v3415 = vpop.permute.xlu0 %3414
        %3417 = vset.pattern.permute.xlu0 0
        %3418 = vperm.xlu0 %3417, %v2392
        %v3419 = vpop.permute.xlu0 %3418
        %3421 = vset.pattern.permute.xlu0 0
        %3422 = vperm.xlu0 %3421, %v2396
        %v3423 = vpop.permute.xlu0 %3422
        %3425 = vset.pattern.permute.xlu0 0
        %3426 = vperm.xlu0 %3425, %v2400
        %v3427 = vpop.permute.xlu0 %3426
        %3429 = vset.pattern.permute.xlu0 0
        %3430 = vperm.xlu0 %3429, %v2404
        %v3431 = vpop.permute.xlu0 %3430
        %3433 = vset.pattern.permute.xlu0 0
        %3434 = vperm.xlu0 %3433, %v2408
        %v3435 = vpop.permute.xlu0 %3434
        %3437 = vset.pattern.permute.xlu0 0
        %3438 = vperm.xlu0 %3437, %v2412
        %v3439 = vpop.permute.xlu0 %3438
        %3441 = vset.pattern.permute.xlu0 0
        %3442 = vperm.xlu0 %3441, %v2416
        %v3443 = vpop.permute.xlu0 %3442
        %3445 = vset.pattern.permute.xlu0 0
        %3446 = vperm.xlu0 %3445, %v2420
        %v3447 = vpop.permute.xlu0 %3446
        %3449 = vset.pattern.permute.xlu0 0
        %3450 = vperm.xlu0 %3449, %v2424
        %v3451 = vpop.permute.xlu0 %3450
        %3453 = vset.pattern.permute.xlu0 0
        %3454 = vperm.xlu0 %3453, %v2428
        %v3455 = vpop.permute.xlu0 %3454
        %3457 = vset.pattern.permute.xlu0 0
        %3458 = vperm.xlu0 %3457, %v2432
        %v3459 = vpop.permute.xlu0 %3458
        %3461 = vset.pattern.permute.xlu0 0
        %3462 = vperm.xlu0 %3461, %v2436
        %v3463 = vpop.permute.xlu0 %3462
        %3465 = vset.pattern.permute.xlu0 0
        %3466 = vperm.xlu0 %3465, %v2440
        %v3467 = vpop.permute.xlu0 %3466
        %3469 = vset.pattern.permute.xlu0 0
        %3470 = vperm.xlu0 %3469, %v2444
        %v3471 = vpop.permute.xlu0 %3470
        %3473 = vset.pattern.permute.xlu0 0
        %3474 = vperm.xlu0 %3473, %v2448
        %v3475 = vpop.permute.xlu0 %3474
        %3477 = vset.pattern.permute.xlu0 0
        %3478 = vperm.xlu0 %3477, %v2452
        %v3479 = vpop.permute.xlu0 %3478
        %3481 = vset.pattern.permute.xlu0 0
        %3482 = vperm.xlu0 %3481, %v2456
        %v3483 = vpop.permute.xlu0 %3482
        %3485 = vset.pattern.permute.xlu0 0
        %3486 = vperm.xlu0 %3485, %v2460
        %v3487 = vpop.permute.xlu0 %3486
        %3489 = vset.pattern.permute.xlu0 0
        %3490 = vperm.xlu0 %3489, %v2464
        %v3491 = vpop.permute.xlu0 %3490
        %3493 = vset.pattern.permute.xlu0 0
        %3494 = vperm.xlu0 %3493, %v2468
        %v3495 = vpop.permute.xlu0 %3494
        %3497 = vset.pattern.permute.xlu0 0
        %3498 = vperm.xlu0 %3497, %v2472
        %v3499 = vpop.permute.xlu0 %3498
        %3501 = vset.pattern.permute.xlu0 0
        %3502 = vperm.xlu0 %3501, %v2476
        %v3503 = vpop.permute.xlu0 %3502
        %3505 = vset.pattern.permute.xlu0 0
        %3506 = vperm.xlu0 %3505, %v2480
        %v3507 = vpop.permute.xlu0 %3506
        %3509 = vset.pattern.permute.xlu0 0
        %3510 = vperm.xlu0 %3509, %v2484
        %v3511 = vpop.permute.xlu0 %3510
        %3513 = vset.pattern.permute.xlu0 0
        %3514 = vperm.xlu0 %3513, %v2488
        %v3515 = vpop.permute.xlu0 %3514
        %3517 = vset.pattern.permute.xlu0 0
        %3518 = vperm.xlu0 %3517, %v2492
        %v3519 = vpop.permute.xlu0 %3518
        %3521 = vset.pattern.permute.xlu0 0
        %3522 = vperm.xlu0 %3521, %v2496
        %v3523 = vpop.permute.xlu0 %3522
        %3525 = vset.pattern.permute.xlu0 0
        %3526 = vperm.xlu0 %3525, %v2500
        %v3527 = vpop.permute.xlu0 %3526
        %3529 = vset.pattern.permute.xlu0 0
        %3530 = vperm.xlu0 %3529, %v2504
        %v3531 = vpop.permute.xlu0 %3530
        %3533 = vset.pattern.permute.xlu0 0
        %3534 = vperm.xlu0 %3533, %v2508
        %v3535 = vpop.permute.xlu0 %3534
        %3537 = vset.pattern.permute.xlu0 0
        %3538 = vperm.xlu0 %3537, %v2512
        %v3539 = vpop.permute.xlu0 %3538
        %3541 = vset.pattern.permute.xlu0 0
        %3542 = vperm.xlu0 %3541, %v2516
        %v3543 = vpop.permute.xlu0 %3542
        %3545 = vset.pattern.permute.xlu0 0
        %3546 = vperm.xlu0 %3545, %v2520
        %v3547 = vpop.permute.xlu0 %3546
        %3549 = vset.pattern.permute.xlu0 0
        %3550 = vperm.xlu0 %3549, %v2524
        %v3551 = vpop.permute.xlu0 %3550
        %3553 = vset.pattern.permute.xlu0 0
        %3554 = vperm.xlu0 %3553, %v2528
        %v3555 = vpop.permute.xlu0 %3554
        %3557 = vset.pattern.permute.xlu0 0
        %3558 = vperm.xlu0 %3557, %v2532
        %v3559 = vpop.permute.xlu0 %3558
        %3561 = vset.pattern.permute.xlu0 0
        %3562 = vperm.xlu0 %3561, %v2536
        %v3563 = vpop.permute.xlu0 %3562
        %3565 = vset.pattern.permute.xlu0 0
        %3566 = vperm.xlu0 %3565, %v2540
        %v3567 = vpop.permute.xlu0 %3566
        %3569 = vset.pattern.permute.xlu0 0
        %3570 = vperm.xlu0 %3569, %v2544
        %v3571 = vpop.permute.xlu0 %3570
        %3573 = vset.pattern.permute.xlu0 0
        %3574 = vperm.xlu0 %3573, %v2548
        %v3575 = vpop.permute.xlu0 %3574
        %3577 = vset.pattern.permute.xlu0 0
        %3578 = vperm.xlu0 %3577, %v2552
        %v3579 = vpop.permute.xlu0 %3578
        %3581 = vset.pattern.permute.xlu0 0
        %3582 = vperm.xlu0 %3581, %v2556
        %v3583 = vpop.permute.xlu0 %3582
        %3585 = vset.pattern.permute.xlu0 0
        %3586 = vperm.xlu0 %3585, %v2560
        %v3587 = vpop.permute.xlu0 %3586
        %3589 = vset.pattern.permute.xlu0 0
        %3590 = vperm.xlu0 %3589, %v2564
        %v3591 = vpop.permute.xlu0 %3590
        %3593 = vset.pattern.permute.xlu0 0
        %3594 = vperm.xlu0 %3593, %v2568
        %v3595 = vpop.permute.xlu0 %3594
        %3597 = vset.pattern.permute.xlu0 0
        %3598 = vperm.xlu0 %3597, %v2572
        %v3599 = vpop.permute.xlu0 %3598
        %3601 = vset.pattern.permute.xlu0 0
        %3602 = vperm.xlu0 %3601, %v2576
        %v3603 = vpop.permute.xlu0 %3602
        %3605 = vset.pattern.permute.xlu0 0
        %3606 = vperm.xlu0 %3605, %v2580
        %v3607 = vpop.permute.xlu0 %3606
        %3609 = vset.pattern.permute.xlu0 0
        %3610 = vperm.xlu0 %3609, %v2584
        %v3611 = vpop.permute.xlu0 %3610
        %3613 = vset.pattern.permute.xlu0 0
        %3614 = vperm.xlu0 %3613, %v2588
        %v3615 = vpop.permute.xlu0 %3614
        %3617 = vset.pattern.permute.xlu0 0
        %3618 = vperm.xlu0 %3617, %v2592
        %v3619 = vpop.permute.xlu0 %3618
        %3621 = vset.pattern.permute.xlu0 0
        %3622 = vperm.xlu0 %3621, %v2596
        %v3623 = vpop.permute.xlu0 %3622
        %3625 = vset.pattern.permute.xlu0 0
        %3626 = vperm.xlu0 %3625, %v2600
        %v3627 = vpop.permute.xlu0 %3626
        %3629 = vset.pattern.permute.xlu0 0
        %3630 = vperm.xlu0 %3629, %v2604
        %v3631 = vpop.permute.xlu0 %3630
        %3633 = vset.pattern.permute.xlu0 0
        %3634 = vperm.xlu0 %3633, %v2608
        %v3635 = vpop.permute.xlu0 %3634
        %3637 = vset.pattern.permute.xlu0 0
        %3638 = vperm.xlu0 %3637, %v2612
        %v3639 = vpop.permute.xlu0 %3638
        %3641 = vset.pattern.permute.xlu0 0
        %3642 = vperm.xlu0 %3641, %v2616
        %v3643 = vpop.permute.xlu0 %3642
        %3645 = vset.pattern.permute.xlu0 0
        %3646 = vperm.xlu0 %3645, %v2620
        %v3647 = vpop.permute.xlu0 %3646
        %3649 = vset.pattern.permute.xlu0 0
        %3650 = vperm.xlu0 %3649, %v2624
        %v3651 = vpop.permute.xlu0 %3650
        %3653 = vset.pattern.permute.xlu0 0
        %3654 = vperm.xlu0 %3653, %v2628
        %v3655 = vpop.permute.xlu0 %3654
        %3657 = vset.pattern.permute.xlu0 0
        %3658 = vperm.xlu0 %3657, %v2632
        %v3659 = vpop.permute.xlu0 %3658
        %3661 = vset.pattern.permute.xlu0 0
        %3662 = vperm.xlu0 %3661, %v2636
        %v3663 = vpop.permute.xlu0 %3662
        %3665 = vset.pattern.permute.xlu0 0
        %3666 = vperm.xlu0 %3665, %v2640
        %v3667 = vpop.permute.xlu0 %3666
        %3669 = vset.pattern.permute.xlu0 0
        %3670 = vperm.xlu0 %3669, %v2644
        %v3671 = vpop.permute.xlu0 %3670
        %3673 = vset.pattern.permute.xlu0 0
        %3674 = vperm.xlu0 %3673, %v2648
        %v3675 = vpop.permute.xlu0 %3674
        %3677 = vset.pattern.permute.xlu0 0
        %3678 = vperm.xlu0 %3677, %v2652
        %v3679 = vpop.permute.xlu0 %3678
        %3681 = vset.pattern.permute.xlu0 0
        %3682 = vperm.xlu0 %3681, %v2656
        %v3683 = vpop.permute.xlu0 %3682
        %3685 = vset.pattern.permute.xlu0 0
        %3686 = vperm.xlu0 %3685, %v2660
        %v3687 = vpop.permute.xlu0 %3686
        %3689 = vset.pattern.permute.xlu0 0
        %3690 = vperm.xlu0 %3689, %v2664
        %v3691 = vpop.permute.xlu0 %3690
        %3693 = vset.pattern.permute.xlu0 0
        %3694 = vperm.xlu0 %3693, %v2668
        %v3695 = vpop.permute.xlu0 %3694
        %3697 = vset.pattern.permute.xlu0 0
        %3698 = vperm.xlu0 %3697, %v2672
        %v3699 = vpop.permute.xlu0 %3698
        %3701 = vset.pattern.permute.xlu0 0
        %3702 = vperm.xlu0 %3701, %v2676
        %v3703 = vpop.permute.xlu0 %3702
        %3705 = vset.pattern.permute.xlu0 0
        %3706 = vperm.xlu0 %3705, %v2680
        %v3707 = vpop.permute.xlu0 %3706
        %3709 = vset.pattern.permute.xlu0 0
        %3710 = vperm.xlu0 %3709, %v2684
        %v3711 = vpop.permute.xlu0 %3710
        %3713 = vset.pattern.permute.xlu0 0
        %3714 = vperm.xlu0 %3713, %v2688
        %v3715 = vpop.permute.xlu0 %3714
        %3717 = vset.pattern.permute.xlu0 0
        %3718 = vperm.xlu0 %3717, %v2692
        %v3719 = vpop.permute.xlu0 %3718
        %3721 = vset.pattern.permute.xlu0 0
        %3722 = vperm.xlu0 %3721, %v2696
        %v3723 = vpop.permute.xlu0 %3722
        %3725 = vset.pattern.permute.xlu0 0
        %3726 = vperm.xlu0 %3725, %v2700
        %v3727 = vpop.permute.xlu0 %3726
        %3729 = vset.pattern.permute.xlu0 0
        %3730 = vperm.xlu0 %3729, %v2704
        %v3731 = vpop.permute.xlu0 %3730
        %3733 = vset.pattern.permute.xlu0 0
        %3734 = vperm.xlu0 %3733, %v2708
        %v3735 = vpop.permute.xlu0 %3734
        %3737 = vset.pattern.permute.xlu0 0
        %3738 = vperm.xlu0 %3737, %v2712
        %v3739 = vpop.permute.xlu0 %3738
        %3741 = vset.pattern.permute.xlu0 0
        %3742 = vperm.xlu0 %3741, %v2716
        %v3743 = vpop.permute.xlu0 %3742
        %3745 = vset.pattern.permute.xlu0 0
        %3746 = vperm.xlu0 %3745, %v2720
        %v3747 = vpop.permute.xlu0 %3746
        %3749 = vset.pattern.permute.xlu0 0
        %3750 = vperm.xlu0 %3749, %v2724
        %v3751 = vpop.permute.xlu0 %3750
        %3753 = vset.pattern.permute.xlu0 0
        %3754 = vperm.xlu0 %3753, %v2728
        %v3755 = vpop.permute.xlu0 %3754
        %3757 = vset.pattern.permute.xlu0 0
        %3758 = vperm.xlu0 %3757, %v2732
        %v3759 = vpop.permute.xlu0 %3758
        %3761 = vset.pattern.permute.xlu0 0
        %3762 = vperm.xlu0 %3761, %v2736
        %v3763 = vpop.permute.xlu0 %3762
        %3765 = vset.pattern.permute.xlu0 0
        %3766 = vperm.xlu0 %3765, %v2740
        %v3767 = vpop.permute.xlu0 %3766
        %3769 = vset.pattern.permute.xlu0 0
        %3770 = vperm.xlu0 %3769, %v2744
        %v3771 = vpop.permute.xlu0 %3770
        %3773 = vset.pattern.permute.xlu0 0
        %3774 = vperm.xlu0 %3773, %v2748
        %v3775 = vpop.permute.xlu0 %3774
        %3777 = vset.pattern.permute.xlu0 0
        %3778 = vperm.xlu0 %3777, %v2752
        %v3779 = vpop.permute.xlu0 %3778
        %3781 = vset.pattern.permute.xlu0 0
        %3782 = vperm.xlu0 %3781, %v2756
        %v3783 = vpop.permute.xlu0 %3782
        %3785 = vset.pattern.permute.xlu0 0
        %3786 = vperm.xlu0 %3785, %v2760
        %v3787 = vpop.permute.xlu0 %3786
        %3789 = vset.pattern.permute.xlu0 0
        %3790 = vperm.xlu0 %3789, %v2764
        %v3791 = vpop.permute.xlu0 %3790
        %3793 = vset.pattern.permute.xlu0 0
        %3794 = vperm.xlu0 %3793, %v2768
        %v3795 = vpop.permute.xlu0 %3794
        %3797 = vset.pattern.permute.xlu0 0
        %3798 = vperm.xlu0 %3797, %v2772
        %v3799 = vpop.permute.xlu0 %3798
        %3801 = vset.pattern.permute.xlu0 0
        %3802 = vperm.xlu0 %3801, %v2776
        %v3803 = vpop.permute.xlu0 %3802
        %3805 = vset.pattern.permute.xlu0 0
        %3806 = vperm.xlu0 %3805, %v2780
        %v3807 = vpop.permute.xlu0 %3806
        %3809 = vset.pattern.permute.xlu0 0
        %3810 = vperm.xlu0 %3809, %v2784
        %v3811 = vpop.permute.xlu0 %3810
        %3813 = vset.pattern.permute.xlu0 0
        %3814 = vperm.xlu0 %3813, %v2788
        %v3815 = vpop.permute.xlu0 %3814
        %3817 = vset.pattern.permute.xlu0 0
        %3818 = vperm.xlu0 %3817, %v2792
        %v3819 = vpop.permute.xlu0 %3818
        %3821 = vset.pattern.permute.xlu0 0
        %3822 = vperm.xlu0 %3821, %v2796
        %v3823 = vpop.permute.xlu0 %3822
        %3825 = vset.pattern.permute.xlu0 0
        %3826 = vperm.xlu0 %3825, %v2800
        %v3827 = vpop.permute.xlu0 %3826
        %3829 = vset.pattern.permute.xlu0 0
        %3830 = vperm.xlu0 %3829, %v2804
        %v3831 = vpop.permute.xlu0 %3830
        %3833 = vset.pattern.permute.xlu0 0
        %3834 = vperm.xlu0 %3833, %v2808
        %v3835 = vpop.permute.xlu0 %3834
        %3837 = vset.pattern.permute.xlu0 0
        %3838 = vperm.xlu0 %3837, %v2812
        %v3839 = vpop.permute.xlu0 %3838
        %3841 = vset.pattern.permute.xlu0 0
        %3842 = vperm.xlu0 %3841, %v2816
        %v3843 = vpop.permute.xlu0 %3842
        %3845 = vset.pattern.permute.xlu0 0
        %3846 = vperm.xlu0 %3845, %v2820
        %v3847 = vpop.permute.xlu0 %3846
        %3849 = vset.pattern.permute.xlu0 0
        %3850 = vperm.xlu0 %3849, %v2824
        %v3851 = vpop.permute.xlu0 %3850
        %3853 = vset.pattern.permute.xlu0 0
        %3854 = vperm.xlu0 %3853, %v2828
        %v3855 = vpop.permute.xlu0 %3854
        %3857 = vset.pattern.permute.xlu0 0
        %3858 = vperm.xlu0 %3857, %v2832
        %v3859 = vpop.permute.xlu0 %3858
        %3861 = vset.pattern.permute.xlu0 0
        %3862 = vperm.xlu0 %3861, %v2836
        %v3863 = vpop.permute.xlu0 %3862
        %3865 = vset.pattern.permute.xlu0 0
        %3866 = vperm.xlu0 %3865, %v2840
        %v3867 = vpop.permute.xlu0 %3866
        %3869 = vset.pattern.permute.xlu0 0
        %3870 = vperm.xlu0 %3869, %v2844
        %v3871 = vpop.permute.xlu0 %3870
        %3873 = vset.pattern.permute.xlu0 0
        %3874 = vperm.xlu0 %3873, %v2848
        %v3875 = vpop.permute.xlu0 %3874
        %3877 = vset.pattern.permute.xlu0 0
        %3878 = vperm.xlu0 %3877, %v2852
        %v3879 = vpop.permute.xlu0 %3878
        %3881 = vset.pattern.permute.xlu0 0
        %3882 = vperm.xlu0 %3881, %v2856
        %v3883 = vpop.permute.xlu0 %3882
        %3885 = vset.pattern.permute.xlu0 0
        %3886 = vperm.xlu0 %3885, %v2860
        %v3887 = vpop.permute.xlu0 %3886
        %3889 = vset.pattern.permute.xlu0 0
        %3890 = vperm.xlu0 %3889, %v2864
        %v3891 = vpop.permute.xlu0 %3890
        %3893 = vset.pattern.permute.xlu0 0
        %3894 = vperm.xlu0 %3893, %v2868
        %v3895 = vpop.permute.xlu0 %3894
        %3897 = vset.pattern.permute.xlu0 0
        %3898 = vperm.xlu0 %3897, %v2872
        %v3899 = vpop.permute.xlu0 %3898
        %3901 = vset.pattern.permute.xlu0 0
        %3902 = vperm.xlu0 %3901, %v2876
        %v3903 = vpop.permute.xlu0 %3902
        %3905 = vset.pattern.permute.xlu0 0
        %3906 = vperm.xlu0 %3905, %v2880
        %v3907 = vpop.permute.xlu0 %3906
        %3909 = vset.pattern.permute.xlu0 0
        %3910 = vperm.xlu0 %3909, %v2884
        %v3911 = vpop.permute.xlu0 %3910
        %3913 = vset.pattern.permute.xlu0 0
        %3914 = vperm.xlu0 %3913, %v2888
        %v3915 = vpop.permute.xlu0 %3914
        %3917 = vset.pattern.permute.xlu0 0
        %3918 = vperm.xlu0 %3917, %v2892
        %v3919 = vpop.permute.xlu0 %3918
        %3921 = vset.pattern.permute.xlu0 0
        %3922 = vperm.xlu0 %3921, %v2896
        %v3923 = vpop.permute.xlu0 %3922
        %3925 = vset.pattern.permute.xlu0 0
        %3926 = vperm.xlu0 %3925, %v2900
        %v3927 = vpop.permute.xlu0 %3926
        %3929 = vset.pattern.permute.xlu0 0
        %3930 = vperm.xlu0 %3929, %v2904
        %v3931 = vpop.permute.xlu0 %3930
        %3933 = vset.pattern.permute.xlu0 0
        %3934 = vperm.xlu0 %3933, %v2908
        %v3935 = vpop.permute.xlu0 %3934
        %3937 = vset.pattern.permute.xlu0 0
        %3938 = vperm.xlu0 %3937, %v2912
        %v3939 = vpop.permute.xlu0 %3938
        %3941 = vset.pattern.permute.xlu0 0
        %3942 = vperm.xlu0 %3941, %v2916
        %v3943 = vpop.permute.xlu0 %3942
        %3945 = vset.pattern.permute.xlu0 0
        %3946 = vperm.xlu0 %3945, %v2920
        %v3947 = vpop.permute.xlu0 %3946
        %3949 = vset.pattern.permute.xlu0 0
        %3950 = vperm.xlu0 %3949, %v2924
        %v3951 = vpop.permute.xlu0 %3950
        %3953 = vset.pattern.permute.xlu0 0
        %3954 = vperm.xlu0 %3953, %v2928
        %v3955 = vpop.permute.xlu0 %3954
        %3957 = vset.pattern.permute.xlu0 0
        %3958 = vperm.xlu0 %3957, %v2932
        %v3959 = vpop.permute.xlu0 %3958
        %3961 = vset.pattern.permute.xlu0 0
        %3962 = vperm.xlu0 %3961, %v2936
        %v3963 = vpop.permute.xlu0 %3962
        %3965 = vset.pattern.permute.xlu0 0
        %3966 = vperm.xlu0 %3965, %v2940
        %v3967 = vpop.permute.xlu0 %3966
        %3969 = vset.pattern.permute.xlu0 0
        %3970 = vperm.xlu0 %3969, %v2944
        %v3971 = vpop.permute.xlu0 %3970
        %3973 = vset.pattern.permute.xlu0 0
        %3974 = vperm.xlu0 %3973, %v2948
        %v3975 = vpop.permute.xlu0 %3974
        %3977 = vset.pattern.permute.xlu0 0
        %3978 = vperm.xlu0 %3977, %v2952
        %v3979 = vpop.permute.xlu0 %3978
        %3981 = vset.pattern.permute.xlu0 0
        %3982 = vperm.xlu0 %3981, %v2956
        %v3983 = vpop.permute.xlu0 %3982
        %3985 = vset.pattern.permute.xlu0 0
        %3986 = vperm.xlu0 %3985, %v2960
        %v3987 = vpop.permute.xlu0 %3986
        %3989 = vset.pattern.permute.xlu0 0
        %3990 = vperm.xlu0 %3989, %v2964
        %v3991 = vpop.permute.xlu0 %3990
        %3993 = vset.pattern.permute.xlu0 0
        %3994 = vperm.xlu0 %3993, %v2968
        %v3995 = vpop.permute.xlu0 %3994
        %3997 = vset.pattern.permute.xlu0 0
        %3998 = vperm.xlu0 %3997, %v2972
        %v3999 = vpop.permute.xlu0 %3998
        %4001 = vset.pattern.permute.xlu0 0
        %4002 = vperm.xlu0 %4001, %v2976
        %v4003 = vpop.permute.xlu0 %4002
        %4005 = vset.pattern.permute.xlu0 0
        %4006 = vperm.xlu0 %4005, %v2980
        %v4007 = vpop.permute.xlu0 %4006
        %4009 = vset.pattern.permute.xlu0 0
        %4010 = vperm.xlu0 %4009, %v2984
        %v4011 = vpop.permute.xlu0 %4010
        %4013 = vset.pattern.permute.xlu0 0
        %4014 = vperm.xlu0 %4013, %v2988
        %v4015 = vpop.permute.xlu0 %4014
        %4017 = vset.pattern.permute.xlu0 0
        %4018 = vperm.xlu0 %4017, %v2992
        %v4019 = vpop.permute.xlu0 %4018
        %4021 = vset.pattern.permute.xlu0 0
        %4022 = vperm.xlu0 %4021, %v2996
        %v4023 = vpop.permute.xlu0 %4022
        %4025 = vset.pattern.permute.xlu0 0
        %4026 = vperm.xlu0 %4025, %v3000
        %v4027 = vpop.permute.xlu0 %4026
        %4029 = vset.pattern.permute.xlu0 0
        %4030 = vperm.xlu0 %4029, %v3004
        %v4031 = vpop.permute.xlu0 %4030
        %4033 = vset.pattern.permute.xlu0 0
        %4034 = vperm.xlu0 %4033, %v3008
        %v4035 = vpop.permute.xlu0 %4034
        %4037 = vset.pattern.permute.xlu0 0
        %4038 = vperm.xlu0 %4037, %v3012
        %v4039 = vpop.permute.xlu0 %4038
        %4041 = vset.pattern.permute.xlu0 0
        %4042 = vperm.xlu0 %4041, %v3016
        %v4043 = vpop.permute.xlu0 %4042
        %4045 = vset.pattern.permute.xlu0 0
        %4046 = vperm.xlu0 %4045, %v3020
        %v4047 = vpop.permute.xlu0 %4046
        %4049 = vset.pattern.permute.xlu0 0
        %4050 = vperm.xlu0 %4049, %v3024
        %v4051 = vpop.permute.xlu0 %4050
        %4053 = vset.pattern.permute.xlu0 0
        %4054 = vperm.xlu0 %4053, %v3028
        %v4055 = vpop.permute.xlu0 %4054
        %4057 = vset.pattern.permute.xlu0 0
        %4058 = vperm.xlu0 %4057, %v3032
        %v4059 = vpop.permute.xlu0 %4058
        %4061 = vset.pattern.permute.xlu0 0
        %4062 = vperm.xlu0 %4061, %v3036
        %v4063 = vpop.permute.xlu0 %4062
        %4065 = vset.pattern.permute.xlu0 0
        %4066 = vperm.xlu0 %4065, %v3040
        %v4067 = vpop.permute.xlu0 %4066
        %4069 = vset.pattern.permute.xlu0 0
        %4070 = vperm.xlu0 %4069, %v3044
        %v4071 = vpop.permute.xlu0 %4070
        %4073 = vset.pattern.permute.xlu0 0
        %4074 = vperm.xlu0 %4073, %v3048
        %v4075 = vpop.permute.xlu0 %4074
        %4077 = vset.pattern.permute.xlu0 0
        %4078 = vperm.xlu0 %4077, %v3052
        %v4079 = vpop.permute.xlu0 %4078
        %4081 = vset.pattern.permute.xlu0 0
        %4082 = vperm.xlu0 %4081, %v3056
        %v4083 = vpop.permute.xlu0 %4082
        %4085 = vset.pattern.permute.xlu0 0
        %4086 = vperm.xlu0 %4085, %v3060
        %v4087 = vpop.permute.xlu0 %4086
        %4089 = vset.pattern.permute.xlu0 0
        %4090 = vperm.xlu0 %4089, %v3064
        %v4091 = vpop.permute.xlu0 %4090
        %4093 = vset.pattern.permute.xlu0 0
        %4094 = vperm.xlu0 %4093, %v3068
        %v4095 = vpop.permute.xlu0 %4094
        %4097 = vset.pattern.permute.xlu0 0
        %4098 = vperm.xlu0 %4097, %v3072
        %v4099 = vpop.permute.xlu0 %4098
        %4101 = vset.pattern.permute.xlu0 0
        %4102 = vperm.xlu0 %4101, %v3076
        %v4103 = vpop.permute.xlu0 %4102
        %4105 = vset.pattern.permute.xlu0 0
        %4106 = vperm.xlu0 %4105, %v3080
        %v4107 = vpop.permute.xlu0 %4106
        %4109 = vset.pattern.permute.xlu0 0
        %4110 = vperm.xlu0 %4109, %v3084
        %v4111 = vpop.permute.xlu0 %4110
        %4113 = vset.pattern.permute.xlu0 0
        %4114 = vperm.xlu0 %4113, %v3088
        %v4115 = vpop.permute.xlu0 %4114
        %4117 = vset.pattern.permute.xlu0 0
        %4118 = vperm.xlu0 %4117, %v3092
        %v4119 = vpop.permute.xlu0 %4118
        %4121 = vset.pattern.permute.xlu0 0
        %4122 = vperm.xlu0 %4121, %v3096
        %v4123 = vpop.permute.xlu0 %4122
        %4125 = vset.pattern.permute.xlu0 0
        %4126 = vperm.xlu0 %4125, %v3100
        %v4127 = vpop.permute.xlu0 %4126
        %4129 = vset.pattern.permute.xlu0 0
        %4130 = vperm.xlu0 %4129, %v3104
        %v4131 = vpop.permute.xlu0 %4130
        %4133 = vset.pattern.permute.xlu0 0
        %4134 = vperm.xlu0 %4133, %v3108
        %v4135 = vpop.permute.xlu0 %4134
        %4137 = vset.pattern.permute.xlu0 0
        %4138 = vperm.xlu0 %4137, %v3112
        %v4139 = vpop.permute.xlu0 %4138
        %4141 = vset.pattern.permute.xlu0 0
        %4142 = vperm.xlu0 %4141, %v3116
        %v4143 = vpop.permute.xlu0 %4142
        %4145 = vset.pattern.permute.xlu0 0
        %4146 = vperm.xlu0 %4145, %v3120
        %v4147 = vpop.permute.xlu0 %4146
        %4149 = vset.pattern.permute.xlu0 0
        %4150 = vperm.xlu0 %4149, %v3124
        %v4151 = vpop.permute.xlu0 %4150
        %4153 = vset.pattern.permute.xlu0 0
        %4154 = vperm.xlu0 %4153, %v3128
        %v4155 = vpop.permute.xlu0 %4154
        %4157 = vset.pattern.permute.xlu0 0
        %4158 = vperm.xlu0 %4157, %v3132
        %v4159 = vpop.permute.xlu0 %4158
        %4161 = vset.pattern.permute.xlu0 0
        %4162 = vperm.xlu0 %4161, %v3136
        %v4163 = vpop.permute.xlu0 %4162
        %4165 = vset.pattern.permute.xlu0 0
        %4166 = vperm.xlu0 %4165, %v3140
        %v4167 = vpop.permute.xlu0 %4166
        %4169 = vset.pattern.permute.xlu0 0
        %4170 = vperm.xlu0 %4169, %v3144
        %v4171 = vpop.permute.xlu0 %4170
        %4173 = vset.pattern.permute.xlu0 0
        %4174 = vperm.xlu0 %4173, %v3148
        %v4175 = vpop.permute.xlu0 %4174
        %v4177 = vsub.f32 %v1349, %v3151
        %v4178 = vsub.f32 %v1349, %v3155
        %v4179 = vsub.f32 %v1349, %v3159
        %v4180 = vsub.f32 %v1349, %v3163
        %v4181 = vsub.f32 %v1349, %v3167
        %v4182 = vsub.f32 %v1349, %v3171
        %v4183 = vsub.f32 %v1349, %v3175
        %v4184 = vsub.f32 %v1349, %v3179
        %v4185 = vsub.f32 %v1349, %v3183
        %v4186 = vsub.f32 %v1349, %v3187
        %v4187 = vsub.f32 %v1349, %v3191
        %v4188 = vsub.f32 %v1349, %v3195
        %v4189 = vsub.f32 %v1349, %v3199
        %v4190 = vsub.f32 %v1349, %v3203
        %v4191 = vsub.f32 %v1349, %v3207
        %v4192 = vsub.f32 %v1349, %v3211
        %v4193 = vsub.f32 %v1349, %v3215
        %v4194 = vsub.f32 %v1349, %v3219
        %v4195 = vsub.f32 %v1349, %v3223
        %v4196 = vsub.f32 %v1349, %v3227
        %v4197 = vsub.f32 %v1349, %v3231
        %v4198 = vsub.f32 %v1349, %v3235
        %v4199 = vsub.f32 %v1349, %v3239
        %v4200 = vsub.f32 %v1349, %v3243
        %v4201 = vsub.f32 %v1349, %v3247
        %v4202 = vsub.f32 %v1349, %v3251
        %v4203 = vsub.f32 %v1349, %v3255
        %v4204 = vsub.f32 %v1349, %v3259
        %v4205 = vsub.f32 %v1349, %v3263
        %v4206 = vsub.f32 %v1349, %v3267
        %v4207 = vsub.f32 %v1349, %v3271
        %v4208 = vsub.f32 %v1349, %v3275
        %v4209 = vsub.f32 %v1349, %v3279
        %v4210 = vsub.f32 %v1349, %v3283
        %v4211 = vsub.f32 %v1349, %v3287
        %v4212 = vsub.f32 %v1349, %v3291
        %v4213 = vsub.f32 %v1349, %v3295
        %v4214 = vsub.f32 %v1349, %v3299
        %v4215 = vsub.f32 %v1349, %v3303
        %v4216 = vsub.f32 %v1349, %v3307
        %v4217 = vsub.f32 %v1349, %v3311
        %v4218 = vsub.f32 %v1349, %v3315
        %v4219 = vsub.f32 %v1349, %v3319
        %v4220 = vsub.f32 %v1349, %v3323
        %v4221 = vsub.f32 %v1349, %v3327
        %v4222 = vsub.f32 %v1349, %v3331
        %v4223 = vsub.f32 %v1349, %v3335
        %v4224 = vsub.f32 %v1349, %v3339
        %v4225 = vsub.f32 %v1349, %v3343
        %v4226 = vsub.f32 %v1349, %v3347
        %v4227 = vsub.f32 %v1349, %v3351
        %v4228 = vsub.f32 %v1349, %v3355
        %v4229 = vsub.f32 %v1349, %v3359
        %v4230 = vsub.f32 %v1349, %v3363
        %v4231 = vsub.f32 %v1349, %v3367
        %v4232 = vsub.f32 %v1349, %v3371
        %v4233 = vsub.f32 %v1349, %v3375
        %v4234 = vsub.f32 %v1349, %v3379
        %v4235 = vsub.f32 %v1349, %v3383
        %v4236 = vsub.f32 %v1349, %v3387
        %v4237 = vsub.f32 %v1349, %v3391
        %v4238 = vsub.f32 %v1349, %v3395
        %v4239 = vsub.f32 %v1349, %v3399
        %v4240 = vsub.f32 %v1349, %v3403
        %v4241 = vsub.f32 %v1349, %v3407
        %v4242 = vsub.f32 %v1349, %v3411
        %v4243 = vsub.f32 %v1349, %v3415
        %v4244 = vsub.f32 %v1349, %v3419
        %v4245 = vsub.f32 %v1349, %v3423
        %v4246 = vsub.f32 %v1349, %v3427
        %v4247 = vsub.f32 %v1349, %v3431
        %v4248 = vsub.f32 %v1349, %v3435
        %v4249 = vsub.f32 %v1349, %v3439
        %v4250 = vsub.f32 %v1349, %v3443
        %v4251 = vsub.f32 %v1349, %v3447
        %v4252 = vsub.f32 %v1349, %v3451
        %v4253 = vsub.f32 %v1349, %v3455
        %v4254 = vsub.f32 %v1349, %v3459
        %v4255 = vsub.f32 %v1349, %v3463
        %v4256 = vsub.f32 %v1349, %v3467
        %v4257 = vsub.f32 %v1349, %v3471
        %v4258 = vsub.f32 %v1349, %v3475
        %v4259 = vsub.f32 %v1349, %v3479
        %v4260 = vsub.f32 %v1349, %v3483
        %v4261 = vsub.f32 %v1349, %v3487
        %v4262 = vsub.f32 %v1349, %v3491
        %v4263 = vsub.f32 %v1349, %v3495
        %v4264 = vsub.f32 %v1349, %v3499
        %v4265 = vsub.f32 %v1349, %v3503
        %v4266 = vsub.f32 %v1349, %v3507
        %v4267 = vsub.f32 %v1349, %v3511
        %v4268 = vsub.f32 %v1349, %v3515
        %v4269 = vsub.f32 %v1349, %v3519
        %v4270 = vsub.f32 %v1349, %v3523
        %v4271 = vsub.f32 %v1349, %v3527
        %v4272 = vsub.f32 %v1349, %v3531
        %v4273 = vsub.f32 %v1349, %v3535
        %v4274 = vsub.f32 %v1349, %v3539
        %v4275 = vsub.f32 %v1349, %v3543
        %v4276 = vsub.f32 %v1349, %v3547
        %v4277 = vsub.f32 %v1349, %v3551
        %v4278 = vsub.f32 %v1349, %v3555
        %v4279 = vsub.f32 %v1349, %v3559
        %v4280 = vsub.f32 %v1349, %v3563
        %v4281 = vsub.f32 %v1349, %v3567
        %v4282 = vsub.f32 %v1349, %v3571
        %v4283 = vsub.f32 %v1349, %v3575
        %v4284 = vsub.f32 %v1349, %v3579
        %v4285 = vsub.f32 %v1349, %v3583
        %v4286 = vsub.f32 %v1349, %v3587
        %v4287 = vsub.f32 %v1349, %v3591
        %v4288 = vsub.f32 %v1349, %v3595
        %v4289 = vsub.f32 %v1349, %v3599
        %v4290 = vsub.f32 %v1349, %v3603
        %v4291 = vsub.f32 %v1349, %v3607
        %v4292 = vsub.f32 %v1349, %v3611
        %v4293 = vsub.f32 %v1349, %v3615
        %v4294 = vsub.f32 %v1349, %v3619
        %v4295 = vsub.f32 %v1349, %v3623
        %v4296 = vsub.f32 %v1349, %v3627
        %v4297 = vsub.f32 %v1349, %v3631
        %v4298 = vsub.f32 %v1349, %v3635
        %v4299 = vsub.f32 %v1349, %v3639
        %v4300 = vsub.f32 %v1349, %v3643
        %v4301 = vsub.f32 %v1349, %v3647
        %v4302 = vsub.f32 %v1349, %v3651
        %v4303 = vsub.f32 %v1349, %v3655
        %v4304 = vsub.f32 %v1349, %v3659
        %v4305 = vsub.f32 %v1349, %v3663
        %v4306 = vsub.f32 %v1349, %v3667
        %v4307 = vsub.f32 %v1349, %v3671
        %v4308 = vsub.f32 %v1349, %v3675
        %v4309 = vsub.f32 %v1349, %v3679
        %v4310 = vsub.f32 %v1349, %v3683
        %v4311 = vsub.f32 %v1349, %v3687
        %v4312 = vsub.f32 %v1349, %v3691
        %v4313 = vsub.f32 %v1349, %v3695
        %v4314 = vsub.f32 %v1349, %v3699
        %v4315 = vsub.f32 %v1349, %v3703
        %v4316 = vsub.f32 %v1349, %v3707
        %v4317 = vsub.f32 %v1349, %v3711
        %v4318 = vsub.f32 %v1349, %v3715
        %v4319 = vsub.f32 %v1349, %v3719
        %v4320 = vsub.f32 %v1349, %v3723
        %v4321 = vsub.f32 %v1349, %v3727
        %v4322 = vsub.f32 %v1349, %v3731
        %v4323 = vsub.f32 %v1349, %v3735
        %v4324 = vsub.f32 %v1349, %v3739
        %v4325 = vsub.f32 %v1349, %v3743
        %v4326 = vsub.f32 %v1349, %v3747
        %v4327 = vsub.f32 %v1349, %v3751
        %v4328 = vsub.f32 %v1349, %v3755
        %v4329 = vsub.f32 %v1349, %v3759
        %v4330 = vsub.f32 %v1349, %v3763
        %v4331 = vsub.f32 %v1349, %v3767
        %v4332 = vsub.f32 %v1349, %v3771
        %v4333 = vsub.f32 %v1349, %v3775
        %v4334 = vsub.f32 %v1349, %v3779
        %v4335 = vsub.f32 %v1349, %v3783
        %v4336 = vsub.f32 %v1349, %v3787
        %v4337 = vsub.f32 %v1349, %v3791
        %v4338 = vsub.f32 %v1349, %v3795
        %v4339 = vsub.f32 %v1349, %v3799
        %v4340 = vsub.f32 %v1349, %v3803
        %v4341 = vsub.f32 %v1349, %v3807
        %v4342 = vsub.f32 %v1349, %v3811
        %v4343 = vsub.f32 %v1349, %v3815
        %v4344 = vsub.f32 %v1349, %v3819
        %v4345 = vsub.f32 %v1349, %v3823
        %v4346 = vsub.f32 %v1349, %v3827
        %v4347 = vsub.f32 %v1349, %v3831
        %v4348 = vsub.f32 %v1349, %v3835
        %v4349 = vsub.f32 %v1349, %v3839
        %v4350 = vsub.f32 %v1349, %v3843
        %v4351 = vsub.f32 %v1349, %v3847
        %v4352 = vsub.f32 %v1349, %v3851
        %v4353 = vsub.f32 %v1349, %v3855
        %v4354 = vsub.f32 %v1349, %v3859
        %v4355 = vsub.f32 %v1349, %v3863
        %v4356 = vsub.f32 %v1349, %v3867
        %v4357 = vsub.f32 %v1349, %v3871
        %v4358 = vsub.f32 %v1349, %v3875
        %v4359 = vsub.f32 %v1349, %v3879
        %v4360 = vsub.f32 %v1349, %v3883
        %v4361 = vsub.f32 %v1349, %v3887
        %v4362 = vsub.f32 %v1349, %v3891
        %v4363 = vsub.f32 %v1349, %v3895
        %v4364 = vsub.f32 %v1349, %v3899
        %v4365 = vsub.f32 %v1349, %v3903
        %v4366 = vsub.f32 %v1349, %v3907
        %v4367 = vsub.f32 %v1349, %v3911
        %v4368 = vsub.f32 %v1349, %v3915
        %v4369 = vsub.f32 %v1349, %v3919
        %v4370 = vsub.f32 %v1349, %v3923
        %v4371 = vsub.f32 %v1349, %v3927
        %v4372 = vsub.f32 %v1349, %v3931
        %v4373 = vsub.f32 %v1349, %v3935
        %v4374 = vsub.f32 %v1349, %v3939
        %v4375 = vsub.f32 %v1349, %v3943
        %v4376 = vsub.f32 %v1349, %v3947
        %v4377 = vsub.f32 %v1349, %v3951
        %v4378 = vsub.f32 %v1349, %v3955
        %v4379 = vsub.f32 %v1349, %v3959
        %v4380 = vsub.f32 %v1349, %v3963
        %v4381 = vsub.f32 %v1349, %v3967
        %v4382 = vsub.f32 %v1349, %v3971
        %v4383 = vsub.f32 %v1349, %v3975
        %v4384 = vsub.f32 %v1349, %v3979
        %v4385 = vsub.f32 %v1349, %v3983
        %v4386 = vsub.f32 %v1349, %v3987
        %v4387 = vsub.f32 %v1349, %v3991
        %v4388 = vsub.f32 %v1349, %v3995
        %v4389 = vsub.f32 %v1349, %v3999
        %v4390 = vsub.f32 %v1349, %v4003
        %v4391 = vsub.f32 %v1349, %v4007
        %v4392 = vsub.f32 %v1349, %v4011
        %v4393 = vsub.f32 %v1349, %v4015
        %v4394 = vsub.f32 %v1349, %v4019
        %v4395 = vsub.f32 %v1349, %v4023
        %v4396 = vsub.f32 %v1349, %v4027
        %v4397 = vsub.f32 %v1349, %v4031
        %v4398 = vsub.f32 %v1349, %v4035
        %v4399 = vsub.f32 %v1349, %v4039
        %v4400 = vsub.f32 %v1349, %v4043
        %v4401 = vsub.f32 %v1349, %v4047
        %v4402 = vsub.f32 %v1349, %v4051
        %v4403 = vsub.f32 %v1349, %v4055
        %v4404 = vsub.f32 %v1349, %v4059
        %v4405 = vsub.f32 %v1349, %v4063
        %v4406 = vsub.f32 %v1349, %v4067
        %v4407 = vsub.f32 %v1349, %v4071
        %v4408 = vsub.f32 %v1349, %v4075
        %v4409 = vsub.f32 %v1349, %v4079
        %v4410 = vsub.f32 %v1349, %v4083
        %v4411 = vsub.f32 %v1349, %v4087
        %v4412 = vsub.f32 %v1349, %v4091
        %v4413 = vsub.f32 %v1349, %v4095
        %v4414 = vsub.f32 %v1349, %v4099
        %v4415 = vsub.f32 %v1349, %v4103
        %v4416 = vsub.f32 %v1349, %v4107
        %v4417 = vsub.f32 %v1349, %v4111
        %v4418 = vsub.f32 %v1349, %v4115
        %v4419 = vsub.f32 %v1349, %v4119
        %v4420 = vsub.f32 %v1349, %v4123
        %v4421 = vsub.f32 %v1349, %v4127
        %v4422 = vsub.f32 %v1349, %v4131
        %v4423 = vsub.f32 %v1349, %v4135
        %v4424 = vsub.f32 %v1349, %v4139
        %v4425 = vsub.f32 %v1349, %v4143
        %v4426 = vsub.f32 %v1349, %v4147
        %v4427 = vsub.f32 %v1349, %v4151
        %v4428 = vsub.f32 %v1349, %v4155
        %v4429 = vsub.f32 %v1349, %v4159
        %v4430 = vsub.f32 %v1349, %v4163
        %v4431 = vsub.f32 %v1349, %v4167
        %v4432 = vsub.f32 %v1349, %v4171
        %v4433 = vsub.f32 %v1349, %v4175
        %v4434 = vmul.f32 %v4177, %v4177
        %v4435 = vmul.f32 %v4178, %v4178
        %v4436 = vmul.f32 %v4179, %v4179
        %v4437 = vmul.f32 %v4180, %v4180
        %v4438 = vmul.f32 %v4181, %v4181
        %v4439 = vmul.f32 %v4182, %v4182
        %v4440 = vmul.f32 %v4183, %v4183
        %v4441 = vmul.f32 %v4184, %v4184
        %v4442 = vmul.f32 %v4185, %v4185
        %v4443 = vmul.f32 %v4186, %v4186
        %v4444 = vmul.f32 %v4187, %v4187
        %v4445 = vmul.f32 %v4188, %v4188
        %v4446 = vmul.f32 %v4189, %v4189
        %v4447 = vmul.f32 %v4190, %v4190
        %v4448 = vmul.f32 %v4191, %v4191
        %v4449 = vmul.f32 %v4192, %v4192
        %v4450 = vmul.f32 %v4193, %v4193
        %v4451 = vmul.f32 %v4194, %v4194
        %v4452 = vmul.f32 %v4195, %v4195
        %v4453 = vmul.f32 %v4196, %v4196
        %v4454 = vmul.f32 %v4197, %v4197
        %v4455 = vmul.f32 %v4198, %v4198
        %v4456 = vmul.f32 %v4199, %v4199
        %v4457 = vmul.f32 %v4200, %v4200
        %v4458 = vmul.f32 %v4201, %v4201
        %v4459 = vmul.f32 %v4202, %v4202
        %v4460 = vmul.f32 %v4203, %v4203
        %v4461 = vmul.f32 %v4204, %v4204
        %v4462 = vmul.f32 %v4205, %v4205
        %v4463 = vmul.f32 %v4206, %v4206
        %v4464 = vmul.f32 %v4207, %v4207
        %v4465 = vmul.f32 %v4208, %v4208
        %v4466 = vmul.f32 %v4209, %v4209
        %v4467 = vmul.f32 %v4210, %v4210
        %v4468 = vmul.f32 %v4211, %v4211
        %v4469 = vmul.f32 %v4212, %v4212
        %v4470 = vmul.f32 %v4213, %v4213
        %v4471 = vmul.f32 %v4214, %v4214
        %v4472 = vmul.f32 %v4215, %v4215
        %v4473 = vmul.f32 %v4216, %v4216
        %v4474 = vmul.f32 %v4217, %v4217
        %v4475 = vmul.f32 %v4218, %v4218
        %v4476 = vmul.f32 %v4219, %v4219
        %v4477 = vmul.f32 %v4220, %v4220
        %v4478 = vmul.f32 %v4221, %v4221
        %v4479 = vmul.f32 %v4222, %v4222
        %v4480 = vmul.f32 %v4223, %v4223
        %v4481 = vmul.f32 %v4224, %v4224
        %v4482 = vmul.f32 %v4225, %v4225
        %v4483 = vmul.f32 %v4226, %v4226
        %v4484 = vmul.f32 %v4227, %v4227
        %v4485 = vmul.f32 %v4228, %v4228
        %v4486 = vmul.f32 %v4229, %v4229
        %v4487 = vmul.f32 %v4230, %v4230
        %v4488 = vmul.f32 %v4231, %v4231
        %v4489 = vmul.f32 %v4232, %v4232
        %v4490 = vmul.f32 %v4233, %v4233
        %v4491 = vmul.f32 %v4234, %v4234
        %v4492 = vmul.f32 %v4235, %v4235
        %v4493 = vmul.f32 %v4236, %v4236
        %v4494 = vmul.f32 %v4237, %v4237
        %v4495 = vmul.f32 %v4238, %v4238
        %v4496 = vmul.f32 %v4239, %v4239
        %v4497 = vmul.f32 %v4240, %v4240
        %v4498 = vmul.f32 %v4241, %v4241
        %v4499 = vmul.f32 %v4242, %v4242
        %v4500 = vmul.f32 %v4243, %v4243
        %v4501 = vmul.f32 %v4244, %v4244
        %v4502 = vmul.f32 %v4245, %v4245
        %v4503 = vmul.f32 %v4246, %v4246
        %v4504 = vmul.f32 %v4247, %v4247
        %v4505 = vmul.f32 %v4248, %v4248
        %v4506 = vmul.f32 %v4249, %v4249
        %v4507 = vmul.f32 %v4250, %v4250
        %v4508 = vmul.f32 %v4251, %v4251
        %v4509 = vmul.f32 %v4252, %v4252
        %v4510 = vmul.f32 %v4253, %v4253
        %v4511 = vmul.f32 %v4254, %v4254
        %v4512 = vmul.f32 %v4255, %v4255
        %v4513 = vmul.f32 %v4256, %v4256
        %v4514 = vmul.f32 %v4257, %v4257
        %v4515 = vmul.f32 %v4258, %v4258
        %v4516 = vmul.f32 %v4259, %v4259
        %v4517 = vmul.f32 %v4260, %v4260
        %v4518 = vmul.f32 %v4261, %v4261
        %v4519 = vmul.f32 %v4262, %v4262
        %v4520 = vmul.f32 %v4263, %v4263
        %v4521 = vmul.f32 %v4264, %v4264
        %v4522 = vmul.f32 %v4265, %v4265
        %v4523 = vmul.f32 %v4266, %v4266
        %v4524 = vmul.f32 %v4267, %v4267
        %v4525 = vmul.f32 %v4268, %v4268
        %v4526 = vmul.f32 %v4269, %v4269
        %v4527 = vmul.f32 %v4270, %v4270
        %v4528 = vmul.f32 %v4271, %v4271
        %v4529 = vmul.f32 %v4272, %v4272
        %v4530 = vmul.f32 %v4273, %v4273
        %v4531 = vmul.f32 %v4274, %v4274
        %v4532 = vmul.f32 %v4275, %v4275
        %v4533 = vmul.f32 %v4276, %v4276
        %v4534 = vmul.f32 %v4277, %v4277
        %v4535 = vmul.f32 %v4278, %v4278
        %v4536 = vmul.f32 %v4279, %v4279
        %v4537 = vmul.f32 %v4280, %v4280
        %v4538 = vmul.f32 %v4281, %v4281
        %v4539 = vmul.f32 %v4282, %v4282
        %v4540 = vmul.f32 %v4283, %v4283
        %v4541 = vmul.f32 %v4284, %v4284
        %v4542 = vmul.f32 %v4285, %v4285
        %v4543 = vmul.f32 %v4286, %v4286
        %v4544 = vmul.f32 %v4287, %v4287
        %v4545 = vmul.f32 %v4288, %v4288
        %v4546 = vmul.f32 %v4289, %v4289
        %v4547 = vmul.f32 %v4290, %v4290
        %v4548 = vmul.f32 %v4291, %v4291
        %v4549 = vmul.f32 %v4292, %v4292
        %v4550 = vmul.f32 %v4293, %v4293
        %v4551 = vmul.f32 %v4294, %v4294
        %v4552 = vmul.f32 %v4295, %v4295
        %v4553 = vmul.f32 %v4296, %v4296
        %v4554 = vmul.f32 %v4297, %v4297
        %v4555 = vmul.f32 %v4298, %v4298
        %v4556 = vmul.f32 %v4299, %v4299
        %v4557 = vmul.f32 %v4300, %v4300
        %v4558 = vmul.f32 %v4301, %v4301
        %v4559 = vmul.f32 %v4302, %v4302
        %v4560 = vmul.f32 %v4303, %v4303
        %v4561 = vmul.f32 %v4304, %v4304
        %v4562 = vmul.f32 %v4305, %v4305
        %v4563 = vmul.f32 %v4306, %v4306
        %v4564 = vmul.f32 %v4307, %v4307
        %v4565 = vmul.f32 %v4308, %v4308
        %v4566 = vmul.f32 %v4309, %v4309
        %v4567 = vmul.f32 %v4310, %v4310
        %v4568 = vmul.f32 %v4311, %v4311
        %v4569 = vmul.f32 %v4312, %v4312
        %v4570 = vmul.f32 %v4313, %v4313
        %v4571 = vmul.f32 %v4314, %v4314
        %v4572 = vmul.f32 %v4315, %v4315
        %v4573 = vmul.f32 %v4316, %v4316
        %v4574 = vmul.f32 %v4317, %v4317
        %v4575 = vmul.f32 %v4318, %v4318
        %v4576 = vmul.f32 %v4319, %v4319
        %v4577 = vmul.f32 %v4320, %v4320
        %v4578 = vmul.f32 %v4321, %v4321
        %v4579 = vmul.f32 %v4322, %v4322
        %v4580 = vmul.f32 %v4323, %v4323
        %v4581 = vmul.f32 %v4324, %v4324
        %v4582 = vmul.f32 %v4325, %v4325
        %v4583 = vmul.f32 %v4326, %v4326
        %v4584 = vmul.f32 %v4327, %v4327
        %v4585 = vmul.f32 %v4328, %v4328
        %v4586 = vmul.f32 %v4329, %v4329
        %v4587 = vmul.f32 %v4330, %v4330
        %v4588 = vmul.f32 %v4331, %v4331
        %v4589 = vmul.f32 %v4332, %v4332
        %v4590 = vmul.f32 %v4333, %v4333
        %v4591 = vmul.f32 %v4334, %v4334
        %v4592 = vmul.f32 %v4335, %v4335
        %v4593 = vmul.f32 %v4336, %v4336
        %v4594 = vmul.f32 %v4337, %v4337
        %v4595 = vmul.f32 %v4338, %v4338
        %v4596 = vmul.f32 %v4339, %v4339
        %v4597 = vmul.f32 %v4340, %v4340
        %v4598 = vmul.f32 %v4341, %v4341
        %v4599 = vmul.f32 %v4342, %v4342
        %v4600 = vmul.f32 %v4343, %v4343
        %v4601 = vmul.f32 %v4344, %v4344
        %v4602 = vmul.f32 %v4345, %v4345
        %v4603 = vmul.f32 %v4346, %v4346
        %v4604 = vmul.f32 %v4347, %v4347
        %v4605 = vmul.f32 %v4348, %v4348
        %v4606 = vmul.f32 %v4349, %v4349
        %v4607 = vmul.f32 %v4350, %v4350
        %v4608 = vmul.f32 %v4351, %v4351
        %v4609 = vmul.f32 %v4352, %v4352
        %v4610 = vmul.f32 %v4353, %v4353
        %v4611 = vmul.f32 %v4354, %v4354
        %v4612 = vmul.f32 %v4355, %v4355
        %v4613 = vmul.f32 %v4356, %v4356
        %v4614 = vmul.f32 %v4357, %v4357
        %v4615 = vmul.f32 %v4358, %v4358
        %v4616 = vmul.f32 %v4359, %v4359
        %v4617 = vmul.f32 %v4360, %v4360
        %v4618 = vmul.f32 %v4361, %v4361
        %v4619 = vmul.f32 %v4362, %v4362
        %v4620 = vmul.f32 %v4363, %v4363
        %v4621 = vmul.f32 %v4364, %v4364
        %v4622 = vmul.f32 %v4365, %v4365
        %v4623 = vmul.f32 %v4366, %v4366
        %v4624 = vmul.f32 %v4367, %v4367
        %v4625 = vmul.f32 %v4368, %v4368
        %v4626 = vmul.f32 %v4369, %v4369
        %v4627 = vmul.f32 %v4370, %v4370
        %v4628 = vmul.f32 %v4371, %v4371
        %v4629 = vmul.f32 %v4372, %v4372
        %v4630 = vmul.f32 %v4373, %v4373
        %v4631 = vmul.f32 %v4374, %v4374
        %v4632 = vmul.f32 %v4375, %v4375
        %v4633 = vmul.f32 %v4376, %v4376
        %v4634 = vmul.f32 %v4377, %v4377
        %v4635 = vmul.f32 %v4378, %v4378
        %v4636 = vmul.f32 %v4379, %v4379
        %v4637 = vmul.f32 %v4380, %v4380
        %v4638 = vmul.f32 %v4381, %v4381
        %v4639 = vmul.f32 %v4382, %v4382
        %v4640 = vmul.f32 %v4383, %v4383
        %v4641 = vmul.f32 %v4384, %v4384
        %v4642 = vmul.f32 %v4385, %v4385
        %v4643 = vmul.f32 %v4386, %v4386
        %v4644 = vmul.f32 %v4387, %v4387
        %v4645 = vmul.f32 %v4388, %v4388
        %v4646 = vmul.f32 %v4389, %v4389
        %v4647 = vmul.f32 %v4390, %v4390
        %v4648 = vmul.f32 %v4391, %v4391
        %v4649 = vmul.f32 %v4392, %v4392
        %v4650 = vmul.f32 %v4393, %v4393
        %v4651 = vmul.f32 %v4394, %v4394
        %v4652 = vmul.f32 %v4395, %v4395
        %v4653 = vmul.f32 %v4396, %v4396
        %v4654 = vmul.f32 %v4397, %v4397
        %v4655 = vmul.f32 %v4398, %v4398
        %v4656 = vmul.f32 %v4399, %v4399
        %v4657 = vmul.f32 %v4400, %v4400
        %v4658 = vmul.f32 %v4401, %v4401
        %v4659 = vmul.f32 %v4402, %v4402
        %v4660 = vmul.f32 %v4403, %v4403
        %v4661 = vmul.f32 %v4404, %v4404
        %v4662 = vmul.f32 %v4405, %v4405
        %v4663 = vmul.f32 %v4406, %v4406
        %v4664 = vmul.f32 %v4407, %v4407
        %v4665 = vmul.f32 %v4408, %v4408
        %v4666 = vmul.f32 %v4409, %v4409
        %v4667 = vmul.f32 %v4410, %v4410
        %v4668 = vmul.f32 %v4411, %v4411
        %v4669 = vmul.f32 %v4412, %v4412
        %v4670 = vmul.f32 %v4413, %v4413
        %v4671 = vmul.f32 %v4414, %v4414
        %v4672 = vmul.f32 %v4415, %v4415
        %v4673 = vmul.f32 %v4416, %v4416
        %v4674 = vmul.f32 %v4417, %v4417
        %v4675 = vmul.f32 %v4418, %v4418
        %v4676 = vmul.f32 %v4419, %v4419
        %v4677 = vmul.f32 %v4420, %v4420
        %v4678 = vmul.f32 %v4421, %v4421
        %v4679 = vmul.f32 %v4422, %v4422
        %v4680 = vmul.f32 %v4423, %v4423
        %v4681 = vmul.f32 %v4424, %v4424
        %v4682 = vmul.f32 %v4425, %v4425
        %v4683 = vmul.f32 %v4426, %v4426
        %v4684 = vmul.f32 %v4427, %v4427
        %v4685 = vmul.f32 %v4428, %v4428
        %v4686 = vmul.f32 %v4429, %v4429
        %v4687 = vmul.f32 %v4430, %v4430
        %v4688 = vmul.f32 %v4431, %v4431
        %v4689 = vmul.f32 %v4432, %v4432
        %v4690 = vmul.f32 %v4433, %v4433
        %v4691 = vsub.f32 0.0, %v4434
        %v4692 = vsub.f32 0.0, %v4435
        %v4693 = vsub.f32 0.0, %v4436
        %v4694 = vsub.f32 0.0, %v4437
        %v4695 = vsub.f32 0.0, %v4438
        %v4696 = vsub.f32 0.0, %v4439
        %v4697 = vsub.f32 0.0, %v4440
        %v4698 = vsub.f32 0.0, %v4441
        %v4699 = vsub.f32 0.0, %v4442
        %v4700 = vsub.f32 0.0, %v4443
        %v4701 = vsub.f32 0.0, %v4444
        %v4702 = vsub.f32 0.0, %v4445
        %v4703 = vsub.f32 0.0, %v4446
        %v4704 = vsub.f32 0.0, %v4447
        %v4705 = vsub.f32 0.0, %v4448
        %v4706 = vsub.f32 0.0, %v4449
        %v4707 = vsub.f32 0.0, %v4450
        %v4708 = vsub.f32 0.0, %v4451
        %v4709 = vsub.f32 0.0, %v4452
        %v4710 = vsub.f32 0.0, %v4453
        %v4711 = vsub.f32 0.0, %v4454
        %v4712 = vsub.f32 0.0, %v4455
        %v4713 = vsub.f32 0.0, %v4456
        %v4714 = vsub.f32 0.0, %v4457
        %v4715 = vsub.f32 0.0, %v4458
        %v4716 = vsub.f32 0.0, %v4459
        %v4717 = vsub.f32 0.0, %v4460
        %v4718 = vsub.f32 0.0, %v4461
        %v4719 = vsub.f32 0.0, %v4462
        %v4720 = vsub.f32 0.0, %v4463
        %v4721 = vsub.f32 0.0, %v4464
        %v4722 = vsub.f32 0.0, %v4465
        %v4723 = vsub.f32 0.0, %v4466
        %v4724 = vsub.f32 0.0, %v4467
        %v4725 = vsub.f32 0.0, %v4468
        %v4726 = vsub.f32 0.0, %v4469
        %v4727 = vsub.f32 0.0, %v4470
        %v4728 = vsub.f32 0.0, %v4471
        %v4729 = vsub.f32 0.0, %v4472
        %v4730 = vsub.f32 0.0, %v4473
        %v4731 = vsub.f32 0.0, %v4474
        %v4732 = vsub.f32 0.0, %v4475
        %v4733 = vsub.f32 0.0, %v4476
        %v4734 = vsub.f32 0.0, %v4477
        %v4735 = vsub.f32 0.0, %v4478
        %v4736 = vsub.f32 0.0, %v4479
        %v4737 = vsub.f32 0.0, %v4480
        %v4738 = vsub.f32 0.0, %v4481
        %v4739 = vsub.f32 0.0, %v4482
        %v4740 = vsub.f32 0.0, %v4483
        %v4741 = vsub.f32 0.0, %v4484
        %v4742 = vsub.f32 0.0, %v4485
        %v4743 = vsub.f32 0.0, %v4486
        %v4744 = vsub.f32 0.0, %v4487
        %v4745 = vsub.f32 0.0, %v4488
        %v4746 = vsub.f32 0.0, %v4489
        %v4747 = vsub.f32 0.0, %v4490
        %v4748 = vsub.f32 0.0, %v4491
        %v4749 = vsub.f32 0.0, %v4492
        %v4750 = vsub.f32 0.0, %v4493
        %v4751 = vsub.f32 0.0, %v4494
        %v4752 = vsub.f32 0.0, %v4495
        %v4753 = vsub.f32 0.0, %v4496
        %v4754 = vsub.f32 0.0, %v4497
        %v4755 = vsub.f32 0.0, %v4498
        %v4756 = vsub.f32 0.0, %v4499
        %v4757 = vsub.f32 0.0, %v4500
        %v4758 = vsub.f32 0.0, %v4501
        %v4759 = vsub.f32 0.0, %v4502
        %v4760 = vsub.f32 0.0, %v4503
        %v4761 = vsub.f32 0.0, %v4504
        %v4762 = vsub.f32 0.0, %v4505
        %v4763 = vsub.f32 0.0, %v4506
        %v4764 = vsub.f32 0.0, %v4507
        %v4765 = vsub.f32 0.0, %v4508
        %v4766 = vsub.f32 0.0, %v4509
        %v4767 = vsub.f32 0.0, %v4510
        %v4768 = vsub.f32 0.0, %v4511
        %v4769 = vsub.f32 0.0, %v4512
        %v4770 = vsub.f32 0.0, %v4513
        %v4771 = vsub.f32 0.0, %v4514
        %v4772 = vsub.f32 0.0, %v4515
        %v4773 = vsub.f32 0.0, %v4516
        %v4774 = vsub.f32 0.0, %v4517
        %v4775 = vsub.f32 0.0, %v4518
        %v4776 = vsub.f32 0.0, %v4519
        %v4777 = vsub.f32 0.0, %v4520
        %v4778 = vsub.f32 0.0, %v4521
        %v4779 = vsub.f32 0.0, %v4522
        %v4780 = vsub.f32 0.0, %v4523
        %v4781 = vsub.f32 0.0, %v4524
        %v4782 = vsub.f32 0.0, %v4525
        %v4783 = vsub.f32 0.0, %v4526
        %v4784 = vsub.f32 0.0, %v4527
        %v4785 = vsub.f32 0.0, %v4528
        %v4786 = vsub.f32 0.0, %v4529
        %v4787 = vsub.f32 0.0, %v4530
        %v4788 = vsub.f32 0.0, %v4531
        %v4789 = vsub.f32 0.0, %v4532
        %v4790 = vsub.f32 0.0, %v4533
        %v4791 = vsub.f32 0.0, %v4534
        %v4792 = vsub.f32 0.0, %v4535
        %v4793 = vsub.f32 0.0, %v4536
        %v4794 = vsub.f32 0.0, %v4537
        %v4795 = vsub.f32 0.0, %v4538
        %v4796 = vsub.f32 0.0, %v4539
        %v4797 = vsub.f32 0.0, %v4540
        %v4798 = vsub.f32 0.0, %v4541
        %v4799 = vsub.f32 0.0, %v4542
        %v4800 = vsub.f32 0.0, %v4543
        %v4801 = vsub.f32 0.0, %v4544
        %v4802 = vsub.f32 0.0, %v4545
        %v4803 = vsub.f32 0.0, %v4546
        %v4804 = vsub.f32 0.0, %v4547
        %v4805 = vsub.f32 0.0, %v4548
        %v4806 = vsub.f32 0.0, %v4549
        %v4807 = vsub.f32 0.0, %v4550
        %v4808 = vsub.f32 0.0, %v4551
        %v4809 = vsub.f32 0.0, %v4552
        %v4810 = vsub.f32 0.0, %v4553
        %v4811 = vsub.f32 0.0, %v4554
        %v4812 = vsub.f32 0.0, %v4555
        %v4813 = vsub.f32 0.0, %v4556
        %v4814 = vsub.f32 0.0, %v4557
        %v4815 = vsub.f32 0.0, %v4558
        %v4816 = vsub.f32 0.0, %v4559
        %v4817 = vsub.f32 0.0, %v4560
        %v4818 = vsub.f32 0.0, %v4561
        %v4819 = vsub.f32 0.0, %v4562
        %v4820 = vsub.f32 0.0, %v4563
        %v4821 = vsub.f32 0.0, %v4564
        %v4822 = vsub.f32 0.0, %v4565
        %v4823 = vsub.f32 0.0, %v4566
        %v4824 = vsub.f32 0.0, %v4567
        %v4825 = vsub.f32 0.0, %v4568
        %v4826 = vsub.f32 0.0, %v4569
        %v4827 = vsub.f32 0.0, %v4570
        %v4828 = vsub.f32 0.0, %v4571
        %v4829 = vsub.f32 0.0, %v4572
        %v4830 = vsub.f32 0.0, %v4573
        %v4831 = vsub.f32 0.0, %v4574
        %v4832 = vsub.f32 0.0, %v4575
        %v4833 = vsub.f32 0.0, %v4576
        %v4834 = vsub.f32 0.0, %v4577
        %v4835 = vsub.f32 0.0, %v4578
        %v4836 = vsub.f32 0.0, %v4579
        %v4837 = vsub.f32 0.0, %v4580
        %v4838 = vsub.f32 0.0, %v4581
        %v4839 = vsub.f32 0.0, %v4582
        %v4840 = vsub.f32 0.0, %v4583
        %v4841 = vsub.f32 0.0, %v4584
        %v4842 = vsub.f32 0.0, %v4585
        %v4843 = vsub.f32 0.0, %v4586
        %v4844 = vsub.f32 0.0, %v4587
        %v4845 = vsub.f32 0.0, %v4588
        %v4846 = vsub.f32 0.0, %v4589
        %v4847 = vsub.f32 0.0, %v4590
        %v4848 = vsub.f32 0.0, %v4591
        %v4849 = vsub.f32 0.0, %v4592
        %v4850 = vsub.f32 0.0, %v4593
        %v4851 = vsub.f32 0.0, %v4594
        %v4852 = vsub.f32 0.0, %v4595
        %v4853 = vsub.f32 0.0, %v4596
        %v4854 = vsub.f32 0.0, %v4597
        %v4855 = vsub.f32 0.0, %v4598
        %v4856 = vsub.f32 0.0, %v4599
        %v4857 = vsub.f32 0.0, %v4600
        %v4858 = vsub.f32 0.0, %v4601
        %v4859 = vsub.f32 0.0, %v4602
        %v4860 = vsub.f32 0.0, %v4603
        %v4861 = vsub.f32 0.0, %v4604
        %v4862 = vsub.f32 0.0, %v4605
        %v4863 = vsub.f32 0.0, %v4606
        %v4864 = vsub.f32 0.0, %v4607
        %v4865 = vsub.f32 0.0, %v4608
        %v4866 = vsub.f32 0.0, %v4609
        %v4867 = vsub.f32 0.0, %v4610
        %v4868 = vsub.f32 0.0, %v4611
        %v4869 = vsub.f32 0.0, %v4612
        %v4870 = vsub.f32 0.0, %v4613
        %v4871 = vsub.f32 0.0, %v4614
        %v4872 = vsub.f32 0.0, %v4615
        %v4873 = vsub.f32 0.0, %v4616
        %v4874 = vsub.f32 0.0, %v4617
        %v4875 = vsub.f32 0.0, %v4618
        %v4876 = vsub.f32 0.0, %v4619
        %v4877 = vsub.f32 0.0, %v4620
        %v4878 = vsub.f32 0.0, %v4621
        %v4879 = vsub.f32 0.0, %v4622
        %v4880 = vsub.f32 0.0, %v4623
        %v4881 = vsub.f32 0.0, %v4624
        %v4882 = vsub.f32 0.0, %v4625
        %v4883 = vsub.f32 0.0, %v4626
        %v4884 = vsub.f32 0.0, %v4627
        %v4885 = vsub.f32 0.0, %v4628
        %v4886 = vsub.f32 0.0, %v4629
        %v4887 = vsub.f32 0.0, %v4630
        %v4888 = vsub.f32 0.0, %v4631
        %v4889 = vsub.f32 0.0, %v4632
        %v4890 = vsub.f32 0.0, %v4633
        %v4891 = vsub.f32 0.0, %v4634
        %v4892 = vsub.f32 0.0, %v4635
        %v4893 = vsub.f32 0.0, %v4636
        %v4894 = vsub.f32 0.0, %v4637
        %v4895 = vsub.f32 0.0, %v4638
        %v4896 = vsub.f32 0.0, %v4639
        %v4897 = vsub.f32 0.0, %v4640
        %v4898 = vsub.f32 0.0, %v4641
        %v4899 = vsub.f32 0.0, %v4642
        %v4900 = vsub.f32 0.0, %v4643
        %v4901 = vsub.f32 0.0, %v4644
        %v4902 = vsub.f32 0.0, %v4645
        %v4903 = vsub.f32 0.0, %v4646
        %v4904 = vsub.f32 0.0, %v4647
        %v4905 = vsub.f32 0.0, %v4648
        %v4906 = vsub.f32 0.0, %v4649
        %v4907 = vsub.f32 0.0, %v4650
        %v4908 = vsub.f32 0.0, %v4651
        %v4909 = vsub.f32 0.0, %v4652
        %v4910 = vsub.f32 0.0, %v4653
        %v4911 = vsub.f32 0.0, %v4654
        %v4912 = vsub.f32 0.0, %v4655
        %v4913 = vsub.f32 0.0, %v4656
        %v4914 = vsub.f32 0.0, %v4657
        %v4915 = vsub.f32 0.0, %v4658
        %v4916 = vsub.f32 0.0, %v4659
        %v4917 = vsub.f32 0.0, %v4660
        %v4918 = vsub.f32 0.0, %v4661
        %v4919 = vsub.f32 0.0, %v4662
        %v4920 = vsub.f32 0.0, %v4663
        %v4921 = vsub.f32 0.0, %v4664
        %v4922 = vsub.f32 0.0, %v4665
        %v4923 = vsub.f32 0.0, %v4666
        %v4924 = vsub.f32 0.0, %v4667
        %v4925 = vsub.f32 0.0, %v4668
        %v4926 = vsub.f32 0.0, %v4669
        %v4927 = vsub.f32 0.0, %v4670
        %v4928 = vsub.f32 0.0, %v4671
        %v4929 = vsub.f32 0.0, %v4672
        %v4930 = vsub.f32 0.0, %v4673
        %v4931 = vsub.f32 0.0, %v4674
        %v4932 = vsub.f32 0.0, %v4675
        %v4933 = vsub.f32 0.0, %v4676
        %v4934 = vsub.f32 0.0, %v4677
        %v4935 = vsub.f32 0.0, %v4678
        %v4936 = vsub.f32 0.0, %v4679
        %v4937 = vsub.f32 0.0, %v4680
        %v4938 = vsub.f32 0.0, %v4681
        %v4939 = vsub.f32 0.0, %v4682
        %v4940 = vsub.f32 0.0, %v4683
        %v4941 = vsub.f32 0.0, %v4684
        %v4942 = vsub.f32 0.0, %v4685
        %v4943 = vsub.f32 0.0, %v4686
        %v4944 = vsub.f32 0.0, %v4687
        %v4945 = vsub.f32 0.0, %v4688
        %v4946 = vsub.f32 0.0, %v4689
        %v4947 = vsub.f32 0.0, %v4690
        %v4948 = vmul.f32 %v4691, 2.0
        %v4949 = vmul.f32 %v4692, 2.0
        %v4950 = vmul.f32 %v4693, 2.0
        %v4951 = vmul.f32 %v4694, 2.0
        %v4952 = vmul.f32 %v4695, 2.0
        %v4953 = vmul.f32 %v4696, 2.0
        %v4954 = vmul.f32 %v4697, 2.0
        %v4955 = vmul.f32 %v4698, 2.0
        %v4956 = vmul.f32 %v4699, 2.0
        %v4957 = vmul.f32 %v4700, 2.0
        %v4958 = vmul.f32 %v4701, 2.0
        %v4959 = vmul.f32 %v4702, 2.0
        %v4960 = vmul.f32 %v4703, 2.0
        %v4961 = vmul.f32 %v4704, 2.0
        %v4962 = vmul.f32 %v4705, 2.0
        %v4963 = vmul.f32 %v4706, 2.0
        %v4964 = vmul.f32 %v4707, 2.0
        %v4965 = vmul.f32 %v4708, 2.0
        %v4966 = vmul.f32 %v4709, 2.0
        %v4967 = vmul.f32 %v4710, 2.0
        %v4968 = vmul.f32 %v4711, 2.0
        %v4969 = vmul.f32 %v4712, 2.0
        %v4970 = vmul.f32 %v4713, 2.0
        %v4971 = vmul.f32 %v4714, 2.0
        %v4972 = vmul.f32 %v4715, 2.0
        %v4973 = vmul.f32 %v4716, 2.0
        %v4974 = vmul.f32 %v4717, 2.0
        %v4975 = vmul.f32 %v4718, 2.0
        %v4976 = vmul.f32 %v4719, 2.0
        %v4977 = vmul.f32 %v4720, 2.0
        %v4978 = vmul.f32 %v4721, 2.0
        %v4979 = vmul.f32 %v4722, 2.0
        %v4980 = vmul.f32 %v4723, 2.0
        %v4981 = vmul.f32 %v4724, 2.0
        %v4982 = vmul.f32 %v4725, 2.0
        %v4983 = vmul.f32 %v4726, 2.0
        %v4984 = vmul.f32 %v4727, 2.0
        %v4985 = vmul.f32 %v4728, 2.0
        %v4986 = vmul.f32 %v4729, 2.0
        %v4987 = vmul.f32 %v4730, 2.0
        %v4988 = vmul.f32 %v4731, 2.0
        %v4989 = vmul.f32 %v4732, 2.0
        %v4990 = vmul.f32 %v4733, 2.0
        %v4991 = vmul.f32 %v4734, 2.0
        %v4992 = vmul.f32 %v4735, 2.0
        %v4993 = vmul.f32 %v4736, 2.0
        %v4994 = vmul.f32 %v4737, 2.0
        %v4995 = vmul.f32 %v4738, 2.0
        %v4996 = vmul.f32 %v4739, 2.0
        %v4997 = vmul.f32 %v4740, 2.0
        %v4998 = vmul.f32 %v4741, 2.0
        %v4999 = vmul.f32 %v4742, 2.0
        %v5000 = vmul.f32 %v4743, 2.0
        %v5001 = vmul.f32 %v4744, 2.0
        %v5002 = vmul.f32 %v4745, 2.0
        %v5003 = vmul.f32 %v4746, 2.0
        %v5004 = vmul.f32 %v4747, 2.0
        %v5005 = vmul.f32 %v4748, 2.0
        %v5006 = vmul.f32 %v4749, 2.0
        %v5007 = vmul.f32 %v4750, 2.0
        %v5008 = vmul.f32 %v4751, 2.0
        %v5009 = vmul.f32 %v4752, 2.0
        %v5010 = vmul.f32 %v4753, 2.0
        %v5011 = vmul.f32 %v4754, 2.0
        %v5012 = vmul.f32 %v4755, 2.0
        %v5013 = vmul.f32 %v4756, 2.0
        %v5014 = vmul.f32 %v4757, 2.0
        %v5015 = vmul.f32 %v4758, 2.0
        %v5016 = vmul.f32 %v4759, 2.0
        %v5017 = vmul.f32 %v4760, 2.0
        %v5018 = vmul.f32 %v4761, 2.0
        %v5019 = vmul.f32 %v4762, 2.0
        %v5020 = vmul.f32 %v4763, 2.0
        %v5021 = vmul.f32 %v4764, 2.0
        %v5022 = vmul.f32 %v4765, 2.0
        %v5023 = vmul.f32 %v4766, 2.0
        %v5024 = vmul.f32 %v4767, 2.0
        %v5025 = vmul.f32 %v4768, 2.0
        %v5026 = vmul.f32 %v4769, 2.0
        %v5027 = vmul.f32 %v4770, 2.0
        %v5028 = vmul.f32 %v4771, 2.0
        %v5029 = vmul.f32 %v4772, 2.0
        %v5030 = vmul.f32 %v4773, 2.0
        %v5031 = vmul.f32 %v4774, 2.0
        %v5032 = vmul.f32 %v4775, 2.0
        %v5033 = vmul.f32 %v4776, 2.0
        %v5034 = vmul.f32 %v4777, 2.0
        %v5035 = vmul.f32 %v4778, 2.0
        %v5036 = vmul.f32 %v4779, 2.0
        %v5037 = vmul.f32 %v4780, 2.0
        %v5038 = vmul.f32 %v4781, 2.0
        %v5039 = vmul.f32 %v4782, 2.0
        %v5040 = vmul.f32 %v4783, 2.0
        %v5041 = vmul.f32 %v4784, 2.0
        %v5042 = vmul.f32 %v4785, 2.0
        %v5043 = vmul.f32 %v4786, 2.0
        %v5044 = vmul.f32 %v4787, 2.0
        %v5045 = vmul.f32 %v4788, 2.0
        %v5046 = vmul.f32 %v4789, 2.0
        %v5047 = vmul.f32 %v4790, 2.0
        %v5048 = vmul.f32 %v4791, 2.0
        %v5049 = vmul.f32 %v4792, 2.0
        %v5050 = vmul.f32 %v4793, 2.0
        %v5051 = vmul.f32 %v4794, 2.0
        %v5052 = vmul.f32 %v4795, 2.0
        %v5053 = vmul.f32 %v4796, 2.0
        %v5054 = vmul.f32 %v4797, 2.0
        %v5055 = vmul.f32 %v4798, 2.0
        %v5056 = vmul.f32 %v4799, 2.0
        %v5057 = vmul.f32 %v4800, 2.0
        %v5058 = vmul.f32 %v4801, 2.0
        %v5059 = vmul.f32 %v4802, 2.0
        %v5060 = vmul.f32 %v4803, 2.0
        %v5061 = vmul.f32 %v4804, 2.0
        %v5062 = vmul.f32 %v4805, 2.0
        %v5063 = vmul.f32 %v4806, 2.0
        %v5064 = vmul.f32 %v4807, 2.0
        %v5065 = vmul.f32 %v4808, 2.0
        %v5066 = vmul.f32 %v4809, 2.0
        %v5067 = vmul.f32 %v4810, 2.0
        %v5068 = vmul.f32 %v4811, 2.0
        %v5069 = vmul.f32 %v4812, 2.0
        %v5070 = vmul.f32 %v4813, 2.0
        %v5071 = vmul.f32 %v4814, 2.0
        %v5072 = vmul.f32 %v4815, 2.0
        %v5073 = vmul.f32 %v4816, 2.0
        %v5074 = vmul.f32 %v4817, 2.0
        %v5075 = vmul.f32 %v4818, 2.0
        %v5076 = vmul.f32 %v4819, 2.0
        %v5077 = vmul.f32 %v4820, 2.0
        %v5078 = vmul.f32 %v4821, 2.0
        %v5079 = vmul.f32 %v4822, 2.0
        %v5080 = vmul.f32 %v4823, 2.0
        %v5081 = vmul.f32 %v4824, 2.0
        %v5082 = vmul.f32 %v4825, 2.0
        %v5083 = vmul.f32 %v4826, 2.0
        %v5084 = vmul.f32 %v4827, 2.0
        %v5085 = vmul.f32 %v4828, 2.0
        %v5086 = vmul.f32 %v4829, 2.0
        %v5087 = vmul.f32 %v4830, 2.0
        %v5088 = vmul.f32 %v4831, 2.0
        %v5089 = vmul.f32 %v4832, 2.0
        %v5090 = vmul.f32 %v4833, 2.0
        %v5091 = vmul.f32 %v4834, 2.0
        %v5092 = vmul.f32 %v4835, 2.0
        %v5093 = vmul.f32 %v4836, 2.0
        %v5094 = vmul.f32 %v4837, 2.0
        %v5095 = vmul.f32 %v4838, 2.0
        %v5096 = vmul.f32 %v4839, 2.0
        %v5097 = vmul.f32 %v4840, 2.0
        %v5098 = vmul.f32 %v4841, 2.0
        %v5099 = vmul.f32 %v4842, 2.0
        %v5100 = vmul.f32 %v4843, 2.0
        %v5101 = vmul.f32 %v4844, 2.0
        %v5102 = vmul.f32 %v4845, 2.0
        %v5103 = vmul.f32 %v4846, 2.0
        %v5104 = vmul.f32 %v4847, 2.0
        %v5105 = vmul.f32 %v4848, 2.0
        %v5106 = vmul.f32 %v4849, 2.0
        %v5107 = vmul.f32 %v4850, 2.0
        %v5108 = vmul.f32 %v4851, 2.0
        %v5109 = vmul.f32 %v4852, 2.0
        %v5110 = vmul.f32 %v4853, 2.0
        %v5111 = vmul.f32 %v4854, 2.0
        %v5112 = vmul.f32 %v4855, 2.0
        %v5113 = vmul.f32 %v4856, 2.0
        %v5114 = vmul.f32 %v4857, 2.0
        %v5115 = vmul.f32 %v4858, 2.0
        %v5116 = vmul.f32 %v4859, 2.0
        %v5117 = vmul.f32 %v4860, 2.0
        %v5118 = vmul.f32 %v4861, 2.0
        %v5119 = vmul.f32 %v4862, 2.0
        %v5120 = vmul.f32 %v4863, 2.0
        %v5121 = vmul.f32 %v4864, 2.0
        %v5122 = vmul.f32 %v4865, 2.0
        %v5123 = vmul.f32 %v4866, 2.0
        %v5124 = vmul.f32 %v4867, 2.0
        %v5125 = vmul.f32 %v4868, 2.0
        %v5126 = vmul.f32 %v4869, 2.0
        %v5127 = vmul.f32 %v4870, 2.0
        %v5128 = vmul.f32 %v4871, 2.0
        %v5129 = vmul.f32 %v4872, 2.0
        %v5130 = vmul.f32 %v4873, 2.0
        %v5131 = vmul.f32 %v4874, 2.0
        %v5132 = vmul.f32 %v4875, 2.0
        %v5133 = vmul.f32 %v4876, 2.0
        %v5134 = vmul.f32 %v4877, 2.0
        %v5135 = vmul.f32 %v4878, 2.0
        %v5136 = vmul.f32 %v4879, 2.0
        %v5137 = vmul.f32 %v4880, 2.0
        %v5138 = vmul.f32 %v4881, 2.0
        %v5139 = vmul.f32 %v4882, 2.0
        %v5140 = vmul.f32 %v4883, 2.0
        %v5141 = vmul.f32 %v4884, 2.0
        %v5142 = vmul.f32 %v4885, 2.0
        %v5143 = vmul.f32 %v4886, 2.0
        %v5144 = vmul.f32 %v4887, 2.0
        %v5145 = vmul.f32 %v4888, 2.0
        %v5146 = vmul.f32 %v4889, 2.0
        %v5147 = vmul.f32 %v4890, 2.0
        %v5148 = vmul.f32 %v4891, 2.0
        %v5149 = vmul.f32 %v4892, 2.0
        %v5150 = vmul.f32 %v4893, 2.0
        %v5151 = vmul.f32 %v4894, 2.0
        %v5152 = vmul.f32 %v4895, 2.0
        %v5153 = vmul.f32 %v4896, 2.0
        %v5154 = vmul.f32 %v4897, 2.0
        %v5155 = vmul.f32 %v4898, 2.0
        %v5156 = vmul.f32 %v4899, 2.0
        %v5157 = vmul.f32 %v4900, 2.0
        %v5158 = vmul.f32 %v4901, 2.0
        %v5159 = vmul.f32 %v4902, 2.0
        %v5160 = vmul.f32 %v4903, 2.0
        %v5161 = vmul.f32 %v4904, 2.0
        %v5162 = vmul.f32 %v4905, 2.0
        %v5163 = vmul.f32 %v4906, 2.0
        %v5164 = vmul.f32 %v4907, 2.0
        %v5165 = vmul.f32 %v4908, 2.0
        %v5166 = vmul.f32 %v4909, 2.0
        %v5167 = vmul.f32 %v4910, 2.0
        %v5168 = vmul.f32 %v4911, 2.0
        %v5169 = vmul.f32 %v4912, 2.0
        %v5170 = vmul.f32 %v4913, 2.0
        %v5171 = vmul.f32 %v4914, 2.0
        %v5172 = vmul.f32 %v4915, 2.0
        %v5173 = vmul.f32 %v4916, 2.0
        %v5174 = vmul.f32 %v4917, 2.0
        %v5175 = vmul.f32 %v4918, 2.0
        %v5176 = vmul.f32 %v4919, 2.0
        %v5177 = vmul.f32 %v4920, 2.0
        %v5178 = vmul.f32 %v4921, 2.0
        %v5179 = vmul.f32 %v4922, 2.0
        %v5180 = vmul.f32 %v4923, 2.0
        %v5181 = vmul.f32 %v4924, 2.0
        %v5182 = vmul.f32 %v4925, 2.0
        %v5183 = vmul.f32 %v4926, 2.0
        %v5184 = vmul.f32 %v4927, 2.0
        %v5185 = vmul.f32 %v4928, 2.0
        %v5186 = vmul.f32 %v4929, 2.0
        %v5187 = vmul.f32 %v4930, 2.0
        %v5188 = vmul.f32 %v4931, 2.0
        %v5189 = vmul.f32 %v4932, 2.0
        %v5190 = vmul.f32 %v4933, 2.0
        %v5191 = vmul.f32 %v4934, 2.0
        %v5192 = vmul.f32 %v4935, 2.0
        %v5193 = vmul.f32 %v4936, 2.0
        %v5194 = vmul.f32 %v4937, 2.0
        %v5195 = vmul.f32 %v4938, 2.0
        %v5196 = vmul.f32 %v4939, 2.0
        %v5197 = vmul.f32 %v4940, 2.0
        %v5198 = vmul.f32 %v4941, 2.0
        %v5199 = vmul.f32 %v4942, 2.0
        %v5200 = vmul.f32 %v4943, 2.0
        %v5201 = vmul.f32 %v4944, 2.0
        %v5202 = vmul.f32 %v4945, 2.0
        %v5203 = vmul.f32 %v4946, 2.0
        %v5204 = vmul.f32 %v4947, 2.0
        %vm5205 = vcmask 130048
        %v5206 = vsel %vm5205, %v4948, -inf
        %v5207 = vsel %vm5205, %v4949, -inf
        %v5208 = vsel %vm5205, %v4950, -inf
        %v5209 = vsel %vm5205, %v4951, -inf
        %v5210 = vsel %vm5205, %v4952, -inf
        %v5211 = vmax.f32 %v5206, %v5210
        %v5212 = vsel %vm5205, %v4953, -inf
        %v5213 = vmax.f32 %v5207, %v5212
        %v5214 = vsel %vm5205, %v4954, -inf
        %v5215 = vmax.f32 %v5208, %v5214
        %v5216 = vsel %vm5205, %v4955, -inf
        %v5217 = vmax.f32 %v5209, %v5216
        %v5218 = vsel %vm5205, %v4956, -inf
        %v5219 = vmax.f32 %v5211, %v5218
        %v5220 = vsel %vm5205, %v4957, -inf
        %v5221 = vmax.f32 %v5213, %v5220
        %v5222 = vsel %vm5205, %v4958, -inf
        %v5223 = vmax.f32 %v5215, %v5222
        %v5224 = vsel %vm5205, %v4959, -inf
        %v5225 = vmax.f32 %v5217, %v5224
        %v5226 = vsel %vm5205, %v4960, -inf
        %v5227 = vmax.f32 %v5219, %v5226
        %v5228 = vsel %vm5205, %v4961, -inf
        %v5229 = vmax.f32 %v5221, %v5228
        %v5230 = vsel %vm5205, %v4962, -inf
        %v5231 = vmax.f32 %v5223, %v5230
        %v5232 = vsel %vm5205, %v4963, -inf
        %v5233 = vmax.f32 %v5225, %v5232
        %v5234 = vsel %vm5205, %v4964, -inf
        %v5235 = vmax.f32 %v5227, %v5234
        %v5236 = vsel %vm5205, %v4965, -inf
        %v5237 = vmax.f32 %v5229, %v5236
        %v5238 = vsel %vm5205, %v4966, -inf
        %v5239 = vmax.f32 %v5231, %v5238
        %v5240 = vsel %vm5205, %v4967, -inf
        %v5241 = vmax.f32 %v5233, %v5240
        %v5242 = vsel %vm5205, %v4968, -inf
        %v5243 = vmax.f32 %v5235, %v5242
        %v5244 = vsel %vm5205, %v4969, -inf
        %v5245 = vmax.f32 %v5237, %v5244
        %v5246 = vsel %vm5205, %v4970, -inf
        %v5247 = vmax.f32 %v5239, %v5246
        %v5248 = vsel %vm5205, %v4971, -inf
        %v5249 = vmax.f32 %v5241, %v5248
        %v5250 = vsel %vm5205, %v4972, -inf
        %v5251 = vmax.f32 %v5243, %v5250
        %v5252 = vsel %vm5205, %v4973, -inf
        %v5253 = vmax.f32 %v5245, %v5252
        %v5254 = vsel %vm5205, %v4974, -inf
        %v5255 = vmax.f32 %v5247, %v5254
        %v5256 = vsel %vm5205, %v4975, -inf
        %v5257 = vmax.f32 %v5249, %v5256
        %v5258 = vsel %vm5205, %v4976, -inf
        %v5259 = vmax.f32 %v5251, %v5258
        %v5260 = vsel %vm5205, %v4977, -inf
        %v5261 = vmax.f32 %v5253, %v5260
        %v5262 = vsel %vm5205, %v4978, -inf
        %v5263 = vmax.f32 %v5255, %v5262
        %v5264 = vsel %vm5205, %v4979, -inf
        %v5265 = vmax.f32 %v5257, %v5264
        %v5266 = vsel %vm5205, %v4980, -inf
        %v5267 = vmax.f32 %v5259, %v5266
        %v5268 = vsel %vm5205, %v4981, -inf
        %v5269 = vmax.f32 %v5261, %v5268
        %v5270 = vsel %vm5205, %v4982, -inf
        %v5271 = vmax.f32 %v5263, %v5270
        %v5272 = vsel %vm5205, %v4983, -inf
        %v5273 = vmax.f32 %v5265, %v5272
        %v5274 = vsel %vm5205, %v4984, -inf
        %v5275 = vmax.f32 %v5267, %v5274
        %v5276 = vsel %vm5205, %v4985, -inf
        %v5277 = vmax.f32 %v5269, %v5276
        %v5278 = vsel %vm5205, %v4986, -inf
        %v5279 = vmax.f32 %v5271, %v5278
        %v5280 = vsel %vm5205, %v4987, -inf
        %v5281 = vmax.f32 %v5273, %v5280
        %v5282 = vsel %vm5205, %v4988, -inf
        %v5283 = vmax.f32 %v5275, %v5282
        %v5284 = vsel %vm5205, %v4989, -inf
        %v5285 = vmax.f32 %v5277, %v5284
        %v5286 = vsel %vm5205, %v4990, -inf
        %v5287 = vmax.f32 %v5279, %v5286
        %v5288 = vsel %vm5205, %v4991, -inf
        %v5289 = vmax.f32 %v5281, %v5288
        %v5290 = vsel %vm5205, %v4992, -inf
        %v5291 = vmax.f32 %v5283, %v5290
        %v5292 = vsel %vm5205, %v4993, -inf
        %v5293 = vmax.f32 %v5285, %v5292
        %v5294 = vsel %vm5205, %v4994, -inf
        %v5295 = vmax.f32 %v5287, %v5294
        %v5296 = vsel %vm5205, %v4995, -inf
        %v5297 = vmax.f32 %v5289, %v5296
        %v5298 = vsel %vm5205, %v4996, -inf
        %v5299 = vmax.f32 %v5291, %v5298
        %v5300 = vsel %vm5205, %v4997, -inf
        %v5301 = vmax.f32 %v5293, %v5300
        %v5302 = vsel %vm5205, %v4998, -inf
        %v5303 = vmax.f32 %v5295, %v5302
        %v5304 = vsel %vm5205, %v4999, -inf
        %v5305 = vmax.f32 %v5297, %v5304
        %v5306 = vsel %vm5205, %v5000, -inf
        %v5307 = vmax.f32 %v5299, %v5306
        %v5308 = vsel %vm5205, %v5001, -inf
        %v5309 = vmax.f32 %v5301, %v5308
        %v5310 = vsel %vm5205, %v5002, -inf
        %v5311 = vmax.f32 %v5303, %v5310
        %v5312 = vsel %vm5205, %v5003, -inf
        %v5313 = vmax.f32 %v5305, %v5312
        %v5314 = vsel %vm5205, %v5004, -inf
        %v5315 = vmax.f32 %v5307, %v5314
        %v5316 = vsel %vm5205, %v5005, -inf
        %v5317 = vmax.f32 %v5309, %v5316
        %v5318 = vsel %vm5205, %v5006, -inf
        %v5319 = vmax.f32 %v5311, %v5318
        %v5320 = vsel %vm5205, %v5007, -inf
        %v5321 = vmax.f32 %v5313, %v5320
        %v5322 = vsel %vm5205, %v5008, -inf
        %v5323 = vmax.f32 %v5315, %v5322
        %v5324 = vsel %vm5205, %v5009, -inf
        %v5325 = vmax.f32 %v5317, %v5324
        %v5326 = vsel %vm5205, %v5010, -inf
        %v5327 = vmax.f32 %v5319, %v5326
        %v5328 = vsel %vm5205, %v5011, -inf
        %v5329 = vmax.f32 %v5321, %v5328
        %v5330 = vsel %vm5205, %v5012, -inf
        %v5331 = vmax.f32 %v5323, %v5330
        %v5332 = vsel %vm5205, %v5013, -inf
        %v5333 = vmax.f32 %v5325, %v5332
        %v5334 = vsel %vm5205, %v5014, -inf
        %v5335 = vmax.f32 %v5327, %v5334
        %v5336 = vsel %vm5205, %v5015, -inf
        %v5337 = vmax.f32 %v5329, %v5336
        %v5338 = vsel %vm5205, %v5016, -inf
        %v5339 = vmax.f32 %v5331, %v5338
        %v5340 = vsel %vm5205, %v5017, -inf
        %v5341 = vmax.f32 %v5333, %v5340
        %v5342 = vsel %vm5205, %v5018, -inf
        %v5343 = vmax.f32 %v5335, %v5342
        %v5344 = vsel %vm5205, %v5019, -inf
        %v5345 = vmax.f32 %v5337, %v5344
        %v5346 = vsel %vm5205, %v5020, -inf
        %v5347 = vmax.f32 %v5339, %v5346
        %v5348 = vsel %vm5205, %v5021, -inf
        %v5349 = vmax.f32 %v5341, %v5348
        %v5350 = vsel %vm5205, %v5022, -inf
        %v5351 = vmax.f32 %v5343, %v5350
        %v5352 = vsel %vm5205, %v5023, -inf
        %v5353 = vmax.f32 %v5345, %v5352
        %v5354 = vsel %vm5205, %v5024, -inf
        %v5355 = vmax.f32 %v5347, %v5354
        %v5356 = vsel %vm5205, %v5025, -inf
        %v5357 = vmax.f32 %v5349, %v5356
        %v5358 = vsel %vm5205, %v5026, -inf
        %v5359 = vmax.f32 %v5351, %v5358
        %v5360 = vsel %vm5205, %v5027, -inf
        %v5361 = vmax.f32 %v5353, %v5360
        %v5362 = vsel %vm5205, %v5028, -inf
        %v5363 = vmax.f32 %v5355, %v5362
        %v5364 = vsel %vm5205, %v5029, -inf
        %v5365 = vmax.f32 %v5357, %v5364
        %v5366 = vsel %vm5205, %v5030, -inf
        %v5367 = vmax.f32 %v5359, %v5366
        %v5368 = vsel %vm5205, %v5031, -inf
        %v5369 = vmax.f32 %v5361, %v5368
        %v5370 = vsel %vm5205, %v5032, -inf
        %v5371 = vmax.f32 %v5363, %v5370
        %v5372 = vsel %vm5205, %v5033, -inf
        %v5373 = vmax.f32 %v5365, %v5372
        %v5374 = vsel %vm5205, %v5034, -inf
        %v5375 = vmax.f32 %v5367, %v5374
        %v5376 = vsel %vm5205, %v5035, -inf
        %v5377 = vmax.f32 %v5369, %v5376
        %v5378 = vsel %vm5205, %v5036, -inf
        %v5379 = vmax.f32 %v5371, %v5378
        %v5380 = vsel %vm5205, %v5037, -inf
        %v5381 = vmax.f32 %v5373, %v5380
        %v5382 = vsel %vm5205, %v5038, -inf
        %v5383 = vmax.f32 %v5375, %v5382
        %v5384 = vsel %vm5205, %v5039, -inf
        %v5385 = vmax.f32 %v5377, %v5384
        %v5386 = vsel %vm5205, %v5040, -inf
        %v5387 = vmax.f32 %v5379, %v5386
        %v5388 = vsel %vm5205, %v5041, -inf
        %v5389 = vmax.f32 %v5381, %v5388
        %v5390 = vsel %vm5205, %v5042, -inf
        %v5391 = vmax.f32 %v5383, %v5390
        %v5392 = vsel %vm5205, %v5043, -inf
        %v5393 = vmax.f32 %v5385, %v5392
        %v5394 = vsel %vm5205, %v5044, -inf
        %v5395 = vmax.f32 %v5387, %v5394
        %v5396 = vsel %vm5205, %v5045, -inf
        %v5397 = vmax.f32 %v5389, %v5396
        %v5398 = vsel %vm5205, %v5046, -inf
        %v5399 = vmax.f32 %v5391, %v5398
        %v5400 = vsel %vm5205, %v5047, -inf
        %v5401 = vmax.f32 %v5393, %v5400
        %v5402 = vsel %vm5205, %v5048, -inf
        %v5403 = vmax.f32 %v5395, %v5402
        %v5404 = vsel %vm5205, %v5049, -inf
        %v5405 = vmax.f32 %v5397, %v5404
        %v5406 = vsel %vm5205, %v5050, -inf
        %v5407 = vmax.f32 %v5399, %v5406
        %v5408 = vsel %vm5205, %v5051, -inf
        %v5409 = vmax.f32 %v5401, %v5408
        %v5410 = vsel %vm5205, %v5052, -inf
        %v5411 = vmax.f32 %v5403, %v5410
        %v5412 = vsel %vm5205, %v5053, -inf
        %v5413 = vmax.f32 %v5405, %v5412
        %v5414 = vsel %vm5205, %v5054, -inf
        %v5415 = vmax.f32 %v5407, %v5414
        %v5416 = vsel %vm5205, %v5055, -inf
        %v5417 = vmax.f32 %v5409, %v5416
        %v5418 = vsel %vm5205, %v5056, -inf
        %v5419 = vmax.f32 %v5411, %v5418
        %v5420 = vsel %vm5205, %v5057, -inf
        %v5421 = vmax.f32 %v5413, %v5420
        %v5422 = vsel %vm5205, %v5058, -inf
        %v5423 = vmax.f32 %v5415, %v5422
        %v5424 = vsel %vm5205, %v5059, -inf
        %v5425 = vmax.f32 %v5417, %v5424
        %v5426 = vsel %vm5205, %v5060, -inf
        %v5427 = vmax.f32 %v5419, %v5426
        %v5428 = vsel %vm5205, %v5061, -inf
        %v5429 = vmax.f32 %v5421, %v5428
        %v5430 = vsel %vm5205, %v5062, -inf
        %v5431 = vmax.f32 %v5423, %v5430
        %v5432 = vsel %vm5205, %v5063, -inf
        %v5433 = vmax.f32 %v5425, %v5432
        %v5434 = vsel %vm5205, %v5064, -inf
        %v5435 = vmax.f32 %v5427, %v5434
        %v5436 = vsel %vm5205, %v5065, -inf
        %v5437 = vmax.f32 %v5429, %v5436
        %v5438 = vsel %vm5205, %v5066, -inf
        %v5439 = vmax.f32 %v5431, %v5438
        %v5440 = vsel %vm5205, %v5067, -inf
        %v5441 = vmax.f32 %v5433, %v5440
        %v5442 = vsel %vm5205, %v5068, -inf
        %v5443 = vmax.f32 %v5435, %v5442
        %v5444 = vsel %vm5205, %v5069, -inf
        %v5445 = vmax.f32 %v5437, %v5444
        %v5446 = vsel %vm5205, %v5070, -inf
        %v5447 = vmax.f32 %v5439, %v5446
        %v5448 = vsel %vm5205, %v5071, -inf
        %v5449 = vmax.f32 %v5441, %v5448
        %v5450 = vsel %vm5205, %v5072, -inf
        %v5451 = vmax.f32 %v5443, %v5450
        %v5452 = vsel %vm5205, %v5073, -inf
        %v5453 = vmax.f32 %v5445, %v5452
        %v5454 = vsel %vm5205, %v5074, -inf
        %v5455 = vmax.f32 %v5447, %v5454
        %v5456 = vsel %vm5205, %v5075, -inf
        %v5457 = vmax.f32 %v5449, %v5456
        %v5458 = vsel %vm5205, %v5076, -inf
        %v5459 = vmax.f32 %v5451, %v5458
        %v5460 = vsel %vm5205, %v5077, -inf
        %v5461 = vmax.f32 %v5453, %v5460
        %v5462 = vsel %vm5205, %v5078, -inf
        %v5463 = vmax.f32 %v5455, %v5462
        %v5464 = vsel %vm5205, %v5079, -inf
        %v5465 = vmax.f32 %v5457, %v5464
        %v5466 = vsel %vm5205, %v5080, -inf
        %v5467 = vmax.f32 %v5459, %v5466
        %v5468 = vsel %vm5205, %v5081, -inf
        %v5469 = vmax.f32 %v5461, %v5468
        %v5470 = vsel %vm5205, %v5082, -inf
        %v5471 = vmax.f32 %v5463, %v5470
        %v5472 = vsel %vm5205, %v5083, -inf
        %v5473 = vmax.f32 %v5465, %v5472
        %v5474 = vsel %vm5205, %v5084, -inf
        %v5475 = vmax.f32 %v5467, %v5474
        %v5476 = vsel %vm5205, %v5085, -inf
        %v5477 = vmax.f32 %v5469, %v5476
        %v5478 = vsel %vm5205, %v5086, -inf
        %v5479 = vmax.f32 %v5471, %v5478
        %v5480 = vsel %vm5205, %v5087, -inf
        %v5481 = vmax.f32 %v5473, %v5480
        %v5482 = vsel %vm5205, %v5088, -inf
        %v5483 = vmax.f32 %v5475, %v5482
        %v5484 = vsel %vm5205, %v5089, -inf
        %v5485 = vmax.f32 %v5477, %v5484
        %v5486 = vsel %vm5205, %v5090, -inf
        %v5487 = vmax.f32 %v5479, %v5486
        %v5488 = vsel %vm5205, %v5091, -inf
        %v5489 = vmax.f32 %v5481, %v5488
        %v5490 = vsel %vm5205, %v5092, -inf
        %v5491 = vmax.f32 %v5483, %v5490
        %v5492 = vsel %vm5205, %v5093, -inf
        %v5493 = vmax.f32 %v5485, %v5492
        %v5494 = vsel %vm5205, %v5094, -inf
        %v5495 = vmax.f32 %v5487, %v5494
        %v5496 = vsel %vm5205, %v5095, -inf
        %v5497 = vmax.f32 %v5489, %v5496
        %v5498 = vsel %vm5205, %v5096, -inf
        %v5499 = vmax.f32 %v5491, %v5498
        %v5500 = vsel %vm5205, %v5097, -inf
        %v5501 = vmax.f32 %v5493, %v5500
        %v5502 = vsel %vm5205, %v5098, -inf
        %v5503 = vmax.f32 %v5495, %v5502
        %v5504 = vsel %vm5205, %v5099, -inf
        %v5505 = vmax.f32 %v5497, %v5504
        %v5506 = vsel %vm5205, %v5100, -inf
        %v5507 = vmax.f32 %v5499, %v5506
        %v5508 = vsel %vm5205, %v5101, -inf
        %v5509 = vmax.f32 %v5501, %v5508
        %v5510 = vsel %vm5205, %v5102, -inf
        %v5511 = vmax.f32 %v5503, %v5510
        %v5512 = vsel %vm5205, %v5103, -inf
        %v5513 = vmax.f32 %v5505, %v5512
        %v5514 = vsel %vm5205, %v5104, -inf
        %v5515 = vmax.f32 %v5507, %v5514
        %v5516 = vsel %vm5205, %v5105, -inf
        %v5517 = vmax.f32 %v5509, %v5516
        %v5518 = vsel %vm5205, %v5106, -inf
        %v5519 = vmax.f32 %v5511, %v5518
        %v5520 = vsel %vm5205, %v5107, -inf
        %v5521 = vmax.f32 %v5513, %v5520
        %v5522 = vsel %vm5205, %v5108, -inf
        %v5523 = vmax.f32 %v5515, %v5522
        %v5524 = vsel %vm5205, %v5109, -inf
        %v5525 = vmax.f32 %v5517, %v5524
        %v5526 = vsel %vm5205, %v5110, -inf
        %v5527 = vmax.f32 %v5519, %v5526
        %v5528 = vsel %vm5205, %v5111, -inf
        %v5529 = vmax.f32 %v5521, %v5528
        %v5530 = vsel %vm5205, %v5112, -inf
        %v5531 = vmax.f32 %v5523, %v5530
        %v5532 = vsel %vm5205, %v5113, -inf
        %v5533 = vmax.f32 %v5525, %v5532
        %v5534 = vsel %vm5205, %v5114, -inf
        %v5535 = vmax.f32 %v5527, %v5534
        %v5536 = vsel %vm5205, %v5115, -inf
        %v5537 = vmax.f32 %v5529, %v5536
        %v5538 = vsel %vm5205, %v5116, -inf
        %v5539 = vmax.f32 %v5531, %v5538
        %v5540 = vsel %vm5205, %v5117, -inf
        %v5541 = vmax.f32 %v5533, %v5540
        %v5542 = vsel %vm5205, %v5118, -inf
        %v5543 = vmax.f32 %v5535, %v5542
        %v5544 = vsel %vm5205, %v5119, -inf
        %v5545 = vmax.f32 %v5537, %v5544
        %v5546 = vsel %vm5205, %v5120, -inf
        %v5547 = vmax.f32 %v5539, %v5546
        %v5548 = vsel %vm5205, %v5121, -inf
        %v5549 = vmax.f32 %v5541, %v5548
        %v5550 = vsel %vm5205, %v5122, -inf
        %v5551 = vmax.f32 %v5543, %v5550
        %v5552 = vsel %vm5205, %v5123, -inf
        %v5553 = vmax.f32 %v5545, %v5552
        %v5554 = vsel %vm5205, %v5124, -inf
        %v5555 = vmax.f32 %v5547, %v5554
        %v5556 = vsel %vm5205, %v5125, -inf
        %v5557 = vmax.f32 %v5549, %v5556
        %v5558 = vsel %vm5205, %v5126, -inf
        %v5559 = vmax.f32 %v5551, %v5558
        %v5560 = vsel %vm5205, %v5127, -inf
        %v5561 = vmax.f32 %v5553, %v5560
        %v5562 = vsel %vm5205, %v5128, -inf
        %v5563 = vmax.f32 %v5555, %v5562
        %v5564 = vsel %vm5205, %v5129, -inf
        %v5565 = vmax.f32 %v5557, %v5564
        %v5566 = vsel %vm5205, %v5130, -inf
        %v5567 = vmax.f32 %v5559, %v5566
        %v5568 = vsel %vm5205, %v5131, -inf
        %v5569 = vmax.f32 %v5561, %v5568
        %v5570 = vsel %vm5205, %v5132, -inf
        %v5571 = vmax.f32 %v5563, %v5570
        %v5572 = vsel %vm5205, %v5133, -inf
        %v5573 = vmax.f32 %v5565, %v5572
        %v5574 = vsel %vm5205, %v5134, -inf
        %v5575 = vmax.f32 %v5567, %v5574
        %v5576 = vsel %vm5205, %v5135, -inf
        %v5577 = vmax.f32 %v5569, %v5576
        %v5578 = vsel %vm5205, %v5136, -inf
        %v5579 = vmax.f32 %v5571, %v5578
        %v5580 = vsel %vm5205, %v5137, -inf
        %v5581 = vmax.f32 %v5573, %v5580
        %v5582 = vsel %vm5205, %v5138, -inf
        %v5583 = vmax.f32 %v5575, %v5582
        %v5584 = vsel %vm5205, %v5139, -inf
        %v5585 = vmax.f32 %v5577, %v5584
        %v5586 = vsel %vm5205, %v5140, -inf
        %v5587 = vmax.f32 %v5579, %v5586
        %v5588 = vsel %vm5205, %v5141, -inf
        %v5589 = vmax.f32 %v5581, %v5588
        %v5590 = vsel %vm5205, %v5142, -inf
        %v5591 = vmax.f32 %v5583, %v5590
        %v5592 = vsel %vm5205, %v5143, -inf
        %v5593 = vmax.f32 %v5585, %v5592
        %v5594 = vsel %vm5205, %v5144, -inf
        %v5595 = vmax.f32 %v5587, %v5594
        %v5596 = vsel %vm5205, %v5145, -inf
        %v5597 = vmax.f32 %v5589, %v5596
        %v5598 = vsel %vm5205, %v5146, -inf
        %v5599 = vmax.f32 %v5591, %v5598
        %v5600 = vsel %vm5205, %v5147, -inf
        %v5601 = vmax.f32 %v5593, %v5600
        %v5602 = vsel %vm5205, %v5148, -inf
        %v5603 = vmax.f32 %v5595, %v5602
        %v5604 = vsel %vm5205, %v5149, -inf
        %v5605 = vmax.f32 %v5597, %v5604
        %v5606 = vsel %vm5205, %v5150, -inf
        %v5607 = vmax.f32 %v5599, %v5606
        %v5608 = vsel %vm5205, %v5151, -inf
        %v5609 = vmax.f32 %v5601, %v5608
        %v5610 = vsel %vm5205, %v5152, -inf
        %v5611 = vmax.f32 %v5603, %v5610
        %v5612 = vsel %vm5205, %v5153, -inf
        %v5613 = vmax.f32 %v5605, %v5612
        %v5614 = vsel %vm5205, %v5154, -inf
        %v5615 = vmax.f32 %v5607, %v5614
        %v5616 = vsel %vm5205, %v5155, -inf
        %v5617 = vmax.f32 %v5609, %v5616
        %v5618 = vsel %vm5205, %v5156, -inf
        %v5619 = vmax.f32 %v5611, %v5618
        %v5620 = vsel %vm5205, %v5157, -inf
        %v5621 = vmax.f32 %v5613, %v5620
        %v5622 = vsel %vm5205, %v5158, -inf
        %v5623 = vmax.f32 %v5615, %v5622
        %v5624 = vsel %vm5205, %v5159, -inf
        %v5625 = vmax.f32 %v5617, %v5624
        %v5626 = vsel %vm5205, %v5160, -inf
        %v5627 = vmax.f32 %v5619, %v5626
        %v5628 = vsel %vm5205, %v5161, -inf
        %v5629 = vmax.f32 %v5621, %v5628
        %v5630 = vsel %vm5205, %v5162, -inf
        %v5631 = vmax.f32 %v5623, %v5630
        %v5632 = vsel %vm5205, %v5163, -inf
        %v5633 = vmax.f32 %v5625, %v5632
        %v5634 = vsel %vm5205, %v5164, -inf
        %v5635 = vmax.f32 %v5627, %v5634
        %v5636 = vsel %vm5205, %v5165, -inf
        %v5637 = vmax.f32 %v5629, %v5636
        %v5638 = vsel %vm5205, %v5166, -inf
        %v5639 = vmax.f32 %v5631, %v5638
        %v5640 = vsel %vm5205, %v5167, -inf
        %v5641 = vmax.f32 %v5633, %v5640
        %v5642 = vsel %vm5205, %v5168, -inf
        %v5643 = vmax.f32 %v5635, %v5642
        %v5644 = vsel %vm5205, %v5169, -inf
        %v5645 = vmax.f32 %v5637, %v5644
        %v5646 = vsel %vm5205, %v5170, -inf
        %v5647 = vmax.f32 %v5639, %v5646
        %v5648 = vsel %vm5205, %v5171, -inf
        %v5649 = vmax.f32 %v5641, %v5648
        %v5650 = vsel %vm5205, %v5172, -inf
        %v5651 = vmax.f32 %v5643, %v5650
        %v5652 = vsel %vm5205, %v5173, -inf
        %v5653 = vmax.f32 %v5645, %v5652
        %v5654 = vsel %vm5205, %v5174, -inf
        %v5655 = vmax.f32 %v5647, %v5654
        %v5656 = vsel %vm5205, %v5175, -inf
        %v5657 = vmax.f32 %v5649, %v5656
        %v5658 = vsel %vm5205, %v5176, -inf
        %v5659 = vmax.f32 %v5651, %v5658
        %v5660 = vsel %vm5205, %v5177, -inf
        %v5661 = vmax.f32 %v5653, %v5660
        %v5662 = vsel %vm5205, %v5178, -inf
        %v5663 = vmax.f32 %v5655, %v5662
        %v5664 = vsel %vm5205, %v5179, -inf
        %v5665 = vmax.f32 %v5657, %v5664
        %v5666 = vsel %vm5205, %v5180, -inf
        %v5667 = vmax.f32 %v5659, %v5666
        %v5668 = vsel %vm5205, %v5181, -inf
        %v5669 = vmax.f32 %v5661, %v5668
        %v5670 = vsel %vm5205, %v5182, -inf
        %v5671 = vmax.f32 %v5663, %v5670
        %v5672 = vsel %vm5205, %v5183, -inf
        %v5673 = vmax.f32 %v5665, %v5672
        %v5674 = vsel %vm5205, %v5184, -inf
        %v5675 = vmax.f32 %v5667, %v5674
        %v5676 = vsel %vm5205, %v5185, -inf
        %v5677 = vmax.f32 %v5669, %v5676
        %v5678 = vsel %vm5205, %v5186, -inf
        %v5679 = vmax.f32 %v5671, %v5678
        %v5680 = vsel %vm5205, %v5187, -inf
        %v5681 = vmax.f32 %v5673, %v5680
        %v5682 = vsel %vm5205, %v5188, -inf
        %v5683 = vmax.f32 %v5675, %v5682
        %v5684 = vsel %vm5205, %v5189, -inf
        %v5685 = vmax.f32 %v5677, %v5684
        %v5686 = vsel %vm5205, %v5190, -inf
        %v5687 = vmax.f32 %v5679, %v5686
        %v5688 = vsel %vm5205, %v5191, -inf
        %v5689 = vmax.f32 %v5681, %v5688
        %v5690 = vsel %vm5205, %v5192, -inf
        %v5691 = vmax.f32 %v5683, %v5690
        %v5692 = vsel %vm5205, %v5193, -inf
        %v5693 = vmax.f32 %v5685, %v5692
        %v5694 = vsel %vm5205, %v5194, -inf
        %v5695 = vmax.f32 %v5687, %v5694
        %v5696 = vsel %vm5205, %v5195, -inf
        %v5697 = vmax.f32 %v5689, %v5696
        %v5698 = vsel %vm5205, %v5196, -inf
        %v5699 = vmax.f32 %v5691, %v5698
        %v5700 = vsel %vm5205, %v5197, -inf
        %v5701 = vmax.f32 %v5693, %v5700
        %v5702 = vsel %vm5205, %v5198, -inf
        %v5703 = vmax.f32 %v5695, %v5702
        %v5704 = vsel %vm5205, %v5199, -inf
        %v5705 = vmax.f32 %v5697, %v5704
        %v5706 = vsel %vm5205, %v5200, -inf
        %v5707 = vmax.f32 %v5699, %v5706
        %v5708 = vsel %vm5205, %v5201, -inf
        %v5709 = vmax.f32 %v5701, %v5708
        %v5710 = vsel %vm5205, %v5202, -inf
        %v5711 = vmax.f32 %v5703, %v5710
        %v5712 = vsel %vm5205, %v5203, -inf
        %v5713 = vmax.f32 %v5705, %v5712
        %v5714 = vsel %vm5205, %v5204, -inf
        %v5715 = vmax.f32 %v5707, %v5714
        %v5716 = vmax.f32 %v5715, %v5709
        %v5717 = vmax.f32 %v5711, %v5713
        %v5718 = vmax.f32 %v5716, %v5717
        %v5719 = vsub.f32 %v4948, %v5718
        %v5720 = vsub.f32 %v4949, %v5718
        %v5721 = vsub.f32 %v4950, %v5718
        %v5722 = vsub.f32 %v4951, %v5718
        %v5723 = vsub.f32 %v4952, %v5718
        %v5724 = vsub.f32 %v4953, %v5718
        %v5725 = vsub.f32 %v4954, %v5718
        %v5726 = vsub.f32 %v4955, %v5718
        %v5727 = vsub.f32 %v4956, %v5718
        %v5728 = vsub.f32 %v4957, %v5718
        %v5729 = vsub.f32 %v4958, %v5718
        %v5730 = vsub.f32 %v4959, %v5718
        %v5731 = vsub.f32 %v4960, %v5718
        %v5732 = vsub.f32 %v4961, %v5718
        %v5733 = vsub.f32 %v4962, %v5718
        %v5734 = vsub.f32 %v4963, %v5718
        %v5735 = vsub.f32 %v4964, %v5718
        %v5736 = vsub.f32 %v4965, %v5718
        %v5737 = vsub.f32 %v4966, %v5718
        %v5738 = vsub.f32 %v4967, %v5718
        %v5739 = vsub.f32 %v4968, %v5718
        %v5740 = vsub.f32 %v4969, %v5718
        %v5741 = vsub.f32 %v4970, %v5718
        %v5742 = vsub.f32 %v4971, %v5718
        %v5743 = vsub.f32 %v4972, %v5718
        %v5744 = vsub.f32 %v4973, %v5718
        %v5745 = vsub.f32 %v4974, %v5718
        %v5746 = vsub.f32 %v4975, %v5718
        %v5747 = vsub.f32 %v4976, %v5718
        %v5748 = vsub.f32 %v4977, %v5718
        %v5749 = vsub.f32 %v4978, %v5718
        %v5750 = vsub.f32 %v4979, %v5718
        %v5751 = vsub.f32 %v4980, %v5718
        %v5752 = vsub.f32 %v4981, %v5718
        %v5753 = vsub.f32 %v4982, %v5718
        %v5754 = vsub.f32 %v4983, %v5718
        %v5755 = vsub.f32 %v4984, %v5718
        %v5756 = vsub.f32 %v4985, %v5718
        %v5757 = vsub.f32 %v4986, %v5718
        %v5758 = vsub.f32 %v4987, %v5718
        %v5759 = vsub.f32 %v4988, %v5718
        %v5760 = vsub.f32 %v4989, %v5718
        %v5761 = vsub.f32 %v4990, %v5718
        %v5762 = vsub.f32 %v4991, %v5718
        %v5763 = vsub.f32 %v4992, %v5718
        %v5764 = vsub.f32 %v4993, %v5718
        %v5765 = vsub.f32 %v4994, %v5718
        %v5766 = vsub.f32 %v4995, %v5718
        %v5767 = vsub.f32 %v4996, %v5718
        %v5768 = vsub.f32 %v4997, %v5718
        %v5769 = vsub.f32 %v4998, %v5718
        %v5770 = vsub.f32 %v4999, %v5718
        %v5771 = vsub.f32 %v5000, %v5718
        %v5772 = vsub.f32 %v5001, %v5718
        %v5773 = vsub.f32 %v5002, %v5718
        %v5774 = vsub.f32 %v5003, %v5718
        %v5775 = vsub.f32 %v5004, %v5718
        %v5776 = vsub.f32 %v5005, %v5718
        %v5777 = vsub.f32 %v5006, %v5718
        %v5778 = vsub.f32 %v5007, %v5718
        %v5779 = vsub.f32 %v5008, %v5718
        %v5780 = vsub.f32 %v5009, %v5718
        %v5781 = vsub.f32 %v5010, %v5718
        %v5782 = vsub.f32 %v5011, %v5718
        %v5783 = vsub.f32 %v5012, %v5718
        %v5784 = vsub.f32 %v5013, %v5718
        %v5785 = vsub.f32 %v5014, %v5718
        %v5786 = vsub.f32 %v5015, %v5718
        %v5787 = vsub.f32 %v5016, %v5718
        %v5788 = vsub.f32 %v5017, %v5718
        %v5789 = vsub.f32 %v5018, %v5718
        %v5790 = vsub.f32 %v5019, %v5718
        %v5791 = vsub.f32 %v5020, %v5718
        %v5792 = vsub.f32 %v5021, %v5718
        %v5793 = vsub.f32 %v5022, %v5718
        %v5794 = vsub.f32 %v5023, %v5718
        %v5795 = vsub.f32 %v5024, %v5718
        %v5796 = vsub.f32 %v5025, %v5718
        %v5797 = vsub.f32 %v5026, %v5718
        %v5798 = vsub.f32 %v5027, %v5718
        %v5799 = vsub.f32 %v5028, %v5718
        %v5800 = vsub.f32 %v5029, %v5718
        %v5801 = vsub.f32 %v5030, %v5718
        %v5802 = vsub.f32 %v5031, %v5718
        %v5803 = vsub.f32 %v5032, %v5718
        %v5804 = vsub.f32 %v5033, %v5718
        %v5805 = vsub.f32 %v5034, %v5718
        %v5806 = vsub.f32 %v5035, %v5718
        %v5807 = vsub.f32 %v5036, %v5718
        %v5808 = vsub.f32 %v5037, %v5718
        %v5809 = vsub.f32 %v5038, %v5718
        %v5810 = vsub.f32 %v5039, %v5718
        %v5811 = vsub.f32 %v5040, %v5718
        %v5812 = vsub.f32 %v5041, %v5718
        %v5813 = vsub.f32 %v5042, %v5718
        %v5814 = vsub.f32 %v5043, %v5718
        %v5815 = vsub.f32 %v5044, %v5718
        %v5816 = vsub.f32 %v5045, %v5718
        %v5817 = vsub.f32 %v5046, %v5718
        %v5818 = vsub.f32 %v5047, %v5718
        %v5819 = vsub.f32 %v5048, %v5718
        %v5820 = vsub.f32 %v5049, %v5718
        %v5821 = vsub.f32 %v5050, %v5718
        %v5822 = vsub.f32 %v5051, %v5718
        %v5823 = vsub.f32 %v5052, %v5718
        %v5824 = vsub.f32 %v5053, %v5718
        %v5825 = vsub.f32 %v5054, %v5718
        %v5826 = vsub.f32 %v5055, %v5718
        %v5827 = vsub.f32 %v5056, %v5718
        %v5828 = vsub.f32 %v5057, %v5718
        %v5829 = vsub.f32 %v5058, %v5718
        %v5830 = vsub.f32 %v5059, %v5718
        %v5831 = vsub.f32 %v5060, %v5718
        %v5832 = vsub.f32 %v5061, %v5718
        %v5833 = vsub.f32 %v5062, %v5718
        %v5834 = vsub.f32 %v5063, %v5718
        %v5835 = vsub.f32 %v5064, %v5718
        %v5836 = vsub.f32 %v5065, %v5718
        %v5837 = vsub.f32 %v5066, %v5718
        %v5838 = vsub.f32 %v5067, %v5718
        %v5839 = vsub.f32 %v5068, %v5718
        %v5840 = vsub.f32 %v5069, %v5718
        %v5841 = vsub.f32 %v5070, %v5718
        %v5842 = vsub.f32 %v5071, %v5718
        %v5843 = vsub.f32 %v5072, %v5718
        %v5844 = vsub.f32 %v5073, %v5718
        %v5845 = vsub.f32 %v5074, %v5718
        %v5846 = vsub.f32 %v5075, %v5718
        %v5847 = vsub.f32 %v5076, %v5718
        %v5848 = vsub.f32 %v5077, %v5718
        %v5849 = vsub.f32 %v5078, %v5718
        %v5850 = vsub.f32 %v5079, %v5718
        %v5851 = vsub.f32 %v5080, %v5718
        %v5852 = vsub.f32 %v5081, %v5718
        %v5853 = vsub.f32 %v5082, %v5718
        %v5854 = vsub.f32 %v5083, %v5718
        %v5855 = vsub.f32 %v5084, %v5718
        %v5856 = vsub.f32 %v5085, %v5718
        %v5857 = vsub.f32 %v5086, %v5718
        %v5858 = vsub.f32 %v5087, %v5718
        %v5859 = vsub.f32 %v5088, %v5718
        %v5860 = vsub.f32 %v5089, %v5718
        %v5861 = vsub.f32 %v5090, %v5718
        %v5862 = vsub.f32 %v5091, %v5718
        %v5863 = vsub.f32 %v5092, %v5718
        %v5864 = vsub.f32 %v5093, %v5718
        %v5865 = vsub.f32 %v5094, %v5718
        %v5866 = vsub.f32 %v5095, %v5718
        %v5867 = vsub.f32 %v5096, %v5718
        %v5868 = vsub.f32 %v5097, %v5718
        %v5869 = vsub.f32 %v5098, %v5718
        %v5870 = vsub.f32 %v5099, %v5718
        %v5871 = vsub.f32 %v5100, %v5718
        %v5872 = vsub.f32 %v5101, %v5718
        %v5873 = vsub.f32 %v5102, %v5718
        %v5874 = vsub.f32 %v5103, %v5718
        %v5875 = vsub.f32 %v5104, %v5718
        %v5876 = vsub.f32 %v5105, %v5718
        %v5877 = vsub.f32 %v5106, %v5718
        %v5878 = vsub.f32 %v5107, %v5718
        %v5879 = vsub.f32 %v5108, %v5718
        %v5880 = vsub.f32 %v5109, %v5718
        %v5881 = vsub.f32 %v5110, %v5718
        %v5882 = vsub.f32 %v5111, %v5718
        %v5883 = vsub.f32 %v5112, %v5718
        %v5884 = vsub.f32 %v5113, %v5718
        %v5885 = vsub.f32 %v5114, %v5718
        %v5886 = vsub.f32 %v5115, %v5718
        %v5887 = vsub.f32 %v5116, %v5718
        %v5888 = vsub.f32 %v5117, %v5718
        %v5889 = vsub.f32 %v5118, %v5718
        %v5890 = vsub.f32 %v5119, %v5718
        %v5891 = vsub.f32 %v5120, %v5718
        %v5892 = vsub.f32 %v5121, %v5718
        %v5893 = vsub.f32 %v5122, %v5718
        %v5894 = vsub.f32 %v5123, %v5718
        %v5895 = vsub.f32 %v5124, %v5718
        %v5896 = vsub.f32 %v5125, %v5718
        %v5897 = vsub.f32 %v5126, %v5718
        %v5898 = vsub.f32 %v5127, %v5718
        %v5899 = vsub.f32 %v5128, %v5718
        %v5900 = vsub.f32 %v5129, %v5718
        %v5901 = vsub.f32 %v5130, %v5718
        %v5902 = vsub.f32 %v5131, %v5718
        %v5903 = vsub.f32 %v5132, %v5718
        %v5904 = vsub.f32 %v5133, %v5718
        %v5905 = vsub.f32 %v5134, %v5718
        %v5906 = vsub.f32 %v5135, %v5718
        %v5907 = vsub.f32 %v5136, %v5718
        %v5908 = vsub.f32 %v5137, %v5718
        %v5909 = vsub.f32 %v5138, %v5718
        %v5910 = vsub.f32 %v5139, %v5718
        %v5911 = vsub.f32 %v5140, %v5718
        %v5912 = vsub.f32 %v5141, %v5718
        %v5913 = vsub.f32 %v5142, %v5718
        %v5914 = vsub.f32 %v5143, %v5718
        %v5915 = vsub.f32 %v5144, %v5718
        %v5916 = vsub.f32 %v5145, %v5718
        %v5917 = vsub.f32 %v5146, %v5718
        %v5918 = vsub.f32 %v5147, %v5718
        %v5919 = vsub.f32 %v5148, %v5718
        %v5920 = vsub.f32 %v5149, %v5718
        %v5921 = vsub.f32 %v5150, %v5718
        %v5922 = vsub.f32 %v5151, %v5718
        %v5923 = vsub.f32 %v5152, %v5718
        %v5924 = vsub.f32 %v5153, %v5718
        %v5925 = vsub.f32 %v5154, %v5718
        %v5926 = vsub.f32 %v5155, %v5718
        %v5927 = vsub.f32 %v5156, %v5718
        %v5928 = vsub.f32 %v5157, %v5718
        %v5929 = vsub.f32 %v5158, %v5718
        %v5930 = vsub.f32 %v5159, %v5718
        %v5931 = vsub.f32 %v5160, %v5718
        %v5932 = vsub.f32 %v5161, %v5718
        %v5933 = vsub.f32 %v5162, %v5718
        %v5934 = vsub.f32 %v5163, %v5718
        %v5935 = vsub.f32 %v5164, %v5718
        %v5936 = vsub.f32 %v5165, %v5718
        %v5937 = vsub.f32 %v5166, %v5718
        %v5938 = vsub.f32 %v5167, %v5718
        %v5939 = vsub.f32 %v5168, %v5718
        %v5940 = vsub.f32 %v5169, %v5718
        %v5941 = vsub.f32 %v5170, %v5718
        %v5942 = vsub.f32 %v5171, %v5718
        %v5943 = vsub.f32 %v5172, %v5718
        %v5944 = vsub.f32 %v5173, %v5718
        %v5945 = vsub.f32 %v5174, %v5718
        %v5946 = vsub.f32 %v5175, %v5718
        %v5947 = vsub.f32 %v5176, %v5718
        %v5948 = vsub.f32 %v5177, %v5718
        %v5949 = vsub.f32 %v5178, %v5718
        %v5950 = vsub.f32 %v5179, %v5718
        %v5951 = vsub.f32 %v5180, %v5718
        %v5952 = vsub.f32 %v5181, %v5718
        %v5953 = vsub.f32 %v5182, %v5718
        %v5954 = vsub.f32 %v5183, %v5718
        %v5955 = vsub.f32 %v5184, %v5718
        %v5956 = vsub.f32 %v5185, %v5718
        %v5957 = vsub.f32 %v5186, %v5718
        %v5958 = vsub.f32 %v5187, %v5718
        %v5959 = vsub.f32 %v5188, %v5718
        %v5960 = vsub.f32 %v5189, %v5718
        %v5961 = vsub.f32 %v5190, %v5718
        %v5962 = vsub.f32 %v5191, %v5718
        %v5963 = vsub.f32 %v5192, %v5718
        %v5964 = vsub.f32 %v5193, %v5718
        %v5965 = vsub.f32 %v5194, %v5718
        %v5966 = vsub.f32 %v5195, %v5718
        %v5967 = vsub.f32 %v5196, %v5718
        %v5968 = vsub.f32 %v5197, %v5718
        %v5969 = vsub.f32 %v5198, %v5718
        %v5970 = vsub.f32 %v5199, %v5718
        %v5971 = vsub.f32 %v5200, %v5718
        %v5972 = vsub.f32 %v5201, %v5718
        %v5973 = vsub.f32 %v5202, %v5718
        %v5974 = vsub.f32 %v5203, %v5718
        %v5975 = vsub.f32 %v5204, %v5718
        %v5976 = vmul.f32 %v5719, 1.442695
        %v5977 = vpow.pop %v5976
        %v5978 = vmul.f32 %v5720, 1.442695
        %v5979 = vpow.pop %v5978
        %v5980 = vmul.f32 %v5721, 1.442695
        %v5981 = vpow.pop %v5980
        %v5982 = vmul.f32 %v5722, 1.442695
        %v5983 = vpow.pop %v5982
        %v5984 = vmul.f32 %v5723, 1.442695
        %v5985 = vpow.pop %v5984
        %v5986 = vmul.f32 %v5724, 1.442695
        %v5987 = vpow.pop %v5986
        %v5988 = vmul.f32 %v5725, 1.442695
        %v5989 = vpow.pop %v5988
        %v5990 = vmul.f32 %v5726, 1.442695
        %v5991 = vpow.pop %v5990
        %v5992 = vmul.f32 %v5727, 1.442695
        %v5993 = vpow.pop %v5992
        %v5994 = vmul.f32 %v5728, 1.442695
        %v5995 = vpow.pop %v5994
        %v5996 = vmul.f32 %v5729, 1.442695
        %v5997 = vpow.pop %v5996
        %v5998 = vmul.f32 %v5730, 1.442695
        %v5999 = vpow.pop %v5998
        %v6000 = vmul.f32 %v5731, 1.442695
        %v6001 = vpow.pop %v6000
        %v6002 = vmul.f32 %v5732, 1.442695
        %v6003 = vpow.pop %v6002
        %v6004 = vmul.f32 %v5733, 1.442695
        %v6005 = vpow.pop %v6004
        %v6006 = vmul.f32 %v5734, 1.442695
        %v6007 = vpow.pop %v6006
        %v6008 = vmul.f32 %v5735, 1.442695
        %v6009 = vpow.pop %v6008
        %v6010 = vmul.f32 %v5736, 1.442695
        %v6011 = vpow.pop %v6010
        %v6012 = vmul.f32 %v5737, 1.442695
        %v6013 = vpow.pop %v6012
        %v6014 = vmul.f32 %v5738, 1.442695
        %v6015 = vpow.pop %v6014
        %v6016 = vmul.f32 %v5739, 1.442695
        %v6017 = vpow.pop %v6016
        %v6018 = vmul.f32 %v5740, 1.442695
        %v6019 = vpow.pop %v6018
        %v6020 = vmul.f32 %v5741, 1.442695
        %v6021 = vpow.pop %v6020
        %v6022 = vmul.f32 %v5742, 1.442695
        %v6023 = vpow.pop %v6022
        %v6024 = vmul.f32 %v5743, 1.442695
        %v6025 = vpow.pop %v6024
        %v6026 = vmul.f32 %v5744, 1.442695
        %v6027 = vpow.pop %v6026
        %v6028 = vmul.f32 %v5745, 1.442695
        %v6029 = vpow.pop %v6028
        %v6030 = vmul.f32 %v5746, 1.442695
        %v6031 = vpow.pop %v6030
        %v6032 = vmul.f32 %v5747, 1.442695
        %v6033 = vpow.pop %v6032
        %v6034 = vmul.f32 %v5748, 1.442695
        %v6035 = vpow.pop %v6034
        %v6036 = vmul.f32 %v5749, 1.442695
        %v6037 = vpow.pop %v6036
        %v6038 = vmul.f32 %v5750, 1.442695
        %v6039 = vpow.pop %v6038
        %v6040 = vmul.f32 %v5751, 1.442695
        %v6041 = vpow.pop %v6040
        %v6042 = vmul.f32 %v5752, 1.442695
        %v6043 = vpow.pop %v6042
        %v6044 = vmul.f32 %v5753, 1.442695
        %v6045 = vpow.pop %v6044
        %v6046 = vmul.f32 %v5754, 1.442695
        %v6047 = vpow.pop %v6046
        %v6048 = vmul.f32 %v5755, 1.442695
        %v6049 = vpow.pop %v6048
        %v6050 = vmul.f32 %v5756, 1.442695
        %v6051 = vpow.pop %v6050
        %v6052 = vmul.f32 %v5757, 1.442695
        %v6053 = vpow.pop %v6052
        %v6054 = vmul.f32 %v5758, 1.442695
        %v6055 = vpow.pop %v6054
        %v6056 = vmul.f32 %v5759, 1.442695
        %v6057 = vpow.pop %v6056
        %v6058 = vmul.f32 %v5760, 1.442695
        %v6059 = vpow.pop %v6058
        %v6060 = vmul.f32 %v5761, 1.442695
        %v6061 = vpow.pop %v6060
        %v6062 = vmul.f32 %v5762, 1.442695
        %v6063 = vpow.pop %v6062
        %v6064 = vmul.f32 %v5763, 1.442695
        %v6065 = vpow.pop %v6064
        %v6066 = vmul.f32 %v5764, 1.442695
        %v6067 = vpow.pop %v6066
        %v6068 = vmul.f32 %v5765, 1.442695
        %v6069 = vpow.pop %v6068
        %v6070 = vmul.f32 %v5766, 1.442695
        %v6071 = vpow.pop %v6070
        %v6072 = vmul.f32 %v5767, 1.442695
        %v6073 = vpow.pop %v6072
        %v6074 = vmul.f32 %v5768, 1.442695
        %v6075 = vpow.pop %v6074
        %v6076 = vmul.f32 %v5769, 1.442695
        %v6077 = vpow.pop %v6076
        %v6078 = vmul.f32 %v5770, 1.442695
        %v6079 = vpow.pop %v6078
        %v6080 = vmul.f32 %v5771, 1.442695
        %v6081 = vpow.pop %v6080
        %v6082 = vmul.f32 %v5772, 1.442695
        %v6083 = vpow.pop %v6082
        %v6084 = vmul.f32 %v5773, 1.442695
        %v6085 = vpow.pop %v6084
        %v6086 = vmul.f32 %v5774, 1.442695
        %v6087 = vpow.pop %v6086
        %v6088 = vmul.f32 %v5775, 1.442695
        %v6089 = vpow.pop %v6088
        %v6090 = vmul.f32 %v5776, 1.442695
        %v6091 = vpow.pop %v6090
        %v6092 = vmul.f32 %v5777, 1.442695
        %v6093 = vpow.pop %v6092
        %v6094 = vmul.f32 %v5778, 1.442695
        %v6095 = vpow.pop %v6094
        %v6096 = vmul.f32 %v5779, 1.442695
        %v6097 = vpow.pop %v6096
        %v6098 = vmul.f32 %v5780, 1.442695
        %v6099 = vpow.pop %v6098
        %v6100 = vmul.f32 %v5781, 1.442695
        %v6101 = vpow.pop %v6100
        %v6102 = vmul.f32 %v5782, 1.442695
        %v6103 = vpow.pop %v6102
        %v6104 = vmul.f32 %v5783, 1.442695
        %v6105 = vpow.pop %v6104
        %v6106 = vmul.f32 %v5784, 1.442695
        %v6107 = vpow.pop %v6106
        %v6108 = vmul.f32 %v5785, 1.442695
        %v6109 = vpow.pop %v6108
        %v6110 = vmul.f32 %v5786, 1.442695
        %v6111 = vpow.pop %v6110
        %v6112 = vmul.f32 %v5787, 1.442695
        %v6113 = vpow.pop %v6112
        %v6114 = vmul.f32 %v5788, 1.442695
        %v6115 = vpow.pop %v6114
        %v6116 = vmul.f32 %v5789, 1.442695
        %v6117 = vpow.pop %v6116
        %v6118 = vmul.f32 %v5790, 1.442695
        %v6119 = vpow.pop %v6118
        %v6120 = vmul.f32 %v5791, 1.442695
        %v6121 = vpow.pop %v6120
        %v6122 = vmul.f32 %v5792, 1.442695
        %v6123 = vpow.pop %v6122
        %v6124 = vmul.f32 %v5793, 1.442695
        %v6125 = vpow.pop %v6124
        %v6126 = vmul.f32 %v5794, 1.442695
        %v6127 = vpow.pop %v6126
        %v6128 = vmul.f32 %v5795, 1.442695
        %v6129 = vpow.pop %v6128
        %v6130 = vmul.f32 %v5796, 1.442695
        %v6131 = vpow.pop %v6130
        %v6132 = vmul.f32 %v5797, 1.442695
        %v6133 = vpow.pop %v6132
        %v6134 = vmul.f32 %v5798, 1.442695
        %v6135 = vpow.pop %v6134
        %v6136 = vmul.f32 %v5799, 1.442695
        %v6137 = vpow.pop %v6136
        %v6138 = vmul.f32 %v5800, 1.442695
        %v6139 = vpow.pop %v6138
        %v6140 = vmul.f32 %v5801, 1.442695
        %v6141 = vpow.pop %v6140
        %v6142 = vmul.f32 %v5802, 1.442695
        %v6143 = vpow.pop %v6142
        %v6144 = vmul.f32 %v5803, 1.442695
        %v6145 = vpow.pop %v6144
        %v6146 = vmul.f32 %v5804, 1.442695
        %v6147 = vpow.pop %v6146
        %v6148 = vmul.f32 %v5805, 1.442695
        %v6149 = vpow.pop %v6148
        %v6150 = vmul.f32 %v5806, 1.442695
        %v6151 = vpow.pop %v6150
        %v6152 = vmul.f32 %v5807, 1.442695
        %v6153 = vpow.pop %v6152
        %v6154 = vmul.f32 %v5808, 1.442695
        %v6155 = vpow.pop %v6154
        %v6156 = vmul.f32 %v5809, 1.442695
        %v6157 = vpow.pop %v6156
        %v6158 = vmul.f32 %v5810, 1.442695
        %v6159 = vpow.pop %v6158
        %v6160 = vmul.f32 %v5811, 1.442695
        %v6161 = vpow.pop %v6160
        %v6162 = vmul.f32 %v5812, 1.442695
        %v6163 = vpow.pop %v6162
        %v6164 = vmul.f32 %v5813, 1.442695
        %v6165 = vpow.pop %v6164
        %v6166 = vmul.f32 %v5814, 1.442695
        %v6167 = vpow.pop %v6166
        %v6168 = vmul.f32 %v5815, 1.442695
        %v6169 = vpow.pop %v6168
        %v6170 = vmul.f32 %v5816, 1.442695
        %v6171 = vpow.pop %v6170
        %v6172 = vmul.f32 %v5817, 1.442695
        %v6173 = vpow.pop %v6172
        %v6174 = vmul.f32 %v5818, 1.442695
        %v6175 = vpow.pop %v6174
        %v6176 = vmul.f32 %v5819, 1.442695
        %v6177 = vpow.pop %v6176
        %v6178 = vmul.f32 %v5820, 1.442695
        %v6179 = vpow.pop %v6178
        %v6180 = vmul.f32 %v5821, 1.442695
        %v6181 = vpow.pop %v6180
        %v6182 = vmul.f32 %v5822, 1.442695
        %v6183 = vpow.pop %v6182
        %v6184 = vmul.f32 %v5823, 1.442695
        %v6185 = vpow.pop %v6184
        %v6186 = vmul.f32 %v5824, 1.442695
        %v6187 = vpow.pop %v6186
        %v6188 = vmul.f32 %v5825, 1.442695
        %v6189 = vpow.pop %v6188
        %v6190 = vmul.f32 %v5826, 1.442695
        %v6191 = vpow.pop %v6190
        %v6192 = vmul.f32 %v5827, 1.442695
        %v6193 = vpow.pop %v6192
        %v6194 = vmul.f32 %v5828, 1.442695
        %v6195 = vpow.pop %v6194
        %v6196 = vmul.f32 %v5829, 1.442695
        %v6197 = vpow.pop %v6196
        %v6198 = vmul.f32 %v5830, 1.442695
        %v6199 = vpow.pop %v6198
        %v6200 = vmul.f32 %v5831, 1.442695
        %v6201 = vpow.pop %v6200
        %v6202 = vmul.f32 %v5832, 1.442695
        %v6203 = vpow.pop %v6202
        %v6204 = vmul.f32 %v5833, 1.442695
        %v6205 = vpow.pop %v6204
        %v6206 = vmul.f32 %v5834, 1.442695
        %v6207 = vpow.pop %v6206
        %v6208 = vmul.f32 %v5835, 1.442695
        %v6209 = vpow.pop %v6208
        %v6210 = vmul.f32 %v5836, 1.442695
        %v6211 = vpow.pop %v6210
        %v6212 = vmul.f32 %v5837, 1.442695
        %v6213 = vpow.pop %v6212
        %v6214 = vmul.f32 %v5838, 1.442695
        %v6215 = vpow.pop %v6214
        %v6216 = vmul.f32 %v5839, 1.442695
        %v6217 = vpow.pop %v6216
        %v6218 = vmul.f32 %v5840, 1.442695
        %v6219 = vpow.pop %v6218
        %v6220 = vmul.f32 %v5841, 1.442695
        %v6221 = vpow.pop %v6220
        %v6222 = vmul.f32 %v5842, 1.442695
        %v6223 = vpow.pop %v6222
        %v6224 = vmul.f32 %v5843, 1.442695
        %v6225 = vpow.pop %v6224
        %v6226 = vmul.f32 %v5844, 1.442695
        %v6227 = vpow.pop %v6226
        %v6228 = vmul.f32 %v5845, 1.442695
        %v6229 = vpow.pop %v6228
        %v6230 = vmul.f32 %v5846, 1.442695
        %v6231 = vpow.pop %v6230
        %v6232 = vmul.f32 %v5847, 1.442695
        %v6233 = vpow.pop %v6232
        %v6234 = vmul.f32 %v5848, 1.442695
        %v6235 = vpow.pop %v6234
        %v6236 = vmul.f32 %v5849, 1.442695
        %v6237 = vpow.pop %v6236
        %v6238 = vmul.f32 %v5850, 1.442695
        %v6239 = vpow.pop %v6238
        %v6240 = vmul.f32 %v5851, 1.442695
        %v6241 = vpow.pop %v6240
        %v6242 = vmul.f32 %v5852, 1.442695
        %v6243 = vpow.pop %v6242
        %v6244 = vmul.f32 %v5853, 1.442695
        %v6245 = vpow.pop %v6244
        %v6246 = vmul.f32 %v5854, 1.442695
        %v6247 = vpow.pop %v6246
        %v6248 = vmul.f32 %v5855, 1.442695
        %v6249 = vpow.pop %v6248
        %v6250 = vmul.f32 %v5856, 1.442695
        %v6251 = vpow.pop %v6250
        %v6252 = vmul.f32 %v5857, 1.442695
        %v6253 = vpow.pop %v6252
        %v6254 = vmul.f32 %v5858, 1.442695
        %v6255 = vpow.pop %v6254
        %v6256 = vmul.f32 %v5859, 1.442695
        %v6257 = vpow.pop %v6256
        %v6258 = vmul.f32 %v5860, 1.442695
        %v6259 = vpow.pop %v6258
        %v6260 = vmul.f32 %v5861, 1.442695
        %v6261 = vpow.pop %v6260
        %v6262 = vmul.f32 %v5862, 1.442695
        %v6263 = vpow.pop %v6262
        %v6264 = vmul.f32 %v5863, 1.442695
        %v6265 = vpow.pop %v6264
        %v6266 = vmul.f32 %v5864, 1.442695
        %v6267 = vpow.pop %v6266
        %v6268 = vmul.f32 %v5865, 1.442695
        %v6269 = vpow.pop %v6268
        %v6270 = vmul.f32 %v5866, 1.442695
        %v6271 = vpow.pop %v6270
        %v6272 = vmul.f32 %v5867, 1.442695
        %v6273 = vpow.pop %v6272
        %v6274 = vmul.f32 %v5868, 1.442695
        %v6275 = vpow.pop %v6274
        %v6276 = vmul.f32 %v5869, 1.442695
        %v6277 = vpow.pop %v6276
        %v6278 = vmul.f32 %v5870, 1.442695
        %v6279 = vpow.pop %v6278
        %v6280 = vmul.f32 %v5871, 1.442695
        %v6281 = vpow.pop %v6280
        %v6282 = vmul.f32 %v5872, 1.442695
        %v6283 = vpow.pop %v6282
        %v6284 = vmul.f32 %v5873, 1.442695
        %v6285 = vpow.pop %v6284
        %v6286 = vmul.f32 %v5874, 1.442695
        %v6287 = vpow.pop %v6286
        %v6288 = vmul.f32 %v5875, 1.442695
        %v6289 = vpow.pop %v6288
        %v6290 = vmul.f32 %v5876, 1.442695
        %v6291 = vpow.pop %v6290
        %v6292 = vmul.f32 %v5877, 1.442695
        %v6293 = vpow.pop %v6292
        %v6294 = vmul.f32 %v5878, 1.442695
        %v6295 = vpow.pop %v6294
        %v6296 = vmul.f32 %v5879, 1.442695
        %v6297 = vpow.pop %v6296
        %v6298 = vmul.f32 %v5880, 1.442695
        %v6299 = vpow.pop %v6298
        %v6300 = vmul.f32 %v5881, 1.442695
        %v6301 = vpow.pop %v6300
        %v6302 = vmul.f32 %v5882, 1.442695
        %v6303 = vpow.pop %v6302
        %v6304 = vmul.f32 %v5883, 1.442695
        %v6305 = vpow.pop %v6304
        %v6306 = vmul.f32 %v5884, 1.442695
        %v6307 = vpow.pop %v6306
        %v6308 = vmul.f32 %v5885, 1.442695
        %v6309 = vpow.pop %v6308
        %v6310 = vmul.f32 %v5886, 1.442695
        %v6311 = vpow.pop %v6310
        %v6312 = vmul.f32 %v5887, 1.442695
        %v6313 = vpow.pop %v6312
        %v6314 = vmul.f32 %v5888, 1.442695
        %v6315 = vpow.pop %v6314
        %v6316 = vmul.f32 %v5889, 1.442695
        %v6317 = vpow.pop %v6316
        %v6318 = vmul.f32 %v5890, 1.442695
        %v6319 = vpow.pop %v6318
        %v6320 = vmul.f32 %v5891, 1.442695
        %v6321 = vpow.pop %v6320
        %v6322 = vmul.f32 %v5892, 1.442695
        %v6323 = vpow.pop %v6322
        %v6324 = vmul.f32 %v5893, 1.442695
        %v6325 = vpow.pop %v6324
        %v6326 = vmul.f32 %v5894, 1.442695
        %v6327 = vpow.pop %v6326
        %v6328 = vmul.f32 %v5895, 1.442695
        %v6329 = vpow.pop %v6328
        %v6330 = vmul.f32 %v5896, 1.442695
        %v6331 = vpow.pop %v6330
        %v6332 = vmul.f32 %v5897, 1.442695
        %v6333 = vpow.pop %v6332
        %v6334 = vmul.f32 %v5898, 1.442695
        %v6335 = vpow.pop %v6334
        %v6336 = vmul.f32 %v5899, 1.442695
        %v6337 = vpow.pop %v6336
        %v6338 = vmul.f32 %v5900, 1.442695
        %v6339 = vpow.pop %v6338
        %v6340 = vmul.f32 %v5901, 1.442695
        %v6341 = vpow.pop %v6340
        %v6342 = vmul.f32 %v5902, 1.442695
        %v6343 = vpow.pop %v6342
        %v6344 = vmul.f32 %v5903, 1.442695
        %v6345 = vpow.pop %v6344
        %v6346 = vmul.f32 %v5904, 1.442695
        %v6347 = vpow.pop %v6346
        %v6348 = vmul.f32 %v5905, 1.442695
        %v6349 = vpow.pop %v6348
        %v6350 = vmul.f32 %v5906, 1.442695
        %v6351 = vpow.pop %v6350
        %v6352 = vmul.f32 %v5907, 1.442695
        %v6353 = vpow.pop %v6352
        %v6354 = vmul.f32 %v5908, 1.442695
        %v6355 = vpow.pop %v6354
        %v6356 = vmul.f32 %v5909, 1.442695
        %v6357 = vpow.pop %v6356
        %v6358 = vmul.f32 %v5910, 1.442695
        %v6359 = vpow.pop %v6358
        %v6360 = vmul.f32 %v5911, 1.442695
        %v6361 = vpow.pop %v6360
        %v6362 = vmul.f32 %v5912, 1.442695
        %v6363 = vpow.pop %v6362
        %v6364 = vmul.f32 %v5913, 1.442695
        %v6365 = vpow.pop %v6364
        %v6366 = vmul.f32 %v5914, 1.442695
        %v6367 = vpow.pop %v6366
        %v6368 = vmul.f32 %v5915, 1.442695
        %v6369 = vpow.pop %v6368
        %v6370 = vmul.f32 %v5916, 1.442695
        %v6371 = vpow.pop %v6370
        %v6372 = vmul.f32 %v5917, 1.442695
        %v6373 = vpow.pop %v6372
        %v6374 = vmul.f32 %v5918, 1.442695
        %v6375 = vpow.pop %v6374
        %v6376 = vmul.f32 %v5919, 1.442695
        %v6377 = vpow.pop %v6376
        %v6378 = vmul.f32 %v5920, 1.442695
        %v6379 = vpow.pop %v6378
        %v6380 = vmul.f32 %v5921, 1.442695
        %v6381 = vpow.pop %v6380
        %v6382 = vmul.f32 %v5922, 1.442695
        %v6383 = vpow.pop %v6382
        %v6384 = vmul.f32 %v5923, 1.442695
        %v6385 = vpow.pop %v6384
        %v6386 = vmul.f32 %v5924, 1.442695
        %v6387 = vpow.pop %v6386
        %v6388 = vmul.f32 %v5925, 1.442695
        %v6389 = vpow.pop %v6388
        %v6390 = vmul.f32 %v5926, 1.442695
        %v6391 = vpow.pop %v6390
        %v6392 = vmul.f32 %v5927, 1.442695
        %v6393 = vpow.pop %v6392
        %v6394 = vmul.f32 %v5928, 1.442695
        %v6395 = vpow.pop %v6394
        %v6396 = vmul.f32 %v5929, 1.442695
        %v6397 = vpow.pop %v6396
        %v6398 = vmul.f32 %v5930, 1.442695
        %v6399 = vpow.pop %v6398
        %v6400 = vmul.f32 %v5931, 1.442695
        %v6401 = vpow.pop %v6400
        %v6402 = vmul.f32 %v5932, 1.442695
        %v6403 = vpow.pop %v6402
        %v6404 = vmul.f32 %v5933, 1.442695
        %v6405 = vpow.pop %v6404
        %v6406 = vmul.f32 %v5934, 1.442695
        %v6407 = vpow.pop %v6406
        %v6408 = vmul.f32 %v5935, 1.442695
        %v6409 = vpow.pop %v6408
        %v6410 = vmul.f32 %v5936, 1.442695
        %v6411 = vpow.pop %v6410
        %v6412 = vmul.f32 %v5937, 1.442695
        %v6413 = vpow.pop %v6412
        %v6414 = vmul.f32 %v5938, 1.442695
        %v6415 = vpow.pop %v6414
        %v6416 = vmul.f32 %v5939, 1.442695
        %v6417 = vpow.pop %v6416
        %v6418 = vmul.f32 %v5940, 1.442695
        %v6419 = vpow.pop %v6418
        %v6420 = vmul.f32 %v5941, 1.442695
        %v6421 = vpow.pop %v6420
        %v6422 = vmul.f32 %v5942, 1.442695
        %v6423 = vpow.pop %v6422
        %v6424 = vmul.f32 %v5943, 1.442695
        %v6425 = vpow.pop %v6424
        %v6426 = vmul.f32 %v5944, 1.442695
        %v6427 = vpow.pop %v6426
        %v6428 = vmul.f32 %v5945, 1.442695
        %v6429 = vpow.pop %v6428
        %v6430 = vmul.f32 %v5946, 1.442695
        %v6431 = vpow.pop %v6430
        %v6432 = vmul.f32 %v5947, 1.442695
        %v6433 = vpow.pop %v6432
        %v6434 = vmul.f32 %v5948, 1.442695
        %v6435 = vpow.pop %v6434
        %v6436 = vmul.f32 %v5949, 1.442695
        %v6437 = vpow.pop %v6436
        %v6438 = vmul.f32 %v5950, 1.442695
        %v6439 = vpow.pop %v6438
        %v6440 = vmul.f32 %v5951, 1.442695
        %v6441 = vpow.pop %v6440
        %v6442 = vmul.f32 %v5952, 1.442695
        %v6443 = vpow.pop %v6442
        %v6444 = vmul.f32 %v5953, 1.442695
        %v6445 = vpow.pop %v6444
        %v6446 = vmul.f32 %v5954, 1.442695
        %v6447 = vpow.pop %v6446
        %v6448 = vmul.f32 %v5955, 1.442695
        %v6449 = vpow.pop %v6448
        %v6450 = vmul.f32 %v5956, 1.442695
        %v6451 = vpow.pop %v6450
        %v6452 = vmul.f32 %v5957, 1.442695
        %v6453 = vpow.pop %v6452
        %v6454 = vmul.f32 %v5958, 1.442695
        %v6455 = vpow.pop %v6454
        %v6456 = vmul.f32 %v5959, 1.442695
        %v6457 = vpow.pop %v6456
        %v6458 = vmul.f32 %v5960, 1.442695
        %v6459 = vpow.pop %v6458
        %v6460 = vmul.f32 %v5961, 1.442695
        %v6461 = vpow.pop %v6460
        %v6462 = vmul.f32 %v5962, 1.442695
        %v6463 = vpow.pop %v6462
        %v6464 = vmul.f32 %v5963, 1.442695
        %v6465 = vpow.pop %v6464
        %v6466 = vmul.f32 %v5964, 1.442695
        %v6467 = vpow.pop %v6466
        %v6468 = vmul.f32 %v5965, 1.442695
        %v6469 = vpow.pop %v6468
        %v6470 = vmul.f32 %v5966, 1.442695
        %v6471 = vpow.pop %v6470
        %v6472 = vmul.f32 %v5967, 1.442695
        %v6473 = vpow.pop %v6472
        %v6474 = vmul.f32 %v5968, 1.442695
        %v6475 = vpow.pop %v6474
        %v6476 = vmul.f32 %v5969, 1.442695
        %v6477 = vpow.pop %v6476
        %v6478 = vmul.f32 %v5970, 1.442695
        %v6479 = vpow.pop %v6478
        %v6480 = vmul.f32 %v5971, 1.442695
        %v6481 = vpow.pop %v6480
        %v6482 = vmul.f32 %v5972, 1.442695
        %v6483 = vpow.pop %v6482
        %v6484 = vmul.f32 %v5973, 1.442695
        %v6485 = vpow.pop %v6484
        %v6486 = vmul.f32 %v5974, 1.442695
        %v6487 = vpow.pop %v6486
        %v6488 = vmul.f32 %v5975, 1.442695
        %v6489 = vpow.pop %v6488
        %v6490 = vsel %vm5205, %v5977, 0.0
        %v6491 = vsel %vm5205, %v5979, 0.0
        %v6492 = vadd.f32 %v6490, %v6491
        %v6493 = vsel %vm5205, %v5981, 0.0
        %v6494 = vadd.f32 %v6492, %v6493
        %v6495 = vsel %vm5205, %v5983, 0.0
        %v6496 = vadd.f32 %v6494, %v6495
        %v6497 = vsel %vm5205, %v5985, 0.0
        %v6498 = vadd.f32 %v6496, %v6497
        %v6499 = vsel %vm5205, %v5987, 0.0
        %v6500 = vadd.f32 %v6498, %v6499
        %v6501 = vsel %vm5205, %v5989, 0.0
        %v6502 = vadd.f32 %v6500, %v6501
        %v6503 = vsel %vm5205, %v5991, 0.0
        %v6504 = vadd.f32 %v6502, %v6503
        %v6505 = vsel %vm5205, %v5993, 0.0
        %v6506 = vadd.f32 %v6504, %v6505
        %v6507 = vsel %vm5205, %v5995, 0.0
        %v6508 = vadd.f32 %v6506, %v6507
        %v6509 = vsel %vm5205, %v5997, 0.0
        %v6510 = vadd.f32 %v6508, %v6509
        %v6511 = vsel %vm5205, %v5999, 0.0
        %v6512 = vadd.f32 %v6510, %v6511
        %v6513 = vsel %vm5205, %v6001, 0.0
        %v6514 = vadd.f32 %v6512, %v6513
        %v6515 = vsel %vm5205, %v6003, 0.0
        %v6516 = vadd.f32 %v6514, %v6515
        %v6517 = vsel %vm5205, %v6005, 0.0
        %v6518 = vadd.f32 %v6516, %v6517
        %v6519 = vsel %vm5205, %v6007, 0.0
        %v6520 = vadd.f32 %v6518, %v6519
        %v6521 = vsel %vm5205, %v6009, 0.0
        %v6522 = vadd.f32 %v6520, %v6521
        %v6523 = vsel %vm5205, %v6011, 0.0
        %v6524 = vadd.f32 %v6522, %v6523
        %v6525 = vsel %vm5205, %v6013, 0.0
        %v6526 = vadd.f32 %v6524, %v6525
        %v6527 = vsel %vm5205, %v6015, 0.0
        %v6528 = vadd.f32 %v6526, %v6527
        %v6529 = vsel %vm5205, %v6017, 0.0
        %v6530 = vadd.f32 %v6528, %v6529
        %v6531 = vsel %vm5205, %v6019, 0.0
        %v6532 = vadd.f32 %v6530, %v6531
        %v6533 = vsel %vm5205, %v6021, 0.0
        %v6534 = vadd.f32 %v6532, %v6533
        %v6535 = vsel %vm5205, %v6023, 0.0
        %v6536 = vadd.f32 %v6534, %v6535
        %v6537 = vsel %vm5205, %v6025, 0.0
        %v6538 = vadd.f32 %v6536, %v6537
        %v6539 = vsel %vm5205, %v6027, 0.0
        %v6540 = vadd.f32 %v6538, %v6539
        %v6541 = vsel %vm5205, %v6029, 0.0
        %v6542 = vadd.f32 %v6540, %v6541
        %v6543 = vsel %vm5205, %v6031, 0.0
        %v6544 = vadd.f32 %v6542, %v6543
        %v6545 = vsel %vm5205, %v6033, 0.0
        %v6546 = vadd.f32 %v6544, %v6545
        %v6547 = vsel %vm5205, %v6035, 0.0
        %v6548 = vadd.f32 %v6546, %v6547
        %v6549 = vsel %vm5205, %v6037, 0.0
        %v6550 = vadd.f32 %v6548, %v6549
        %v6551 = vsel %vm5205, %v6039, 0.0
        %v6552 = vadd.f32 %v6550, %v6551
        %v6553 = vsel %vm5205, %v6041, 0.0
        %v6554 = vadd.f32 %v6552, %v6553
        %v6555 = vsel %vm5205, %v6043, 0.0
        %v6556 = vadd.f32 %v6554, %v6555
        %v6557 = vsel %vm5205, %v6045, 0.0
        %v6558 = vadd.f32 %v6556, %v6557
        %v6559 = vsel %vm5205, %v6047, 0.0
        %v6560 = vadd.f32 %v6558, %v6559
        %v6561 = vsel %vm5205, %v6049, 0.0
        %v6562 = vadd.f32 %v6560, %v6561
        %v6563 = vsel %vm5205, %v6051, 0.0
        %v6564 = vadd.f32 %v6562, %v6563
        %v6565 = vsel %vm5205, %v6053, 0.0
        %v6566 = vadd.f32 %v6564, %v6565
        %v6567 = vsel %vm5205, %v6055, 0.0
        %v6568 = vadd.f32 %v6566, %v6567
        %v6569 = vsel %vm5205, %v6057, 0.0
        %v6570 = vadd.f32 %v6568, %v6569
        %v6571 = vsel %vm5205, %v6059, 0.0
        %v6572 = vadd.f32 %v6570, %v6571
        %v6573 = vsel %vm5205, %v6061, 0.0
        %v6574 = vadd.f32 %v6572, %v6573
        %v6575 = vsel %vm5205, %v6063, 0.0
        %v6576 = vadd.f32 %v6574, %v6575
        %v6577 = vsel %vm5205, %v6065, 0.0
        %v6578 = vadd.f32 %v6576, %v6577
        %v6579 = vsel %vm5205, %v6067, 0.0
        %v6580 = vadd.f32 %v6578, %v6579
        %v6581 = vsel %vm5205, %v6069, 0.0
        %v6582 = vadd.f32 %v6580, %v6581
        %v6583 = vsel %vm5205, %v6071, 0.0
        %v6584 = vadd.f32 %v6582, %v6583
        %v6585 = vsel %vm5205, %v6073, 0.0
        %v6586 = vadd.f32 %v6584, %v6585
        %v6587 = vsel %vm5205, %v6075, 0.0
        %v6588 = vadd.f32 %v6586, %v6587
        %v6589 = vsel %vm5205, %v6077, 0.0
        %v6590 = vadd.f32 %v6588, %v6589
        %v6591 = vsel %vm5205, %v6079, 0.0
        %v6592 = vadd.f32 %v6590, %v6591
        %v6593 = vsel %vm5205, %v6081, 0.0
        %v6594 = vadd.f32 %v6592, %v6593
        %v6595 = vsel %vm5205, %v6083, 0.0
        %v6596 = vadd.f32 %v6594, %v6595
        %v6597 = vsel %vm5205, %v6085, 0.0
        %v6598 = vadd.f32 %v6596, %v6597
        %v6599 = vsel %vm5205, %v6087, 0.0
        %v6600 = vadd.f32 %v6598, %v6599
        %v6601 = vsel %vm5205, %v6089, 0.0
        %v6602 = vadd.f32 %v6600, %v6601
        %v6603 = vsel %vm5205, %v6091, 0.0
        %v6604 = vadd.f32 %v6602, %v6603
        %v6605 = vsel %vm5205, %v6093, 0.0
        %v6606 = vadd.f32 %v6604, %v6605
        %v6607 = vsel %vm5205, %v6095, 0.0
        %v6608 = vadd.f32 %v6606, %v6607
        %v6609 = vsel %vm5205, %v6097, 0.0
        %v6610 = vadd.f32 %v6608, %v6609
        %v6611 = vsel %vm5205, %v6099, 0.0
        %v6612 = vadd.f32 %v6610, %v6611
        %v6613 = vsel %vm5205, %v6101, 0.0
        %v6614 = vadd.f32 %v6612, %v6613
        %v6615 = vsel %vm5205, %v6103, 0.0
        %v6616 = vadd.f32 %v6614, %v6615
        %v6617 = vsel %vm5205, %v6105, 0.0
        %v6618 = vadd.f32 %v6616, %v6617
        %v6619 = vsel %vm5205, %v6107, 0.0
        %v6620 = vadd.f32 %v6618, %v6619
        %v6621 = vsel %vm5205, %v6109, 0.0
        %v6622 = vadd.f32 %v6620, %v6621
        %v6623 = vsel %vm5205, %v6111, 0.0
        %v6624 = vadd.f32 %v6622, %v6623
        %v6625 = vsel %vm5205, %v6113, 0.0
        %v6626 = vadd.f32 %v6624, %v6625
        %v6627 = vsel %vm5205, %v6115, 0.0
        %v6628 = vadd.f32 %v6626, %v6627
        %v6629 = vsel %vm5205, %v6117, 0.0
        %v6630 = vadd.f32 %v6628, %v6629
        %v6631 = vsel %vm5205, %v6119, 0.0
        %v6632 = vadd.f32 %v6630, %v6631
        %v6633 = vsel %vm5205, %v6121, 0.0
        %v6634 = vadd.f32 %v6632, %v6633
        %v6635 = vsel %vm5205, %v6123, 0.0
        %v6636 = vadd.f32 %v6634, %v6635
        %v6637 = vsel %vm5205, %v6125, 0.0
        %v6638 = vadd.f32 %v6636, %v6637
        %v6639 = vsel %vm5205, %v6127, 0.0
        %v6640 = vadd.f32 %v6638, %v6639
        %v6641 = vsel %vm5205, %v6129, 0.0
        %v6642 = vadd.f32 %v6640, %v6641
        %v6643 = vsel %vm5205, %v6131, 0.0
        %v6644 = vadd.f32 %v6642, %v6643
        %v6645 = vsel %vm5205, %v6133, 0.0
        %v6646 = vadd.f32 %v6644, %v6645
        %v6647 = vsel %vm5205, %v6135, 0.0
        %v6648 = vadd.f32 %v6646, %v6647
        %v6649 = vsel %vm5205, %v6137, 0.0
        %v6650 = vadd.f32 %v6648, %v6649
        %v6651 = vsel %vm5205, %v6139, 0.0
        %v6652 = vadd.f32 %v6650, %v6651
        %v6653 = vsel %vm5205, %v6141, 0.0
        %v6654 = vadd.f32 %v6652, %v6653
        %v6655 = vsel %vm5205, %v6143, 0.0
        %v6656 = vadd.f32 %v6654, %v6655
        %v6657 = vsel %vm5205, %v6145, 0.0
        %v6658 = vadd.f32 %v6656, %v6657
        %v6659 = vsel %vm5205, %v6147, 0.0
        %v6660 = vadd.f32 %v6658, %v6659
        %v6661 = vsel %vm5205, %v6149, 0.0
        %v6662 = vadd.f32 %v6660, %v6661
        %v6663 = vsel %vm5205, %v6151, 0.0
        %v6664 = vadd.f32 %v6662, %v6663
        %v6665 = vsel %vm5205, %v6153, 0.0
        %v6666 = vadd.f32 %v6664, %v6665
        %v6667 = vsel %vm5205, %v6155, 0.0
        %v6668 = vadd.f32 %v6666, %v6667
        %v6669 = vsel %vm5205, %v6157, 0.0
        %v6670 = vadd.f32 %v6668, %v6669
        %v6671 = vsel %vm5205, %v6159, 0.0
        %v6672 = vadd.f32 %v6670, %v6671
        %v6673 = vsel %vm5205, %v6161, 0.0
        %v6674 = vadd.f32 %v6672, %v6673
        %v6675 = vsel %vm5205, %v6163, 0.0
        %v6676 = vadd.f32 %v6674, %v6675
        %v6677 = vsel %vm5205, %v6165, 0.0
        %v6678 = vadd.f32 %v6676, %v6677
        %v6679 = vsel %vm5205, %v6167, 0.0
        %v6680 = vadd.f32 %v6678, %v6679
        %v6681 = vsel %vm5205, %v6169, 0.0
        %v6682 = vadd.f32 %v6680, %v6681
        %v6683 = vsel %vm5205, %v6171, 0.0
        %v6684 = vadd.f32 %v6682, %v6683
        %v6685 = vsel %vm5205, %v6173, 0.0
        %v6686 = vadd.f32 %v6684, %v6685
        %v6687 = vsel %vm5205, %v6175, 0.0
        %v6688 = vadd.f32 %v6686, %v6687
        %v6689 = vsel %vm5205, %v6177, 0.0
        %v6690 = vadd.f32 %v6688, %v6689
        %v6691 = vsel %vm5205, %v6179, 0.0
        %v6692 = vadd.f32 %v6690, %v6691
        %v6693 = vsel %vm5205, %v6181, 0.0
        %v6694 = vadd.f32 %v6692, %v6693
        %v6695 = vsel %vm5205, %v6183, 0.0
        %v6696 = vadd.f32 %v6694, %v6695
        %v6697 = vsel %vm5205, %v6185, 0.0
        %v6698 = vadd.f32 %v6696, %v6697
        %v6699 = vsel %vm5205, %v6187, 0.0
        %v6700 = vadd.f32 %v6698, %v6699
        %v6701 = vsel %vm5205, %v6189, 0.0
        %v6702 = vadd.f32 %v6700, %v6701
        %v6703 = vsel %vm5205, %v6191, 0.0
        %v6704 = vadd.f32 %v6702, %v6703
        %v6705 = vsel %vm5205, %v6193, 0.0
        %v6706 = vadd.f32 %v6704, %v6705
        %v6707 = vsel %vm5205, %v6195, 0.0
        %v6708 = vadd.f32 %v6706, %v6707
        %v6709 = vsel %vm5205, %v6197, 0.0
        %v6710 = vadd.f32 %v6708, %v6709
        %v6711 = vsel %vm5205, %v6199, 0.0
        %v6712 = vadd.f32 %v6710, %v6711
        %v6713 = vsel %vm5205, %v6201, 0.0
        %v6714 = vadd.f32 %v6712, %v6713
        %v6715 = vsel %vm5205, %v6203, 0.0
        %v6716 = vadd.f32 %v6714, %v6715
        %v6717 = vsel %vm5205, %v6205, 0.0
        %v6718 = vadd.f32 %v6716, %v6717
        %v6719 = vsel %vm5205, %v6207, 0.0
        %v6720 = vadd.f32 %v6718, %v6719
        %v6721 = vsel %vm5205, %v6209, 0.0
        %v6722 = vadd.f32 %v6720, %v6721
        %v6723 = vsel %vm5205, %v6211, 0.0
        %v6724 = vadd.f32 %v6722, %v6723
        %v6725 = vsel %vm5205, %v6213, 0.0
        %v6726 = vadd.f32 %v6724, %v6725
        %v6727 = vsel %vm5205, %v6215, 0.0
        %v6728 = vadd.f32 %v6726, %v6727
        %v6729 = vsel %vm5205, %v6217, 0.0
        %v6730 = vadd.f32 %v6728, %v6729
        %v6731 = vsel %vm5205, %v6219, 0.0
        %v6732 = vadd.f32 %v6730, %v6731
        %v6733 = vsel %vm5205, %v6221, 0.0
        %v6734 = vadd.f32 %v6732, %v6733
        %v6735 = vsel %vm5205, %v6223, 0.0
        %v6736 = vadd.f32 %v6734, %v6735
        %v6737 = vsel %vm5205, %v6225, 0.0
        %v6738 = vadd.f32 %v6736, %v6737
        %v6739 = vsel %vm5205, %v6227, 0.0
        %v6740 = vadd.f32 %v6738, %v6739
        %v6741 = vsel %vm5205, %v6229, 0.0
        %v6742 = vadd.f32 %v6740, %v6741
        %v6743 = vsel %vm5205, %v6231, 0.0
        %v6744 = vadd.f32 %v6742, %v6743
        %v6745 = vsel %vm5205, %v6233, 0.0
        %v6746 = vadd.f32 %v6744, %v6745
        %v6747 = vsel %vm5205, %v6235, 0.0
        %v6748 = vadd.f32 %v6746, %v6747
        %v6749 = vsel %vm5205, %v6237, 0.0
        %v6750 = vadd.f32 %v6748, %v6749
        %v6751 = vsel %vm5205, %v6239, 0.0
        %v6752 = vadd.f32 %v6750, %v6751
        %v6753 = vsel %vm5205, %v6241, 0.0
        %v6754 = vadd.f32 %v6752, %v6753
        %v6755 = vsel %vm5205, %v6243, 0.0
        %v6756 = vadd.f32 %v6754, %v6755
        %v6757 = vsel %vm5205, %v6245, 0.0
        %v6758 = vadd.f32 %v6756, %v6757
        %v6759 = vsel %vm5205, %v6247, 0.0
        %v6760 = vadd.f32 %v6758, %v6759
        %v6761 = vsel %vm5205, %v6249, 0.0
        %v6762 = vadd.f32 %v6760, %v6761
        %v6763 = vsel %vm5205, %v6251, 0.0
        %v6764 = vadd.f32 %v6762, %v6763
        %v6765 = vsel %vm5205, %v6253, 0.0
        %v6766 = vadd.f32 %v6764, %v6765
        %v6767 = vsel %vm5205, %v6255, 0.0
        %v6768 = vadd.f32 %v6766, %v6767
        %v6769 = vsel %vm5205, %v6257, 0.0
        %v6770 = vadd.f32 %v6768, %v6769
        %v6771 = vsel %vm5205, %v6259, 0.0
        %v6772 = vadd.f32 %v6770, %v6771
        %v6773 = vsel %vm5205, %v6261, 0.0
        %v6774 = vadd.f32 %v6772, %v6773
        %v6775 = vsel %vm5205, %v6263, 0.0
        %v6776 = vadd.f32 %v6774, %v6775
        %v6777 = vsel %vm5205, %v6265, 0.0
        %v6778 = vadd.f32 %v6776, %v6777
        %v6779 = vsel %vm5205, %v6267, 0.0
        %v6780 = vadd.f32 %v6778, %v6779
        %v6781 = vsel %vm5205, %v6269, 0.0
        %v6782 = vadd.f32 %v6780, %v6781
        %v6783 = vsel %vm5205, %v6271, 0.0
        %v6784 = vadd.f32 %v6782, %v6783
        %v6785 = vsel %vm5205, %v6273, 0.0
        %v6786 = vadd.f32 %v6784, %v6785
        %v6787 = vsel %vm5205, %v6275, 0.0
        %v6788 = vadd.f32 %v6786, %v6787
        %v6789 = vsel %vm5205, %v6277, 0.0
        %v6790 = vadd.f32 %v6788, %v6789
        %v6791 = vsel %vm5205, %v6279, 0.0
        %v6792 = vadd.f32 %v6790, %v6791
        %v6793 = vsel %vm5205, %v6281, 0.0
        %v6794 = vadd.f32 %v6792, %v6793
        %v6795 = vsel %vm5205, %v6283, 0.0
        %v6796 = vadd.f32 %v6794, %v6795
        %v6797 = vsel %vm5205, %v6285, 0.0
        %v6798 = vadd.f32 %v6796, %v6797
        %v6799 = vsel %vm5205, %v6287, 0.0
        %v6800 = vadd.f32 %v6798, %v6799
        %v6801 = vsel %vm5205, %v6289, 0.0
        %v6802 = vadd.f32 %v6800, %v6801
        %v6803 = vsel %vm5205, %v6291, 0.0
        %v6804 = vadd.f32 %v6802, %v6803
        %v6805 = vsel %vm5205, %v6293, 0.0
        %v6806 = vadd.f32 %v6804, %v6805
        %v6807 = vsel %vm5205, %v6295, 0.0
        %v6808 = vadd.f32 %v6806, %v6807
        %v6809 = vsel %vm5205, %v6297, 0.0
        %v6810 = vadd.f32 %v6808, %v6809
        %v6811 = vsel %vm5205, %v6299, 0.0
        %v6812 = vadd.f32 %v6810, %v6811
        %v6813 = vsel %vm5205, %v6301, 0.0
        %v6814 = vadd.f32 %v6812, %v6813
        %v6815 = vsel %vm5205, %v6303, 0.0
        %v6816 = vadd.f32 %v6814, %v6815
        %v6817 = vsel %vm5205, %v6305, 0.0
        %v6818 = vadd.f32 %v6816, %v6817
        %v6819 = vsel %vm5205, %v6307, 0.0
        %v6820 = vadd.f32 %v6818, %v6819
        %v6821 = vsel %vm5205, %v6309, 0.0
        %v6822 = vadd.f32 %v6820, %v6821
        %v6823 = vsel %vm5205, %v6311, 0.0
        %v6824 = vadd.f32 %v6822, %v6823
        %v6825 = vsel %vm5205, %v6313, 0.0
        %v6826 = vadd.f32 %v6824, %v6825
        %v6827 = vsel %vm5205, %v6315, 0.0
        %v6828 = vadd.f32 %v6826, %v6827
        %v6829 = vsel %vm5205, %v6317, 0.0
        %v6830 = vadd.f32 %v6828, %v6829
        %v6831 = vsel %vm5205, %v6319, 0.0
        %v6832 = vadd.f32 %v6830, %v6831
        %v6833 = vsel %vm5205, %v6321, 0.0
        %v6834 = vadd.f32 %v6832, %v6833
        %v6835 = vsel %vm5205, %v6323, 0.0
        %v6836 = vadd.f32 %v6834, %v6835
        %v6837 = vsel %vm5205, %v6325, 0.0
        %v6838 = vadd.f32 %v6836, %v6837
        %v6839 = vsel %vm5205, %v6327, 0.0
        %v6840 = vadd.f32 %v6838, %v6839
        %v6841 = vsel %vm5205, %v6329, 0.0
        %v6842 = vadd.f32 %v6840, %v6841
        %v6843 = vsel %vm5205, %v6331, 0.0
        %v6844 = vadd.f32 %v6842, %v6843
        %v6845 = vsel %vm5205, %v6333, 0.0
        %v6846 = vadd.f32 %v6844, %v6845
        %v6847 = vsel %vm5205, %v6335, 0.0
        %v6848 = vadd.f32 %v6846, %v6847
        %v6849 = vsel %vm5205, %v6337, 0.0
        %v6850 = vadd.f32 %v6848, %v6849
        %v6851 = vsel %vm5205, %v6339, 0.0
        %v6852 = vadd.f32 %v6850, %v6851
        %v6853 = vsel %vm5205, %v6341, 0.0
        %v6854 = vadd.f32 %v6852, %v6853
        %v6855 = vsel %vm5205, %v6343, 0.0
        %v6856 = vadd.f32 %v6854, %v6855
        %v6857 = vsel %vm5205, %v6345, 0.0
        %v6858 = vadd.f32 %v6856, %v6857
        %v6859 = vsel %vm5205, %v6347, 0.0
        %v6860 = vadd.f32 %v6858, %v6859
        %v6861 = vsel %vm5205, %v6349, 0.0
        %v6862 = vadd.f32 %v6860, %v6861
        %v6863 = vsel %vm5205, %v6351, 0.0
        %v6864 = vadd.f32 %v6862, %v6863
        %v6865 = vsel %vm5205, %v6353, 0.0
        %v6866 = vadd.f32 %v6864, %v6865
        %v6867 = vsel %vm5205, %v6355, 0.0
        %v6868 = vadd.f32 %v6866, %v6867
        %v6869 = vsel %vm5205, %v6357, 0.0
        %v6870 = vadd.f32 %v6868, %v6869
        %v6871 = vsel %vm5205, %v6359, 0.0
        %v6872 = vadd.f32 %v6870, %v6871
        %v6873 = vsel %vm5205, %v6361, 0.0
        %v6874 = vadd.f32 %v6872, %v6873
        %v6875 = vsel %vm5205, %v6363, 0.0
        %v6876 = vadd.f32 %v6874, %v6875
        %v6877 = vsel %vm5205, %v6365, 0.0
        %v6878 = vadd.f32 %v6876, %v6877
        %v6879 = vsel %vm5205, %v6367, 0.0
        %v6880 = vadd.f32 %v6878, %v6879
        %v6881 = vsel %vm5205, %v6369, 0.0
        %v6882 = vadd.f32 %v6880, %v6881
        %v6883 = vsel %vm5205, %v6371, 0.0
        %v6884 = vadd.f32 %v6882, %v6883
        %v6885 = vsel %vm5205, %v6373, 0.0
        %v6886 = vadd.f32 %v6884, %v6885
        %v6887 = vsel %vm5205, %v6375, 0.0
        %v6888 = vadd.f32 %v6886, %v6887
        %v6889 = vsel %vm5205, %v6377, 0.0
        %v6890 = vadd.f32 %v6888, %v6889
        %v6891 = vsel %vm5205, %v6379, 0.0
        %v6892 = vadd.f32 %v6890, %v6891
        %v6893 = vsel %vm5205, %v6381, 0.0
        %v6894 = vadd.f32 %v6892, %v6893
        %v6895 = vsel %vm5205, %v6383, 0.0
        %v6896 = vadd.f32 %v6894, %v6895
        %v6897 = vsel %vm5205, %v6385, 0.0
        %v6898 = vadd.f32 %v6896, %v6897
        %v6899 = vsel %vm5205, %v6387, 0.0
        %v6900 = vadd.f32 %v6898, %v6899
        %v6901 = vsel %vm5205, %v6389, 0.0
        %v6902 = vadd.f32 %v6900, %v6901
        %v6903 = vsel %vm5205, %v6391, 0.0
        %v6904 = vadd.f32 %v6902, %v6903
        %v6905 = vsel %vm5205, %v6393, 0.0
        %v6906 = vadd.f32 %v6904, %v6905
        %v6907 = vsel %vm5205, %v6395, 0.0
        %v6908 = vadd.f32 %v6906, %v6907
        %v6909 = vsel %vm5205, %v6397, 0.0
        %v6910 = vadd.f32 %v6908, %v6909
        %v6911 = vsel %vm5205, %v6399, 0.0
        %v6912 = vadd.f32 %v6910, %v6911
        %v6913 = vsel %vm5205, %v6401, 0.0
        %v6914 = vadd.f32 %v6912, %v6913
        %v6915 = vsel %vm5205, %v6403, 0.0
        %v6916 = vadd.f32 %v6914, %v6915
        %v6917 = vsel %vm5205, %v6405, 0.0
        %v6918 = vadd.f32 %v6916, %v6917
        %v6919 = vsel %vm5205, %v6407, 0.0
        %v6920 = vadd.f32 %v6918, %v6919
        %v6921 = vsel %vm5205, %v6409, 0.0
        %v6922 = vadd.f32 %v6920, %v6921
        %v6923 = vsel %vm5205, %v6411, 0.0
        %v6924 = vadd.f32 %v6922, %v6923
        %v6925 = vsel %vm5205, %v6413, 0.0
        %v6926 = vadd.f32 %v6924, %v6925
        %v6927 = vsel %vm5205, %v6415, 0.0
        %v6928 = vadd.f32 %v6926, %v6927
        %v6929 = vsel %vm5205, %v6417, 0.0
        %v6930 = vadd.f32 %v6928, %v6929
        %v6931 = vsel %vm5205, %v6419, 0.0
        %v6932 = vadd.f32 %v6930, %v6931
        %v6933 = vsel %vm5205, %v6421, 0.0
        %v6934 = vadd.f32 %v6932, %v6933
        %v6935 = vsel %vm5205, %v6423, 0.0
        %v6936 = vadd.f32 %v6934, %v6935
        %v6937 = vsel %vm5205, %v6425, 0.0
        %v6938 = vadd.f32 %v6936, %v6937
        %v6939 = vsel %vm5205, %v6427, 0.0
        %v6940 = vadd.f32 %v6938, %v6939
        %v6941 = vsel %vm5205, %v6429, 0.0
        %v6942 = vadd.f32 %v6940, %v6941
        %v6943 = vsel %vm5205, %v6431, 0.0
        %v6944 = vadd.f32 %v6942, %v6943
        %v6945 = vsel %vm5205, %v6433, 0.0
        %v6946 = vadd.f32 %v6944, %v6945
        %v6947 = vsel %vm5205, %v6435, 0.0
        %v6948 = vadd.f32 %v6946, %v6947
        %v6949 = vsel %vm5205, %v6437, 0.0
        %v6950 = vadd.f32 %v6948, %v6949
        %v6951 = vsel %vm5205, %v6439, 0.0
        %v6952 = vadd.f32 %v6950, %v6951
        %v6953 = vsel %vm5205, %v6441, 0.0
        %v6954 = vadd.f32 %v6952, %v6953
        %v6955 = vsel %vm5205, %v6443, 0.0
        %v6956 = vadd.f32 %v6954, %v6955
        %v6957 = vsel %vm5205, %v6445, 0.0
        %v6958 = vadd.f32 %v6956, %v6957
        %v6959 = vsel %vm5205, %v6447, 0.0
        %v6960 = vadd.f32 %v6958, %v6959
        %v6961 = vsel %vm5205, %v6449, 0.0
        %v6962 = vadd.f32 %v6960, %v6961
        %v6963 = vsel %vm5205, %v6451, 0.0
        %v6964 = vadd.f32 %v6962, %v6963
        %v6965 = vsel %vm5205, %v6453, 0.0
        %v6966 = vadd.f32 %v6964, %v6965
        %v6967 = vsel %vm5205, %v6455, 0.0
        %v6968 = vadd.f32 %v6966, %v6967
        %v6969 = vsel %vm5205, %v6457, 0.0
        %v6970 = vadd.f32 %v6968, %v6969
        %v6971 = vsel %vm5205, %v6459, 0.0
        %v6972 = vadd.f32 %v6970, %v6971
        %v6973 = vsel %vm5205, %v6461, 0.0
        %v6974 = vadd.f32 %v6972, %v6973
        %v6975 = vsel %vm5205, %v6463, 0.0
        %v6976 = vadd.f32 %v6974, %v6975
        %v6977 = vsel %vm5205, %v6465, 0.0
        %v6978 = vadd.f32 %v6976, %v6977
        %v6979 = vsel %vm5205, %v6467, 0.0
        %v6980 = vadd.f32 %v6978, %v6979
        %v6981 = vsel %vm5205, %v6469, 0.0
        %v6982 = vadd.f32 %v6980, %v6981
        %v6983 = vsel %vm5205, %v6471, 0.0
        %v6984 = vadd.f32 %v6982, %v6983
        %v6985 = vsel %vm5205, %v6473, 0.0
        %v6986 = vadd.f32 %v6984, %v6985
        %v6987 = vsel %vm5205, %v6475, 0.0
        %v6988 = vadd.f32 %v6986, %v6987
        %v6989 = vsel %vm5205, %v6477, 0.0
        %v6990 = vadd.f32 %v6988, %v6989
        %v6991 = vsel %vm5205, %v6479, 0.0
        %v6992 = vadd.f32 %v6990, %v6991
        %v6993 = vsel %vm5205, %v6481, 0.0
        %v6994 = vadd.f32 %v6992, %v6993
        %v6995 = vsel %vm5205, %v6483, 0.0
        %v6996 = vadd.f32 %v6994, %v6995
        %v6997 = vsel %vm5205, %v6485, 0.0
        %v6998 = vadd.f32 %v6996, %v6997
        %v6999 = vsel %vm5205, %v6487, 0.0
        %v7000 = vadd.f32 %v6998, %v6999
        %v7001 = vsel %vm5205, %v6489, 0.0
        %v7002 = vadd.f32 %v7000, %v7001
        %v7003 = vlog2.pop %v1607
        %v7004 = vmul.f32 %v7003, 0.6931472
        %v7005 = vlog2.pop %v1608
        %v7006 = vmul.f32 %v7005, 0.6931472
        %v7007 = vlog2.pop %v1609
        %v7008 = vmul.f32 %v7007, 0.6931472
        %v7009 = vlog2.pop %v1610
        %v7010 = vmul.f32 %v7009, 0.6931472
        %v7011 = vlog2.pop %v1611
        %v7012 = vmul.f32 %v7011, 0.6931472
        %v7013 = vlog2.pop %v1612
        %v7014 = vmul.f32 %v7013, 0.6931472
        %v7015 = vlog2.pop %v1613
        %v7016 = vmul.f32 %v7015, 0.6931472
        %v7017 = vlog2.pop %v1614
        %v7018 = vmul.f32 %v7017, 0.6931472
        %v7019 = vlog2.pop %v1615
        %v7020 = vmul.f32 %v7019, 0.6931472
        %v7021 = vlog2.pop %v1616
        %v7022 = vmul.f32 %v7021, 0.6931472
        %v7023 = vlog2.pop %v1617
        %v7024 = vmul.f32 %v7023, 0.6931472
        %v7025 = vlog2.pop %v1618
        %v7026 = vmul.f32 %v7025, 0.6931472
        %v7027 = vlog2.pop %v1619
        %v7028 = vmul.f32 %v7027, 0.6931472
        %v7029 = vlog2.pop %v1620
        %v7030 = vmul.f32 %v7029, 0.6931472
        %v7031 = vlog2.pop %v1621
        %v7032 = vmul.f32 %v7031, 0.6931472
        %v7033 = vlog2.pop %v1622
        %v7034 = vmul.f32 %v7033, 0.6931472
        %v7035 = vlog2.pop %v1623
        %v7036 = vmul.f32 %v7035, 0.6931472
        %v7037 = vlog2.pop %v1624
        %v7038 = vmul.f32 %v7037, 0.6931472
        %v7039 = vlog2.pop %v1625
        %v7040 = vmul.f32 %v7039, 0.6931472
        %v7041 = vlog2.pop %v1626
        %v7042 = vmul.f32 %v7041, 0.6931472
        %v7043 = vlog2.pop %v1627
        %v7044 = vmul.f32 %v7043, 0.6931472
        %v7045 = vlog2.pop %v1628
        %v7046 = vmul.f32 %v7045, 0.6931472
        %v7047 = vlog2.pop %v1629
        %v7048 = vmul.f32 %v7047, 0.6931472
        %v7049 = vlog2.pop %v1630
        %v7050 = vmul.f32 %v7049, 0.6931472
        %v7051 = vlog2.pop %v1631
        %v7052 = vmul.f32 %v7051, 0.6931472
        %v7053 = vlog2.pop %v1632
        %v7054 = vmul.f32 %v7053, 0.6931472
        %v7055 = vlog2.pop %v1633
        %v7056 = vmul.f32 %v7055, 0.6931472
        %v7057 = vlog2.pop %v1634
        %v7058 = vmul.f32 %v7057, 0.6931472
        %v7059 = vlog2.pop %v1635
        %v7060 = vmul.f32 %v7059, 0.6931472
        %v7061 = vlog2.pop %v1636
        %v7062 = vmul.f32 %v7061, 0.6931472
        %v7063 = vlog2.pop %v1637
        %v7064 = vmul.f32 %v7063, 0.6931472
        %v7065 = vlog2.pop %v1638
        %v7066 = vmul.f32 %v7065, 0.6931472
        %v7067 = vlog2.pop %v1639
        %v7068 = vmul.f32 %v7067, 0.6931472
        %v7069 = vlog2.pop %v1640
        %v7070 = vmul.f32 %v7069, 0.6931472
        %v7071 = vlog2.pop %v1641
        %v7072 = vmul.f32 %v7071, 0.6931472
        %v7073 = vlog2.pop %v1642
        %v7074 = vmul.f32 %v7073, 0.6931472
        %v7075 = vlog2.pop %v1643
        %v7076 = vmul.f32 %v7075, 0.6931472
        %v7077 = vlog2.pop %v1644
        %v7078 = vmul.f32 %v7077, 0.6931472
        %v7079 = vlog2.pop %v1645
        %v7080 = vmul.f32 %v7079, 0.6931472
        %v7081 = vlog2.pop %v1646
        %v7082 = vmul.f32 %v7081, 0.6931472
        %v7083 = vlog2.pop %v1647
        %v7084 = vmul.f32 %v7083, 0.6931472
        %v7085 = vlog2.pop %v1648
        %v7086 = vmul.f32 %v7085, 0.6931472
        %v7087 = vlog2.pop %v1649
        %v7088 = vmul.f32 %v7087, 0.6931472
        %v7089 = vlog2.pop %v1650
        %v7090 = vmul.f32 %v7089, 0.6931472
        %v7091 = vlog2.pop %v1651
        %v7092 = vmul.f32 %v7091, 0.6931472
        %v7093 = vlog2.pop %v1652
        %v7094 = vmul.f32 %v7093, 0.6931472
        %v7095 = vlog2.pop %v1653
        %v7096 = vmul.f32 %v7095, 0.6931472
        %v7097 = vlog2.pop %v1654
        %v7098 = vmul.f32 %v7097, 0.6931472
        %v7099 = vlog2.pop %v1655
        %v7100 = vmul.f32 %v7099, 0.6931472
        %v7101 = vlog2.pop %v1656
        %v7102 = vmul.f32 %v7101, 0.6931472
        %v7103 = vlog2.pop %v1657
        %v7104 = vmul.f32 %v7103, 0.6931472
        %v7105 = vlog2.pop %v1658
        %v7106 = vmul.f32 %v7105, 0.6931472
        %v7107 = vlog2.pop %v1659
        %v7108 = vmul.f32 %v7107, 0.6931472
        %v7109 = vlog2.pop %v1660
        %v7110 = vmul.f32 %v7109, 0.6931472
        %v7111 = vlog2.pop %v1661
        %v7112 = vmul.f32 %v7111, 0.6931472
        %v7113 = vlog2.pop %v1662
        %v7114 = vmul.f32 %v7113, 0.6931472
        %v7115 = vlog2.pop %v1663
        %v7116 = vmul.f32 %v7115, 0.6931472
        %v7117 = vlog2.pop %v1664
        %v7118 = vmul.f32 %v7117, 0.6931472
        %v7119 = vlog2.pop %v1665
        %v7120 = vmul.f32 %v7119, 0.6931472
        %v7121 = vlog2.pop %v1666
        %v7122 = vmul.f32 %v7121, 0.6931472
        %v7123 = vlog2.pop %v1667
        %v7124 = vmul.f32 %v7123, 0.6931472
        %v7125 = vlog2.pop %v1668
        %v7126 = vmul.f32 %v7125, 0.6931472
        %v7127 = vlog2.pop %v1669
        %v7128 = vmul.f32 %v7127, 0.6931472
        %v7129 = vlog2.pop %v1670
        %v7130 = vmul.f32 %v7129, 0.6931472
        %v7131 = vlog2.pop %v1671
        %v7132 = vmul.f32 %v7131, 0.6931472
        %v7133 = vlog2.pop %v1672
        %v7134 = vmul.f32 %v7133, 0.6931472
        %v7135 = vlog2.pop %v1673
        %v7136 = vmul.f32 %v7135, 0.6931472
        %v7137 = vlog2.pop %v1674
        %v7138 = vmul.f32 %v7137, 0.6931472
        %v7139 = vlog2.pop %v1675
        %v7140 = vmul.f32 %v7139, 0.6931472
        %v7141 = vlog2.pop %v1676
        %v7142 = vmul.f32 %v7141, 0.6931472
        %v7143 = vlog2.pop %v1677
        %v7144 = vmul.f32 %v7143, 0.6931472
        %v7145 = vlog2.pop %v1678
        %v7146 = vmul.f32 %v7145, 0.6931472
        %v7147 = vlog2.pop %v1679
        %v7148 = vmul.f32 %v7147, 0.6931472
        %v7149 = vlog2.pop %v1680
        %v7150 = vmul.f32 %v7149, 0.6931472
        %v7151 = vlog2.pop %v1681
        %v7152 = vmul.f32 %v7151, 0.6931472
        %v7153 = vlog2.pop %v1682
        %v7154 = vmul.f32 %v7153, 0.6931472
        %v7155 = vlog2.pop %v1683
        %v7156 = vmul.f32 %v7155, 0.6931472
        %v7157 = vlog2.pop %v1684
        %v7158 = vmul.f32 %v7157, 0.6931472
        %v7159 = vlog2.pop %v1685
        %v7160 = vmul.f32 %v7159, 0.6931472
        %v7161 = vlog2.pop %v1686
        %v7162 = vmul.f32 %v7161, 0.6931472
        %v7163 = vlog2.pop %v1687
        %v7164 = vmul.f32 %v7163, 0.6931472
        %v7165 = vlog2.pop %v1688
        %v7166 = vmul.f32 %v7165, 0.6931472
        %v7167 = vlog2.pop %v1689
        %v7168 = vmul.f32 %v7167, 0.6931472
        %v7169 = vlog2.pop %v1690
        %v7170 = vmul.f32 %v7169, 0.6931472
        %v7171 = vlog2.pop %v1691
        %v7172 = vmul.f32 %v7171, 0.6931472
        %v7173 = vlog2.pop %v1692
        %v7174 = vmul.f32 %v7173, 0.6931472
        %v7175 = vlog2.pop %v1693
        %v7176 = vmul.f32 %v7175, 0.6931472
        %v7177 = vlog2.pop %v1694
        %v7178 = vmul.f32 %v7177, 0.6931472
        %v7179 = vlog2.pop %v1695
        %v7180 = vmul.f32 %v7179, 0.6931472
        %v7181 = vlog2.pop %v1696
        %v7182 = vmul.f32 %v7181, 0.6931472
        %v7183 = vlog2.pop %v1697
        %v7184 = vmul.f32 %v7183, 0.6931472
        %v7185 = vlog2.pop %v1698
        %v7186 = vmul.f32 %v7185, 0.6931472
        %v7187 = vlog2.pop %v1699
        %v7188 = vmul.f32 %v7187, 0.6931472
        %v7189 = vlog2.pop %v1700
        %v7190 = vmul.f32 %v7189, 0.6931472
        %v7191 = vlog2.pop %v1701
        %v7192 = vmul.f32 %v7191, 0.6931472
        %v7193 = vlog2.pop %v1702
        %v7194 = vmul.f32 %v7193, 0.6931472
        %v7195 = vlog2.pop %v1703
        %v7196 = vmul.f32 %v7195, 0.6931472
        %v7197 = vlog2.pop %v1704
        %v7198 = vmul.f32 %v7197, 0.6931472
        %v7199 = vlog2.pop %v1705
        %v7200 = vmul.f32 %v7199, 0.6931472
        %v7201 = vlog2.pop %v1706
        %v7202 = vmul.f32 %v7201, 0.6931472
        %v7203 = vlog2.pop %v1707
        %v7204 = vmul.f32 %v7203, 0.6931472
        %v7205 = vlog2.pop %v1708
        %v7206 = vmul.f32 %v7205, 0.6931472
        %v7207 = vlog2.pop %v1709
        %v7208 = vmul.f32 %v7207, 0.6931472
        %v7209 = vlog2.pop %v1710
        %v7210 = vmul.f32 %v7209, 0.6931472
        %v7211 = vlog2.pop %v1711
        %v7212 = vmul.f32 %v7211, 0.6931472
        %v7213 = vlog2.pop %v1712
        %v7214 = vmul.f32 %v7213, 0.6931472
        %v7215 = vlog2.pop %v1713
        %v7216 = vmul.f32 %v7215, 0.6931472
        %v7217 = vlog2.pop %v1714
        %v7218 = vmul.f32 %v7217, 0.6931472
        %v7219 = vlog2.pop %v1715
        %v7220 = vmul.f32 %v7219, 0.6931472
        %v7221 = vlog2.pop %v1716
        %v7222 = vmul.f32 %v7221, 0.6931472
        %v7223 = vlog2.pop %v1717
        %v7224 = vmul.f32 %v7223, 0.6931472
        %v7225 = vlog2.pop %v1718
        %v7226 = vmul.f32 %v7225, 0.6931472
        %v7227 = vlog2.pop %v1719
        %v7228 = vmul.f32 %v7227, 0.6931472
        %v7229 = vlog2.pop %v1720
        %v7230 = vmul.f32 %v7229, 0.6931472
        %v7231 = vlog2.pop %v1721
        %v7232 = vmul.f32 %v7231, 0.6931472
        %v7233 = vlog2.pop %v1722
        %v7234 = vmul.f32 %v7233, 0.6931472
        %v7235 = vlog2.pop %v1723
        %v7236 = vmul.f32 %v7235, 0.6931472
        %v7237 = vlog2.pop %v1724
        %v7238 = vmul.f32 %v7237, 0.6931472
        %v7239 = vlog2.pop %v1725
        %v7240 = vmul.f32 %v7239, 0.6931472
        %v7241 = vlog2.pop %v1726
        %v7242 = vmul.f32 %v7241, 0.6931472
        %v7243 = vlog2.pop %v1727
        %v7244 = vmul.f32 %v7243, 0.6931472
        %v7245 = vlog2.pop %v1728
        %v7246 = vmul.f32 %v7245, 0.6931472
        %v7247 = vlog2.pop %v1729
        %v7248 = vmul.f32 %v7247, 0.6931472
        %v7249 = vlog2.pop %v1730
        %v7250 = vmul.f32 %v7249, 0.6931472
        %v7251 = vlog2.pop %v1731
        %v7252 = vmul.f32 %v7251, 0.6931472
        %v7253 = vlog2.pop %v1732
        %v7254 = vmul.f32 %v7253, 0.6931472
        %v7255 = vlog2.pop %v1733
        %v7256 = vmul.f32 %v7255, 0.6931472
        %v7257 = vlog2.pop %v1734
        %v7258 = vmul.f32 %v7257, 0.6931472
        %v7259 = vlog2.pop %v1735
        %v7260 = vmul.f32 %v7259, 0.6931472
        %v7261 = vlog2.pop %v1736
        %v7262 = vmul.f32 %v7261, 0.6931472
        %v7263 = vlog2.pop %v1737
        %v7264 = vmul.f32 %v7263, 0.6931472
        %v7265 = vlog2.pop %v1738
        %v7266 = vmul.f32 %v7265, 0.6931472
        %v7267 = vlog2.pop %v1739
        %v7268 = vmul.f32 %v7267, 0.6931472
        %v7269 = vlog2.pop %v1740
        %v7270 = vmul.f32 %v7269, 0.6931472
        %v7271 = vlog2.pop %v1741
        %v7272 = vmul.f32 %v7271, 0.6931472
        %v7273 = vlog2.pop %v1742
        %v7274 = vmul.f32 %v7273, 0.6931472
        %v7275 = vlog2.pop %v1743
        %v7276 = vmul.f32 %v7275, 0.6931472
        %v7277 = vlog2.pop %v1744
        %v7278 = vmul.f32 %v7277, 0.6931472
        %v7279 = vlog2.pop %v1745
        %v7280 = vmul.f32 %v7279, 0.6931472
        %v7281 = vlog2.pop %v1746
        %v7282 = vmul.f32 %v7281, 0.6931472
        %v7283 = vlog2.pop %v1747
        %v7284 = vmul.f32 %v7283, 0.6931472
        %v7285 = vlog2.pop %v1748
        %v7286 = vmul.f32 %v7285, 0.6931472
        %v7287 = vlog2.pop %v1749
        %v7288 = vmul.f32 %v7287, 0.6931472
        %v7289 = vlog2.pop %v1750
        %v7290 = vmul.f32 %v7289, 0.6931472
        %v7291 = vlog2.pop %v1751
        %v7292 = vmul.f32 %v7291, 0.6931472
        %v7293 = vlog2.pop %v1752
        %v7294 = vmul.f32 %v7293, 0.6931472
        %v7295 = vlog2.pop %v1753
        %v7296 = vmul.f32 %v7295, 0.6931472
        %v7297 = vlog2.pop %v1754
        %v7298 = vmul.f32 %v7297, 0.6931472
        %v7299 = vlog2.pop %v1755
        %v7300 = vmul.f32 %v7299, 0.6931472
        %v7301 = vlog2.pop %v1756
        %v7302 = vmul.f32 %v7301, 0.6931472
        %v7303 = vlog2.pop %v1757
        %v7304 = vmul.f32 %v7303, 0.6931472
        %v7305 = vlog2.pop %v1758
        %v7306 = vmul.f32 %v7305, 0.6931472
        %v7307 = vlog2.pop %v1759
        %v7308 = vmul.f32 %v7307, 0.6931472
        %v7309 = vlog2.pop %v1760
        %v7310 = vmul.f32 %v7309, 0.6931472
        %v7311 = vlog2.pop %v1761
        %v7312 = vmul.f32 %v7311, 0.6931472
        %v7313 = vlog2.pop %v1762
        %v7314 = vmul.f32 %v7313, 0.6931472
        %v7315 = vlog2.pop %v1763
        %v7316 = vmul.f32 %v7315, 0.6931472
        %v7317 = vlog2.pop %v1764
        %v7318 = vmul.f32 %v7317, 0.6931472
        %v7319 = vlog2.pop %v1765
        %v7320 = vmul.f32 %v7319, 0.6931472
        %v7321 = vlog2.pop %v1766
        %v7322 = vmul.f32 %v7321, 0.6931472
        %v7323 = vlog2.pop %v1767
        %v7324 = vmul.f32 %v7323, 0.6931472
        %v7325 = vlog2.pop %v1768
        %v7326 = vmul.f32 %v7325, 0.6931472
        %v7327 = vlog2.pop %v1769
        %v7328 = vmul.f32 %v7327, 0.6931472
        %v7329 = vlog2.pop %v1770
        %v7330 = vmul.f32 %v7329, 0.6931472
        %v7331 = vlog2.pop %v1771
        %v7332 = vmul.f32 %v7331, 0.6931472
        %v7333 = vlog2.pop %v1772
        %v7334 = vmul.f32 %v7333, 0.6931472
        %v7335 = vlog2.pop %v1773
        %v7336 = vmul.f32 %v7335, 0.6931472
        %v7337 = vlog2.pop %v1774
        %v7338 = vmul.f32 %v7337, 0.6931472
        %v7339 = vlog2.pop %v1775
        %v7340 = vmul.f32 %v7339, 0.6931472
        %v7341 = vlog2.pop %v1776
        %v7342 = vmul.f32 %v7341, 0.6931472
        %v7343 = vlog2.pop %v1777
        %v7344 = vmul.f32 %v7343, 0.6931472
        %v7345 = vlog2.pop %v1778
        %v7346 = vmul.f32 %v7345, 0.6931472
        %v7347 = vlog2.pop %v1779
        %v7348 = vmul.f32 %v7347, 0.6931472
        %v7349 = vlog2.pop %v1780
        %v7350 = vmul.f32 %v7349, 0.6931472
        %v7351 = vlog2.pop %v1781
        %v7352 = vmul.f32 %v7351, 0.6931472
        %v7353 = vlog2.pop %v1782
        %v7354 = vmul.f32 %v7353, 0.6931472
        %v7355 = vlog2.pop %v1783
        %v7356 = vmul.f32 %v7355, 0.6931472
        %v7357 = vlog2.pop %v1784
        %v7358 = vmul.f32 %v7357, 0.6931472
        %v7359 = vlog2.pop %v1785
        %v7360 = vmul.f32 %v7359, 0.6931472
        %v7361 = vlog2.pop %v1786
        %v7362 = vmul.f32 %v7361, 0.6931472
        %v7363 = vlog2.pop %v1787
        %v7364 = vmul.f32 %v7363, 0.6931472
        %v7365 = vlog2.pop %v1788
        %v7366 = vmul.f32 %v7365, 0.6931472
        %v7367 = vlog2.pop %v1789
        %v7368 = vmul.f32 %v7367, 0.6931472
        %v7369 = vlog2.pop %v1790
        %v7370 = vmul.f32 %v7369, 0.6931472
        %v7371 = vlog2.pop %v1791
        %v7372 = vmul.f32 %v7371, 0.6931472
        %v7373 = vlog2.pop %v1792
        %v7374 = vmul.f32 %v7373, 0.6931472
        %v7375 = vlog2.pop %v1793
        %v7376 = vmul.f32 %v7375, 0.6931472
        %v7377 = vlog2.pop %v1794
        %v7378 = vmul.f32 %v7377, 0.6931472
        %v7379 = vlog2.pop %v1795
        %v7380 = vmul.f32 %v7379, 0.6931472
        %v7381 = vlog2.pop %v1796
        %v7382 = vmul.f32 %v7381, 0.6931472
        %v7383 = vlog2.pop %v1797
        %v7384 = vmul.f32 %v7383, 0.6931472
        %v7385 = vlog2.pop %v1798
        %v7386 = vmul.f32 %v7385, 0.6931472
        %v7387 = vlog2.pop %v1799
        %v7388 = vmul.f32 %v7387, 0.6931472
        %v7389 = vlog2.pop %v1800
        %v7390 = vmul.f32 %v7389, 0.6931472
        %v7391 = vlog2.pop %v1801
        %v7392 = vmul.f32 %v7391, 0.6931472
        %v7393 = vlog2.pop %v1802
        %v7394 = vmul.f32 %v7393, 0.6931472
        %v7395 = vlog2.pop %v1803
        %v7396 = vmul.f32 %v7395, 0.6931472
        %v7397 = vlog2.pop %v1804
        %v7398 = vmul.f32 %v7397, 0.6931472
        %v7399 = vlog2.pop %v1805
        %v7400 = vmul.f32 %v7399, 0.6931472
        %v7401 = vlog2.pop %v1806
        %v7402 = vmul.f32 %v7401, 0.6931472
        %v7403 = vlog2.pop %v1807
        %v7404 = vmul.f32 %v7403, 0.6931472
        %v7405 = vlog2.pop %v1808
        %v7406 = vmul.f32 %v7405, 0.6931472
        %v7407 = vlog2.pop %v1809
        %v7408 = vmul.f32 %v7407, 0.6931472
        %v7409 = vlog2.pop %v1810
        %v7410 = vmul.f32 %v7409, 0.6931472
        %v7411 = vlog2.pop %v1811
        %v7412 = vmul.f32 %v7411, 0.6931472
        %v7413 = vlog2.pop %v1812
        %v7414 = vmul.f32 %v7413, 0.6931472
        %v7415 = vlog2.pop %v1813
        %v7416 = vmul.f32 %v7415, 0.6931472
        %v7417 = vlog2.pop %v1814
        %v7418 = vmul.f32 %v7417, 0.6931472
        %v7419 = vlog2.pop %v1815
        %v7420 = vmul.f32 %v7419, 0.6931472
        %v7421 = vlog2.pop %v1816
        %v7422 = vmul.f32 %v7421, 0.6931472
        %v7423 = vlog2.pop %v1817
        %v7424 = vmul.f32 %v7423, 0.6931472
        %v7425 = vlog2.pop %v1818
        %v7426 = vmul.f32 %v7425, 0.6931472
        %v7427 = vlog2.pop %v1819
        %v7428 = vmul.f32 %v7427, 0.6931472
        %v7429 = vlog2.pop %v1820
        %v7430 = vmul.f32 %v7429, 0.6931472
        %v7431 = vlog2.pop %v1821
        %v7432 = vmul.f32 %v7431, 0.6931472
        %v7433 = vlog2.pop %v1822
        %v7434 = vmul.f32 %v7433, 0.6931472
        %v7435 = vlog2.pop %v1823
        %v7436 = vmul.f32 %v7435, 0.6931472
        %v7437 = vlog2.pop %v1824
        %v7438 = vmul.f32 %v7437, 0.6931472
        %v7439 = vlog2.pop %v1825
        %v7440 = vmul.f32 %v7439, 0.6931472
        %v7441 = vlog2.pop %v1826
        %v7442 = vmul.f32 %v7441, 0.6931472
        %v7443 = vlog2.pop %v1827
        %v7444 = vmul.f32 %v7443, 0.6931472
        %v7445 = vlog2.pop %v1828
        %v7446 = vmul.f32 %v7445, 0.6931472
        %v7447 = vlog2.pop %v1829
        %v7448 = vmul.f32 %v7447, 0.6931472
        %v7449 = vlog2.pop %v1830
        %v7450 = vmul.f32 %v7449, 0.6931472
        %v7451 = vlog2.pop %v1831
        %v7452 = vmul.f32 %v7451, 0.6931472
        %v7453 = vlog2.pop %v1832
        %v7454 = vmul.f32 %v7453, 0.6931472
        %v7455 = vlog2.pop %v1833
        %v7456 = vmul.f32 %v7455, 0.6931472
        %v7457 = vlog2.pop %v1834
        %v7458 = vmul.f32 %v7457, 0.6931472
        %v7459 = vlog2.pop %v1835
        %v7460 = vmul.f32 %v7459, 0.6931472
        %v7461 = vlog2.pop %v1836
        %v7462 = vmul.f32 %v7461, 0.6931472
        %v7463 = vlog2.pop %v1837
        %v7464 = vmul.f32 %v7463, 0.6931472
        %v7465 = vlog2.pop %v1838
        %v7466 = vmul.f32 %v7465, 0.6931472
        %v7467 = vlog2.pop %v1839
        %v7468 = vmul.f32 %v7467, 0.6931472
        %v7469 = vlog2.pop %v1840
        %v7470 = vmul.f32 %v7469, 0.6931472
        %v7471 = vlog2.pop %v1841
        %v7472 = vmul.f32 %v7471, 0.6931472
        %v7473 = vlog2.pop %v1842
        %v7474 = vmul.f32 %v7473, 0.6931472
        %v7475 = vlog2.pop %v1843
        %v7476 = vmul.f32 %v7475, 0.6931472
        %v7477 = vlog2.pop %v1844
        %v7478 = vmul.f32 %v7477, 0.6931472
        %v7479 = vlog2.pop %v1845
        %v7480 = vmul.f32 %v7479, 0.6931472
        %v7481 = vlog2.pop %v1846
        %v7482 = vmul.f32 %v7481, 0.6931472
        %v7483 = vlog2.pop %v1847
        %v7484 = vmul.f32 %v7483, 0.6931472
        %v7485 = vlog2.pop %v1848
        %v7486 = vmul.f32 %v7485, 0.6931472
        %v7487 = vlog2.pop %v1849
        %v7488 = vmul.f32 %v7487, 0.6931472
        %v7489 = vlog2.pop %v1850
        %v7490 = vmul.f32 %v7489, 0.6931472
        %v7491 = vlog2.pop %v1851
        %v7492 = vmul.f32 %v7491, 0.6931472
        %v7493 = vlog2.pop %v1852
        %v7494 = vmul.f32 %v7493, 0.6931472
        %v7495 = vlog2.pop %v1853
        %v7496 = vmul.f32 %v7495, 0.6931472
        %v7497 = vlog2.pop %v1854
        %v7498 = vmul.f32 %v7497, 0.6931472
        %v7499 = vlog2.pop %v1855
        %v7500 = vmul.f32 %v7499, 0.6931472
        %v7501 = vlog2.pop %v1856
        %v7502 = vmul.f32 %v7501, 0.6931472
        %v7503 = vlog2.pop %v1857
        %v7504 = vmul.f32 %v7503, 0.6931472
        %v7505 = vlog2.pop %v1858
        %v7506 = vmul.f32 %v7505, 0.6931472
        %v7507 = vlog2.pop %v1859
        %v7508 = vmul.f32 %v7507, 0.6931472
        %v7509 = vlog2.pop %v1860
        %v7510 = vmul.f32 %v7509, 0.6931472
        %v7511 = vlog2.pop %v1861
        %v7512 = vmul.f32 %v7511, 0.6931472
        %v7513 = vlog2.pop %v1862
        %v7514 = vmul.f32 %v7513, 0.6931472
        %v7515 = vlog2.pop %v1863
        %v7516 = vmul.f32 %v7515, 0.6931472
        %v7517 = vsub.f32 %v5719, %v7004
        %v7518 = vsub.f32 %v5720, %v7006
        %v7519 = vsub.f32 %v5721, %v7008
        %v7520 = vsub.f32 %v5722, %v7010
        %v7521 = vsub.f32 %v5723, %v7012
        %v7522 = vsub.f32 %v5724, %v7014
        %v7523 = vsub.f32 %v5725, %v7016
        %v7524 = vsub.f32 %v5726, %v7018
        %v7525 = vsub.f32 %v5727, %v7020
        %v7526 = vsub.f32 %v5728, %v7022
        %v7527 = vsub.f32 %v5729, %v7024
        %v7528 = vsub.f32 %v5730, %v7026
        %v7529 = vsub.f32 %v5731, %v7028
        %v7530 = vsub.f32 %v5732, %v7030
        %v7531 = vsub.f32 %v5733, %v7032
        %v7532 = vsub.f32 %v5734, %v7034
        %v7533 = vsub.f32 %v5735, %v7036
        %v7534 = vsub.f32 %v5736, %v7038
        %v7535 = vsub.f32 %v5737, %v7040
        %v7536 = vsub.f32 %v5738, %v7042
        %v7537 = vsub.f32 %v5739, %v7044
        %v7538 = vsub.f32 %v5740, %v7046
        %v7539 = vsub.f32 %v5741, %v7048
        %v7540 = vsub.f32 %v5742, %v7050
        %v7541 = vsub.f32 %v5743, %v7052
        %v7542 = vsub.f32 %v5744, %v7054
        %v7543 = vsub.f32 %v5745, %v7056
        %v7544 = vsub.f32 %v5746, %v7058
        %v7545 = vsub.f32 %v5747, %v7060
        %v7546 = vsub.f32 %v5748, %v7062
        %v7547 = vsub.f32 %v5749, %v7064
        %v7548 = vsub.f32 %v5750, %v7066
        %v7549 = vsub.f32 %v5751, %v7068
        %v7550 = vsub.f32 %v5752, %v7070
        %v7551 = vsub.f32 %v5753, %v7072
        %v7552 = vsub.f32 %v5754, %v7074
        %v7553 = vsub.f32 %v5755, %v7076
        %v7554 = vsub.f32 %v5756, %v7078
        %v7555 = vsub.f32 %v5757, %v7080
        %v7556 = vsub.f32 %v5758, %v7082
        %v7557 = vsub.f32 %v5759, %v7084
        %v7558 = vsub.f32 %v5760, %v7086
        %v7559 = vsub.f32 %v5761, %v7088
        %v7560 = vsub.f32 %v5762, %v7090
        %v7561 = vsub.f32 %v5763, %v7092
        %v7562 = vsub.f32 %v5764, %v7094
        %v7563 = vsub.f32 %v5765, %v7096
        %v7564 = vsub.f32 %v5766, %v7098
        %v7565 = vsub.f32 %v5767, %v7100
        %v7566 = vsub.f32 %v5768, %v7102
        %v7567 = vsub.f32 %v5769, %v7104
        %v7568 = vsub.f32 %v5770, %v7106
        %v7569 = vsub.f32 %v5771, %v7108
        %v7570 = vsub.f32 %v5772, %v7110
        %v7571 = vsub.f32 %v5773, %v7112
        %v7572 = vsub.f32 %v5774, %v7114
        %v7573 = vsub.f32 %v5775, %v7116
        %v7574 = vsub.f32 %v5776, %v7118
        %v7575 = vsub.f32 %v5777, %v7120
        %v7576 = vsub.f32 %v5778, %v7122
        %v7577 = vsub.f32 %v5779, %v7124
        %v7578 = vsub.f32 %v5780, %v7126
        %v7579 = vsub.f32 %v5781, %v7128
        %v7580 = vsub.f32 %v5782, %v7130
        %v7581 = vsub.f32 %v5783, %v7132
        %v7582 = vsub.f32 %v5784, %v7134
        %v7583 = vsub.f32 %v5785, %v7136
        %v7584 = vsub.f32 %v5786, %v7138
        %v7585 = vsub.f32 %v5787, %v7140
        %v7586 = vsub.f32 %v5788, %v7142
        %v7587 = vsub.f32 %v5789, %v7144
        %v7588 = vsub.f32 %v5790, %v7146
        %v7589 = vsub.f32 %v5791, %v7148
        %v7590 = vsub.f32 %v5792, %v7150
        %v7591 = vsub.f32 %v5793, %v7152
        %v7592 = vsub.f32 %v5794, %v7154
        %v7593 = vsub.f32 %v5795, %v7156
        %v7594 = vsub.f32 %v5796, %v7158
        %v7595 = vsub.f32 %v5797, %v7160
        %v7596 = vsub.f32 %v5798, %v7162
        %v7597 = vsub.f32 %v5799, %v7164
        %v7598 = vsub.f32 %v5800, %v7166
        %v7599 = vsub.f32 %v5801, %v7168
        %v7600 = vsub.f32 %v5802, %v7170
        %v7601 = vsub.f32 %v5803, %v7172
        %v7602 = vsub.f32 %v5804, %v7174
        %v7603 = vsub.f32 %v5805, %v7176
        %v7604 = vsub.f32 %v5806, %v7178
        %v7605 = vsub.f32 %v5807, %v7180
        %v7606 = vsub.f32 %v5808, %v7182
        %v7607 = vsub.f32 %v5809, %v7184
        %v7608 = vsub.f32 %v5810, %v7186
        %v7609 = vsub.f32 %v5811, %v7188
        %v7610 = vsub.f32 %v5812, %v7190
        %v7611 = vsub.f32 %v5813, %v7192
        %v7612 = vsub.f32 %v5814, %v7194
        %v7613 = vsub.f32 %v5815, %v7196
        %v7614 = vsub.f32 %v5816, %v7198
        %v7615 = vsub.f32 %v5817, %v7200
        %v7616 = vsub.f32 %v5818, %v7202
        %v7617 = vsub.f32 %v5819, %v7204
        %v7618 = vsub.f32 %v5820, %v7206
        %v7619 = vsub.f32 %v5821, %v7208
        %v7620 = vsub.f32 %v5822, %v7210
        %v7621 = vsub.f32 %v5823, %v7212
        %v7622 = vsub.f32 %v5824, %v7214
        %v7623 = vsub.f32 %v5825, %v7216
        %v7624 = vsub.f32 %v5826, %v7218
        %v7625 = vsub.f32 %v5827, %v7220
        %v7626 = vsub.f32 %v5828, %v7222
        %v7627 = vsub.f32 %v5829, %v7224
        %v7628 = vsub.f32 %v5830, %v7226
        %v7629 = vsub.f32 %v5831, %v7228
        %v7630 = vsub.f32 %v5832, %v7230
        %v7631 = vsub.f32 %v5833, %v7232
        %v7632 = vsub.f32 %v5834, %v7234
        %v7633 = vsub.f32 %v5835, %v7236
        %v7634 = vsub.f32 %v5836, %v7238
        %v7635 = vsub.f32 %v5837, %v7240
        %v7636 = vsub.f32 %v5838, %v7242
        %v7637 = vsub.f32 %v5839, %v7244
        %v7638 = vsub.f32 %v5840, %v7246
        %v7639 = vsub.f32 %v5841, %v7248
        %v7640 = vsub.f32 %v5842, %v7250
        %v7641 = vsub.f32 %v5843, %v7252
        %v7642 = vsub.f32 %v5844, %v7254
        %v7643 = vsub.f32 %v5845, %v7256
        %v7644 = vsub.f32 %v5846, %v7258
        %v7645 = vsub.f32 %v5847, %v7260
        %v7646 = vsub.f32 %v5848, %v7262
        %v7647 = vsub.f32 %v5849, %v7264
        %v7648 = vsub.f32 %v5850, %v7266
        %v7649 = vsub.f32 %v5851, %v7268
        %v7650 = vsub.f32 %v5852, %v7270
        %v7651 = vsub.f32 %v5853, %v7272
        %v7652 = vsub.f32 %v5854, %v7274
        %v7653 = vsub.f32 %v5855, %v7276
        %v7654 = vsub.f32 %v5856, %v7278
        %v7655 = vsub.f32 %v5857, %v7280
        %v7656 = vsub.f32 %v5858, %v7282
        %v7657 = vsub.f32 %v5859, %v7284
        %v7658 = vsub.f32 %v5860, %v7286
        %v7659 = vsub.f32 %v5861, %v7288
        %v7660 = vsub.f32 %v5862, %v7290
        %v7661 = vsub.f32 %v5863, %v7292
        %v7662 = vsub.f32 %v5864, %v7294
        %v7663 = vsub.f32 %v5865, %v7296
        %v7664 = vsub.f32 %v5866, %v7298
        %v7665 = vsub.f32 %v5867, %v7300
        %v7666 = vsub.f32 %v5868, %v7302
        %v7667 = vsub.f32 %v5869, %v7304
        %v7668 = vsub.f32 %v5870, %v7306
        %v7669 = vsub.f32 %v5871, %v7308
        %v7670 = vsub.f32 %v5872, %v7310
        %v7671 = vsub.f32 %v5873, %v7312
        %v7672 = vsub.f32 %v5874, %v7314
        %v7673 = vsub.f32 %v5875, %v7316
        %v7674 = vsub.f32 %v5876, %v7318
        %v7675 = vsub.f32 %v5877, %v7320
        %v7676 = vsub.f32 %v5878, %v7322
        %v7677 = vsub.f32 %v5879, %v7324
        %v7678 = vsub.f32 %v5880, %v7326
        %v7679 = vsub.f32 %v5881, %v7328
        %v7680 = vsub.f32 %v5882, %v7330
        %v7681 = vsub.f32 %v5883, %v7332
        %v7682 = vsub.f32 %v5884, %v7334
        %v7683 = vsub.f32 %v5885, %v7336
        %v7684 = vsub.f32 %v5886, %v7338
        %v7685 = vsub.f32 %v5887, %v7340
        %v7686 = vsub.f32 %v5888, %v7342
        %v7687 = vsub.f32 %v5889, %v7344
        %v7688 = vsub.f32 %v5890, %v7346
        %v7689 = vsub.f32 %v5891, %v7348
        %v7690 = vsub.f32 %v5892, %v7350
        %v7691 = vsub.f32 %v5893, %v7352
        %v7692 = vsub.f32 %v5894, %v7354
        %v7693 = vsub.f32 %v5895, %v7356
        %v7694 = vsub.f32 %v5896, %v7358
        %v7695 = vsub.f32 %v5897, %v7360
        %v7696 = vsub.f32 %v5898, %v7362
        %v7697 = vsub.f32 %v5899, %v7364
        %v7698 = vsub.f32 %v5900, %v7366
        %v7699 = vsub.f32 %v5901, %v7368
        %v7700 = vsub.f32 %v5902, %v7370
        %v7701 = vsub.f32 %v5903, %v7372
        %v7702 = vsub.f32 %v5904, %v7374
        %v7703 = vsub.f32 %v5905, %v7376
        %v7704 = vsub.f32 %v5906, %v7378
        %v7705 = vsub.f32 %v5907, %v7380
        %v7706 = vsub.f32 %v5908, %v7382
        %v7707 = vsub.f32 %v5909, %v7384
        %v7708 = vsub.f32 %v5910, %v7386
        %v7709 = vsub.f32 %v5911, %v7388
        %v7710 = vsub.f32 %v5912, %v7390
        %v7711 = vsub.f32 %v5913, %v7392
        %v7712 = vsub.f32 %v5914, %v7394
        %v7713 = vsub.f32 %v5915, %v7396
        %v7714 = vsub.f32 %v5916, %v7398
        %v7715 = vsub.f32 %v5917, %v7400
        %v7716 = vsub.f32 %v5918, %v7402
        %v7717 = vsub.f32 %v5919, %v7404
        %v7718 = vsub.f32 %v5920, %v7406
        %v7719 = vsub.f32 %v5921, %v7408
        %v7720 = vsub.f32 %v5922, %v7410
        %v7721 = vsub.f32 %v5923, %v7412
        %v7722 = vsub.f32 %v5924, %v7414
        %v7723 = vsub.f32 %v5925, %v7416
        %v7724 = vsub.f32 %v5926, %v7418
        %v7725 = vsub.f32 %v5927, %v7420
        %v7726 = vsub.f32 %v5928, %v7422
        %v7727 = vsub.f32 %v5929, %v7424
        %v7728 = vsub.f32 %v5930, %v7426
        %v7729 = vsub.f32 %v5931, %v7428
        %v7730 = vsub.f32 %v5932, %v7430
        %v7731 = vsub.f32 %v5933, %v7432
        %v7732 = vsub.f32 %v5934, %v7434
        %v7733 = vsub.f32 %v5935, %v7436
        %v7734 = vsub.f32 %v5936, %v7438
        %v7735 = vsub.f32 %v5937, %v7440
        %v7736 = vsub.f32 %v5938, %v7442
        %v7737 = vsub.f32 %v5939, %v7444
        %v7738 = vsub.f32 %v5940, %v7446
        %v7739 = vsub.f32 %v5941, %v7448
        %v7740 = vsub.f32 %v5942, %v7450
        %v7741 = vsub.f32 %v5943, %v7452
        %v7742 = vsub.f32 %v5944, %v7454
        %v7743 = vsub.f32 %v5945, %v7456
        %v7744 = vsub.f32 %v5946, %v7458
        %v7745 = vsub.f32 %v5947, %v7460
        %v7746 = vsub.f32 %v5948, %v7462
        %v7747 = vsub.f32 %v5949, %v7464
        %v7748 = vsub.f32 %v5950, %v7466
        %v7749 = vsub.f32 %v5951, %v7468
        %v7750 = vsub.f32 %v5952, %v7470
        %v7751 = vsub.f32 %v5953, %v7472
        %v7752 = vsub.f32 %v5954, %v7474
        %v7753 = vsub.f32 %v5955, %v7476
        %v7754 = vsub.f32 %v5956, %v7478
        %v7755 = vsub.f32 %v5957, %v7480
        %v7756 = vsub.f32 %v5958, %v7482
        %v7757 = vsub.f32 %v5959, %v7484
        %v7758 = vsub.f32 %v5960, %v7486
        %v7759 = vsub.f32 %v5961, %v7488
        %v7760 = vsub.f32 %v5962, %v7490
        %v7761 = vsub.f32 %v5963, %v7492
        %v7762 = vsub.f32 %v5964, %v7494
        %v7763 = vsub.f32 %v5965, %v7496
        %v7764 = vsub.f32 %v5966, %v7498
        %v7765 = vsub.f32 %v5967, %v7500
        %v7766 = vsub.f32 %v5968, %v7502
        %v7767 = vsub.f32 %v5969, %v7504
        %v7768 = vsub.f32 %v5970, %v7506
        %v7769 = vsub.f32 %v5971, %v7508
        %v7770 = vsub.f32 %v5972, %v7510
        %v7771 = vsub.f32 %v5973, %v7512
        %v7772 = vsub.f32 %v5974, %v7514
        %v7773 = vsub.f32 %v5975, %v7516
        %v7774 = vmul.f32 %v5977, %v7517
        %v7775 = vmul.f32 %v5979, %v7518
        %v7776 = vmul.f32 %v5981, %v7519
        %v7777 = vmul.f32 %v5983, %v7520
        %v7778 = vmul.f32 %v5985, %v7521
        %v7779 = vmul.f32 %v5987, %v7522
        %v7780 = vmul.f32 %v5989, %v7523
        %v7781 = vmul.f32 %v5991, %v7524
        %v7782 = vmul.f32 %v5993, %v7525
        %v7783 = vmul.f32 %v5995, %v7526
        %v7784 = vmul.f32 %v5997, %v7527
        %v7785 = vmul.f32 %v5999, %v7528
        %v7786 = vmul.f32 %v6001, %v7529
        %v7787 = vmul.f32 %v6003, %v7530
        %v7788 = vmul.f32 %v6005, %v7531
        %v7789 = vmul.f32 %v6007, %v7532
        %v7790 = vmul.f32 %v6009, %v7533
        %v7791 = vmul.f32 %v6011, %v7534
        %v7792 = vmul.f32 %v6013, %v7535
        %v7793 = vmul.f32 %v6015, %v7536
        %v7794 = vmul.f32 %v6017, %v7537
        %v7795 = vmul.f32 %v6019, %v7538
        %v7796 = vmul.f32 %v6021, %v7539
        %v7797 = vmul.f32 %v6023, %v7540
        %v7798 = vmul.f32 %v6025, %v7541
        %v7799 = vmul.f32 %v6027, %v7542
        %v7800 = vmul.f32 %v6029, %v7543
        %v7801 = vmul.f32 %v6031, %v7544
        %v7802 = vmul.f32 %v6033, %v7545
        %v7803 = vmul.f32 %v6035, %v7546
        %v7804 = vmul.f32 %v6037, %v7547
        %v7805 = vmul.f32 %v6039, %v7548
        %v7806 = vmul.f32 %v6041, %v7549
        %v7807 = vmul.f32 %v6043, %v7550
        %v7808 = vmul.f32 %v6045, %v7551
        %v7809 = vmul.f32 %v6047, %v7552
        %v7810 = vmul.f32 %v6049, %v7553
        %v7811 = vmul.f32 %v6051, %v7554
        %v7812 = vmul.f32 %v6053, %v7555
        %v7813 = vmul.f32 %v6055, %v7556
        %v7814 = vmul.f32 %v6057, %v7557
        %v7815 = vmul.f32 %v6059, %v7558
        %v7816 = vmul.f32 %v6061, %v7559
        %v7817 = vmul.f32 %v6063, %v7560
        %v7818 = vmul.f32 %v6065, %v7561
        %v7819 = vmul.f32 %v6067, %v7562
        %v7820 = vmul.f32 %v6069, %v7563
        %v7821 = vmul.f32 %v6071, %v7564
        %v7822 = vmul.f32 %v6073, %v7565
        %v7823 = vmul.f32 %v6075, %v7566
        %v7824 = vmul.f32 %v6077, %v7567
        %v7825 = vmul.f32 %v6079, %v7568
        %v7826 = vmul.f32 %v6081, %v7569
        %v7827 = vmul.f32 %v6083, %v7570
        %v7828 = vmul.f32 %v6085, %v7571
        %v7829 = vmul.f32 %v6087, %v7572
        %v7830 = vmul.f32 %v6089, %v7573
        %v7831 = vmul.f32 %v6091, %v7574
        %v7832 = vmul.f32 %v6093, %v7575
        %v7833 = vmul.f32 %v6095, %v7576
        %v7834 = vmul.f32 %v6097, %v7577
        %v7835 = vmul.f32 %v6099, %v7578
        %v7836 = vmul.f32 %v6101, %v7579
        %v7837 = vmul.f32 %v6103, %v7580
        %v7838 = vmul.f32 %v6105, %v7581
        %v7839 = vmul.f32 %v6107, %v7582
        %v7840 = vmul.f32 %v6109, %v7583
        %v7841 = vmul.f32 %v6111, %v7584
        %v7842 = vmul.f32 %v6113, %v7585
        %v7843 = vmul.f32 %v6115, %v7586
        %v7844 = vmul.f32 %v6117, %v7587
        %v7845 = vmul.f32 %v6119, %v7588
        %v7846 = vmul.f32 %v6121, %v7589
        %v7847 = vmul.f32 %v6123, %v7590
        %v7848 = vmul.f32 %v6125, %v7591
        %v7849 = vmul.f32 %v6127, %v7592
        %v7850 = vmul.f32 %v6129, %v7593
        %v7851 = vmul.f32 %v6131, %v7594
        %v7852 = vmul.f32 %v6133, %v7595
        %v7853 = vmul.f32 %v6135, %v7596
        %v7854 = vmul.f32 %v6137, %v7597
        %v7855 = vmul.f32 %v6139, %v7598
        %v7856 = vmul.f32 %v6141, %v7599
        %v7857 = vmul.f32 %v6143, %v7600
        %v7858 = vmul.f32 %v6145, %v7601
        %v7859 = vmul.f32 %v6147, %v7602
        %v7860 = vmul.f32 %v6149, %v7603
        %v7861 = vmul.f32 %v6151, %v7604
        %v7862 = vmul.f32 %v6153, %v7605
        %v7863 = vmul.f32 %v6155, %v7606
        %v7864 = vmul.f32 %v6157, %v7607
        %v7865 = vmul.f32 %v6159, %v7608
        %v7866 = vmul.f32 %v6161, %v7609
        %v7867 = vmul.f32 %v6163, %v7610
        %v7868 = vmul.f32 %v6165, %v7611
        %v7869 = vmul.f32 %v6167, %v7612
        %v7870 = vmul.f32 %v6169, %v7613
        %v7871 = vmul.f32 %v6171, %v7614
        %v7872 = vmul.f32 %v6173, %v7615
        %v7873 = vmul.f32 %v6175, %v7616
        %v7874 = vmul.f32 %v6177, %v7617
        %v7875 = vmul.f32 %v6179, %v7618
        %v7876 = vmul.f32 %v6181, %v7619
        %v7877 = vmul.f32 %v6183, %v7620
        %v7878 = vmul.f32 %v6185, %v7621
        %v7879 = vmul.f32 %v6187, %v7622
        %v7880 = vmul.f32 %v6189, %v7623
        %v7881 = vmul.f32 %v6191, %v7624
        %v7882 = vmul.f32 %v6193, %v7625
        %v7883 = vmul.f32 %v6195, %v7626
        %v7884 = vmul.f32 %v6197, %v7627
        %v7885 = vmul.f32 %v6199, %v7628
        %v7886 = vmul.f32 %v6201, %v7629
        %v7887 = vmul.f32 %v6203, %v7630
        %v7888 = vmul.f32 %v6205, %v7631
        %v7889 = vmul.f32 %v6207, %v7632
        %v7890 = vmul.f32 %v6209, %v7633
        %v7891 = vmul.f32 %v6211, %v7634
        %v7892 = vmul.f32 %v6213, %v7635
        %v7893 = vmul.f32 %v6215, %v7636
        %v7894 = vmul.f32 %v6217, %v7637
        %v7895 = vmul.f32 %v6219, %v7638
        %v7896 = vmul.f32 %v6221, %v7639
        %v7897 = vmul.f32 %v6223, %v7640
        %v7898 = vmul.f32 %v6225, %v7641
        %v7899 = vmul.f32 %v6227, %v7642
        %v7900 = vmul.f32 %v6229, %v7643
        %v7901 = vmul.f32 %v6231, %v7644
        %v7902 = vmul.f32 %v6233, %v7645
        %v7903 = vmul.f32 %v6235, %v7646
        %v7904 = vmul.f32 %v6237, %v7647
        %v7905 = vmul.f32 %v6239, %v7648
        %v7906 = vmul.f32 %v6241, %v7649
        %v7907 = vmul.f32 %v6243, %v7650
        %v7908 = vmul.f32 %v6245, %v7651
        %v7909 = vmul.f32 %v6247, %v7652
        %v7910 = vmul.f32 %v6249, %v7653
        %v7911 = vmul.f32 %v6251, %v7654
        %v7912 = vmul.f32 %v6253, %v7655
        %v7913 = vmul.f32 %v6255, %v7656
        %v7914 = vmul.f32 %v6257, %v7657
        %v7915 = vmul.f32 %v6259, %v7658
        %v7916 = vmul.f32 %v6261, %v7659
        %v7917 = vmul.f32 %v6263, %v7660
        %v7918 = vmul.f32 %v6265, %v7661
        %v7919 = vmul.f32 %v6267, %v7662
        %v7920 = vmul.f32 %v6269, %v7663
        %v7921 = vmul.f32 %v6271, %v7664
        %v7922 = vmul.f32 %v6273, %v7665
        %v7923 = vmul.f32 %v6275, %v7666
        %v7924 = vmul.f32 %v6277, %v7667
        %v7925 = vmul.f32 %v6279, %v7668
        %v7926 = vmul.f32 %v6281, %v7669
        %v7927 = vmul.f32 %v6283, %v7670
        %v7928 = vmul.f32 %v6285, %v7671
        %v7929 = vmul.f32 %v6287, %v7672
        %v7930 = vmul.f32 %v6289, %v7673
        %v7931 = vmul.f32 %v6291, %v7674
        %v7932 = vmul.f32 %v6293, %v7675
        %v7933 = vmul.f32 %v6295, %v7676
        %v7934 = vmul.f32 %v6297, %v7677
        %v7935 = vmul.f32 %v6299, %v7678
        %v7936 = vmul.f32 %v6301, %v7679
        %v7937 = vmul.f32 %v6303, %v7680
        %v7938 = vmul.f32 %v6305, %v7681
        %v7939 = vmul.f32 %v6307, %v7682
        %v7940 = vmul.f32 %v6309, %v7683
        %v7941 = vmul.f32 %v6311, %v7684
        %v7942 = vmul.f32 %v6313, %v7685
        %v7943 = vmul.f32 %v6315, %v7686
        %v7944 = vmul.f32 %v6317, %v7687
        %v7945 = vmul.f32 %v6319, %v7688
        %v7946 = vmul.f32 %v6321, %v7689
        %v7947 = vmul.f32 %v6323, %v7690
        %v7948 = vmul.f32 %v6325, %v7691
        %v7949 = vmul.f32 %v6327, %v7692
        %v7950 = vmul.f32 %v6329, %v7693
        %v7951 = vmul.f32 %v6331, %v7694
        %v7952 = vmul.f32 %v6333, %v7695
        %v7953 = vmul.f32 %v6335, %v7696
        %v7954 = vmul.f32 %v6337, %v7697
        %v7955 = vmul.f32 %v6339, %v7698
        %v7956 = vmul.f32 %v6341, %v7699
        %v7957 = vmul.f32 %v6343, %v7700
        %v7958 = vmul.f32 %v6345, %v7701
        %v7959 = vmul.f32 %v6347, %v7702
        %v7960 = vmul.f32 %v6349, %v7703
        %v7961 = vmul.f32 %v6351, %v7704
        %v7962 = vmul.f32 %v6353, %v7705
        %v7963 = vmul.f32 %v6355, %v7706
        %v7964 = vmul.f32 %v6357, %v7707
        %v7965 = vmul.f32 %v6359, %v7708
        %v7966 = vmul.f32 %v6361, %v7709
        %v7967 = vmul.f32 %v6363, %v7710
        %v7968 = vmul.f32 %v6365, %v7711
        %v7969 = vmul.f32 %v6367, %v7712
        %v7970 = vmul.f32 %v6369, %v7713
        %v7971 = vmul.f32 %v6371, %v7714
        %v7972 = vmul.f32 %v6373, %v7715
        %v7973 = vmul.f32 %v6375, %v7716
        %v7974 = vmul.f32 %v6377, %v7717
        %v7975 = vmul.f32 %v6379, %v7718
        %v7976 = vmul.f32 %v6381, %v7719
        %v7977 = vmul.f32 %v6383, %v7720
        %v7978 = vmul.f32 %v6385, %v7721
        %v7979 = vmul.f32 %v6387, %v7722
        %v7980 = vmul.f32 %v6389, %v7723
        %v7981 = vmul.f32 %v6391, %v7724
        %v7982 = vmul.f32 %v6393, %v7725
        %v7983 = vmul.f32 %v6395, %v7726
        %v7984 = vmul.f32 %v6397, %v7727
        %v7985 = vmul.f32 %v6399, %v7728
        %v7986 = vmul.f32 %v6401, %v7729
        %v7987 = vmul.f32 %v6403, %v7730
        %v7988 = vmul.f32 %v6405, %v7731
        %v7989 = vmul.f32 %v6407, %v7732
        %v7990 = vmul.f32 %v6409, %v7733
        %v7991 = vmul.f32 %v6411, %v7734
        %v7992 = vmul.f32 %v6413, %v7735
        %v7993 = vmul.f32 %v6415, %v7736
        %v7994 = vmul.f32 %v6417, %v7737
        %v7995 = vmul.f32 %v6419, %v7738
        %v7996 = vmul.f32 %v6421, %v7739
        %v7997 = vmul.f32 %v6423, %v7740
        %v7998 = vmul.f32 %v6425, %v7741
        %v7999 = vmul.f32 %v6427, %v7742
        %v8000 = vmul.f32 %v6429, %v7743
        %v8001 = vmul.f32 %v6431, %v7744
        %v8002 = vmul.f32 %v6433, %v7745
        %v8003 = vmul.f32 %v6435, %v7746
        %v8004 = vmul.f32 %v6437, %v7747
        %v8005 = vmul.f32 %v6439, %v7748
        %v8006 = vmul.f32 %v6441, %v7749
        %v8007 = vmul.f32 %v6443, %v7750
        %v8008 = vmul.f32 %v6445, %v7751
        %v8009 = vmul.f32 %v6447, %v7752
        %v8010 = vmul.f32 %v6449, %v7753
        %v8011 = vmul.f32 %v6451, %v7754
        %v8012 = vmul.f32 %v6453, %v7755
        %v8013 = vmul.f32 %v6455, %v7756
        %v8014 = vmul.f32 %v6457, %v7757
        %v8015 = vmul.f32 %v6459, %v7758
        %v8016 = vmul.f32 %v6461, %v7759
        %v8017 = vmul.f32 %v6463, %v7760
        %v8018 = vmul.f32 %v6465, %v7761
        %v8019 = vmul.f32 %v6467, %v7762
        %v8020 = vmul.f32 %v6469, %v7763
        %v8021 = vmul.f32 %v6471, %v7764
        %v8022 = vmul.f32 %v6473, %v7765
        %v8023 = vmul.f32 %v6475, %v7766
        %v8024 = vmul.f32 %v6477, %v7767
        %v8025 = vmul.f32 %v6479, %v7768
        %v8026 = vmul.f32 %v6481, %v7769
        %v8027 = vmul.f32 %v6483, %v7770
        %v8028 = vmul.f32 %v6485, %v7771
        %v8029 = vmul.f32 %v6487, %v7772
        %v8030 = vmul.f32 %v6489, %v7773
        %v8031 = vsel %vm5205, %v7774, 0.0
        %v8032 = vsel %vm5205, %v7775, 0.0
        %v8033 = vadd.f32 %v8031, %v8032
        %v8034 = vsel %vm5205, %v7776, 0.0
        %v8035 = vadd.f32 %v8033, %v8034
        %v8036 = vsel %vm5205, %v7777, 0.0
        %v8037 = vadd.f32 %v8035, %v8036
        %v8038 = vsel %vm5205, %v7778, 0.0
        %v8039 = vadd.f32 %v8037, %v8038
        %v8040 = vsel %vm5205, %v7779, 0.0
        %v8041 = vadd.f32 %v8039, %v8040
        %v8042 = vsel %vm5205, %v7780, 0.0
        %v8043 = vadd.f32 %v8041, %v8042
        %v8044 = vsel %vm5205, %v7781, 0.0
        %v8045 = vadd.f32 %v8043, %v8044
        %v8046 = vsel %vm5205, %v7782, 0.0
        %v8047 = vadd.f32 %v8045, %v8046
        %v8048 = vsel %vm5205, %v7783, 0.0
        %v8049 = vadd.f32 %v8047, %v8048
        %v8050 = vsel %vm5205, %v7784, 0.0
        %v8051 = vadd.f32 %v8049, %v8050
        %v8052 = vsel %vm5205, %v7785, 0.0
        %v8053 = vadd.f32 %v8051, %v8052
        %v8054 = vsel %vm5205, %v7786, 0.0
        %v8055 = vadd.f32 %v8053, %v8054
        %v8056 = vsel %vm5205, %v7787, 0.0
        %v8057 = vadd.f32 %v8055, %v8056
        %v8058 = vsel %vm5205, %v7788, 0.0
        %v8059 = vadd.f32 %v8057, %v8058
        %v8060 = vsel %vm5205, %v7789, 0.0
        %v8061 = vadd.f32 %v8059, %v8060
        %v8062 = vsel %vm5205, %v7790, 0.0
        %v8063 = vadd.f32 %v8061, %v8062
        %v8064 = vsel %vm5205, %v7791, 0.0
        %v8065 = vadd.f32 %v8063, %v8064
        %v8066 = vsel %vm5205, %v7792, 0.0
        %v8067 = vadd.f32 %v8065, %v8066
        %v8068 = vsel %vm5205, %v7793, 0.0
        %v8069 = vadd.f32 %v8067, %v8068
        %v8070 = vsel %vm5205, %v7794, 0.0
        %v8071 = vadd.f32 %v8069, %v8070
        %v8072 = vsel %vm5205, %v7795, 0.0
        %v8073 = vadd.f32 %v8071, %v8072
        %v8074 = vsel %vm5205, %v7796, 0.0
        %v8075 = vadd.f32 %v8073, %v8074
        %v8076 = vsel %vm5205, %v7797, 0.0
        %v8077 = vadd.f32 %v8075, %v8076
        %v8078 = vsel %vm5205, %v7798, 0.0
        %v8079 = vadd.f32 %v8077, %v8078
        %v8080 = vsel %vm5205, %v7799, 0.0
        %v8081 = vadd.f32 %v8079, %v8080
        %v8082 = vsel %vm5205, %v7800, 0.0
        %v8083 = vadd.f32 %v8081, %v8082
        %v8084 = vsel %vm5205, %v7801, 0.0
        %v8085 = vadd.f32 %v8083, %v8084
        %v8086 = vsel %vm5205, %v7802, 0.0
        %v8087 = vadd.f32 %v8085, %v8086
        %v8088 = vsel %vm5205, %v7803, 0.0
        %v8089 = vadd.f32 %v8087, %v8088
        %v8090 = vsel %vm5205, %v7804, 0.0
        %v8091 = vadd.f32 %v8089, %v8090
        %v8092 = vsel %vm5205, %v7805, 0.0
        %v8093 = vadd.f32 %v8091, %v8092
        %v8094 = vsel %vm5205, %v7806, 0.0
        %v8095 = vadd.f32 %v8093, %v8094
        %v8096 = vsel %vm5205, %v7807, 0.0
        %v8097 = vadd.f32 %v8095, %v8096
        %v8098 = vsel %vm5205, %v7808, 0.0
        %v8099 = vadd.f32 %v8097, %v8098
        %v8100 = vsel %vm5205, %v7809, 0.0
        %v8101 = vadd.f32 %v8099, %v8100
        %v8102 = vsel %vm5205, %v7810, 0.0
        %v8103 = vadd.f32 %v8101, %v8102
        %v8104 = vsel %vm5205, %v7811, 0.0
        %v8105 = vadd.f32 %v8103, %v8104
        %v8106 = vsel %vm5205, %v7812, 0.0
        %v8107 = vadd.f32 %v8105, %v8106
        %v8108 = vsel %vm5205, %v7813, 0.0
        %v8109 = vadd.f32 %v8107, %v8108
        %v8110 = vsel %vm5205, %v7814, 0.0
        %v8111 = vadd.f32 %v8109, %v8110
        %v8112 = vsel %vm5205, %v7815, 0.0
        %v8113 = vadd.f32 %v8111, %v8112
        %v8114 = vsel %vm5205, %v7816, 0.0
        %v8115 = vadd.f32 %v8113, %v8114
        %v8116 = vsel %vm5205, %v7817, 0.0
        %v8117 = vadd.f32 %v8115, %v8116
        %v8118 = vsel %vm5205, %v7818, 0.0
        %v8119 = vadd.f32 %v8117, %v8118
        %v8120 = vsel %vm5205, %v7819, 0.0
        %v8121 = vadd.f32 %v8119, %v8120
        %v8122 = vsel %vm5205, %v7820, 0.0
        %v8123 = vadd.f32 %v8121, %v8122
        %v8124 = vsel %vm5205, %v7821, 0.0
        %v8125 = vadd.f32 %v8123, %v8124
        %v8126 = vsel %vm5205, %v7822, 0.0
        %v8127 = vadd.f32 %v8125, %v8126
        %v8128 = vsel %vm5205, %v7823, 0.0
        %v8129 = vadd.f32 %v8127, %v8128
        %v8130 = vsel %vm5205, %v7824, 0.0
        %v8131 = vadd.f32 %v8129, %v8130
        %v8132 = vsel %vm5205, %v7825, 0.0
        %v8133 = vadd.f32 %v8131, %v8132
        %v8134 = vsel %vm5205, %v7826, 0.0
        %v8135 = vadd.f32 %v8133, %v8134
        %v8136 = vsel %vm5205, %v7827, 0.0
        %v8137 = vadd.f32 %v8135, %v8136
        %v8138 = vsel %vm5205, %v7828, 0.0
        %v8139 = vadd.f32 %v8137, %v8138
        %v8140 = vsel %vm5205, %v7829, 0.0
        %v8141 = vadd.f32 %v8139, %v8140
        %v8142 = vsel %vm5205, %v7830, 0.0
        %v8143 = vadd.f32 %v8141, %v8142
        %v8144 = vsel %vm5205, %v7831, 0.0
        %v8145 = vadd.f32 %v8143, %v8144
        %v8146 = vsel %vm5205, %v7832, 0.0
        %v8147 = vadd.f32 %v8145, %v8146
        %v8148 = vsel %vm5205, %v7833, 0.0
        %v8149 = vadd.f32 %v8147, %v8148
        %v8150 = vsel %vm5205, %v7834, 0.0
        %v8151 = vadd.f32 %v8149, %v8150
        %v8152 = vsel %vm5205, %v7835, 0.0
        %v8153 = vadd.f32 %v8151, %v8152
        %v8154 = vsel %vm5205, %v7836, 0.0
        %v8155 = vadd.f32 %v8153, %v8154
        %v8156 = vsel %vm5205, %v7837, 0.0
        %v8157 = vadd.f32 %v8155, %v8156
        %v8158 = vsel %vm5205, %v7838, 0.0
        %v8159 = vadd.f32 %v8157, %v8158
        %v8160 = vsel %vm5205, %v7839, 0.0
        %v8161 = vadd.f32 %v8159, %v8160
        %v8162 = vsel %vm5205, %v7840, 0.0
        %v8163 = vadd.f32 %v8161, %v8162
        %v8164 = vsel %vm5205, %v7841, 0.0
        %v8165 = vadd.f32 %v8163, %v8164
        %v8166 = vsel %vm5205, %v7842, 0.0
        %v8167 = vadd.f32 %v8165, %v8166
        %v8168 = vsel %vm5205, %v7843, 0.0
        %v8169 = vadd.f32 %v8167, %v8168
        %v8170 = vsel %vm5205, %v7844, 0.0
        %v8171 = vadd.f32 %v8169, %v8170
        %v8172 = vsel %vm5205, %v7845, 0.0
        %v8173 = vadd.f32 %v8171, %v8172
        %v8174 = vsel %vm5205, %v7846, 0.0
        %v8175 = vadd.f32 %v8173, %v8174
        %v8176 = vsel %vm5205, %v7847, 0.0
        %v8177 = vadd.f32 %v8175, %v8176
        %v8178 = vsel %vm5205, %v7848, 0.0
        %v8179 = vadd.f32 %v8177, %v8178
        %v8180 = vsel %vm5205, %v7849, 0.0
        %v8181 = vadd.f32 %v8179, %v8180
        %v8182 = vsel %vm5205, %v7850, 0.0
        %v8183 = vadd.f32 %v8181, %v8182
        %v8184 = vsel %vm5205, %v7851, 0.0
        %v8185 = vadd.f32 %v8183, %v8184
        %v8186 = vsel %vm5205, %v7852, 0.0
        %v8187 = vadd.f32 %v8185, %v8186
        %v8188 = vsel %vm5205, %v7853, 0.0
        %v8189 = vadd.f32 %v8187, %v8188
        %v8190 = vsel %vm5205, %v7854, 0.0
        %v8191 = vadd.f32 %v8189, %v8190
        %v8192 = vsel %vm5205, %v7855, 0.0
        %v8193 = vadd.f32 %v8191, %v8192
        %v8194 = vsel %vm5205, %v7856, 0.0
        %v8195 = vadd.f32 %v8193, %v8194
        %v8196 = vsel %vm5205, %v7857, 0.0
        %v8197 = vadd.f32 %v8195, %v8196
        %v8198 = vsel %vm5205, %v7858, 0.0
        %v8199 = vadd.f32 %v8197, %v8198
        %v8200 = vsel %vm5205, %v7859, 0.0
        %v8201 = vadd.f32 %v8199, %v8200
        %v8202 = vsel %vm5205, %v7860, 0.0
        %v8203 = vadd.f32 %v8201, %v8202
        %v8204 = vsel %vm5205, %v7861, 0.0
        %v8205 = vadd.f32 %v8203, %v8204
        %v8206 = vsel %vm5205, %v7862, 0.0
        %v8207 = vadd.f32 %v8205, %v8206
        %v8208 = vsel %vm5205, %v7863, 0.0
        %v8209 = vadd.f32 %v8207, %v8208
        %v8210 = vsel %vm5205, %v7864, 0.0
        %v8211 = vadd.f32 %v8209, %v8210
        %v8212 = vsel %vm5205, %v7865, 0.0
        %v8213 = vadd.f32 %v8211, %v8212
        %v8214 = vsel %vm5205, %v7866, 0.0
        %v8215 = vadd.f32 %v8213, %v8214
        %v8216 = vsel %vm5205, %v7867, 0.0
        %v8217 = vadd.f32 %v8215, %v8216
        %v8218 = vsel %vm5205, %v7868, 0.0
        %v8219 = vadd.f32 %v8217, %v8218
        %v8220 = vsel %vm5205, %v7869, 0.0
        %v8221 = vadd.f32 %v8219, %v8220
        %v8222 = vsel %vm5205, %v7870, 0.0
        %v8223 = vadd.f32 %v8221, %v8222
        %v8224 = vsel %vm5205, %v7871, 0.0
        %v8225 = vadd.f32 %v8223, %v8224
        %v8226 = vsel %vm5205, %v7872, 0.0
        %v8227 = vadd.f32 %v8225, %v8226
        %v8228 = vsel %vm5205, %v7873, 0.0
        %v8229 = vadd.f32 %v8227, %v8228
        %v8230 = vsel %vm5205, %v7874, 0.0
        %v8231 = vadd.f32 %v8229, %v8230
        %v8232 = vsel %vm5205, %v7875, 0.0
        %v8233 = vadd.f32 %v8231, %v8232
        %v8234 = vsel %vm5205, %v7876, 0.0
        %v8235 = vadd.f32 %v8233, %v8234
        %v8236 = vsel %vm5205, %v7877, 0.0
        %v8237 = vadd.f32 %v8235, %v8236
        %v8238 = vsel %vm5205, %v7878, 0.0
        %v8239 = vadd.f32 %v8237, %v8238
        %v8240 = vsel %vm5205, %v7879, 0.0
        %v8241 = vadd.f32 %v8239, %v8240
        %v8242 = vsel %vm5205, %v7880, 0.0
        %v8243 = vadd.f32 %v8241, %v8242
        %v8244 = vsel %vm5205, %v7881, 0.0
        %v8245 = vadd.f32 %v8243, %v8244
        %v8246 = vsel %vm5205, %v7882, 0.0
        %v8247 = vadd.f32 %v8245, %v8246
        %v8248 = vsel %vm5205, %v7883, 0.0
        %v8249 = vadd.f32 %v8247, %v8248
        %v8250 = vsel %vm5205, %v7884, 0.0
        %v8251 = vadd.f32 %v8249, %v8250
        %v8252 = vsel %vm5205, %v7885, 0.0
        %v8253 = vadd.f32 %v8251, %v8252
        %v8254 = vsel %vm5205, %v7886, 0.0
        %v8255 = vadd.f32 %v8253, %v8254
        %v8256 = vsel %vm5205, %v7887, 0.0
        %v8257 = vadd.f32 %v8255, %v8256
        %v8258 = vsel %vm5205, %v7888, 0.0
        %v8259 = vadd.f32 %v8257, %v8258
        %v8260 = vsel %vm5205, %v7889, 0.0
        %v8261 = vadd.f32 %v8259, %v8260
        %v8262 = vsel %vm5205, %v7890, 0.0
        %v8263 = vadd.f32 %v8261, %v8262
        %v8264 = vsel %vm5205, %v7891, 0.0
        %v8265 = vadd.f32 %v8263, %v8264
        %v8266 = vsel %vm5205, %v7892, 0.0
        %v8267 = vadd.f32 %v8265, %v8266
        %v8268 = vsel %vm5205, %v7893, 0.0
        %v8269 = vadd.f32 %v8267, %v8268
        %v8270 = vsel %vm5205, %v7894, 0.0
        %v8271 = vadd.f32 %v8269, %v8270
        %v8272 = vsel %vm5205, %v7895, 0.0
        %v8273 = vadd.f32 %v8271, %v8272
        %v8274 = vsel %vm5205, %v7896, 0.0
        %v8275 = vadd.f32 %v8273, %v8274
        %v8276 = vsel %vm5205, %v7897, 0.0
        %v8277 = vadd.f32 %v8275, %v8276
        %v8278 = vsel %vm5205, %v7898, 0.0
        %v8279 = vadd.f32 %v8277, %v8278
        %v8280 = vsel %vm5205, %v7899, 0.0
        %v8281 = vadd.f32 %v8279, %v8280
        %v8282 = vsel %vm5205, %v7900, 0.0
        %v8283 = vadd.f32 %v8281, %v8282
        %v8284 = vsel %vm5205, %v7901, 0.0
        %v8285 = vadd.f32 %v8283, %v8284
        %v8286 = vsel %vm5205, %v7902, 0.0
        %v8287 = vadd.f32 %v8285, %v8286
        %v8288 = vsel %vm5205, %v7903, 0.0
        %v8289 = vadd.f32 %v8287, %v8288
        %v8290 = vsel %vm5205, %v7904, 0.0
        %v8291 = vadd.f32 %v8289, %v8290
        %v8292 = vsel %vm5205, %v7905, 0.0
        %v8293 = vadd.f32 %v8291, %v8292
        %v8294 = vsel %vm5205, %v7906, 0.0
        %v8295 = vadd.f32 %v8293, %v8294
        %v8296 = vsel %vm5205, %v7907, 0.0
        %v8297 = vadd.f32 %v8295, %v8296
        %v8298 = vsel %vm5205, %v7908, 0.0
        %v8299 = vadd.f32 %v8297, %v8298
        %v8300 = vsel %vm5205, %v7909, 0.0
        %v8301 = vadd.f32 %v8299, %v8300
        %v8302 = vsel %vm5205, %v7910, 0.0
        %v8303 = vadd.f32 %v8301, %v8302
        %v8304 = vsel %vm5205, %v7911, 0.0
        %v8305 = vadd.f32 %v8303, %v8304
        %v8306 = vsel %vm5205, %v7912, 0.0
        %v8307 = vadd.f32 %v8305, %v8306
        %v8308 = vsel %vm5205, %v7913, 0.0
        %v8309 = vadd.f32 %v8307, %v8308
        %v8310 = vsel %vm5205, %v7914, 0.0
        %v8311 = vadd.f32 %v8309, %v8310
        %v8312 = vsel %vm5205, %v7915, 0.0
        %v8313 = vadd.f32 %v8311, %v8312
        %v8314 = vsel %vm5205, %v7916, 0.0
        %v8315 = vadd.f32 %v8313, %v8314
        %v8316 = vsel %vm5205, %v7917, 0.0
        %v8317 = vadd.f32 %v8315, %v8316
        %v8318 = vsel %vm5205, %v7918, 0.0
        %v8319 = vadd.f32 %v8317, %v8318
        %v8320 = vsel %vm5205, %v7919, 0.0
        %v8321 = vadd.f32 %v8319, %v8320
        %v8322 = vsel %vm5205, %v7920, 0.0
        %v8323 = vadd.f32 %v8321, %v8322
        %v8324 = vsel %vm5205, %v7921, 0.0
        %v8325 = vadd.f32 %v8323, %v8324
        %v8326 = vsel %vm5205, %v7922, 0.0
        %v8327 = vadd.f32 %v8325, %v8326
        %v8328 = vsel %vm5205, %v7923, 0.0
        %v8329 = vadd.f32 %v8327, %v8328
        %v8330 = vsel %vm5205, %v7924, 0.0
        %v8331 = vadd.f32 %v8329, %v8330
        %v8332 = vsel %vm5205, %v7925, 0.0
        %v8333 = vadd.f32 %v8331, %v8332
        %v8334 = vsel %vm5205, %v7926, 0.0
        %v8335 = vadd.f32 %v8333, %v8334
        %v8336 = vsel %vm5205, %v7927, 0.0
        %v8337 = vadd.f32 %v8335, %v8336
        %v8338 = vsel %vm5205, %v7928, 0.0
        %v8339 = vadd.f32 %v8337, %v8338
        %v8340 = vsel %vm5205, %v7929, 0.0
        %v8341 = vadd.f32 %v8339, %v8340
        %v8342 = vsel %vm5205, %v7930, 0.0
        %v8343 = vadd.f32 %v8341, %v8342
        %v8344 = vsel %vm5205, %v7931, 0.0
        %v8345 = vadd.f32 %v8343, %v8344
        %v8346 = vsel %vm5205, %v7932, 0.0
        %v8347 = vadd.f32 %v8345, %v8346
        %v8348 = vsel %vm5205, %v7933, 0.0
        %v8349 = vadd.f32 %v8347, %v8348
        %v8350 = vsel %vm5205, %v7934, 0.0
        %v8351 = vadd.f32 %v8349, %v8350
        %v8352 = vsel %vm5205, %v7935, 0.0
        %v8353 = vadd.f32 %v8351, %v8352
        %v8354 = vsel %vm5205, %v7936, 0.0
        %v8355 = vadd.f32 %v8353, %v8354
        %v8356 = vsel %vm5205, %v7937, 0.0
        %v8357 = vadd.f32 %v8355, %v8356
        %v8358 = vsel %vm5205, %v7938, 0.0
        %v8359 = vadd.f32 %v8357, %v8358
        %v8360 = vsel %vm5205, %v7939, 0.0
        %v8361 = vadd.f32 %v8359, %v8360
        %v8362 = vsel %vm5205, %v7940, 0.0
        %v8363 = vadd.f32 %v8361, %v8362
        %v8364 = vsel %vm5205, %v7941, 0.0
        %v8365 = vadd.f32 %v8363, %v8364
        %v8366 = vsel %vm5205, %v7942, 0.0
        %v8367 = vadd.f32 %v8365, %v8366
        %v8368 = vsel %vm5205, %v7943, 0.0
        %v8369 = vadd.f32 %v8367, %v8368
        %v8370 = vsel %vm5205, %v7944, 0.0
        %v8371 = vadd.f32 %v8369, %v8370
        %v8372 = vsel %vm5205, %v7945, 0.0
        %v8373 = vadd.f32 %v8371, %v8372
        %v8374 = vsel %vm5205, %v7946, 0.0
        %v8375 = vadd.f32 %v8373, %v8374
        %v8376 = vsel %vm5205, %v7947, 0.0
        %v8377 = vadd.f32 %v8375, %v8376
        %v8378 = vsel %vm5205, %v7948, 0.0
        %v8379 = vadd.f32 %v8377, %v8378
        %v8380 = vsel %vm5205, %v7949, 0.0
        %v8381 = vadd.f32 %v8379, %v8380
        %v8382 = vsel %vm5205, %v7950, 0.0
        %v8383 = vadd.f32 %v8381, %v8382
        %v8384 = vsel %vm5205, %v7951, 0.0
        %v8385 = vadd.f32 %v8383, %v8384
        %v8386 = vsel %vm5205, %v7952, 0.0
        %v8387 = vadd.f32 %v8385, %v8386
        %v8388 = vsel %vm5205, %v7953, 0.0
        %v8389 = vadd.f32 %v8387, %v8388
        %v8390 = vsel %vm5205, %v7954, 0.0
        %v8391 = vadd.f32 %v8389, %v8390
        %v8392 = vsel %vm5205, %v7955, 0.0
        %v8393 = vadd.f32 %v8391, %v8392
        %v8394 = vsel %vm5205, %v7956, 0.0
        %v8395 = vadd.f32 %v8393, %v8394
        %v8396 = vsel %vm5205, %v7957, 0.0
        %v8397 = vadd.f32 %v8395, %v8396
        %v8398 = vsel %vm5205, %v7958, 0.0
        %v8399 = vadd.f32 %v8397, %v8398
        %v8400 = vsel %vm5205, %v7959, 0.0
        %v8401 = vadd.f32 %v8399, %v8400
        %v8402 = vsel %vm5205, %v7960, 0.0
        %v8403 = vadd.f32 %v8401, %v8402
        %v8404 = vsel %vm5205, %v7961, 0.0
        %v8405 = vadd.f32 %v8403, %v8404
        %v8406 = vsel %vm5205, %v7962, 0.0
        %v8407 = vadd.f32 %v8405, %v8406
        %v8408 = vsel %vm5205, %v7963, 0.0
        %v8409 = vadd.f32 %v8407, %v8408
        %v8410 = vsel %vm5205, %v7964, 0.0
        %v8411 = vadd.f32 %v8409, %v8410
        %v8412 = vsel %vm5205, %v7965, 0.0
        %v8413 = vadd.f32 %v8411, %v8412
        %v8414 = vsel %vm5205, %v7966, 0.0
        %v8415 = vadd.f32 %v8413, %v8414
        %v8416 = vsel %vm5205, %v7967, 0.0
        %v8417 = vadd.f32 %v8415, %v8416
        %v8418 = vsel %vm5205, %v7968, 0.0
        %v8419 = vadd.f32 %v8417, %v8418
        %v8420 = vsel %vm5205, %v7969, 0.0
        %v8421 = vadd.f32 %v8419, %v8420
        %v8422 = vsel %vm5205, %v7970, 0.0
        %v8423 = vadd.f32 %v8421, %v8422
        %v8424 = vsel %vm5205, %v7971, 0.0
        %v8425 = vadd.f32 %v8423, %v8424
        %v8426 = vsel %vm5205, %v7972, 0.0
        %v8427 = vadd.f32 %v8425, %v8426
        %v8428 = vsel %vm5205, %v7973, 0.0
        %v8429 = vadd.f32 %v8427, %v8428
        %v8430 = vsel %vm5205, %v7974, 0.0
        %v8431 = vadd.f32 %v8429, %v8430
        %v8432 = vsel %vm5205, %v7975, 0.0
        %v8433 = vadd.f32 %v8431, %v8432
        %v8434 = vsel %vm5205, %v7976, 0.0
        %v8435 = vadd.f32 %v8433, %v8434
        %v8436 = vsel %vm5205, %v7977, 0.0
        %v8437 = vadd.f32 %v8435, %v8436
        %v8438 = vsel %vm5205, %v7978, 0.0
        %v8439 = vadd.f32 %v8437, %v8438
        %v8440 = vsel %vm5205, %v7979, 0.0
        %v8441 = vadd.f32 %v8439, %v8440
        %v8442 = vsel %vm5205, %v7980, 0.0
        %v8443 = vadd.f32 %v8441, %v8442
        %v8444 = vsel %vm5205, %v7981, 0.0
        %v8445 = vadd.f32 %v8443, %v8444
        %v8446 = vsel %vm5205, %v7982, 0.0
        %v8447 = vadd.f32 %v8445, %v8446
        %v8448 = vsel %vm5205, %v7983, 0.0
        %v8449 = vadd.f32 %v8447, %v8448
        %v8450 = vsel %vm5205, %v7984, 0.0
        %v8451 = vadd.f32 %v8449, %v8450
        %v8452 = vsel %vm5205, %v7985, 0.0
        %v8453 = vadd.f32 %v8451, %v8452
        %v8454 = vsel %vm5205, %v7986, 0.0
        %v8455 = vadd.f32 %v8453, %v8454
        %v8456 = vsel %vm5205, %v7987, 0.0
        %v8457 = vadd.f32 %v8455, %v8456
        %v8458 = vsel %vm5205, %v7988, 0.0
        %v8459 = vadd.f32 %v8457, %v8458
        %v8460 = vsel %vm5205, %v7989, 0.0
        %v8461 = vadd.f32 %v8459, %v8460
        %v8462 = vsel %vm5205, %v7990, 0.0
        %v8463 = vadd.f32 %v8461, %v8462
        %v8464 = vsel %vm5205, %v7991, 0.0
        %v8465 = vadd.f32 %v8463, %v8464
        %v8466 = vsel %vm5205, %v7992, 0.0
        %v8467 = vadd.f32 %v8465, %v8466
        %v8468 = vsel %vm5205, %v7993, 0.0
        %v8469 = vadd.f32 %v8467, %v8468
        %v8470 = vsel %vm5205, %v7994, 0.0
        %v8471 = vadd.f32 %v8469, %v8470
        %v8472 = vsel %vm5205, %v7995, 0.0
        %v8473 = vadd.f32 %v8471, %v8472
        %v8474 = vsel %vm5205, %v7996, 0.0
        %v8475 = vadd.f32 %v8473, %v8474
        %v8476 = vsel %vm5205, %v7997, 0.0
        %v8477 = vadd.f32 %v8475, %v8476
        %v8478 = vsel %vm5205, %v7998, 0.0
        %v8479 = vadd.f32 %v8477, %v8478
        %v8480 = vsel %vm5205, %v7999, 0.0
        %v8481 = vadd.f32 %v8479, %v8480
        %v8482 = vsel %vm5205, %v8000, 0.0
        %v8483 = vadd.f32 %v8481, %v8482
        %v8484 = vsel %vm5205, %v8001, 0.0
        %v8485 = vadd.f32 %v8483, %v8484
        %v8486 = vsel %vm5205, %v8002, 0.0
        %v8487 = vadd.f32 %v8485, %v8486
        %v8488 = vsel %vm5205, %v8003, 0.0
        %v8489 = vadd.f32 %v8487, %v8488
        %v8490 = vsel %vm5205, %v8004, 0.0
        %v8491 = vadd.f32 %v8489, %v8490
        %v8492 = vsel %vm5205, %v8005, 0.0
        %v8493 = vadd.f32 %v8491, %v8492
        %v8494 = vsel %vm5205, %v8006, 0.0
        %v8495 = vadd.f32 %v8493, %v8494
        %v8496 = vsel %vm5205, %v8007, 0.0
        %v8497 = vadd.f32 %v8495, %v8496
        %v8498 = vsel %vm5205, %v8008, 0.0
        %v8499 = vadd.f32 %v8497, %v8498
        %v8500 = vsel %vm5205, %v8009, 0.0
        %v8501 = vadd.f32 %v8499, %v8500
        %v8502 = vsel %vm5205, %v8010, 0.0
        %v8503 = vadd.f32 %v8501, %v8502
        %v8504 = vsel %vm5205, %v8011, 0.0
        %v8505 = vadd.f32 %v8503, %v8504
        %v8506 = vsel %vm5205, %v8012, 0.0
        %v8507 = vadd.f32 %v8505, %v8506
        %v8508 = vsel %vm5205, %v8013, 0.0
        %v8509 = vadd.f32 %v8507, %v8508
        %v8510 = vsel %vm5205, %v8014, 0.0
        %v8511 = vadd.f32 %v8509, %v8510
        %v8512 = vsel %vm5205, %v8015, 0.0
        %v8513 = vadd.f32 %v8511, %v8512
        %v8514 = vsel %vm5205, %v8016, 0.0
        %v8515 = vadd.f32 %v8513, %v8514
        %v8516 = vsel %vm5205, %v8017, 0.0
        %v8517 = vadd.f32 %v8515, %v8516
        %v8518 = vsel %vm5205, %v8018, 0.0
        %v8519 = vadd.f32 %v8517, %v8518
        %v8520 = vsel %vm5205, %v8019, 0.0
        %v8521 = vadd.f32 %v8519, %v8520
        %v8522 = vsel %vm5205, %v8020, 0.0
        %v8523 = vadd.f32 %v8521, %v8522
        %v8524 = vsel %vm5205, %v8021, 0.0
        %v8525 = vadd.f32 %v8523, %v8524
        %v8526 = vsel %vm5205, %v8022, 0.0
        %v8527 = vadd.f32 %v8525, %v8526
        %v8528 = vsel %vm5205, %v8023, 0.0
        %v8529 = vadd.f32 %v8527, %v8528
        %v8530 = vsel %vm5205, %v8024, 0.0
        %v8531 = vadd.f32 %v8529, %v8530
        %v8532 = vsel %vm5205, %v8025, 0.0
        %v8533 = vadd.f32 %v8531, %v8532
        %v8534 = vsel %vm5205, %v8026, 0.0
        %v8535 = vadd.f32 %v8533, %v8534
        %v8536 = vsel %vm5205, %v8027, 0.0
        %v8537 = vadd.f32 %v8535, %v8536
        %v8538 = vsel %vm5205, %v8028, 0.0
        %v8539 = vadd.f32 %v8537, %v8538
        %v8540 = vsel %vm5205, %v8029, 0.0
        %v8541 = vadd.f32 %v8539, %v8540
        %v8542 = vsel %vm5205, %v8030, 0.0
        %v8543 = vadd.f32 %v8541, %v8542
        %v8544 = vrcp.pop %v7002
        %v8545 = vmul.f32 %v8543, %v8544
        %v8546 = vlog2.pop %v7002
        %v8547 = vmul.f32 %v8546, 0.6931472
        %v8548 = vsub.f32 %v8545, %v8547
        %v8549 = vsel %vm5205, %v8548, 0.0
        %8550 = vadd.xlane.f32.xlu0 %v8549
        %v8551 = vpop.xlane.xlu0 %8550
        %v8552 = vrot.slane %v8551, 4
        %v8553 = vadd.f32 %v8551, %v8552
        %v8554 = vrot.slane %v8553, 2
        %v8555 = vadd.f32 %v8553, %v8554
        %v8556 = vrot.slane %v8555, 1
        %v8557 = vadd.f32 %v8555, %v8556
        %s8558 = vtos %v8557
        %v8559 = vlaneseq
        %v8560 = vand.u32 %v8559, 127
        %vm8561 = vcmp.eq.s32.totalorder %v8560, 0
        %v8562 = vstv %s8558
        %v8563 = vsel %vm8561, %v8562, 0.0
        %p8564 = scmp.eq.s32.totalorder %s23, 0
        // Predicated region
        $region75: #{tpu_custom_call.1} parent=69 // pred_check
          %p8565 = pneg %p8564
        $region76: #{tpu_custom_call.1} parent=69 // pred_check_branch
          %8567 = sbr.rel (%p8565) target = $region78
        $region77: #{tpu_custom_call.1} parent=69 // pred_region
          %8568 = vst [vmem:[%s1328] sm:$0x1] %v8563
        $region78: #{tpu_custom_call.1} parent=69 // pred_fallthru
          _
        %p8569 = scmp.gt.s32.totalorder %s23, 0
        // Predicated region
        $region79: #{tpu_custom_call.1} parent=69 // pred_check
          %p8570 = pneg %p8569
        $region80: #{tpu_custom_call.1} parent=69 // pred_check_branch
          %8572 = sbr.rel (%p8570) target = $region82
        $region81: #{tpu_custom_call.1} parent=69 // pred_region
          %v8573 = vld [vmem:[%s1328] sm:$0x1]
          %v8574 = vadd.f32 %v8573, %v8563
          %8575 = vst [vmem:[%s1328] sm:$0x1] %v8574
        $region82: #{tpu_custom_call.1} parent=69 // pred_fallthru
          _
        %s8576 = sand.u32 %s148, 1
        %s8577 = scalar_lea.sflag [#allocation4], %s8576
        %s8578 = sand.u32 %s148, 1
        %s8579 = scalar_lea.vmem [#allocation3], %s8578
        // Predicated region
        $region83: #{tpu_custom_call.1} parent=69 // pred_check
          %p8580 = pneg %p158
        $region84: #{tpu_custom_call.1} parent=69 // pred_check_branch
          %8582 = sbr.rel (%p8580) target = $region86
        $region85: #{tpu_custom_call.1} parent=69 // pred_region
          %s8584 = ssub.s32 16, 16
          %8585 = vsyncadd %s8577, %s8584
          %s8586 = smul.addr %s22, 16
          %s8587 = scalar_lea.hbm %s4, %s8586
          %s8589 = sshll.u32 %s8579, 4
          %s8590 = int_to_ptr.vmem [resolvable:$true] %s8589
          %8592 = dma.vmem_to_hbm [thread:$0]  %s8590, 16, %s8587, %s8577
        $region86: #{tpu_custom_call.1} parent=69 // pred_fallthru
          _
      $region70: #{tpu_custom_call.1} parent=5 // pred_fallthru
        _
      %p8593 = scmp.le.s32.totalorder 2, %s13
      // Predicated region
      $region87: #{tpu_custom_call.1} parent=5 // pred_check
        %p8594 = pneg %p8593
      $region88: #{tpu_custom_call.1} parent=5 // pred_check_branch
        %8596 = sbr.rel (%p8594) target = $region90
      $region89: #{tpu_custom_call.1} parent=5 // pred_region
        %s8597 = ssub.s32 %s13, 2
        // Predicated region
        $region91: #{tpu_custom_call.1} parent=89 // pred_check
          %p8598 = pneg %p164
        $region92: #{tpu_custom_call.1} parent=89 // pred_check_branch
          %8600 = sbr.rel (%p8598) target = $region94
        $region93: #{tpu_custom_call.1} parent=89 // pred_region
          %s8601 = sand.u32 %s149, 1
          %s8602 = scalar_lea.sflag [#allocation4], %s8601
          %s8603 = sand.u32 %s149, 1
          %s8604 = scalar_lea.vmem [#allocation3], %s8603
          %8605 = dma.done %s8602, 16
        $region94: #{tpu_custom_call.1} parent=89 // pred_fallthru
          _
      $region90: #{tpu_custom_call.1} parent=5 // pred_fallthru
        _
    $region6: #{tpu_custom_call.1} parent=1 // loop_footer
      %s17 = sadd.s32 1, %s13
    $region7: #{tpu_custom_call.1} parent=1 // loop_footer_branch
      %12 = sbr.rel target = $region3
    $region8: #{tpu_custom_call.1} parent=1 // loop_exit
      _
    %8606 = vsyncpa [#allocation4], 1
    %s8607 = scalar_lea.sflag [#allocation4], 1
    %8608 = vsyncpa %s8607, 1

</llo_original>
